<compile_context>
chip_gen: v6e
topology: v6e:2x2x1
jax: 0.10.0
libtpu: 0.0.40
codegen_flags: <defaults>
</compile_context>

<pallas_src>
import jax
import jax.numpy as jnp
from jax.experimental import pallas as pl
from jax.experimental.pallas import tpu as pltpu


def _fflayer_kernel(x_ref, w_ref, scale_ref, b_ref, o_ref):
    """Fused Linear + bias + tanh on one lane-dense output-column tile.

    w_ref is one HBM-contiguous [1, K, tn] weight slab (int8 or bf16). The int8->bf16
    cast is VPU work (pure slack: kernel is weight-streaming bound), the MXU does the
    full-K reduction in a single pass with f32 accumulation, and the per-column scale /
    bias / tanh epilogue touches only the [B, tn] result.
    """
    w_bf = w_ref[0].astype(jnp.bfloat16)
    acc = jnp.dot(x_ref[...], w_bf, preferred_element_type=jnp.float32)
    o_ref[...] = jnp.tanh(acc * scale_ref[...] + b_ref[...]).astype(o_ref.dtype)


def prepare_params(w_t, bias, *, n_tiles=1, quantize=True):
    """One-time parameter prep (call OUTSIDE jit, once per model load).

    w_t:  [K, N] f32 (transposed PyTorch Linear weight), bias: [N] f32.
    Returns (w_packed [n_tiles, K, N//n_tiles], scale [1, N] f32, bias [1, N] f32).
    """
    K, N = w_t.shape
    assert N % n_tiles == 0 and (N // n_tiles) % 128 == 0
    tn = N // n_tiles

    bias2d = bias.reshape(1, N).astype(jnp.float32)
    if quantize:
        amax = jnp.max(jnp.abs(w_t), axis=0, keepdims=True)       # [1, N]
        scale = (amax / 127.0).astype(jnp.float32)
        w_q = jnp.round(w_t / scale).astype(jnp.int8)              # [K, N]
    else:
        scale = jnp.ones((1, N), jnp.float32)
        w_q = w_t.astype(jnp.bfloat16)

    # [K, N] -> [n_tiles, K, tn]: each output-column tile becomes an HBM-contiguous slab.
    w_packed = jnp.transpose(w_q.reshape(K, n_tiles, tn), (1, 0, 2))
    return w_packed, scale, bias2d


@jax.jit
def image_embedding_forward(feats, w_packed, scale, bias2d):
    """feats: [B, K] f32 pre-extracted features; params from prepare_params."""
    B, K = feats.shape
    n_tiles, K2, tn = w_packed.shape
    assert K == K2
    N = n_tiles * tn

    # Activations are tiny (B*K*2 bytes); casting here is negligible. The weight is
    # deliberately NOT converted here — it is streamed exactly as stored.
    x_bf = feats.astype(jnp.bfloat16)

    w_bytes = w_packed.size * w_packed.dtype.itemsize
    cost = pl.CostEstimate(
        flops=2 * B * K * N,
        transcendentals=B * N,
        bytes_accessed=B * K * 2        # activations, fetched once (resident)
        + w_bytes                       # streamed weight (int8 or bf16)
        + N * 4 + N * 4                 # scale + bias
        + B * N * 4,                    # f32 output
    )

    return pl.pallas_call(
        _fflayer_kernel,
        out_shape=jax.ShapeDtypeStruct((B, N), jnp.float32),
        grid_spec=pltpu.PrefetchScalarGridSpec(
            num_scalar_prefetch=0,
            grid=(n_tiles,),
            in_specs=[
                pl.BlockSpec((B, K), lambda j: (0, 0)),         # activations (resident)
                pl.BlockSpec((1, K, tn), lambda j: (j, 0, 0)),  # contiguous weight slab
                pl.BlockSpec((1, tn), lambda j: (0, j)),        # per-column dequant scale
                pl.BlockSpec((1, tn), lambda j: (0, j)),        # bias
            ],
            out_specs=pl.BlockSpec((B, tn), lambda j: (0, j)),
        ),
        compiler_params=pltpu.CompilerParams(
            # TODO(synk): on v7x verify the N-tile axis shards across both TensorCores;
            # if one core idles, switch to pltpu.CORE_PARALLEL / pl.core_map.
            dimension_semantics=("parallel",),
            vmem_limit_bytes=32 * 1024 * 1024,  # <= ~8.1 MiB used; safe on v5e/v6e/v7x
        ),
        cost_estimate=cost,
    )(x_bf, w_packed, scale, bias2d)


def init_params(key, in_features=4096, out_features=1024):
    """Deterministic init mirroring torch.nn.Linear default (uniform +/- 1/sqrt(in))."""
    kw, kb = jax.random.split(key)
    bound = 1.0 / jnp.sqrt(jnp.float32(in_features))
    # PyTorch stores weight as [out, in]; we keep the transposed [in, out] layout.
    w_t = jax.random.uniform(kw, (in_features, out_features), jnp.float32, -bound, bound)
    b = jax.random.uniform(kb, (out_features,), jnp.float32, -bound, bound)
    return w_t, b


if __name__ == "__main__":
    B, K, N = 2, 4096, 1024  # Linear(4096, output_size=1024) as in the module.

    key = jax.random.PRNGKey(0)
    k_x, k_p = jax.random.split(key)
    # `image` in extract_features=True mode: pre-extracted VGG16 fc7 features [B, 4096].
    feats = jax.random.normal(k_x, (B, K), jnp.float32)
    w_t, bias = init_params(k_p, K, N)

    # Full-f32 PyTorch-equivalent forward (loose semantic reference).
    ref_f32 = jnp.tanh(feats @ w_t + bias[None, :])

    # n_tiles=1: single contiguous weight stream (v5e/v6e, single TensorCore).
    # n_tiles=2: two contiguous 512-wide slabs (v7x, one per TensorCore).
    for n_tiles in (1, 2):
        w_packed, scale, bias2d = prepare_params(w_t, bias, n_tiles=n_tiles, quantize=True)
        out = jax.block_until_ready(image_embedding_forward(feats, w_packed, scale, bias2d))
        assert out.shape == (B, N)

        # Tight check: emulate exactly what the kernel computes (int8 dequant column
        # scaling, bf16 activations/weights on the MXU, f32 accumulation, f32 epilogue).
        w_deq = jnp.transpose(w_packed, (1, 0, 2)).reshape(K, N).astype(jnp.bfloat16)
        ref_exact = jnp.tanh(
            jnp.dot(feats.astype(jnp.bfloat16), w_deq, preferred_element_type=jnp.float32)
            * scale
            + bias2d
        )
        assert jnp.allclose(out, ref_exact, atol=1e-3, rtol=1e-3), (
            f"mismatch vs exact-emulation reference (n_tiles={n_tiles})"
        )

        # Loose check: module semantics (bf16 activations + int8 weights vs f32 torch).
        assert jnp.allclose(out, ref_f32, atol=4e-2, rtol=4e-2), (
            f"mismatch vs f32 reference (n_tiles={n_tiles})"
        )

    print("KERNEL_OK")
</pallas_src>

<mosaic_0001>
module attributes {stable_mosaic.version = 11 : i64} {
  func.func @_fflayer_kernel(%arg0: i32, %arg1: memref<2x4096xbf16, #tpu.memory_space<vmem>>, %arg2: memref<1x4096x1024xi8, #tpu.memory_space<vmem>>, %arg3: memref<1x1024xf32, #tpu.memory_space<vmem>>, %arg4: memref<1x1024xf32, #tpu.memory_space<vmem>>, %arg5: memref<2x1024xf32, #tpu.memory_space<vmem>>) attributes {dimension_semantics = [#tpu.dimension_semantics<parallel>], iteration_bounds = array<i64: 1>, scalar_prefetch = 0 : i64, scratch_operands = 0 : i64, tpu.core_type = #tpu.core_type<tc>, window_params = [{pipeline_mode = #tpu.pipeline_mode<synchronous>, transform_indices = @transform_0, window_bounds = array<i64: 2, 4096>}, {transform_indices = @transform_1, window_bounds = array<i64: 1, 4096, 1024>}, {transform_indices = @transform_2, window_bounds = array<i64: 1, 1024>}, {transform_indices = @transform_3, window_bounds = array<i64: 1, 1024>}, {transform_indices = @transform_4, window_bounds = array<i64: 2, 1024>}]} {
    %c0 = arith.constant 0 : index
    %c0_0 = arith.constant 0 : index
    %c0_1 = arith.constant 0 : index
    %0 = vector.load %arg2[%c0, %c0_0, %c0_1] : memref<1x4096x1024xi8, #tpu.memory_space<vmem>>, vector<1x4096x1024xi8>
    %1 = vector.shape_cast %0 : vector<1x4096x1024xi8> to vector<4096x1024xi8>
    %2 = arith.sitofp %1 : vector<4096x1024xi8> to vector<4096x1024xbf16>
    %c0_2 = arith.constant 0 : index
    %c0_3 = arith.constant 0 : index
    %3 = vector.load %arg1[%c0_2, %c0_3] : memref<2x4096xbf16, #tpu.memory_space<vmem>>, vector<2x4096xbf16>
    %cst = arith.constant dense<0.000000e+00> : vector<2x1024xf32>
    %4 = tpu.matmul %3, %2, %cst {dimension_numbers = #tpu.dot_dimension_numbers<[1], [0], [0], [1], [0, 0, 1, 1], [], []>} : vector<2x4096xbf16>, vector<4096x1024xbf16>, vector<2x1024xf32> -> vector<2x1024xf32>
    %c0_4 = arith.constant 0 : index
    %c0_5 = arith.constant 0 : index
    %5 = vector.load %arg3[%c0_4, %c0_5] : memref<1x1024xf32, #tpu.memory_space<vmem>>, vector<1x1024xf32>
    %6 = vector.broadcast %5 : vector<1x1024xf32> to vector<2x1024xf32>
    %7 = arith.mulf %4, %6 : vector<2x1024xf32>
    %c0_6 = arith.constant 0 : index
    %c0_7 = arith.constant 0 : index
    %8 = vector.load %arg4[%c0_6, %c0_7] : memref<1x1024xf32, #tpu.memory_space<vmem>>, vector<1x1024xf32>
    %9 = vector.broadcast %8 : vector<1x1024xf32> to vector<2x1024xf32>
    %10 = arith.addf %7, %9 : vector<2x1024xf32>
    %11 = math.tanh %10 : vector<2x1024xf32>
    %c0_8 = arith.constant 0 : index
    %c0_9 = arith.constant 0 : index
    %12 = vector.load %arg5[%c0_8, %c0_9] : memref<2x1024xf32, #tpu.memory_space<vmem>>, vector<2x1024xf32>
    tpu.vector_store %arg5[%c0_8, %c0_9], %11 {strides = array<i32>} : memref<2x1024xf32, #tpu.memory_space<vmem>>, vector<2x1024xf32>,
    return
  }
  func.func @transform_0(%arg0: i32) -> (i32, i32) {
    %c0_i32 = arith.constant 0 : i32
    %c0_i32_0 = arith.constant 0 : i32
    %c0_i32_1 = arith.constant 0 : i32
    return %c0_i32, %c0_i32_0 : i32, i32
  }
  func.func @transform_1(%arg0: i32) -> (i32, i32, i32) {
    %c0_i32 = arith.constant 0 : i32
    %c0_i32_0 = arith.constant 0 : i32
    %c0_i32_1 = arith.constant 0 : i32
    return %arg0, %c0_i32, %c0_i32_0 : i32, i32, i32
  }
  func.func @transform_2(%arg0: i32) -> (i32, i32) {
    %c0_i32 = arith.constant 0 : i32
    %c0_i32_0 = arith.constant 0 : i32
    return %c0_i32, %arg0 : i32, i32
  }
  func.func @transform_3(%arg0: i32) -> (i32, i32) {
    %c0_i32 = arith.constant 0 : i32
    %c0_i32_0 = arith.constant 0 : i32
    return %c0_i32, %arg0 : i32, i32
  }
  func.func @transform_4(%arg0: i32) -> (i32, i32) {
    %c0_i32 = arith.constant 0 : i32
    %c0_i32_0 = arith.constant 0 : i32
    return %c0_i32, %arg0 : i32, i32
  }
}

</mosaic_0001>

<llo_original>
// kernel: image_embedding_forward.1
$region0: #{image_embedding_forward.1}
  #allocation0 [shape = 'u32[]', space=smem, size = 0x4, offset = 0x4, fixed_abs, tag = 'smem constant byte address 0x4 - core index']
  #allocation1 [shape = 'u32[144,128]{1,0:T(1,128)}', space=vmem, size = 0x12000, scoped, tag = 'internal scratch']
  %s0 = inlined_call_operand.vmem [shape: bf16[2,4096], index: 0, kind: input, shape index: {}]
  %s1 = inlined_call_operand.hbm [shape: s8[1,4096,1024], index: 1, kind: input, shape index: {}]
  %s2 = inlined_call_operand.hbm [shape: f32[1,1024], index: 2, kind: input, shape index: {}]
  %s3 = inlined_call_operand.hbm [shape: f32[1,1024], index: 3, kind: input, shape index: {}]
  %s4 = inlined_call_operand.hbm [shape: f32[2,1024], index: 4, kind: output, shape index: {}]
  %s5 = sld [smem:[#allocation0]]
  $region38: #{image_embedding_forward.1} parent=0
    _
  %s7 = ssub.s32 1, %s5
  %s8 = scalar_select 0, %s7, %s5
  $region1: #{image_embedding_forward.1} parent=0
    #allocation2 [shape = 'u8[4194304]{0}', space=vmem, size = 0x400000, scoped, tag = 'input window, operand 1, single buffered']
    #allocation3 [shape = 's32[1]{0}', space=sflag, size = 0x4, scoped, tag = 'scoped memory for image_embedding_forward.1']
    #allocation4 [shape = 's32[1]{0}', space=sflag, size = 0x4, scoped, tag = 'scoped memory for image_embedding_forward.1']
    #allocation5 [shape = 'u8[4096]{0}', space=vmem, size = 0x1000, scoped, tag = 'input window, operand 2, single buffered']
    #allocation6 [shape = 's32[1]{0}', space=sflag, size = 0x4, scoped, tag = 'scoped memory for image_embedding_forward.1']
    #allocation7 [shape = 'u8[4096]{0}', space=vmem, size = 0x1000, scoped, tag = 'input window, operand 3, single buffered']
    #allocation8 [shape = 'u8[8192]{0}', space=vmem, size = 0x2000, scoped, tag = 'output window, operand 0, single buffered']
    %9 = vsyncpa [#allocation3], 0
    %10 = vsyncpa [#allocation6], 0
    %11 = vsyncpa [#allocation4], 0
    // Predicated region
    $region2: #{image_embedding_forward.1} parent=1 // pred_check
      _
    $region3: #{image_embedding_forward.1} parent=1 // pred_check_branch
      %13 = sbr.rel (0) target = $region5
    $region4: #{image_embedding_forward.1} parent=1 // pred_region
      _
    $region5: #{image_embedding_forward.1} parent=1 // pred_fallthru
      _
    // Predicated region
    $region6: #{image_embedding_forward.1} parent=1 // pred_check
      _
    $region7: #{image_embedding_forward.1} parent=1 // pred_check_branch
      %15 = sbr.rel (0) target = $region9
    $region8: #{image_embedding_forward.1} parent=1 // pred_region
      %s17 = ssub.s32 131072, 131072
      %18 = vsyncadd [#allocation3], %s17
      %s19 = sshll.u32 [#allocation2], 4
      %s20 = int_to_ptr.vmem [resolvable:$true] %s19
      %25 = dma.hbm_to_vmem [thread:$0]  %s1, 131072, %s20, [#allocation3], 1024, 1024, 64
    $region9: #{image_embedding_forward.1} parent=1 // pred_fallthru
      _
    // Predicated region
    $region10: #{image_embedding_forward.1} parent=1 // pred_check
      _
    $region11: #{image_embedding_forward.1} parent=1 // pred_check_branch
      %27 = sbr.rel (0) target = $region13
    $region12: #{image_embedding_forward.1} parent=1 // pred_region
      %s29 = ssub.s32 128, 128
      %30 = vsyncadd [#allocation6], %s29
      %s32 = sshll.u32 [#allocation5], 4
      %s33 = int_to_ptr.vmem [resolvable:$true] %s32
      %35 = dma.hbm_to_vmem [thread:$0]  %s2, 128, %s33, [#allocation6]
    $region13: #{image_embedding_forward.1} parent=1 // pred_fallthru
      _
    // Predicated region
    $region14: #{image_embedding_forward.1} parent=1 // pred_check
      _
    $region15: #{image_embedding_forward.1} parent=1 // pred_check_branch
      %37 = sbr.rel (0) target = $region17
    $region16: #{image_embedding_forward.1} parent=1 // pred_region
      %s39 = ssub.s32 128, 128
      %40 = vsyncadd [#allocation6], %s39
      %s42 = sshll.u32 [#allocation7], 4
      %s43 = int_to_ptr.vmem [resolvable:$true] %s42
      %45 = dma.hbm_to_vmem [thread:$0]  %s3, 128, %s43, [#allocation6]
    $region17: #{image_embedding_forward.1} parent=1 // pred_fallthru
      _
    // Predicated region
    $region18: #{image_embedding_forward.1} parent=1 // pred_check
      _
    $region19: #{image_embedding_forward.1} parent=1 // pred_check_branch
      %47 = sbr.rel (0) target = $region21
    $region20: #{image_embedding_forward.1} parent=1 // pred_region
      %48 = dma.done [#allocation3], 131072
    $region21: #{image_embedding_forward.1} parent=1 // pred_fallthru
      _
    // Predicated region
    $region22: #{image_embedding_forward.1} parent=1 // pred_check
      _
    $region23: #{image_embedding_forward.1} parent=1 // pred_check_branch
      %50 = sbr.rel (0) target = $region25
    $region24: #{image_embedding_forward.1} parent=1 // pred_region
      %51 = dma.done [#allocation6], 128
    $region25: #{image_embedding_forward.1} parent=1 // pred_fallthru
      _
    // Predicated region
    $region26: #{image_embedding_forward.1} parent=1 // pred_check
      _
    $region27: #{image_embedding_forward.1} parent=1 // pred_check_branch
      %53 = sbr.rel (0) target = $region29
    $region28: #{image_embedding_forward.1} parent=1 // pred_region
      %54 = dma.done [#allocation6], 128
    $region29: #{image_embedding_forward.1} parent=1 // pred_fallthru
      _
    %v55 = vld [vmem:[#allocation2] sm:$0xff]
    %v56 = vld [vmem:[#allocation2 + $0x8] sm:$0xff]
    %v57 = vld [vmem:[#allocation2 + $0x10] sm:$0xff]
    %v58 = vld [vmem:[#allocation2 + $0x18] sm:$0xff]
    %v59 = vld [vmem:[#allocation2 + $0x20] sm:$0xff]
    %v60 = vld [vmem:[#allocation2 + $0x28] sm:$0xff]
    %v61 = vld [vmem:[#allocation2 + $0x30] sm:$0xff]
    %v62 = vld [vmem:[#allocation2 + $0x38] sm:$0xff]
    %v63 = vld [vmem:[#allocation2 + $0x40] sm:$0xff]
    %v64 = vld [vmem:[#allocation2 + $0x48] sm:$0xff]
    %v65 = vld [vmem:[#allocation2 + $0x50] sm:$0xff]
    %v66 = vld [vmem:[#allocation2 + $0x58] sm:$0xff]
    %v67 = vld [vmem:[#allocation2 + $0x60] sm:$0xff]
    %v68 = vld [vmem:[#allocation2 + $0x68] sm:$0xff]
    %v69 = vld [vmem:[#allocation2 + $0x70] sm:$0xff]
    %v70 = vld [vmem:[#allocation2 + $0x78] sm:$0xff]
    %v71 = vld [vmem:[#allocation2 + $0x80] sm:$0xff]
    %v72 = vld [vmem:[#allocation2 + $0x88] sm:$0xff]
    %v73 = vld [vmem:[#allocation2 + $0x90] sm:$0xff]
    %v74 = vld [vmem:[#allocation2 + $0x98] sm:$0xff]
    %v75 = vld [vmem:[#allocation2 + $0xa0] sm:$0xff]
    %v76 = vld [vmem:[#allocation2 + $0xa8] sm:$0xff]
    %v77 = vld [vmem:[#allocation2 + $0xb0] sm:$0xff]
    %v78 = vld [vmem:[#allocation2 + $0xb8] sm:$0xff]
    %v79 = vld [vmem:[#allocation2 + $0xc0] sm:$0xff]
    %v80 = vld [vmem:[#allocation2 + $0xc8] sm:$0xff]
    %v81 = vld [vmem:[#allocation2 + $0xd0] sm:$0xff]
    %v82 = vld [vmem:[#allocation2 + $0xd8] sm:$0xff]
    %v83 = vld [vmem:[#allocation2 + $0xe0] sm:$0xff]
    %v84 = vld [vmem:[#allocation2 + $0xe8] sm:$0xff]
    %v85 = vld [vmem:[#allocation2 + $0xf0] sm:$0xff]
    %v86 = vld [vmem:[#allocation2 + $0xf8] sm:$0xff]
    %v87 = vld [vmem:[#allocation2 + $0x100] sm:$0xff]
    %v88 = vld [vmem:[#allocation2 + $0x108] sm:$0xff]
    %v89 = vld [vmem:[#allocation2 + $0x110] sm:$0xff]
    %v90 = vld [vmem:[#allocation2 + $0x118] sm:$0xff]
    %v91 = vld [vmem:[#allocation2 + $0x120] sm:$0xff]
    %v92 = vld [vmem:[#allocation2 + $0x128] sm:$0xff]
    %v93 = vld [vmem:[#allocation2 + $0x130] sm:$0xff]
    %v94 = vld [vmem:[#allocation2 + $0x138] sm:$0xff]
    %v95 = vld [vmem:[#allocation2 + $0x140] sm:$0xff]
    %v96 = vld [vmem:[#allocation2 + $0x148] sm:$0xff]
    %v97 = vld [vmem:[#allocation2 + $0x150] sm:$0xff]
    %v98 = vld [vmem:[#allocation2 + $0x158] sm:$0xff]
    %v99 = vld [vmem:[#allocation2 + $0x160] sm:$0xff]
    %v100 = vld [vmem:[#allocation2 + $0x168] sm:$0xff]
    %v101 = vld [vmem:[#allocation2 + $0x170] sm:$0xff]
    %v102 = vld [vmem:[#allocation2 + $0x178] sm:$0xff]
    %v103 = vld [vmem:[#allocation2 + $0x180] sm:$0xff]
    %v104 = vld [vmem:[#allocation2 + $0x188] sm:$0xff]
    %v105 = vld [vmem:[#allocation2 + $0x190] sm:$0xff]
    %v106 = vld [vmem:[#allocation2 + $0x198] sm:$0xff]
    %v107 = vld [vmem:[#allocation2 + $0x1a0] sm:$0xff]
    %v108 = vld [vmem:[#allocation2 + $0x1a8] sm:$0xff]
    %v109 = vld [vmem:[#allocation2 + $0x1b0] sm:$0xff]
    %v110 = vld [vmem:[#allocation2 + $0x1b8] sm:$0xff]
    %v111 = vld [vmem:[#allocation2 + $0x1c0] sm:$0xff]
    %v112 = vld [vmem:[#allocation2 + $0x1c8] sm:$0xff]
    %v113 = vld [vmem:[#allocation2 + $0x1d0] sm:$0xff]
    %v114 = vld [vmem:[#allocation2 + $0x1d8] sm:$0xff]
    %v115 = vld [vmem:[#allocation2 + $0x1e0] sm:$0xff]
    %v116 = vld [vmem:[#allocation2 + $0x1e8] sm:$0xff]
    %v117 = vld [vmem:[#allocation2 + $0x1f0] sm:$0xff]
    %v118 = vld [vmem:[#allocation2 + $0x1f8] sm:$0xff]
    %v119 = vld [vmem:[#allocation2 + $0x200] sm:$0xff]
    %v120 = vld [vmem:[#allocation2 + $0x208] sm:$0xff]
    %v121 = vld [vmem:[#allocation2 + $0x210] sm:$0xff]
    %v122 = vld [vmem:[#allocation2 + $0x218] sm:$0xff]
    %v123 = vld [vmem:[#allocation2 + $0x220] sm:$0xff]
    %v124 = vld [vmem:[#allocation2 + $0x228] sm:$0xff]
    %v125 = vld [vmem:[#allocation2 + $0x230] sm:$0xff]
    %v126 = vld [vmem:[#allocation2 + $0x238] sm:$0xff]
    %v127 = vld [vmem:[#allocation2 + $0x240] sm:$0xff]
    %v128 = vld [vmem:[#allocation2 + $0x248] sm:$0xff]
    %v129 = vld [vmem:[#allocation2 + $0x250] sm:$0xff]
    %v130 = vld [vmem:[#allocation2 + $0x258] sm:$0xff]
    %v131 = vld [vmem:[#allocation2 + $0x260] sm:$0xff]
    %v132 = vld [vmem:[#allocation2 + $0x268] sm:$0xff]
    %v133 = vld [vmem:[#allocation2 + $0x270] sm:$0xff]
    %v134 = vld [vmem:[#allocation2 + $0x278] sm:$0xff]
    %v135 = vld [vmem:[#allocation2 + $0x280] sm:$0xff]
    %v136 = vld [vmem:[#allocation2 + $0x288] sm:$0xff]
    %v137 = vld [vmem:[#allocation2 + $0x290] sm:$0xff]
    %v138 = vld [vmem:[#allocation2 + $0x298] sm:$0xff]
    %v139 = vld [vmem:[#allocation2 + $0x2a0] sm:$0xff]
    %v140 = vld [vmem:[#allocation2 + $0x2a8] sm:$0xff]
    %v141 = vld [vmem:[#allocation2 + $0x2b0] sm:$0xff]
    %v142 = vld [vmem:[#allocation2 + $0x2b8] sm:$0xff]
    %v143 = vld [vmem:[#allocation2 + $0x2c0] sm:$0xff]
    %v144 = vld [vmem:[#allocation2 + $0x2c8] sm:$0xff]
    %v145 = vld [vmem:[#allocation2 + $0x2d0] sm:$0xff]
    %v146 = vld [vmem:[#allocation2 + $0x2d8] sm:$0xff]
    %v147 = vld [vmem:[#allocation2 + $0x2e0] sm:$0xff]
    %v148 = vld [vmem:[#allocation2 + $0x2e8] sm:$0xff]
    %v149 = vld [vmem:[#allocation2 + $0x2f0] sm:$0xff]
    %v150 = vld [vmem:[#allocation2 + $0x2f8] sm:$0xff]
    %v151 = vld [vmem:[#allocation2 + $0x300] sm:$0xff]
    %v152 = vld [vmem:[#allocation2 + $0x308] sm:$0xff]
    %v153 = vld [vmem:[#allocation2 + $0x310] sm:$0xff]
    %v154 = vld [vmem:[#allocation2 + $0x318] sm:$0xff]
    %v155 = vld [vmem:[#allocation2 + $0x320] sm:$0xff]
    %v156 = vld [vmem:[#allocation2 + $0x328] sm:$0xff]
    %v157 = vld [vmem:[#allocation2 + $0x330] sm:$0xff]
    %v158 = vld [vmem:[#allocation2 + $0x338] sm:$0xff]
    %v159 = vld [vmem:[#allocation2 + $0x340] sm:$0xff]
    %v160 = vld [vmem:[#allocation2 + $0x348] sm:$0xff]
    %v161 = vld [vmem:[#allocation2 + $0x350] sm:$0xff]
    %v162 = vld [vmem:[#allocation2 + $0x358] sm:$0xff]
    %v163 = vld [vmem:[#allocation2 + $0x360] sm:$0xff]
    %v164 = vld [vmem:[#allocation2 + $0x368] sm:$0xff]
    %v165 = vld [vmem:[#allocation2 + $0x370] sm:$0xff]
    %v166 = vld [vmem:[#allocation2 + $0x378] sm:$0xff]
    %v167 = vld [vmem:[#allocation2 + $0x380] sm:$0xff]
    %v168 = vld [vmem:[#allocation2 + $0x388] sm:$0xff]
    %v169 = vld [vmem:[#allocation2 + $0x390] sm:$0xff]
    %v170 = vld [vmem:[#allocation2 + $0x398] sm:$0xff]
    %v171 = vld [vmem:[#allocation2 + $0x3a0] sm:$0xff]
    %v172 = vld [vmem:[#allocation2 + $0x3a8] sm:$0xff]
    %v173 = vld [vmem:[#allocation2 + $0x3b0] sm:$0xff]
    %v174 = vld [vmem:[#allocation2 + $0x3b8] sm:$0xff]
    %v175 = vld [vmem:[#allocation2 + $0x3c0] sm:$0xff]
    %v176 = vld [vmem:[#allocation2 + $0x3c8] sm:$0xff]
    %v177 = vld [vmem:[#allocation2 + $0x3d0] sm:$0xff]
    %v178 = vld [vmem:[#allocation2 + $0x3d8] sm:$0xff]
    %v179 = vld [vmem:[#allocation2 + $0x3e0] sm:$0xff]
    %v180 = vld [vmem:[#allocation2 + $0x3e8] sm:$0xff]
    %v181 = vld [vmem:[#allocation2 + $0x3f0] sm:$0xff]
    %v182 = vld [vmem:[#allocation2 + $0x3f8] sm:$0xff]
    %v183 = vld [vmem:[#allocation2 + $0x400] sm:$0xff]
    %v184 = vld [vmem:[#allocation2 + $0x408] sm:$0xff]
    %v185 = vld [vmem:[#allocation2 + $0x410] sm:$0xff]
    %v186 = vld [vmem:[#allocation2 + $0x418] sm:$0xff]
    %v187 = vld [vmem:[#allocation2 + $0x420] sm:$0xff]
    %v188 = vld [vmem:[#allocation2 + $0x428] sm:$0xff]
    %v189 = vld [vmem:[#allocation2 + $0x430] sm:$0xff]
    %v190 = vld [vmem:[#allocation2 + $0x438] sm:$0xff]
    %v191 = vld [vmem:[#allocation2 + $0x440] sm:$0xff]
    %v192 = vld [vmem:[#allocation2 + $0x448] sm:$0xff]
    %v193 = vld [vmem:[#allocation2 + $0x450] sm:$0xff]
    %v194 = vld [vmem:[#allocation2 + $0x458] sm:$0xff]
    %v195 = vld [vmem:[#allocation2 + $0x460] sm:$0xff]
    %v196 = vld [vmem:[#allocation2 + $0x468] sm:$0xff]
    %v197 = vld [vmem:[#allocation2 + $0x470] sm:$0xff]
    %v198 = vld [vmem:[#allocation2 + $0x478] sm:$0xff]
    %v199 = vld [vmem:[#allocation2 + $0x480] sm:$0xff]
    %v200 = vld [vmem:[#allocation2 + $0x488] sm:$0xff]
    %v201 = vld [vmem:[#allocation2 + $0x490] sm:$0xff]
    %v202 = vld [vmem:[#allocation2 + $0x498] sm:$0xff]
    %v203 = vld [vmem:[#allocation2 + $0x4a0] sm:$0xff]
    %v204 = vld [vmem:[#allocation2 + $0x4a8] sm:$0xff]
    %v205 = vld [vmem:[#allocation2 + $0x4b0] sm:$0xff]
    %v206 = vld [vmem:[#allocation2 + $0x4b8] sm:$0xff]
    %v207 = vld [vmem:[#allocation2 + $0x4c0] sm:$0xff]
    %v208 = vld [vmem:[#allocation2 + $0x4c8] sm:$0xff]
    %v209 = vld [vmem:[#allocation2 + $0x4d0] sm:$0xff]
    %v210 = vld [vmem:[#allocation2 + $0x4d8] sm:$0xff]
    %v211 = vld [vmem:[#allocation2 + $0x4e0] sm:$0xff]
    %v212 = vld [vmem:[#allocation2 + $0x4e8] sm:$0xff]
    %v213 = vld [vmem:[#allocation2 + $0x4f0] sm:$0xff]
    %v214 = vld [vmem:[#allocation2 + $0x4f8] sm:$0xff]
    %v215 = vld [vmem:[#allocation2 + $0x500] sm:$0xff]
    %v216 = vld [vmem:[#allocation2 + $0x508] sm:$0xff]
    %v217 = vld [vmem:[#allocation2 + $0x510] sm:$0xff]
    %v218 = vld [vmem:[#allocation2 + $0x518] sm:$0xff]
    %v219 = vld [vmem:[#allocation2 + $0x520] sm:$0xff]
    %v220 = vld [vmem:[#allocation2 + $0x528] sm:$0xff]
    %v221 = vld [vmem:[#allocation2 + $0x530] sm:$0xff]
    %v222 = vld [vmem:[#allocation2 + $0x538] sm:$0xff]
    %v223 = vld [vmem:[#allocation2 + $0x540] sm:$0xff]
    %v224 = vld [vmem:[#allocation2 + $0x548] sm:$0xff]
    %v225 = vld [vmem:[#allocation2 + $0x550] sm:$0xff]
    %v226 = vld [vmem:[#allocation2 + $0x558] sm:$0xff]
    %v227 = vld [vmem:[#allocation2 + $0x560] sm:$0xff]
    %v228 = vld [vmem:[#allocation2 + $0x568] sm:$0xff]
    %v229 = vld [vmem:[#allocation2 + $0x570] sm:$0xff]
    %v230 = vld [vmem:[#allocation2 + $0x578] sm:$0xff]
    %v231 = vld [vmem:[#allocation2 + $0x580] sm:$0xff]
    %v232 = vld [vmem:[#allocation2 + $0x588] sm:$0xff]
    %v233 = vld [vmem:[#allocation2 + $0x590] sm:$0xff]
    %v234 = vld [vmem:[#allocation2 + $0x598] sm:$0xff]
    %v235 = vld [vmem:[#allocation2 + $0x5a0] sm:$0xff]
    %v236 = vld [vmem:[#allocation2 + $0x5a8] sm:$0xff]
    %v237 = vld [vmem:[#allocation2 + $0x5b0] sm:$0xff]
    %v238 = vld [vmem:[#allocation2 + $0x5b8] sm:$0xff]
    %v239 = vld [vmem:[#allocation2 + $0x5c0] sm:$0xff]
    %v240 = vld [vmem:[#allocation2 + $0x5c8] sm:$0xff]
    %v241 = vld [vmem:[#allocation2 + $0x5d0] sm:$0xff]
    %v242 = vld [vmem:[#allocation2 + $0x5d8] sm:$0xff]
    %v243 = vld [vmem:[#allocation2 + $0x5e0] sm:$0xff]
    %v244 = vld [vmem:[#allocation2 + $0x5e8] sm:$0xff]
    %v245 = vld [vmem:[#allocation2 + $0x5f0] sm:$0xff]
    %v246 = vld [vmem:[#allocation2 + $0x5f8] sm:$0xff]
    %v247 = vld [vmem:[#allocation2 + $0x600] sm:$0xff]
    %v248 = vld [vmem:[#allocation2 + $0x608] sm:$0xff]
    %v249 = vld [vmem:[#allocation2 + $0x610] sm:$0xff]
    %v250 = vld [vmem:[#allocation2 + $0x618] sm:$0xff]
    %v251 = vld [vmem:[#allocation2 + $0x620] sm:$0xff]
    %v252 = vld [vmem:[#allocation2 + $0x628] sm:$0xff]
    %v253 = vld [vmem:[#allocation2 + $0x630] sm:$0xff]
    %v254 = vld [vmem:[#allocation2 + $0x638] sm:$0xff]
    %v255 = vld [vmem:[#allocation2 + $0x640] sm:$0xff]
    %v256 = vld [vmem:[#allocation2 + $0x648] sm:$0xff]
    %v257 = vld [vmem:[#allocation2 + $0x650] sm:$0xff]
    %v258 = vld [vmem:[#allocation2 + $0x658] sm:$0xff]
    %v259 = vld [vmem:[#allocation2 + $0x660] sm:$0xff]
    %v260 = vld [vmem:[#allocation2 + $0x668] sm:$0xff]
    %v261 = vld [vmem:[#allocation2 + $0x670] sm:$0xff]
    %v262 = vld [vmem:[#allocation2 + $0x678] sm:$0xff]
    %v263 = vld [vmem:[#allocation2 + $0x680] sm:$0xff]
    %v264 = vld [vmem:[#allocation2 + $0x688] sm:$0xff]
    %v265 = vld [vmem:[#allocation2 + $0x690] sm:$0xff]
    %v266 = vld [vmem:[#allocation2 + $0x698] sm:$0xff]
    %v267 = vld [vmem:[#allocation2 + $0x6a0] sm:$0xff]
    %v268 = vld [vmem:[#allocation2 + $0x6a8] sm:$0xff]
    %v269 = vld [vmem:[#allocation2 + $0x6b0] sm:$0xff]
    %v270 = vld [vmem:[#allocation2 + $0x6b8] sm:$0xff]
    %v271 = vld [vmem:[#allocation2 + $0x6c0] sm:$0xff]
    %v272 = vld [vmem:[#allocation2 + $0x6c8] sm:$0xff]
    %v273 = vld [vmem:[#allocation2 + $0x6d0] sm:$0xff]
    %v274 = vld [vmem:[#allocation2 + $0x6d8] sm:$0xff]
    %v275 = vld [vmem:[#allocation2 + $0x6e0] sm:$0xff]
    %v276 = vld [vmem:[#allocation2 + $0x6e8] sm:$0xff]
    %v277 = vld [vmem:[#allocation2 + $0x6f0] sm:$0xff]
    %v278 = vld [vmem:[#allocation2 + $0x6f8] sm:$0xff]
    %v279 = vld [vmem:[#allocation2 + $0x700] sm:$0xff]
    %v280 = vld [vmem:[#allocation2 + $0x708] sm:$0xff]
    %v281 = vld [vmem:[#allocation2 + $0x710] sm:$0xff]
    %v282 = vld [vmem:[#allocation2 + $0x718] sm:$0xff]
    %v283 = vld [vmem:[#allocation2 + $0x720] sm:$0xff]
    %v284 = vld [vmem:[#allocation2 + $0x728] sm:$0xff]
    %v285 = vld [vmem:[#allocation2 + $0x730] sm:$0xff]
    %v286 = vld [vmem:[#allocation2 + $0x738] sm:$0xff]
    %v287 = vld [vmem:[#allocation2 + $0x740] sm:$0xff]
    %v288 = vld [vmem:[#allocation2 + $0x748] sm:$0xff]
    %v289 = vld [vmem:[#allocation2 + $0x750] sm:$0xff]
    %v290 = vld [vmem:[#allocation2 + $0x758] sm:$0xff]
    %v291 = vld [vmem:[#allocation2 + $0x760] sm:$0xff]
    %v292 = vld [vmem:[#allocation2 + $0x768] sm:$0xff]
    %v293 = vld [vmem:[#allocation2 + $0x770] sm:$0xff]
    %v294 = vld [vmem:[#allocation2 + $0x778] sm:$0xff]
    %v295 = vld [vmem:[#allocation2 + $0x780] sm:$0xff]
    %v296 = vld [vmem:[#allocation2 + $0x788] sm:$0xff]
    %v297 = vld [vmem:[#allocation2 + $0x790] sm:$0xff]
    %v298 = vld [vmem:[#allocation2 + $0x798] sm:$0xff]
    %v299 = vld [vmem:[#allocation2 + $0x7a0] sm:$0xff]
    %v300 = vld [vmem:[#allocation2 + $0x7a8] sm:$0xff]
    %v301 = vld [vmem:[#allocation2 + $0x7b0] sm:$0xff]
    %v302 = vld [vmem:[#allocation2 + $0x7b8] sm:$0xff]
    %v303 = vld [vmem:[#allocation2 + $0x7c0] sm:$0xff]
    %v304 = vld [vmem:[#allocation2 + $0x7c8] sm:$0xff]
    %v305 = vld [vmem:[#allocation2 + $0x7d0] sm:$0xff]
    %v306 = vld [vmem:[#allocation2 + $0x7d8] sm:$0xff]
    %v307 = vld [vmem:[#allocation2 + $0x7e0] sm:$0xff]
    %v308 = vld [vmem:[#allocation2 + $0x7e8] sm:$0xff]
    %v309 = vld [vmem:[#allocation2 + $0x7f0] sm:$0xff]
    %v310 = vld [vmem:[#allocation2 + $0x7f8] sm:$0xff]
    %v311 = vld [vmem:[#allocation2 + $0x800] sm:$0xff]
    %v312 = vld [vmem:[#allocation2 + $0x808] sm:$0xff]
    %v313 = vld [vmem:[#allocation2 + $0x810] sm:$0xff]
    %v314 = vld [vmem:[#allocation2 + $0x818] sm:$0xff]
    %v315 = vld [vmem:[#allocation2 + $0x820] sm:$0xff]
    %v316 = vld [vmem:[#allocation2 + $0x828] sm:$0xff]
    %v317 = vld [vmem:[#allocation2 + $0x830] sm:$0xff]
    %v318 = vld [vmem:[#allocation2 + $0x838] sm:$0xff]
    %v319 = vld [vmem:[#allocation2 + $0x840] sm:$0xff]
    %v320 = vld [vmem:[#allocation2 + $0x848] sm:$0xff]
    %v321 = vld [vmem:[#allocation2 + $0x850] sm:$0xff]
    %v322 = vld [vmem:[#allocation2 + $0x858] sm:$0xff]
    %v323 = vld [vmem:[#allocation2 + $0x860] sm:$0xff]
    %v324 = vld [vmem:[#allocation2 + $0x868] sm:$0xff]
    %v325 = vld [vmem:[#allocation2 + $0x870] sm:$0xff]
    %v326 = vld [vmem:[#allocation2 + $0x878] sm:$0xff]
    %v327 = vld [vmem:[#allocation2 + $0x880] sm:$0xff]
    %v328 = vld [vmem:[#allocation2 + $0x888] sm:$0xff]
    %v329 = vld [vmem:[#allocation2 + $0x890] sm:$0xff]
    %v330 = vld [vmem:[#allocation2 + $0x898] sm:$0xff]
    %v331 = vld [vmem:[#allocation2 + $0x8a0] sm:$0xff]
    %v332 = vld [vmem:[#allocation2 + $0x8a8] sm:$0xff]
    %v333 = vld [vmem:[#allocation2 + $0x8b0] sm:$0xff]
    %v334 = vld [vmem:[#allocation2 + $0x8b8] sm:$0xff]
    %v335 = vld [vmem:[#allocation2 + $0x8c0] sm:$0xff]
    %v336 = vld [vmem:[#allocation2 + $0x8c8] sm:$0xff]
    %v337 = vld [vmem:[#allocation2 + $0x8d0] sm:$0xff]
    %v338 = vld [vmem:[#allocation2 + $0x8d8] sm:$0xff]
    %v339 = vld [vmem:[#allocation2 + $0x8e0] sm:$0xff]
    %v340 = vld [vmem:[#allocation2 + $0x8e8] sm:$0xff]
    %v341 = vld [vmem:[#allocation2 + $0x8f0] sm:$0xff]
    %v342 = vld [vmem:[#allocation2 + $0x8f8] sm:$0xff]
    %v343 = vld [vmem:[#allocation2 + $0x900] sm:$0xff]
    %v344 = vld [vmem:[#allocation2 + $0x908] sm:$0xff]
    %v345 = vld [vmem:[#allocation2 + $0x910] sm:$0xff]
    %v346 = vld [vmem:[#allocation2 + $0x918] sm:$0xff]
    %v347 = vld [vmem:[#allocation2 + $0x920] sm:$0xff]
    %v348 = vld [vmem:[#allocation2 + $0x928] sm:$0xff]
    %v349 = vld [vmem:[#allocation2 + $0x930] sm:$0xff]
    %v350 = vld [vmem:[#allocation2 + $0x938] sm:$0xff]
    %v351 = vld [vmem:[#allocation2 + $0x940] sm:$0xff]
    %v352 = vld [vmem:[#allocation2 + $0x948] sm:$0xff]
    %v353 = vld [vmem:[#allocation2 + $0x950] sm:$0xff]
    %v354 = vld [vmem:[#allocation2 + $0x958] sm:$0xff]
    %v355 = vld [vmem:[#allocation2 + $0x960] sm:$0xff]
    %v356 = vld [vmem:[#allocation2 + $0x968] sm:$0xff]
    %v357 = vld [vmem:[#allocation2 + $0x970] sm:$0xff]
    %v358 = vld [vmem:[#allocation2 + $0x978] sm:$0xff]
    %v359 = vld [vmem:[#allocation2 + $0x980] sm:$0xff]
    %v360 = vld [vmem:[#allocation2 + $0x988] sm:$0xff]
    %v361 = vld [vmem:[#allocation2 + $0x990] sm:$0xff]
    %v362 = vld [vmem:[#allocation2 + $0x998] sm:$0xff]
    %v363 = vld [vmem:[#allocation2 + $0x9a0] sm:$0xff]
    %v364 = vld [vmem:[#allocation2 + $0x9a8] sm:$0xff]
    %v365 = vld [vmem:[#allocation2 + $0x9b0] sm:$0xff]
    %v366 = vld [vmem:[#allocation2 + $0x9b8] sm:$0xff]
    %v367 = vld [vmem:[#allocation2 + $0x9c0] sm:$0xff]
    %v368 = vld [vmem:[#allocation2 + $0x9c8] sm:$0xff]
    %v369 = vld [vmem:[#allocation2 + $0x9d0] sm:$0xff]
    %v370 = vld [vmem:[#allocation2 + $0x9d8] sm:$0xff]
    %v371 = vld [vmem:[#allocation2 + $0x9e0] sm:$0xff]
    %v372 = vld [vmem:[#allocation2 + $0x9e8] sm:$0xff]
    %v373 = vld [vmem:[#allocation2 + $0x9f0] sm:$0xff]
    %v374 = vld [vmem:[#allocation2 + $0x9f8] sm:$0xff]
    %v375 = vld [vmem:[#allocation2 + $0xa00] sm:$0xff]
    %v376 = vld [vmem:[#allocation2 + $0xa08] sm:$0xff]
    %v377 = vld [vmem:[#allocation2 + $0xa10] sm:$0xff]
    %v378 = vld [vmem:[#allocation2 + $0xa18] sm:$0xff]
    %v379 = vld [vmem:[#allocation2 + $0xa20] sm:$0xff]
    %v380 = vld [vmem:[#allocation2 + $0xa28] sm:$0xff]
    %v381 = vld [vmem:[#allocation2 + $0xa30] sm:$0xff]
    %v382 = vld [vmem:[#allocation2 + $0xa38] sm:$0xff]
    %v383 = vld [vmem:[#allocation2 + $0xa40] sm:$0xff]
    %v384 = vld [vmem:[#allocation2 + $0xa48] sm:$0xff]
    %v385 = vld [vmem:[#allocation2 + $0xa50] sm:$0xff]
    %v386 = vld [vmem:[#allocation2 + $0xa58] sm:$0xff]
    %v387 = vld [vmem:[#allocation2 + $0xa60] sm:$0xff]
    %v388 = vld [vmem:[#allocation2 + $0xa68] sm:$0xff]
    %v389 = vld [vmem:[#allocation2 + $0xa70] sm:$0xff]
    %v390 = vld [vmem:[#allocation2 + $0xa78] sm:$0xff]
    %v391 = vld [vmem:[#allocation2 + $0xa80] sm:$0xff]
    %v392 = vld [vmem:[#allocation2 + $0xa88] sm:$0xff]
    %v393 = vld [vmem:[#allocation2 + $0xa90] sm:$0xff]
    %v394 = vld [vmem:[#allocation2 + $0xa98] sm:$0xff]
    %v395 = vld [vmem:[#allocation2 + $0xaa0] sm:$0xff]
    %v396 = vld [vmem:[#allocation2 + $0xaa8] sm:$0xff]
    %v397 = vld [vmem:[#allocation2 + $0xab0] sm:$0xff]
    %v398 = vld [vmem:[#allocation2 + $0xab8] sm:$0xff]
    %v399 = vld [vmem:[#allocation2 + $0xac0] sm:$0xff]
    %v400 = vld [vmem:[#allocation2 + $0xac8] sm:$0xff]
    %v401 = vld [vmem:[#allocation2 + $0xad0] sm:$0xff]
    %v402 = vld [vmem:[#allocation2 + $0xad8] sm:$0xff]
    %v403 = vld [vmem:[#allocation2 + $0xae0] sm:$0xff]
    %v404 = vld [vmem:[#allocation2 + $0xae8] sm:$0xff]
    %v405 = vld [vmem:[#allocation2 + $0xaf0] sm:$0xff]
    %v406 = vld [vmem:[#allocation2 + $0xaf8] sm:$0xff]
    %v407 = vld [vmem:[#allocation2 + $0xb00] sm:$0xff]
    %v408 = vld [vmem:[#allocation2 + $0xb08] sm:$0xff]
    %v409 = vld [vmem:[#allocation2 + $0xb10] sm:$0xff]
    %v410 = vld [vmem:[#allocation2 + $0xb18] sm:$0xff]
    %v411 = vld [vmem:[#allocation2 + $0xb20] sm:$0xff]
    %v412 = vld [vmem:[#allocation2 + $0xb28] sm:$0xff]
    %v413 = vld [vmem:[#allocation2 + $0xb30] sm:$0xff]
    %v414 = vld [vmem:[#allocation2 + $0xb38] sm:$0xff]
    %v415 = vld [vmem:[#allocation2 + $0xb40] sm:$0xff]
    %v416 = vld [vmem:[#allocation2 + $0xb48] sm:$0xff]
    %v417 = vld [vmem:[#allocation2 + $0xb50] sm:$0xff]
    %v418 = vld [vmem:[#allocation2 + $0xb58] sm:$0xff]
    %v419 = vld [vmem:[#allocation2 + $0xb60] sm:$0xff]
    %v420 = vld [vmem:[#allocation2 + $0xb68] sm:$0xff]
    %v421 = vld [vmem:[#allocation2 + $0xb70] sm:$0xff]
    %v422 = vld [vmem:[#allocation2 + $0xb78] sm:$0xff]
    %v423 = vld [vmem:[#allocation2 + $0xb80] sm:$0xff]
    %v424 = vld [vmem:[#allocation2 + $0xb88] sm:$0xff]
    %v425 = vld [vmem:[#allocation2 + $0xb90] sm:$0xff]
    %v426 = vld [vmem:[#allocation2 + $0xb98] sm:$0xff]
    %v427 = vld [vmem:[#allocation2 + $0xba0] sm:$0xff]
    %v428 = vld [vmem:[#allocation2 + $0xba8] sm:$0xff]
    %v429 = vld [vmem:[#allocation2 + $0xbb0] sm:$0xff]
    %v430 = vld [vmem:[#allocation2 + $0xbb8] sm:$0xff]
    %v431 = vld [vmem:[#allocation2 + $0xbc0] sm:$0xff]
    %v432 = vld [vmem:[#allocation2 + $0xbc8] sm:$0xff]
    %v433 = vld [vmem:[#allocation2 + $0xbd0] sm:$0xff]
    %v434 = vld [vmem:[#allocation2 + $0xbd8] sm:$0xff]
    %v435 = vld [vmem:[#allocation2 + $0xbe0] sm:$0xff]
    %v436 = vld [vmem:[#allocation2 + $0xbe8] sm:$0xff]
    %v437 = vld [vmem:[#allocation2 + $0xbf0] sm:$0xff]
    %v438 = vld [vmem:[#allocation2 + $0xbf8] sm:$0xff]
    %v439 = vld [vmem:[#allocation2 + $0xc00] sm:$0xff]
    %v440 = vld [vmem:[#allocation2 + $0xc08] sm:$0xff]
    %v441 = vld [vmem:[#allocation2 + $0xc10] sm:$0xff]
    %v442 = vld [vmem:[#allocation2 + $0xc18] sm:$0xff]
    %v443 = vld [vmem:[#allocation2 + $0xc20] sm:$0xff]
    %v444 = vld [vmem:[#allocation2 + $0xc28] sm:$0xff]
    %v445 = vld [vmem:[#allocation2 + $0xc30] sm:$0xff]
    %v446 = vld [vmem:[#allocation2 + $0xc38] sm:$0xff]
    %v447 = vld [vmem:[#allocation2 + $0xc40] sm:$0xff]
    %v448 = vld [vmem:[#allocation2 + $0xc48] sm:$0xff]
    %v449 = vld [vmem:[#allocation2 + $0xc50] sm:$0xff]
    %v450 = vld [vmem:[#allocation2 + $0xc58] sm:$0xff]
    %v451 = vld [vmem:[#allocation2 + $0xc60] sm:$0xff]
    %v452 = vld [vmem:[#allocation2 + $0xc68] sm:$0xff]
    %v453 = vld [vmem:[#allocation2 + $0xc70] sm:$0xff]
    %v454 = vld [vmem:[#allocation2 + $0xc78] sm:$0xff]
    %v455 = vld [vmem:[#allocation2 + $0xc80] sm:$0xff]
    %v456 = vld [vmem:[#allocation2 + $0xc88] sm:$0xff]
    %v457 = vld [vmem:[#allocation2 + $0xc90] sm:$0xff]
    %v458 = vld [vmem:[#allocation2 + $0xc98] sm:$0xff]
    %v459 = vld [vmem:[#allocation2 + $0xca0] sm:$0xff]
    %v460 = vld [vmem:[#allocation2 + $0xca8] sm:$0xff]
    %v461 = vld [vmem:[#allocation2 + $0xcb0] sm:$0xff]
    %v462 = vld [vmem:[#allocation2 + $0xcb8] sm:$0xff]
    %v463 = vld [vmem:[#allocation2 + $0xcc0] sm:$0xff]
    %v464 = vld [vmem:[#allocation2 + $0xcc8] sm:$0xff]
    %v465 = vld [vmem:[#allocation2 + $0xcd0] sm:$0xff]
    %v466 = vld [vmem:[#allocation2 + $0xcd8] sm:$0xff]
    %v467 = vld [vmem:[#allocation2 + $0xce0] sm:$0xff]
    %v468 = vld [vmem:[#allocation2 + $0xce8] sm:$0xff]
    %v469 = vld [vmem:[#allocation2 + $0xcf0] sm:$0xff]
    %v470 = vld [vmem:[#allocation2 + $0xcf8] sm:$0xff]
    %v471 = vld [vmem:[#allocation2 + $0xd00] sm:$0xff]
    %v472 = vld [vmem:[#allocation2 + $0xd08] sm:$0xff]
    %v473 = vld [vmem:[#allocation2 + $0xd10] sm:$0xff]
    %v474 = vld [vmem:[#allocation2 + $0xd18] sm:$0xff]
    %v475 = vld [vmem:[#allocation2 + $0xd20] sm:$0xff]
    %v476 = vld [vmem:[#allocation2 + $0xd28] sm:$0xff]
    %v477 = vld [vmem:[#allocation2 + $0xd30] sm:$0xff]
    %v478 = vld [vmem:[#allocation2 + $0xd38] sm:$0xff]
    %v479 = vld [vmem:[#allocation2 + $0xd40] sm:$0xff]
    %v480 = vld [vmem:[#allocation2 + $0xd48] sm:$0xff]
    %v481 = vld [vmem:[#allocation2 + $0xd50] sm:$0xff]
    %v482 = vld [vmem:[#allocation2 + $0xd58] sm:$0xff]
    %v483 = vld [vmem:[#allocation2 + $0xd60] sm:$0xff]
    %v484 = vld [vmem:[#allocation2 + $0xd68] sm:$0xff]
    %v485 = vld [vmem:[#allocation2 + $0xd70] sm:$0xff]
    %v486 = vld [vmem:[#allocation2 + $0xd78] sm:$0xff]
    %v487 = vld [vmem:[#allocation2 + $0xd80] sm:$0xff]
    %v488 = vld [vmem:[#allocation2 + $0xd88] sm:$0xff]
    %v489 = vld [vmem:[#allocation2 + $0xd90] sm:$0xff]
    %v490 = vld [vmem:[#allocation2 + $0xd98] sm:$0xff]
    %v491 = vld [vmem:[#allocation2 + $0xda0] sm:$0xff]
    %v492 = vld [vmem:[#allocation2 + $0xda8] sm:$0xff]
    %v493 = vld [vmem:[#allocation2 + $0xdb0] sm:$0xff]
    %v494 = vld [vmem:[#allocation2 + $0xdb8] sm:$0xff]
    %v495 = vld [vmem:[#allocation2 + $0xdc0] sm:$0xff]
    %v496 = vld [vmem:[#allocation2 + $0xdc8] sm:$0xff]
    %v497 = vld [vmem:[#allocation2 + $0xdd0] sm:$0xff]
    %v498 = vld [vmem:[#allocation2 + $0xdd8] sm:$0xff]
    %v499 = vld [vmem:[#allocation2 + $0xde0] sm:$0xff]
    %v500 = vld [vmem:[#allocation2 + $0xde8] sm:$0xff]
    %v501 = vld [vmem:[#allocation2 + $0xdf0] sm:$0xff]
    %v502 = vld [vmem:[#allocation2 + $0xdf8] sm:$0xff]
    %v503 = vld [vmem:[#allocation2 + $0xe00] sm:$0xff]
    %v504 = vld [vmem:[#allocation2 + $0xe08] sm:$0xff]
    %v505 = vld [vmem:[#allocation2 + $0xe10] sm:$0xff]
    %v506 = vld [vmem:[#allocation2 + $0xe18] sm:$0xff]
    %v507 = vld [vmem:[#allocation2 + $0xe20] sm:$0xff]
    %v508 = vld [vmem:[#allocation2 + $0xe28] sm:$0xff]
    %v509 = vld [vmem:[#allocation2 + $0xe30] sm:$0xff]
    %v510 = vld [vmem:[#allocation2 + $0xe38] sm:$0xff]
    %v511 = vld [vmem:[#allocation2 + $0xe40] sm:$0xff]
    %v512 = vld [vmem:[#allocation2 + $0xe48] sm:$0xff]
    %v513 = vld [vmem:[#allocation2 + $0xe50] sm:$0xff]
    %v514 = vld [vmem:[#allocation2 + $0xe58] sm:$0xff]
    %v515 = vld [vmem:[#allocation2 + $0xe60] sm:$0xff]
    %v516 = vld [vmem:[#allocation2 + $0xe68] sm:$0xff]
    %v517 = vld [vmem:[#allocation2 + $0xe70] sm:$0xff]
    %v518 = vld [vmem:[#allocation2 + $0xe78] sm:$0xff]
    %v519 = vld [vmem:[#allocation2 + $0xe80] sm:$0xff]
    %v520 = vld [vmem:[#allocation2 + $0xe88] sm:$0xff]
    %v521 = vld [vmem:[#allocation2 + $0xe90] sm:$0xff]
    %v522 = vld [vmem:[#allocation2 + $0xe98] sm:$0xff]
    %v523 = vld [vmem:[#allocation2 + $0xea0] sm:$0xff]
    %v524 = vld [vmem:[#allocation2 + $0xea8] sm:$0xff]
    %v525 = vld [vmem:[#allocation2 + $0xeb0] sm:$0xff]
    %v526 = vld [vmem:[#allocation2 + $0xeb8] sm:$0xff]
    %v527 = vld [vmem:[#allocation2 + $0xec0] sm:$0xff]
    %v528 = vld [vmem:[#allocation2 + $0xec8] sm:$0xff]
    %v529 = vld [vmem:[#allocation2 + $0xed0] sm:$0xff]
    %v530 = vld [vmem:[#allocation2 + $0xed8] sm:$0xff]
    %v531 = vld [vmem:[#allocation2 + $0xee0] sm:$0xff]
    %v532 = vld [vmem:[#allocation2 + $0xee8] sm:$0xff]
    %v533 = vld [vmem:[#allocation2 + $0xef0] sm:$0xff]
    %v534 = vld [vmem:[#allocation2 + $0xef8] sm:$0xff]
    %v535 = vld [vmem:[#allocation2 + $0xf00] sm:$0xff]
    %v536 = vld [vmem:[#allocation2 + $0xf08] sm:$0xff]
    %v537 = vld [vmem:[#allocation2 + $0xf10] sm:$0xff]
    %v538 = vld [vmem:[#allocation2 + $0xf18] sm:$0xff]
    %v539 = vld [vmem:[#allocation2 + $0xf20] sm:$0xff]
    %v540 = vld [vmem:[#allocation2 + $0xf28] sm:$0xff]
    %v541 = vld [vmem:[#allocation2 + $0xf30] sm:$0xff]
    %v542 = vld [vmem:[#allocation2 + $0xf38] sm:$0xff]
    %v543 = vld [vmem:[#allocation2 + $0xf40] sm:$0xff]
    %v544 = vld [vmem:[#allocation2 + $0xf48] sm:$0xff]
    %v545 = vld [vmem:[#allocation2 + $0xf50] sm:$0xff]
    %v546 = vld [vmem:[#allocation2 + $0xf58] sm:$0xff]
    %v547 = vld [vmem:[#allocation2 + $0xf60] sm:$0xff]
    %v548 = vld [vmem:[#allocation2 + $0xf68] sm:$0xff]
    %v549 = vld [vmem:[#allocation2 + $0xf70] sm:$0xff]
    %v550 = vld [vmem:[#allocation2 + $0xf78] sm:$0xff]
    %v551 = vld [vmem:[#allocation2 + $0xf80] sm:$0xff]
    %v552 = vld [vmem:[#allocation2 + $0xf88] sm:$0xff]
    %v553 = vld [vmem:[#allocation2 + $0xf90] sm:$0xff]
    %v554 = vld [vmem:[#allocation2 + $0xf98] sm:$0xff]
    %v555 = vld [vmem:[#allocation2 + $0xfa0] sm:$0xff]
    %v556 = vld [vmem:[#allocation2 + $0xfa8] sm:$0xff]
    %v557 = vld [vmem:[#allocation2 + $0xfb0] sm:$0xff]
    %v558 = vld [vmem:[#allocation2 + $0xfb8] sm:$0xff]
    %v559 = vld [vmem:[#allocation2 + $0xfc0] sm:$0xff]
    %v560 = vld [vmem:[#allocation2 + $0xfc8] sm:$0xff]
    %v561 = vld [vmem:[#allocation2 + $0xfd0] sm:$0xff]
    %v562 = vld [vmem:[#allocation2 + $0xfd8] sm:$0xff]
    %v563 = vld [vmem:[#allocation2 + $0xfe0] sm:$0xff]
    %v564 = vld [vmem:[#allocation2 + $0xfe8] sm:$0xff]
    %v565 = vld [vmem:[#allocation2 + $0xff0] sm:$0xff]
    %v566 = vld [vmem:[#allocation2 + $0xff8] sm:$0xff]
    %v567 = vld [vmem:[#allocation2 + $0x1000] sm:$0xff]
    %v568 = vld [vmem:[#allocation2 + $0x1008] sm:$0xff]
    %v569 = vld [vmem:[#allocation2 + $0x1010] sm:$0xff]
    %v570 = vld [vmem:[#allocation2 + $0x1018] sm:$0xff]
    %v571 = vld [vmem:[#allocation2 + $0x1020] sm:$0xff]
    %v572 = vld [vmem:[#allocation2 + $0x1028] sm:$0xff]
    %v573 = vld [vmem:[#allocation2 + $0x1030] sm:$0xff]
    %v574 = vld [vmem:[#allocation2 + $0x1038] sm:$0xff]
    %v575 = vld [vmem:[#allocation2 + $0x1040] sm:$0xff]
    %v576 = vld [vmem:[#allocation2 + $0x1048] sm:$0xff]
    %v577 = vld [vmem:[#allocation2 + $0x1050] sm:$0xff]
    %v578 = vld [vmem:[#allocation2 + $0x1058] sm:$0xff]
    %v579 = vld [vmem:[#allocation2 + $0x1060] sm:$0xff]
    %v580 = vld [vmem:[#allocation2 + $0x1068] sm:$0xff]
    %v581 = vld [vmem:[#allocation2 + $0x1070] sm:$0xff]
    %v582 = vld [vmem:[#allocation2 + $0x1078] sm:$0xff]
    %v583 = vld [vmem:[#allocation2 + $0x1080] sm:$0xff]
    %v584 = vld [vmem:[#allocation2 + $0x1088] sm:$0xff]
    %v585 = vld [vmem:[#allocation2 + $0x1090] sm:$0xff]
    %v586 = vld [vmem:[#allocation2 + $0x1098] sm:$0xff]
    %v587 = vld [vmem:[#allocation2 + $0x10a0] sm:$0xff]
    %v588 = vld [vmem:[#allocation2 + $0x10a8] sm:$0xff]
    %v589 = vld [vmem:[#allocation2 + $0x10b0] sm:$0xff]
    %v590 = vld [vmem:[#allocation2 + $0x10b8] sm:$0xff]
    %v591 = vld [vmem:[#allocation2 + $0x10c0] sm:$0xff]
    %v592 = vld [vmem:[#allocation2 + $0x10c8] sm:$0xff]
    %v593 = vld [vmem:[#allocation2 + $0x10d0] sm:$0xff]
    %v594 = vld [vmem:[#allocation2 + $0x10d8] sm:$0xff]
    %v595 = vld [vmem:[#allocation2 + $0x10e0] sm:$0xff]
    %v596 = vld [vmem:[#allocation2 + $0x10e8] sm:$0xff]
    %v597 = vld [vmem:[#allocation2 + $0x10f0] sm:$0xff]
    %v598 = vld [vmem:[#allocation2 + $0x10f8] sm:$0xff]
    %v599 = vld [vmem:[#allocation2 + $0x1100] sm:$0xff]
    %v600 = vld [vmem:[#allocation2 + $0x1108] sm:$0xff]
    %v601 = vld [vmem:[#allocation2 + $0x1110] sm:$0xff]
    %v602 = vld [vmem:[#allocation2 + $0x1118] sm:$0xff]
    %v603 = vld [vmem:[#allocation2 + $0x1120] sm:$0xff]
    %v604 = vld [vmem:[#allocation2 + $0x1128] sm:$0xff]
    %v605 = vld [vmem:[#allocation2 + $0x1130] sm:$0xff]
    %v606 = vld [vmem:[#allocation2 + $0x1138] sm:$0xff]
    %v607 = vld [vmem:[#allocation2 + $0x1140] sm:$0xff]
    %v608 = vld [vmem:[#allocation2 + $0x1148] sm:$0xff]
    %v609 = vld [vmem:[#allocation2 + $0x1150] sm:$0xff]
    %v610 = vld [vmem:[#allocation2 + $0x1158] sm:$0xff]
    %v611 = vld [vmem:[#allocation2 + $0x1160] sm:$0xff]
    %v612 = vld [vmem:[#allocation2 + $0x1168] sm:$0xff]
    %v613 = vld [vmem:[#allocation2 + $0x1170] sm:$0xff]
    %v614 = vld [vmem:[#allocation2 + $0x1178] sm:$0xff]
    %v615 = vld [vmem:[#allocation2 + $0x1180] sm:$0xff]
    %v616 = vld [vmem:[#allocation2 + $0x1188] sm:$0xff]
    %v617 = vld [vmem:[#allocation2 + $0x1190] sm:$0xff]
    %v618 = vld [vmem:[#allocation2 + $0x1198] sm:$0xff]
    %v619 = vld [vmem:[#allocation2 + $0x11a0] sm:$0xff]
    %v620 = vld [vmem:[#allocation2 + $0x11a8] sm:$0xff]
    %v621 = vld [vmem:[#allocation2 + $0x11b0] sm:$0xff]
    %v622 = vld [vmem:[#allocation2 + $0x11b8] sm:$0xff]
    %v623 = vld [vmem:[#allocation2 + $0x11c0] sm:$0xff]
    %v624 = vld [vmem:[#allocation2 + $0x11c8] sm:$0xff]
    %v625 = vld [vmem:[#allocation2 + $0x11d0] sm:$0xff]
    %v626 = vld [vmem:[#allocation2 + $0x11d8] sm:$0xff]
    %v627 = vld [vmem:[#allocation2 + $0x11e0] sm:$0xff]
    %v628 = vld [vmem:[#allocation2 + $0x11e8] sm:$0xff]
    %v629 = vld [vmem:[#allocation2 + $0x11f0] sm:$0xff]
    %v630 = vld [vmem:[#allocation2 + $0x11f8] sm:$0xff]
    %v631 = vld [vmem:[#allocation2 + $0x1200] sm:$0xff]
    %v632 = vld [vmem:[#allocation2 + $0x1208] sm:$0xff]
    %v633 = vld [vmem:[#allocation2 + $0x1210] sm:$0xff]
    %v634 = vld [vmem:[#allocation2 + $0x1218] sm:$0xff]
    %v635 = vld [vmem:[#allocation2 + $0x1220] sm:$0xff]
    %v636 = vld [vmem:[#allocation2 + $0x1228] sm:$0xff]
    %v637 = vld [vmem:[#allocation2 + $0x1230] sm:$0xff]
    %v638 = vld [vmem:[#allocation2 + $0x1238] sm:$0xff]
    %v639 = vld [vmem:[#allocation2 + $0x1240] sm:$0xff]
    %v640 = vld [vmem:[#allocation2 + $0x1248] sm:$0xff]
    %v641 = vld [vmem:[#allocation2 + $0x1250] sm:$0xff]
    %v642 = vld [vmem:[#allocation2 + $0x1258] sm:$0xff]
    %v643 = vld [vmem:[#allocation2 + $0x1260] sm:$0xff]
    %v644 = vld [vmem:[#allocation2 + $0x1268] sm:$0xff]
    %v645 = vld [vmem:[#allocation2 + $0x1270] sm:$0xff]
    %v646 = vld [vmem:[#allocation2 + $0x1278] sm:$0xff]
    %v647 = vld [vmem:[#allocation2 + $0x1280] sm:$0xff]
    %v648 = vld [vmem:[#allocation2 + $0x1288] sm:$0xff]
    %v649 = vld [vmem:[#allocation2 + $0x1290] sm:$0xff]
    %v650 = vld [vmem:[#allocation2 + $0x1298] sm:$0xff]
    %v651 = vld [vmem:[#allocation2 + $0x12a0] sm:$0xff]
    %v652 = vld [vmem:[#allocation2 + $0x12a8] sm:$0xff]
    %v653 = vld [vmem:[#allocation2 + $0x12b0] sm:$0xff]
    %v654 = vld [vmem:[#allocation2 + $0x12b8] sm:$0xff]
    %v655 = vld [vmem:[#allocation2 + $0x12c0] sm:$0xff]
    %v656 = vld [vmem:[#allocation2 + $0x12c8] sm:$0xff]
    %v657 = vld [vmem:[#allocation2 + $0x12d0] sm:$0xff]
    %v658 = vld [vmem:[#allocation2 + $0x12d8] sm:$0xff]
    %v659 = vld [vmem:[#allocation2 + $0x12e0] sm:$0xff]
    %v660 = vld [vmem:[#allocation2 + $0x12e8] sm:$0xff]
    %v661 = vld [vmem:[#allocation2 + $0x12f0] sm:$0xff]
    %v662 = vld [vmem:[#allocation2 + $0x12f8] sm:$0xff]
    %v663 = vld [vmem:[#allocation2 + $0x1300] sm:$0xff]
    %v664 = vld [vmem:[#allocation2 + $0x1308] sm:$0xff]
    %v665 = vld [vmem:[#allocation2 + $0x1310] sm:$0xff]
    %v666 = vld [vmem:[#allocation2 + $0x1318] sm:$0xff]
    %v667 = vld [vmem:[#allocation2 + $0x1320] sm:$0xff]
    %v668 = vld [vmem:[#allocation2 + $0x1328] sm:$0xff]
    %v669 = vld [vmem:[#allocation2 + $0x1330] sm:$0xff]
    %v670 = vld [vmem:[#allocation2 + $0x1338] sm:$0xff]
    %v671 = vld [vmem:[#allocation2 + $0x1340] sm:$0xff]
    %v672 = vld [vmem:[#allocation2 + $0x1348] sm:$0xff]
    %v673 = vld [vmem:[#allocation2 + $0x1350] sm:$0xff]
    %v674 = vld [vmem:[#allocation2 + $0x1358] sm:$0xff]
    %v675 = vld [vmem:[#allocation2 + $0x1360] sm:$0xff]
    %v676 = vld [vmem:[#allocation2 + $0x1368] sm:$0xff]
    %v677 = vld [vmem:[#allocation2 + $0x1370] sm:$0xff]
    %v678 = vld [vmem:[#allocation2 + $0x1378] sm:$0xff]
    %v679 = vld [vmem:[#allocation2 + $0x1380] sm:$0xff]
    %v680 = vld [vmem:[#allocation2 + $0x1388] sm:$0xff]
    %v681 = vld [vmem:[#allocation2 + $0x1390] sm:$0xff]
    %v682 = vld [vmem:[#allocation2 + $0x1398] sm:$0xff]
    %v683 = vld [vmem:[#allocation2 + $0x13a0] sm:$0xff]
    %v684 = vld [vmem:[#allocation2 + $0x13a8] sm:$0xff]
    %v685 = vld [vmem:[#allocation2 + $0x13b0] sm:$0xff]
    %v686 = vld [vmem:[#allocation2 + $0x13b8] sm:$0xff]
    %v687 = vld [vmem:[#allocation2 + $0x13c0] sm:$0xff]
    %v688 = vld [vmem:[#allocation2 + $0x13c8] sm:$0xff]
    %v689 = vld [vmem:[#allocation2 + $0x13d0] sm:$0xff]
    %v690 = vld [vmem:[#allocation2 + $0x13d8] sm:$0xff]
    %v691 = vld [vmem:[#allocation2 + $0x13e0] sm:$0xff]
    %v692 = vld [vmem:[#allocation2 + $0x13e8] sm:$0xff]
    %v693 = vld [vmem:[#allocation2 + $0x13f0] sm:$0xff]
    %v694 = vld [vmem:[#allocation2 + $0x13f8] sm:$0xff]
    %v695 = vld [vmem:[#allocation2 + $0x1400] sm:$0xff]
    %v696 = vld [vmem:[#allocation2 + $0x1408] sm:$0xff]
    %v697 = vld [vmem:[#allocation2 + $0x1410] sm:$0xff]
    %v698 = vld [vmem:[#allocation2 + $0x1418] sm:$0xff]
    %v699 = vld [vmem:[#allocation2 + $0x1420] sm:$0xff]
    %v700 = vld [vmem:[#allocation2 + $0x1428] sm:$0xff]
    %v701 = vld [vmem:[#allocation2 + $0x1430] sm:$0xff]
    %v702 = vld [vmem:[#allocation2 + $0x1438] sm:$0xff]
    %v703 = vld [vmem:[#allocation2 + $0x1440] sm:$0xff]
    %v704 = vld [vmem:[#allocation2 + $0x1448] sm:$0xff]
    %v705 = vld [vmem:[#allocation2 + $0x1450] sm:$0xff]
    %v706 = vld [vmem:[#allocation2 + $0x1458] sm:$0xff]
    %v707 = vld [vmem:[#allocation2 + $0x1460] sm:$0xff]
    %v708 = vld [vmem:[#allocation2 + $0x1468] sm:$0xff]
    %v709 = vld [vmem:[#allocation2 + $0x1470] sm:$0xff]
    %v710 = vld [vmem:[#allocation2 + $0x1478] sm:$0xff]
    %v711 = vld [vmem:[#allocation2 + $0x1480] sm:$0xff]
    %v712 = vld [vmem:[#allocation2 + $0x1488] sm:$0xff]
    %v713 = vld [vmem:[#allocation2 + $0x1490] sm:$0xff]
    %v714 = vld [vmem:[#allocation2 + $0x1498] sm:$0xff]
    %v715 = vld [vmem:[#allocation2 + $0x14a0] sm:$0xff]
    %v716 = vld [vmem:[#allocation2 + $0x14a8] sm:$0xff]
    %v717 = vld [vmem:[#allocation2 + $0x14b0] sm:$0xff]
    %v718 = vld [vmem:[#allocation2 + $0x14b8] sm:$0xff]
    %v719 = vld [vmem:[#allocation2 + $0x14c0] sm:$0xff]
    %v720 = vld [vmem:[#allocation2 + $0x14c8] sm:$0xff]
    %v721 = vld [vmem:[#allocation2 + $0x14d0] sm:$0xff]
    %v722 = vld [vmem:[#allocation2 + $0x14d8] sm:$0xff]
    %v723 = vld [vmem:[#allocation2 + $0x14e0] sm:$0xff]
    %v724 = vld [vmem:[#allocation2 + $0x14e8] sm:$0xff]
    %v725 = vld [vmem:[#allocation2 + $0x14f0] sm:$0xff]
    %v726 = vld [vmem:[#allocation2 + $0x14f8] sm:$0xff]
    %v727 = vld [vmem:[#allocation2 + $0x1500] sm:$0xff]
    %v728 = vld [vmem:[#allocation2 + $0x1508] sm:$0xff]
    %v729 = vld [vmem:[#allocation2 + $0x1510] sm:$0xff]
    %v730 = vld [vmem:[#allocation2 + $0x1518] sm:$0xff]
    %v731 = vld [vmem:[#allocation2 + $0x1520] sm:$0xff]
    %v732 = vld [vmem:[#allocation2 + $0x1528] sm:$0xff]
    %v733 = vld [vmem:[#allocation2 + $0x1530] sm:$0xff]
    %v734 = vld [vmem:[#allocation2 + $0x1538] sm:$0xff]
    %v735 = vld [vmem:[#allocation2 + $0x1540] sm:$0xff]
    %v736 = vld [vmem:[#allocation2 + $0x1548] sm:$0xff]
    %v737 = vld [vmem:[#allocation2 + $0x1550] sm:$0xff]
    %v738 = vld [vmem:[#allocation2 + $0x1558] sm:$0xff]
    %v739 = vld [vmem:[#allocation2 + $0x1560] sm:$0xff]
    %v740 = vld [vmem:[#allocation2 + $0x1568] sm:$0xff]
    %v741 = vld [vmem:[#allocation2 + $0x1570] sm:$0xff]
    %v742 = vld [vmem:[#allocation2 + $0x1578] sm:$0xff]
    %v743 = vld [vmem:[#allocation2 + $0x1580] sm:$0xff]
    %v744 = vld [vmem:[#allocation2 + $0x1588] sm:$0xff]
    %v745 = vld [vmem:[#allocation2 + $0x1590] sm:$0xff]
    %v746 = vld [vmem:[#allocation2 + $0x1598] sm:$0xff]
    %v747 = vld [vmem:[#allocation2 + $0x15a0] sm:$0xff]
    %v748 = vld [vmem:[#allocation2 + $0x15a8] sm:$0xff]
    %v749 = vld [vmem:[#allocation2 + $0x15b0] sm:$0xff]
    %v750 = vld [vmem:[#allocation2 + $0x15b8] sm:$0xff]
    %v751 = vld [vmem:[#allocation2 + $0x15c0] sm:$0xff]
    %v752 = vld [vmem:[#allocation2 + $0x15c8] sm:$0xff]
    %v753 = vld [vmem:[#allocation2 + $0x15d0] sm:$0xff]
    %v754 = vld [vmem:[#allocation2 + $0x15d8] sm:$0xff]
    %v755 = vld [vmem:[#allocation2 + $0x15e0] sm:$0xff]
    %v756 = vld [vmem:[#allocation2 + $0x15e8] sm:$0xff]
    %v757 = vld [vmem:[#allocation2 + $0x15f0] sm:$0xff]
    %v758 = vld [vmem:[#allocation2 + $0x15f8] sm:$0xff]
    %v759 = vld [vmem:[#allocation2 + $0x1600] sm:$0xff]
    %v760 = vld [vmem:[#allocation2 + $0x1608] sm:$0xff]
    %v761 = vld [vmem:[#allocation2 + $0x1610] sm:$0xff]
    %v762 = vld [vmem:[#allocation2 + $0x1618] sm:$0xff]
    %v763 = vld [vmem:[#allocation2 + $0x1620] sm:$0xff]
    %v764 = vld [vmem:[#allocation2 + $0x1628] sm:$0xff]
    %v765 = vld [vmem:[#allocation2 + $0x1630] sm:$0xff]
    %v766 = vld [vmem:[#allocation2 + $0x1638] sm:$0xff]
    %v767 = vld [vmem:[#allocation2 + $0x1640] sm:$0xff]
    %v768 = vld [vmem:[#allocation2 + $0x1648] sm:$0xff]
    %v769 = vld [vmem:[#allocation2 + $0x1650] sm:$0xff]
    %v770 = vld [vmem:[#allocation2 + $0x1658] sm:$0xff]
    %v771 = vld [vmem:[#allocation2 + $0x1660] sm:$0xff]
    %v772 = vld [vmem:[#allocation2 + $0x1668] sm:$0xff]
    %v773 = vld [vmem:[#allocation2 + $0x1670] sm:$0xff]
    %v774 = vld [vmem:[#allocation2 + $0x1678] sm:$0xff]
    %v775 = vld [vmem:[#allocation2 + $0x1680] sm:$0xff]
    %v776 = vld [vmem:[#allocation2 + $0x1688] sm:$0xff]
    %v777 = vld [vmem:[#allocation2 + $0x1690] sm:$0xff]
    %v778 = vld [vmem:[#allocation2 + $0x1698] sm:$0xff]
    %v779 = vld [vmem:[#allocation2 + $0x16a0] sm:$0xff]
    %v780 = vld [vmem:[#allocation2 + $0x16a8] sm:$0xff]
    %v781 = vld [vmem:[#allocation2 + $0x16b0] sm:$0xff]
    %v782 = vld [vmem:[#allocation2 + $0x16b8] sm:$0xff]
    %v783 = vld [vmem:[#allocation2 + $0x16c0] sm:$0xff]
    %v784 = vld [vmem:[#allocation2 + $0x16c8] sm:$0xff]
    %v785 = vld [vmem:[#allocation2 + $0x16d0] sm:$0xff]
    %v786 = vld [vmem:[#allocation2 + $0x16d8] sm:$0xff]
    %v787 = vld [vmem:[#allocation2 + $0x16e0] sm:$0xff]
    %v788 = vld [vmem:[#allocation2 + $0x16e8] sm:$0xff]
    %v789 = vld [vmem:[#allocation2 + $0x16f0] sm:$0xff]
    %v790 = vld [vmem:[#allocation2 + $0x16f8] sm:$0xff]
    %v791 = vld [vmem:[#allocation2 + $0x1700] sm:$0xff]
    %v792 = vld [vmem:[#allocation2 + $0x1708] sm:$0xff]
    %v793 = vld [vmem:[#allocation2 + $0x1710] sm:$0xff]
    %v794 = vld [vmem:[#allocation2 + $0x1718] sm:$0xff]
    %v795 = vld [vmem:[#allocation2 + $0x1720] sm:$0xff]
    %v796 = vld [vmem:[#allocation2 + $0x1728] sm:$0xff]
    %v797 = vld [vmem:[#allocation2 + $0x1730] sm:$0xff]
    %v798 = vld [vmem:[#allocation2 + $0x1738] sm:$0xff]
    %v799 = vld [vmem:[#allocation2 + $0x1740] sm:$0xff]
    %v800 = vld [vmem:[#allocation2 + $0x1748] sm:$0xff]
    %v801 = vld [vmem:[#allocation2 + $0x1750] sm:$0xff]
    %v802 = vld [vmem:[#allocation2 + $0x1758] sm:$0xff]
    %v803 = vld [vmem:[#allocation2 + $0x1760] sm:$0xff]
    %v804 = vld [vmem:[#allocation2 + $0x1768] sm:$0xff]
    %v805 = vld [vmem:[#allocation2 + $0x1770] sm:$0xff]
    %v806 = vld [vmem:[#allocation2 + $0x1778] sm:$0xff]
    %v807 = vld [vmem:[#allocation2 + $0x1780] sm:$0xff]
    %v808 = vld [vmem:[#allocation2 + $0x1788] sm:$0xff]
    %v809 = vld [vmem:[#allocation2 + $0x1790] sm:$0xff]
    %v810 = vld [vmem:[#allocation2 + $0x1798] sm:$0xff]
    %v811 = vld [vmem:[#allocation2 + $0x17a0] sm:$0xff]
    %v812 = vld [vmem:[#allocation2 + $0x17a8] sm:$0xff]
    %v813 = vld [vmem:[#allocation2 + $0x17b0] sm:$0xff]
    %v814 = vld [vmem:[#allocation2 + $0x17b8] sm:$0xff]
    %v815 = vld [vmem:[#allocation2 + $0x17c0] sm:$0xff]
    %v816 = vld [vmem:[#allocation2 + $0x17c8] sm:$0xff]
    %v817 = vld [vmem:[#allocation2 + $0x17d0] sm:$0xff]
    %v818 = vld [vmem:[#allocation2 + $0x17d8] sm:$0xff]
    %v819 = vld [vmem:[#allocation2 + $0x17e0] sm:$0xff]
    %v820 = vld [vmem:[#allocation2 + $0x17e8] sm:$0xff]
    %v821 = vld [vmem:[#allocation2 + $0x17f0] sm:$0xff]
    %v822 = vld [vmem:[#allocation2 + $0x17f8] sm:$0xff]
    %v823 = vld [vmem:[#allocation2 + $0x1800] sm:$0xff]
    %v824 = vld [vmem:[#allocation2 + $0x1808] sm:$0xff]
    %v825 = vld [vmem:[#allocation2 + $0x1810] sm:$0xff]
    %v826 = vld [vmem:[#allocation2 + $0x1818] sm:$0xff]
    %v827 = vld [vmem:[#allocation2 + $0x1820] sm:$0xff]
    %v828 = vld [vmem:[#allocation2 + $0x1828] sm:$0xff]
    %v829 = vld [vmem:[#allocation2 + $0x1830] sm:$0xff]
    %v830 = vld [vmem:[#allocation2 + $0x1838] sm:$0xff]
    %v831 = vld [vmem:[#allocation2 + $0x1840] sm:$0xff]
    %v832 = vld [vmem:[#allocation2 + $0x1848] sm:$0xff]
    %v833 = vld [vmem:[#allocation2 + $0x1850] sm:$0xff]
    %v834 = vld [vmem:[#allocation2 + $0x1858] sm:$0xff]
    %v835 = vld [vmem:[#allocation2 + $0x1860] sm:$0xff]
    %v836 = vld [vmem:[#allocation2 + $0x1868] sm:$0xff]
    %v837 = vld [vmem:[#allocation2 + $0x1870] sm:$0xff]
    %v838 = vld [vmem:[#allocation2 + $0x1878] sm:$0xff]
    %v839 = vld [vmem:[#allocation2 + $0x1880] sm:$0xff]
    %v840 = vld [vmem:[#allocation2 + $0x1888] sm:$0xff]
    %v841 = vld [vmem:[#allocation2 + $0x1890] sm:$0xff]
    %v842 = vld [vmem:[#allocation2 + $0x1898] sm:$0xff]
    %v843 = vld [vmem:[#allocation2 + $0x18a0] sm:$0xff]
    %v844 = vld [vmem:[#allocation2 + $0x18a8] sm:$0xff]
    %v845 = vld [vmem:[#allocation2 + $0x18b0] sm:$0xff]
    %v846 = vld [vmem:[#allocation2 + $0x18b8] sm:$0xff]
    %v847 = vld [vmem:[#allocation2 + $0x18c0] sm:$0xff]
    %v848 = vld [vmem:[#allocation2 + $0x18c8] sm:$0xff]
    %v849 = vld [vmem:[#allocation2 + $0x18d0] sm:$0xff]
    %v850 = vld [vmem:[#allocation2 + $0x18d8] sm:$0xff]
    %v851 = vld [vmem:[#allocation2 + $0x18e0] sm:$0xff]
    %v852 = vld [vmem:[#allocation2 + $0x18e8] sm:$0xff]
    %v853 = vld [vmem:[#allocation2 + $0x18f0] sm:$0xff]
    %v854 = vld [vmem:[#allocation2 + $0x18f8] sm:$0xff]
    %v855 = vld [vmem:[#allocation2 + $0x1900] sm:$0xff]
    %v856 = vld [vmem:[#allocation2 + $0x1908] sm:$0xff]
    %v857 = vld [vmem:[#allocation2 + $0x1910] sm:$0xff]
    %v858 = vld [vmem:[#allocation2 + $0x1918] sm:$0xff]
    %v859 = vld [vmem:[#allocation2 + $0x1920] sm:$0xff]
    %v860 = vld [vmem:[#allocation2 + $0x1928] sm:$0xff]
    %v861 = vld [vmem:[#allocation2 + $0x1930] sm:$0xff]
    %v862 = vld [vmem:[#allocation2 + $0x1938] sm:$0xff]
    %v863 = vld [vmem:[#allocation2 + $0x1940] sm:$0xff]
    %v864 = vld [vmem:[#allocation2 + $0x1948] sm:$0xff]
    %v865 = vld [vmem:[#allocation2 + $0x1950] sm:$0xff]
    %v866 = vld [vmem:[#allocation2 + $0x1958] sm:$0xff]
    %v867 = vld [vmem:[#allocation2 + $0x1960] sm:$0xff]
    %v868 = vld [vmem:[#allocation2 + $0x1968] sm:$0xff]
    %v869 = vld [vmem:[#allocation2 + $0x1970] sm:$0xff]
    %v870 = vld [vmem:[#allocation2 + $0x1978] sm:$0xff]
    %v871 = vld [vmem:[#allocation2 + $0x1980] sm:$0xff]
    %v872 = vld [vmem:[#allocation2 + $0x1988] sm:$0xff]
    %v873 = vld [vmem:[#allocation2 + $0x1990] sm:$0xff]
    %v874 = vld [vmem:[#allocation2 + $0x1998] sm:$0xff]
    %v875 = vld [vmem:[#allocation2 + $0x19a0] sm:$0xff]
    %v876 = vld [vmem:[#allocation2 + $0x19a8] sm:$0xff]
    %v877 = vld [vmem:[#allocation2 + $0x19b0] sm:$0xff]
    %v878 = vld [vmem:[#allocation2 + $0x19b8] sm:$0xff]
    %v879 = vld [vmem:[#allocation2 + $0x19c0] sm:$0xff]
    %v880 = vld [vmem:[#allocation2 + $0x19c8] sm:$0xff]
    %v881 = vld [vmem:[#allocation2 + $0x19d0] sm:$0xff]
    %v882 = vld [vmem:[#allocation2 + $0x19d8] sm:$0xff]
    %v883 = vld [vmem:[#allocation2 + $0x19e0] sm:$0xff]
    %v884 = vld [vmem:[#allocation2 + $0x19e8] sm:$0xff]
    %v885 = vld [vmem:[#allocation2 + $0x19f0] sm:$0xff]
    %v886 = vld [vmem:[#allocation2 + $0x19f8] sm:$0xff]
    %v887 = vld [vmem:[#allocation2 + $0x1a00] sm:$0xff]
    %v888 = vld [vmem:[#allocation2 + $0x1a08] sm:$0xff]
    %v889 = vld [vmem:[#allocation2 + $0x1a10] sm:$0xff]
    %v890 = vld [vmem:[#allocation2 + $0x1a18] sm:$0xff]
    %v891 = vld [vmem:[#allocation2 + $0x1a20] sm:$0xff]
    %v892 = vld [vmem:[#allocation2 + $0x1a28] sm:$0xff]
    %v893 = vld [vmem:[#allocation2 + $0x1a30] sm:$0xff]
    %v894 = vld [vmem:[#allocation2 + $0x1a38] sm:$0xff]
    %v895 = vld [vmem:[#allocation2 + $0x1a40] sm:$0xff]
    %v896 = vld [vmem:[#allocation2 + $0x1a48] sm:$0xff]
    %v897 = vld [vmem:[#allocation2 + $0x1a50] sm:$0xff]
    %v898 = vld [vmem:[#allocation2 + $0x1a58] sm:$0xff]
    %v899 = vld [vmem:[#allocation2 + $0x1a60] sm:$0xff]
    %v900 = vld [vmem:[#allocation2 + $0x1a68] sm:$0xff]
    %v901 = vld [vmem:[#allocation2 + $0x1a70] sm:$0xff]
    %v902 = vld [vmem:[#allocation2 + $0x1a78] sm:$0xff]
    %v903 = vld [vmem:[#allocation2 + $0x1a80] sm:$0xff]
    %v904 = vld [vmem:[#allocation2 + $0x1a88] sm:$0xff]
    %v905 = vld [vmem:[#allocation2 + $0x1a90] sm:$0xff]
    %v906 = vld [vmem:[#allocation2 + $0x1a98] sm:$0xff]
    %v907 = vld [vmem:[#allocation2 + $0x1aa0] sm:$0xff]
    %v908 = vld [vmem:[#allocation2 + $0x1aa8] sm:$0xff]
    %v909 = vld [vmem:[#allocation2 + $0x1ab0] sm:$0xff]
    %v910 = vld [vmem:[#allocation2 + $0x1ab8] sm:$0xff]
    %v911 = vld [vmem:[#allocation2 + $0x1ac0] sm:$0xff]
    %v912 = vld [vmem:[#allocation2 + $0x1ac8] sm:$0xff]
    %v913 = vld [vmem:[#allocation2 + $0x1ad0] sm:$0xff]
    %v914 = vld [vmem:[#allocation2 + $0x1ad8] sm:$0xff]
    %v915 = vld [vmem:[#allocation2 + $0x1ae0] sm:$0xff]
    %v916 = vld [vmem:[#allocation2 + $0x1ae8] sm:$0xff]
    %v917 = vld [vmem:[#allocation2 + $0x1af0] sm:$0xff]
    %v918 = vld [vmem:[#allocation2 + $0x1af8] sm:$0xff]
    %v919 = vld [vmem:[#allocation2 + $0x1b00] sm:$0xff]
    %v920 = vld [vmem:[#allocation2 + $0x1b08] sm:$0xff]
    %v921 = vld [vmem:[#allocation2 + $0x1b10] sm:$0xff]
    %v922 = vld [vmem:[#allocation2 + $0x1b18] sm:$0xff]
    %v923 = vld [vmem:[#allocation2 + $0x1b20] sm:$0xff]
    %v924 = vld [vmem:[#allocation2 + $0x1b28] sm:$0xff]
    %v925 = vld [vmem:[#allocation2 + $0x1b30] sm:$0xff]
    %v926 = vld [vmem:[#allocation2 + $0x1b38] sm:$0xff]
    %v927 = vld [vmem:[#allocation2 + $0x1b40] sm:$0xff]
    %v928 = vld [vmem:[#allocation2 + $0x1b48] sm:$0xff]
    %v929 = vld [vmem:[#allocation2 + $0x1b50] sm:$0xff]
    %v930 = vld [vmem:[#allocation2 + $0x1b58] sm:$0xff]
    %v931 = vld [vmem:[#allocation2 + $0x1b60] sm:$0xff]
    %v932 = vld [vmem:[#allocation2 + $0x1b68] sm:$0xff]
    %v933 = vld [vmem:[#allocation2 + $0x1b70] sm:$0xff]
    %v934 = vld [vmem:[#allocation2 + $0x1b78] sm:$0xff]
    %v935 = vld [vmem:[#allocation2 + $0x1b80] sm:$0xff]
    %v936 = vld [vmem:[#allocation2 + $0x1b88] sm:$0xff]
    %v937 = vld [vmem:[#allocation2 + $0x1b90] sm:$0xff]
    %v938 = vld [vmem:[#allocation2 + $0x1b98] sm:$0xff]
    %v939 = vld [vmem:[#allocation2 + $0x1ba0] sm:$0xff]
    %v940 = vld [vmem:[#allocation2 + $0x1ba8] sm:$0xff]
    %v941 = vld [vmem:[#allocation2 + $0x1bb0] sm:$0xff]
    %v942 = vld [vmem:[#allocation2 + $0x1bb8] sm:$0xff]
    %v943 = vld [vmem:[#allocation2 + $0x1bc0] sm:$0xff]
    %v944 = vld [vmem:[#allocation2 + $0x1bc8] sm:$0xff]
    %v945 = vld [vmem:[#allocation2 + $0x1bd0] sm:$0xff]
    %v946 = vld [vmem:[#allocation2 + $0x1bd8] sm:$0xff]
    %v947 = vld [vmem:[#allocation2 + $0x1be0] sm:$0xff]
    %v948 = vld [vmem:[#allocation2 + $0x1be8] sm:$0xff]
    %v949 = vld [vmem:[#allocation2 + $0x1bf0] sm:$0xff]
    %v950 = vld [vmem:[#allocation2 + $0x1bf8] sm:$0xff]
    %v951 = vld [vmem:[#allocation2 + $0x1c00] sm:$0xff]
    %v952 = vld [vmem:[#allocation2 + $0x1c08] sm:$0xff]
    %v953 = vld [vmem:[#allocation2 + $0x1c10] sm:$0xff]
    %v954 = vld [vmem:[#allocation2 + $0x1c18] sm:$0xff]
    %v955 = vld [vmem:[#allocation2 + $0x1c20] sm:$0xff]
    %v956 = vld [vmem:[#allocation2 + $0x1c28] sm:$0xff]
    %v957 = vld [vmem:[#allocation2 + $0x1c30] sm:$0xff]
    %v958 = vld [vmem:[#allocation2 + $0x1c38] sm:$0xff]
    %v959 = vld [vmem:[#allocation2 + $0x1c40] sm:$0xff]
    %v960 = vld [vmem:[#allocation2 + $0x1c48] sm:$0xff]
    %v961 = vld [vmem:[#allocation2 + $0x1c50] sm:$0xff]
    %v962 = vld [vmem:[#allocation2 + $0x1c58] sm:$0xff]
    %v963 = vld [vmem:[#allocation2 + $0x1c60] sm:$0xff]
    %v964 = vld [vmem:[#allocation2 + $0x1c68] sm:$0xff]
    %v965 = vld [vmem:[#allocation2 + $0x1c70] sm:$0xff]
    %v966 = vld [vmem:[#allocation2 + $0x1c78] sm:$0xff]
    %v967 = vld [vmem:[#allocation2 + $0x1c80] sm:$0xff]
    %v968 = vld [vmem:[#allocation2 + $0x1c88] sm:$0xff]
    %v969 = vld [vmem:[#allocation2 + $0x1c90] sm:$0xff]
    %v970 = vld [vmem:[#allocation2 + $0x1c98] sm:$0xff]
    %v971 = vld [vmem:[#allocation2 + $0x1ca0] sm:$0xff]
    %v972 = vld [vmem:[#allocation2 + $0x1ca8] sm:$0xff]
    %v973 = vld [vmem:[#allocation2 + $0x1cb0] sm:$0xff]
    %v974 = vld [vmem:[#allocation2 + $0x1cb8] sm:$0xff]
    %v975 = vld [vmem:[#allocation2 + $0x1cc0] sm:$0xff]
    %v976 = vld [vmem:[#allocation2 + $0x1cc8] sm:$0xff]
    %v977 = vld [vmem:[#allocation2 + $0x1cd0] sm:$0xff]
    %v978 = vld [vmem:[#allocation2 + $0x1cd8] sm:$0xff]
    %v979 = vld [vmem:[#allocation2 + $0x1ce0] sm:$0xff]
    %v980 = vld [vmem:[#allocation2 + $0x1ce8] sm:$0xff]
    %v981 = vld [vmem:[#allocation2 + $0x1cf0] sm:$0xff]
    %v982 = vld [vmem:[#allocation2 + $0x1cf8] sm:$0xff]
    %v983 = vld [vmem:[#allocation2 + $0x1d00] sm:$0xff]
    %v984 = vld [vmem:[#allocation2 + $0x1d08] sm:$0xff]
    %v985 = vld [vmem:[#allocation2 + $0x1d10] sm:$0xff]
    %v986 = vld [vmem:[#allocation2 + $0x1d18] sm:$0xff]
    %v987 = vld [vmem:[#allocation2 + $0x1d20] sm:$0xff]
    %v988 = vld [vmem:[#allocation2 + $0x1d28] sm:$0xff]
    %v989 = vld [vmem:[#allocation2 + $0x1d30] sm:$0xff]
    %v990 = vld [vmem:[#allocation2 + $0x1d38] sm:$0xff]
    %v991 = vld [vmem:[#allocation2 + $0x1d40] sm:$0xff]
    %v992 = vld [vmem:[#allocation2 + $0x1d48] sm:$0xff]
    %v993 = vld [vmem:[#allocation2 + $0x1d50] sm:$0xff]
    %v994 = vld [vmem:[#allocation2 + $0x1d58] sm:$0xff]
    %v995 = vld [vmem:[#allocation2 + $0x1d60] sm:$0xff]
    %v996 = vld [vmem:[#allocation2 + $0x1d68] sm:$0xff]
    %v997 = vld [vmem:[#allocation2 + $0x1d70] sm:$0xff]
    %v998 = vld [vmem:[#allocation2 + $0x1d78] sm:$0xff]
    %v999 = vld [vmem:[#allocation2 + $0x1d80] sm:$0xff]
    %v1000 = vld [vmem:[#allocation2 + $0x1d88] sm:$0xff]
    %v1001 = vld [vmem:[#allocation2 + $0x1d90] sm:$0xff]
    %v1002 = vld [vmem:[#allocation2 + $0x1d98] sm:$0xff]
    %v1003 = vld [vmem:[#allocation2 + $0x1da0] sm:$0xff]
    %v1004 = vld [vmem:[#allocation2 + $0x1da8] sm:$0xff]
    %v1005 = vld [vmem:[#allocation2 + $0x1db0] sm:$0xff]
    %v1006 = vld [vmem:[#allocation2 + $0x1db8] sm:$0xff]
    %v1007 = vld [vmem:[#allocation2 + $0x1dc0] sm:$0xff]
    %v1008 = vld [vmem:[#allocation2 + $0x1dc8] sm:$0xff]
    %v1009 = vld [vmem:[#allocation2 + $0x1dd0] sm:$0xff]
    %v1010 = vld [vmem:[#allocation2 + $0x1dd8] sm:$0xff]
    %v1011 = vld [vmem:[#allocation2 + $0x1de0] sm:$0xff]
    %v1012 = vld [vmem:[#allocation2 + $0x1de8] sm:$0xff]
    %v1013 = vld [vmem:[#allocation2 + $0x1df0] sm:$0xff]
    %v1014 = vld [vmem:[#allocation2 + $0x1df8] sm:$0xff]
    %v1015 = vld [vmem:[#allocation2 + $0x1e00] sm:$0xff]
    %v1016 = vld [vmem:[#allocation2 + $0x1e08] sm:$0xff]
    %v1017 = vld [vmem:[#allocation2 + $0x1e10] sm:$0xff]
    %v1018 = vld [vmem:[#allocation2 + $0x1e18] sm:$0xff]
    %v1019 = vld [vmem:[#allocation2 + $0x1e20] sm:$0xff]
    %v1020 = vld [vmem:[#allocation2 + $0x1e28] sm:$0xff]
    %v1021 = vld [vmem:[#allocation2 + $0x1e30] sm:$0xff]
    %v1022 = vld [vmem:[#allocation2 + $0x1e38] sm:$0xff]
    %v1023 = vld [vmem:[#allocation2 + $0x1e40] sm:$0xff]
    %v1024 = vld [vmem:[#allocation2 + $0x1e48] sm:$0xff]
    %v1025 = vld [vmem:[#allocation2 + $0x1e50] sm:$0xff]
    %v1026 = vld [vmem:[#allocation2 + $0x1e58] sm:$0xff]
    %v1027 = vld [vmem:[#allocation2 + $0x1e60] sm:$0xff]
    %v1028 = vld [vmem:[#allocation2 + $0x1e68] sm:$0xff]
    %v1029 = vld [vmem:[#allocation2 + $0x1e70] sm:$0xff]
    %v1030 = vld [vmem:[#allocation2 + $0x1e78] sm:$0xff]
    %v1031 = vld [vmem:[#allocation2 + $0x1e80] sm:$0xff]
    %v1032 = vld [vmem:[#allocation2 + $0x1e88] sm:$0xff]
    %v1033 = vld [vmem:[#allocation2 + $0x1e90] sm:$0xff]
    %v1034 = vld [vmem:[#allocation2 + $0x1e98] sm:$0xff]
    %v1035 = vld [vmem:[#allocation2 + $0x1ea0] sm:$0xff]
    %v1036 = vld [vmem:[#allocation2 + $0x1ea8] sm:$0xff]
    %v1037 = vld [vmem:[#allocation2 + $0x1eb0] sm:$0xff]
    %v1038 = vld [vmem:[#allocation2 + $0x1eb8] sm:$0xff]
    %v1039 = vld [vmem:[#allocation2 + $0x1ec0] sm:$0xff]
    %v1040 = vld [vmem:[#allocation2 + $0x1ec8] sm:$0xff]
    %v1041 = vld [vmem:[#allocation2 + $0x1ed0] sm:$0xff]
    %v1042 = vld [vmem:[#allocation2 + $0x1ed8] sm:$0xff]
    %v1043 = vld [vmem:[#allocation2 + $0x1ee0] sm:$0xff]
    %v1044 = vld [vmem:[#allocation2 + $0x1ee8] sm:$0xff]
    %v1045 = vld [vmem:[#allocation2 + $0x1ef0] sm:$0xff]
    %v1046 = vld [vmem:[#allocation2 + $0x1ef8] sm:$0xff]
    %v1047 = vld [vmem:[#allocation2 + $0x1f00] sm:$0xff]
    %v1048 = vld [vmem:[#allocation2 + $0x1f08] sm:$0xff]
    %v1049 = vld [vmem:[#allocation2 + $0x1f10] sm:$0xff]
    %v1050 = vld [vmem:[#allocation2 + $0x1f18] sm:$0xff]
    %v1051 = vld [vmem:[#allocation2 + $0x1f20] sm:$0xff]
    %v1052 = vld [vmem:[#allocation2 + $0x1f28] sm:$0xff]
    %v1053 = vld [vmem:[#allocation2 + $0x1f30] sm:$0xff]
    %v1054 = vld [vmem:[#allocation2 + $0x1f38] sm:$0xff]
    %v1055 = vld [vmem:[#allocation2 + $0x1f40] sm:$0xff]
    %v1056 = vld [vmem:[#allocation2 + $0x1f48] sm:$0xff]
    %v1057 = vld [vmem:[#allocation2 + $0x1f50] sm:$0xff]
    %v1058 = vld [vmem:[#allocation2 + $0x1f58] sm:$0xff]
    %v1059 = vld [vmem:[#allocation2 + $0x1f60] sm:$0xff]
    %v1060 = vld [vmem:[#allocation2 + $0x1f68] sm:$0xff]
    %v1061 = vld [vmem:[#allocation2 + $0x1f70] sm:$0xff]
    %v1062 = vld [vmem:[#allocation2 + $0x1f78] sm:$0xff]
    %v1063 = vld [vmem:[#allocation2 + $0x1f80] sm:$0xff]
    %v1064 = vld [vmem:[#allocation2 + $0x1f88] sm:$0xff]
    %v1065 = vld [vmem:[#allocation2 + $0x1f90] sm:$0xff]
    %v1066 = vld [vmem:[#allocation2 + $0x1f98] sm:$0xff]
    %v1067 = vld [vmem:[#allocation2 + $0x1fa0] sm:$0xff]
    %v1068 = vld [vmem:[#allocation2 + $0x1fa8] sm:$0xff]
    %v1069 = vld [vmem:[#allocation2 + $0x1fb0] sm:$0xff]
    %v1070 = vld [vmem:[#allocation2 + $0x1fb8] sm:$0xff]
    %v1071 = vld [vmem:[#allocation2 + $0x1fc0] sm:$0xff]
    %v1072 = vld [vmem:[#allocation2 + $0x1fc8] sm:$0xff]
    %v1073 = vld [vmem:[#allocation2 + $0x1fd0] sm:$0xff]
    %v1074 = vld [vmem:[#allocation2 + $0x1fd8] sm:$0xff]
    %v1075 = vld [vmem:[#allocation2 + $0x1fe0] sm:$0xff]
    %v1076 = vld [vmem:[#allocation2 + $0x1fe8] sm:$0xff]
    %v1077 = vld [vmem:[#allocation2 + $0x1ff0] sm:$0xff]
    %v1078 = vld [vmem:[#allocation2 + $0x1ff8] sm:$0xff]
    %v1079 = vunpack.c.l.s8.bf16 %v55
    %v1080 = vunpack.c.l.s8.bf16 %v56
    %v1081 = vunpack.c.l.s8.bf16 %v57
    %v1082 = vunpack.c.l.s8.bf16 %v58
    %v1083 = vunpack.c.l.s8.bf16 %v59
    %v1084 = vunpack.c.l.s8.bf16 %v60
    %v1085 = vunpack.c.l.s8.bf16 %v61
    %v1086 = vunpack.c.l.s8.bf16 %v62
    %v1087 = vunpack.c.h.s8.bf16 %v55
    %v1088 = vunpack.c.h.s8.bf16 %v56
    %v1089 = vunpack.c.h.s8.bf16 %v57
    %v1090 = vunpack.c.h.s8.bf16 %v58
    %v1091 = vunpack.c.h.s8.bf16 %v59
    %v1092 = vunpack.c.h.s8.bf16 %v60
    %v1093 = vunpack.c.h.s8.bf16 %v61
    %v1094 = vunpack.c.h.s8.bf16 %v62
    %v1095 = vunpack.c.l.s8.bf16 %v63
    %v1096 = vunpack.c.l.s8.bf16 %v64
    %v1097 = vunpack.c.l.s8.bf16 %v65
    %v1098 = vunpack.c.l.s8.bf16 %v66
    %v1099 = vunpack.c.l.s8.bf16 %v67
    %v1100 = vunpack.c.l.s8.bf16 %v68
    %v1101 = vunpack.c.l.s8.bf16 %v69
    %v1102 = vunpack.c.l.s8.bf16 %v70
    %v1103 = vunpack.c.h.s8.bf16 %v63
    %v1104 = vunpack.c.h.s8.bf16 %v64
    %v1105 = vunpack.c.h.s8.bf16 %v65
    %v1106 = vunpack.c.h.s8.bf16 %v66
    %v1107 = vunpack.c.h.s8.bf16 %v67
    %v1108 = vunpack.c.h.s8.bf16 %v68
    %v1109 = vunpack.c.h.s8.bf16 %v69
    %v1110 = vunpack.c.h.s8.bf16 %v70
    %v1111 = vunpack.c.l.s8.bf16 %v71
    %v1112 = vunpack.c.l.s8.bf16 %v72
    %v1113 = vunpack.c.l.s8.bf16 %v73
    %v1114 = vunpack.c.l.s8.bf16 %v74
    %v1115 = vunpack.c.l.s8.bf16 %v75
    %v1116 = vunpack.c.l.s8.bf16 %v76
    %v1117 = vunpack.c.l.s8.bf16 %v77
    %v1118 = vunpack.c.l.s8.bf16 %v78
    %v1119 = vunpack.c.h.s8.bf16 %v71
    %v1120 = vunpack.c.h.s8.bf16 %v72
    %v1121 = vunpack.c.h.s8.bf16 %v73
    %v1122 = vunpack.c.h.s8.bf16 %v74
    %v1123 = vunpack.c.h.s8.bf16 %v75
    %v1124 = vunpack.c.h.s8.bf16 %v76
    %v1125 = vunpack.c.h.s8.bf16 %v77
    %v1126 = vunpack.c.h.s8.bf16 %v78
    %v1127 = vunpack.c.l.s8.bf16 %v79
    %v1128 = vunpack.c.l.s8.bf16 %v80
    %v1129 = vunpack.c.l.s8.bf16 %v81
    %v1130 = vunpack.c.l.s8.bf16 %v82
    %v1131 = vunpack.c.l.s8.bf16 %v83
    %v1132 = vunpack.c.l.s8.bf16 %v84
    %v1133 = vunpack.c.l.s8.bf16 %v85
    %v1134 = vunpack.c.l.s8.bf16 %v86
    %v1135 = vunpack.c.h.s8.bf16 %v79
    %v1136 = vunpack.c.h.s8.bf16 %v80
    %v1137 = vunpack.c.h.s8.bf16 %v81
    %v1138 = vunpack.c.h.s8.bf16 %v82
    %v1139 = vunpack.c.h.s8.bf16 %v83
    %v1140 = vunpack.c.h.s8.bf16 %v84
    %v1141 = vunpack.c.h.s8.bf16 %v85
    %v1142 = vunpack.c.h.s8.bf16 %v86
    %v1143 = vunpack.c.l.s8.bf16 %v87
    %v1144 = vunpack.c.l.s8.bf16 %v88
    %v1145 = vunpack.c.l.s8.bf16 %v89
    %v1146 = vunpack.c.l.s8.bf16 %v90
    %v1147 = vunpack.c.l.s8.bf16 %v91
    %v1148 = vunpack.c.l.s8.bf16 %v92
    %v1149 = vunpack.c.l.s8.bf16 %v93
    %v1150 = vunpack.c.l.s8.bf16 %v94
    %v1151 = vunpack.c.h.s8.bf16 %v87
    %v1152 = vunpack.c.h.s8.bf16 %v88
    %v1153 = vunpack.c.h.s8.bf16 %v89
    %v1154 = vunpack.c.h.s8.bf16 %v90
    %v1155 = vunpack.c.h.s8.bf16 %v91
    %v1156 = vunpack.c.h.s8.bf16 %v92
    %v1157 = vunpack.c.h.s8.bf16 %v93
    %v1158 = vunpack.c.h.s8.bf16 %v94
    %v1159 = vunpack.c.l.s8.bf16 %v95
    %v1160 = vunpack.c.l.s8.bf16 %v96
    %v1161 = vunpack.c.l.s8.bf16 %v97
    %v1162 = vunpack.c.l.s8.bf16 %v98
    %v1163 = vunpack.c.l.s8.bf16 %v99
    %v1164 = vunpack.c.l.s8.bf16 %v100
    %v1165 = vunpack.c.l.s8.bf16 %v101
    %v1166 = vunpack.c.l.s8.bf16 %v102
    %v1167 = vunpack.c.h.s8.bf16 %v95
    %v1168 = vunpack.c.h.s8.bf16 %v96
    %v1169 = vunpack.c.h.s8.bf16 %v97
    %v1170 = vunpack.c.h.s8.bf16 %v98
    %v1171 = vunpack.c.h.s8.bf16 %v99
    %v1172 = vunpack.c.h.s8.bf16 %v100
    %v1173 = vunpack.c.h.s8.bf16 %v101
    %v1174 = vunpack.c.h.s8.bf16 %v102
    %v1175 = vunpack.c.l.s8.bf16 %v103
    %v1176 = vunpack.c.l.s8.bf16 %v104
    %v1177 = vunpack.c.l.s8.bf16 %v105
    %v1178 = vunpack.c.l.s8.bf16 %v106
    %v1179 = vunpack.c.l.s8.bf16 %v107
    %v1180 = vunpack.c.l.s8.bf16 %v108
    %v1181 = vunpack.c.l.s8.bf16 %v109
    %v1182 = vunpack.c.l.s8.bf16 %v110
    %v1183 = vunpack.c.h.s8.bf16 %v103
    %v1184 = vunpack.c.h.s8.bf16 %v104
    %v1185 = vunpack.c.h.s8.bf16 %v105
    %v1186 = vunpack.c.h.s8.bf16 %v106
    %v1187 = vunpack.c.h.s8.bf16 %v107
    %v1188 = vunpack.c.h.s8.bf16 %v108
    %v1189 = vunpack.c.h.s8.bf16 %v109
    %v1190 = vunpack.c.h.s8.bf16 %v110
    %v1191 = vunpack.c.l.s8.bf16 %v111
    %v1192 = vunpack.c.l.s8.bf16 %v112
    %v1193 = vunpack.c.l.s8.bf16 %v113
    %v1194 = vunpack.c.l.s8.bf16 %v114
    %v1195 = vunpack.c.l.s8.bf16 %v115
    %v1196 = vunpack.c.l.s8.bf16 %v116
    %v1197 = vunpack.c.l.s8.bf16 %v117
    %v1198 = vunpack.c.l.s8.bf16 %v118
    %v1199 = vunpack.c.h.s8.bf16 %v111
    %v1200 = vunpack.c.h.s8.bf16 %v112
    %v1201 = vunpack.c.h.s8.bf16 %v113
    %v1202 = vunpack.c.h.s8.bf16 %v114
    %v1203 = vunpack.c.h.s8.bf16 %v115
    %v1204 = vunpack.c.h.s8.bf16 %v116
    %v1205 = vunpack.c.h.s8.bf16 %v117
    %v1206 = vunpack.c.h.s8.bf16 %v118
    %v1207 = vunpack.c.l.s8.bf16 %v119
    %v1208 = vunpack.c.l.s8.bf16 %v120
    %v1209 = vunpack.c.l.s8.bf16 %v121
    %v1210 = vunpack.c.l.s8.bf16 %v122
    %v1211 = vunpack.c.l.s8.bf16 %v123
    %v1212 = vunpack.c.l.s8.bf16 %v124
    %v1213 = vunpack.c.l.s8.bf16 %v125
    %v1214 = vunpack.c.l.s8.bf16 %v126
    %v1215 = vunpack.c.h.s8.bf16 %v119
    %v1216 = vunpack.c.h.s8.bf16 %v120
    %v1217 = vunpack.c.h.s8.bf16 %v121
    %v1218 = vunpack.c.h.s8.bf16 %v122
    %v1219 = vunpack.c.h.s8.bf16 %v123
    %v1220 = vunpack.c.h.s8.bf16 %v124
    %v1221 = vunpack.c.h.s8.bf16 %v125
    %v1222 = vunpack.c.h.s8.bf16 %v126
    %v1223 = vunpack.c.l.s8.bf16 %v127
    %v1224 = vunpack.c.l.s8.bf16 %v128
    %v1225 = vunpack.c.l.s8.bf16 %v129
    %v1226 = vunpack.c.l.s8.bf16 %v130
    %v1227 = vunpack.c.l.s8.bf16 %v131
    %v1228 = vunpack.c.l.s8.bf16 %v132
    %v1229 = vunpack.c.l.s8.bf16 %v133
    %v1230 = vunpack.c.l.s8.bf16 %v134
    %v1231 = vunpack.c.h.s8.bf16 %v127
    %v1232 = vunpack.c.h.s8.bf16 %v128
    %v1233 = vunpack.c.h.s8.bf16 %v129
    %v1234 = vunpack.c.h.s8.bf16 %v130
    %v1235 = vunpack.c.h.s8.bf16 %v131
    %v1236 = vunpack.c.h.s8.bf16 %v132
    %v1237 = vunpack.c.h.s8.bf16 %v133
    %v1238 = vunpack.c.h.s8.bf16 %v134
    %v1239 = vunpack.c.l.s8.bf16 %v135
    %v1240 = vunpack.c.l.s8.bf16 %v136
    %v1241 = vunpack.c.l.s8.bf16 %v137
    %v1242 = vunpack.c.l.s8.bf16 %v138
    %v1243 = vunpack.c.l.s8.bf16 %v139
    %v1244 = vunpack.c.l.s8.bf16 %v140
    %v1245 = vunpack.c.l.s8.bf16 %v141
    %v1246 = vunpack.c.l.s8.bf16 %v142
    %v1247 = vunpack.c.h.s8.bf16 %v135
    %v1248 = vunpack.c.h.s8.bf16 %v136
    %v1249 = vunpack.c.h.s8.bf16 %v137
    %v1250 = vunpack.c.h.s8.bf16 %v138
    %v1251 = vunpack.c.h.s8.bf16 %v139
    %v1252 = vunpack.c.h.s8.bf16 %v140
    %v1253 = vunpack.c.h.s8.bf16 %v141
    %v1254 = vunpack.c.h.s8.bf16 %v142
    %v1255 = vunpack.c.l.s8.bf16 %v143
    %v1256 = vunpack.c.l.s8.bf16 %v144
    %v1257 = vunpack.c.l.s8.bf16 %v145
    %v1258 = vunpack.c.l.s8.bf16 %v146
    %v1259 = vunpack.c.l.s8.bf16 %v147
    %v1260 = vunpack.c.l.s8.bf16 %v148
    %v1261 = vunpack.c.l.s8.bf16 %v149
    %v1262 = vunpack.c.l.s8.bf16 %v150
    %v1263 = vunpack.c.h.s8.bf16 %v143
    %v1264 = vunpack.c.h.s8.bf16 %v144
    %v1265 = vunpack.c.h.s8.bf16 %v145
    %v1266 = vunpack.c.h.s8.bf16 %v146
    %v1267 = vunpack.c.h.s8.bf16 %v147
    %v1268 = vunpack.c.h.s8.bf16 %v148
    %v1269 = vunpack.c.h.s8.bf16 %v149
    %v1270 = vunpack.c.h.s8.bf16 %v150
    %v1271 = vunpack.c.l.s8.bf16 %v151
    %v1272 = vunpack.c.l.s8.bf16 %v152
    %v1273 = vunpack.c.l.s8.bf16 %v153
    %v1274 = vunpack.c.l.s8.bf16 %v154
    %v1275 = vunpack.c.l.s8.bf16 %v155
    %v1276 = vunpack.c.l.s8.bf16 %v156
    %v1277 = vunpack.c.l.s8.bf16 %v157
    %v1278 = vunpack.c.l.s8.bf16 %v158
    %v1279 = vunpack.c.h.s8.bf16 %v151
    %v1280 = vunpack.c.h.s8.bf16 %v152
    %v1281 = vunpack.c.h.s8.bf16 %v153
    %v1282 = vunpack.c.h.s8.bf16 %v154
    %v1283 = vunpack.c.h.s8.bf16 %v155
    %v1284 = vunpack.c.h.s8.bf16 %v156
    %v1285 = vunpack.c.h.s8.bf16 %v157
    %v1286 = vunpack.c.h.s8.bf16 %v158
    %v1287 = vunpack.c.l.s8.bf16 %v159
    %v1288 = vunpack.c.l.s8.bf16 %v160
    %v1289 = vunpack.c.l.s8.bf16 %v161
    %v1290 = vunpack.c.l.s8.bf16 %v162
    %v1291 = vunpack.c.l.s8.bf16 %v163
    %v1292 = vunpack.c.l.s8.bf16 %v164
    %v1293 = vunpack.c.l.s8.bf16 %v165
    %v1294 = vunpack.c.l.s8.bf16 %v166
    %v1295 = vunpack.c.h.s8.bf16 %v159
    %v1296 = vunpack.c.h.s8.bf16 %v160
    %v1297 = vunpack.c.h.s8.bf16 %v161
    %v1298 = vunpack.c.h.s8.bf16 %v162
    %v1299 = vunpack.c.h.s8.bf16 %v163
    %v1300 = vunpack.c.h.s8.bf16 %v164
    %v1301 = vunpack.c.h.s8.bf16 %v165
    %v1302 = vunpack.c.h.s8.bf16 %v166
    %v1303 = vunpack.c.l.s8.bf16 %v167
    %v1304 = vunpack.c.l.s8.bf16 %v168
    %v1305 = vunpack.c.l.s8.bf16 %v169
    %v1306 = vunpack.c.l.s8.bf16 %v170
    %v1307 = vunpack.c.l.s8.bf16 %v171
    %v1308 = vunpack.c.l.s8.bf16 %v172
    %v1309 = vunpack.c.l.s8.bf16 %v173
    %v1310 = vunpack.c.l.s8.bf16 %v174
    %v1311 = vunpack.c.h.s8.bf16 %v167
    %v1312 = vunpack.c.h.s8.bf16 %v168
    %v1313 = vunpack.c.h.s8.bf16 %v169
    %v1314 = vunpack.c.h.s8.bf16 %v170
    %v1315 = vunpack.c.h.s8.bf16 %v171
    %v1316 = vunpack.c.h.s8.bf16 %v172
    %v1317 = vunpack.c.h.s8.bf16 %v173
    %v1318 = vunpack.c.h.s8.bf16 %v174
    %v1319 = vunpack.c.l.s8.bf16 %v175
    %v1320 = vunpack.c.l.s8.bf16 %v176
    %v1321 = vunpack.c.l.s8.bf16 %v177
    %v1322 = vunpack.c.l.s8.bf16 %v178
    %v1323 = vunpack.c.l.s8.bf16 %v179
    %v1324 = vunpack.c.l.s8.bf16 %v180
    %v1325 = vunpack.c.l.s8.bf16 %v181
    %v1326 = vunpack.c.l.s8.bf16 %v182
    %v1327 = vunpack.c.h.s8.bf16 %v175
    %v1328 = vunpack.c.h.s8.bf16 %v176
    %v1329 = vunpack.c.h.s8.bf16 %v177
    %v1330 = vunpack.c.h.s8.bf16 %v178
    %v1331 = vunpack.c.h.s8.bf16 %v179
    %v1332 = vunpack.c.h.s8.bf16 %v180
    %v1333 = vunpack.c.h.s8.bf16 %v181
    %v1334 = vunpack.c.h.s8.bf16 %v182
    %v1335 = vunpack.c.l.s8.bf16 %v183
    %v1336 = vunpack.c.l.s8.bf16 %v184
    %v1337 = vunpack.c.l.s8.bf16 %v185
    %v1338 = vunpack.c.l.s8.bf16 %v186
    %v1339 = vunpack.c.l.s8.bf16 %v187
    %v1340 = vunpack.c.l.s8.bf16 %v188
    %v1341 = vunpack.c.l.s8.bf16 %v189
    %v1342 = vunpack.c.l.s8.bf16 %v190
    %v1343 = vunpack.c.h.s8.bf16 %v183
    %v1344 = vunpack.c.h.s8.bf16 %v184
    %v1345 = vunpack.c.h.s8.bf16 %v185
    %v1346 = vunpack.c.h.s8.bf16 %v186
    %v1347 = vunpack.c.h.s8.bf16 %v187
    %v1348 = vunpack.c.h.s8.bf16 %v188
    %v1349 = vunpack.c.h.s8.bf16 %v189
    %v1350 = vunpack.c.h.s8.bf16 %v190
    %v1351 = vunpack.c.l.s8.bf16 %v191
    %v1352 = vunpack.c.l.s8.bf16 %v192
    %v1353 = vunpack.c.l.s8.bf16 %v193
    %v1354 = vunpack.c.l.s8.bf16 %v194
    %v1355 = vunpack.c.l.s8.bf16 %v195
    %v1356 = vunpack.c.l.s8.bf16 %v196
    %v1357 = vunpack.c.l.s8.bf16 %v197
    %v1358 = vunpack.c.l.s8.bf16 %v198
    %v1359 = vunpack.c.h.s8.bf16 %v191
    %v1360 = vunpack.c.h.s8.bf16 %v192
    %v1361 = vunpack.c.h.s8.bf16 %v193
    %v1362 = vunpack.c.h.s8.bf16 %v194
    %v1363 = vunpack.c.h.s8.bf16 %v195
    %v1364 = vunpack.c.h.s8.bf16 %v196
    %v1365 = vunpack.c.h.s8.bf16 %v197
    %v1366 = vunpack.c.h.s8.bf16 %v198
    %v1367 = vunpack.c.l.s8.bf16 %v199
    %v1368 = vunpack.c.l.s8.bf16 %v200
    %v1369 = vunpack.c.l.s8.bf16 %v201
    %v1370 = vunpack.c.l.s8.bf16 %v202
    %v1371 = vunpack.c.l.s8.bf16 %v203
    %v1372 = vunpack.c.l.s8.bf16 %v204
    %v1373 = vunpack.c.l.s8.bf16 %v205
    %v1374 = vunpack.c.l.s8.bf16 %v206
    %v1375 = vunpack.c.h.s8.bf16 %v199
    %v1376 = vunpack.c.h.s8.bf16 %v200
    %v1377 = vunpack.c.h.s8.bf16 %v201
    %v1378 = vunpack.c.h.s8.bf16 %v202
    %v1379 = vunpack.c.h.s8.bf16 %v203
    %v1380 = vunpack.c.h.s8.bf16 %v204
    %v1381 = vunpack.c.h.s8.bf16 %v205
    %v1382 = vunpack.c.h.s8.bf16 %v206
    %v1383 = vunpack.c.l.s8.bf16 %v207
    %v1384 = vunpack.c.l.s8.bf16 %v208
    %v1385 = vunpack.c.l.s8.bf16 %v209
    %v1386 = vunpack.c.l.s8.bf16 %v210
    %v1387 = vunpack.c.l.s8.bf16 %v211
    %v1388 = vunpack.c.l.s8.bf16 %v212
    %v1389 = vunpack.c.l.s8.bf16 %v213
    %v1390 = vunpack.c.l.s8.bf16 %v214
    %v1391 = vunpack.c.h.s8.bf16 %v207
    %v1392 = vunpack.c.h.s8.bf16 %v208
    %v1393 = vunpack.c.h.s8.bf16 %v209
    %v1394 = vunpack.c.h.s8.bf16 %v210
    %v1395 = vunpack.c.h.s8.bf16 %v211
    %v1396 = vunpack.c.h.s8.bf16 %v212
    %v1397 = vunpack.c.h.s8.bf16 %v213
    %v1398 = vunpack.c.h.s8.bf16 %v214
    %v1399 = vunpack.c.l.s8.bf16 %v215
    %v1400 = vunpack.c.l.s8.bf16 %v216
    %v1401 = vunpack.c.l.s8.bf16 %v217
    %v1402 = vunpack.c.l.s8.bf16 %v218
    %v1403 = vunpack.c.l.s8.bf16 %v219
    %v1404 = vunpack.c.l.s8.bf16 %v220
    %v1405 = vunpack.c.l.s8.bf16 %v221
    %v1406 = vunpack.c.l.s8.bf16 %v222
    %v1407 = vunpack.c.h.s8.bf16 %v215
    %v1408 = vunpack.c.h.s8.bf16 %v216
    %v1409 = vunpack.c.h.s8.bf16 %v217
    %v1410 = vunpack.c.h.s8.bf16 %v218
    %v1411 = vunpack.c.h.s8.bf16 %v219
    %v1412 = vunpack.c.h.s8.bf16 %v220
    %v1413 = vunpack.c.h.s8.bf16 %v221
    %v1414 = vunpack.c.h.s8.bf16 %v222
    %v1415 = vunpack.c.l.s8.bf16 %v223
    %v1416 = vunpack.c.l.s8.bf16 %v224
    %v1417 = vunpack.c.l.s8.bf16 %v225
    %v1418 = vunpack.c.l.s8.bf16 %v226
    %v1419 = vunpack.c.l.s8.bf16 %v227
    %v1420 = vunpack.c.l.s8.bf16 %v228
    %v1421 = vunpack.c.l.s8.bf16 %v229
    %v1422 = vunpack.c.l.s8.bf16 %v230
    %v1423 = vunpack.c.h.s8.bf16 %v223
    %v1424 = vunpack.c.h.s8.bf16 %v224
    %v1425 = vunpack.c.h.s8.bf16 %v225
    %v1426 = vunpack.c.h.s8.bf16 %v226
    %v1427 = vunpack.c.h.s8.bf16 %v227
    %v1428 = vunpack.c.h.s8.bf16 %v228
    %v1429 = vunpack.c.h.s8.bf16 %v229
    %v1430 = vunpack.c.h.s8.bf16 %v230
    %v1431 = vunpack.c.l.s8.bf16 %v231
    %v1432 = vunpack.c.l.s8.bf16 %v232
    %v1433 = vunpack.c.l.s8.bf16 %v233
    %v1434 = vunpack.c.l.s8.bf16 %v234
    %v1435 = vunpack.c.l.s8.bf16 %v235
    %v1436 = vunpack.c.l.s8.bf16 %v236
    %v1437 = vunpack.c.l.s8.bf16 %v237
    %v1438 = vunpack.c.l.s8.bf16 %v238
    %v1439 = vunpack.c.h.s8.bf16 %v231
    %v1440 = vunpack.c.h.s8.bf16 %v232
    %v1441 = vunpack.c.h.s8.bf16 %v233
    %v1442 = vunpack.c.h.s8.bf16 %v234
    %v1443 = vunpack.c.h.s8.bf16 %v235
    %v1444 = vunpack.c.h.s8.bf16 %v236
    %v1445 = vunpack.c.h.s8.bf16 %v237
    %v1446 = vunpack.c.h.s8.bf16 %v238
    %v1447 = vunpack.c.l.s8.bf16 %v239
    %v1448 = vunpack.c.l.s8.bf16 %v240
    %v1449 = vunpack.c.l.s8.bf16 %v241
    %v1450 = vunpack.c.l.s8.bf16 %v242
    %v1451 = vunpack.c.l.s8.bf16 %v243
    %v1452 = vunpack.c.l.s8.bf16 %v244
    %v1453 = vunpack.c.l.s8.bf16 %v245
    %v1454 = vunpack.c.l.s8.bf16 %v246
    %v1455 = vunpack.c.h.s8.bf16 %v239
    %v1456 = vunpack.c.h.s8.bf16 %v240
    %v1457 = vunpack.c.h.s8.bf16 %v241
    %v1458 = vunpack.c.h.s8.bf16 %v242
    %v1459 = vunpack.c.h.s8.bf16 %v243
    %v1460 = vunpack.c.h.s8.bf16 %v244
    %v1461 = vunpack.c.h.s8.bf16 %v245
    %v1462 = vunpack.c.h.s8.bf16 %v246
    %v1463 = vunpack.c.l.s8.bf16 %v247
    %v1464 = vunpack.c.l.s8.bf16 %v248
    %v1465 = vunpack.c.l.s8.bf16 %v249
    %v1466 = vunpack.c.l.s8.bf16 %v250
    %v1467 = vunpack.c.l.s8.bf16 %v251
    %v1468 = vunpack.c.l.s8.bf16 %v252
    %v1469 = vunpack.c.l.s8.bf16 %v253
    %v1470 = vunpack.c.l.s8.bf16 %v254
    %v1471 = vunpack.c.h.s8.bf16 %v247
    %v1472 = vunpack.c.h.s8.bf16 %v248
    %v1473 = vunpack.c.h.s8.bf16 %v249
    %v1474 = vunpack.c.h.s8.bf16 %v250
    %v1475 = vunpack.c.h.s8.bf16 %v251
    %v1476 = vunpack.c.h.s8.bf16 %v252
    %v1477 = vunpack.c.h.s8.bf16 %v253
    %v1478 = vunpack.c.h.s8.bf16 %v254
    %v1479 = vunpack.c.l.s8.bf16 %v255
    %v1480 = vunpack.c.l.s8.bf16 %v256
    %v1481 = vunpack.c.l.s8.bf16 %v257
    %v1482 = vunpack.c.l.s8.bf16 %v258
    %v1483 = vunpack.c.l.s8.bf16 %v259
    %v1484 = vunpack.c.l.s8.bf16 %v260
    %v1485 = vunpack.c.l.s8.bf16 %v261
    %v1486 = vunpack.c.l.s8.bf16 %v262
    %v1487 = vunpack.c.h.s8.bf16 %v255
    %v1488 = vunpack.c.h.s8.bf16 %v256
    %v1489 = vunpack.c.h.s8.bf16 %v257
    %v1490 = vunpack.c.h.s8.bf16 %v258
    %v1491 = vunpack.c.h.s8.bf16 %v259
    %v1492 = vunpack.c.h.s8.bf16 %v260
    %v1493 = vunpack.c.h.s8.bf16 %v261
    %v1494 = vunpack.c.h.s8.bf16 %v262
    %v1495 = vunpack.c.l.s8.bf16 %v263
    %v1496 = vunpack.c.l.s8.bf16 %v264
    %v1497 = vunpack.c.l.s8.bf16 %v265
    %v1498 = vunpack.c.l.s8.bf16 %v266
    %v1499 = vunpack.c.l.s8.bf16 %v267
    %v1500 = vunpack.c.l.s8.bf16 %v268
    %v1501 = vunpack.c.l.s8.bf16 %v269
    %v1502 = vunpack.c.l.s8.bf16 %v270
    %v1503 = vunpack.c.h.s8.bf16 %v263
    %v1504 = vunpack.c.h.s8.bf16 %v264
    %v1505 = vunpack.c.h.s8.bf16 %v265
    %v1506 = vunpack.c.h.s8.bf16 %v266
    %v1507 = vunpack.c.h.s8.bf16 %v267
    %v1508 = vunpack.c.h.s8.bf16 %v268
    %v1509 = vunpack.c.h.s8.bf16 %v269
    %v1510 = vunpack.c.h.s8.bf16 %v270
    %v1511 = vunpack.c.l.s8.bf16 %v271
    %v1512 = vunpack.c.l.s8.bf16 %v272
    %v1513 = vunpack.c.l.s8.bf16 %v273
    %v1514 = vunpack.c.l.s8.bf16 %v274
    %v1515 = vunpack.c.l.s8.bf16 %v275
    %v1516 = vunpack.c.l.s8.bf16 %v276
    %v1517 = vunpack.c.l.s8.bf16 %v277
    %v1518 = vunpack.c.l.s8.bf16 %v278
    %v1519 = vunpack.c.h.s8.bf16 %v271
    %v1520 = vunpack.c.h.s8.bf16 %v272
    %v1521 = vunpack.c.h.s8.bf16 %v273
    %v1522 = vunpack.c.h.s8.bf16 %v274
    %v1523 = vunpack.c.h.s8.bf16 %v275
    %v1524 = vunpack.c.h.s8.bf16 %v276
    %v1525 = vunpack.c.h.s8.bf16 %v277
    %v1526 = vunpack.c.h.s8.bf16 %v278
    %v1527 = vunpack.c.l.s8.bf16 %v279
    %v1528 = vunpack.c.l.s8.bf16 %v280
    %v1529 = vunpack.c.l.s8.bf16 %v281
    %v1530 = vunpack.c.l.s8.bf16 %v282
    %v1531 = vunpack.c.l.s8.bf16 %v283
    %v1532 = vunpack.c.l.s8.bf16 %v284
    %v1533 = vunpack.c.l.s8.bf16 %v285
    %v1534 = vunpack.c.l.s8.bf16 %v286
    %v1535 = vunpack.c.h.s8.bf16 %v279
    %v1536 = vunpack.c.h.s8.bf16 %v280
    %v1537 = vunpack.c.h.s8.bf16 %v281
    %v1538 = vunpack.c.h.s8.bf16 %v282
    %v1539 = vunpack.c.h.s8.bf16 %v283
    %v1540 = vunpack.c.h.s8.bf16 %v284
    %v1541 = vunpack.c.h.s8.bf16 %v285
    %v1542 = vunpack.c.h.s8.bf16 %v286
    %v1543 = vunpack.c.l.s8.bf16 %v287
    %v1544 = vunpack.c.l.s8.bf16 %v288
    %v1545 = vunpack.c.l.s8.bf16 %v289
    %v1546 = vunpack.c.l.s8.bf16 %v290
    %v1547 = vunpack.c.l.s8.bf16 %v291
    %v1548 = vunpack.c.l.s8.bf16 %v292
    %v1549 = vunpack.c.l.s8.bf16 %v293
    %v1550 = vunpack.c.l.s8.bf16 %v294
    %v1551 = vunpack.c.h.s8.bf16 %v287
    %v1552 = vunpack.c.h.s8.bf16 %v288
    %v1553 = vunpack.c.h.s8.bf16 %v289
    %v1554 = vunpack.c.h.s8.bf16 %v290
    %v1555 = vunpack.c.h.s8.bf16 %v291
    %v1556 = vunpack.c.h.s8.bf16 %v292
    %v1557 = vunpack.c.h.s8.bf16 %v293
    %v1558 = vunpack.c.h.s8.bf16 %v294
    %v1559 = vunpack.c.l.s8.bf16 %v295
    %v1560 = vunpack.c.l.s8.bf16 %v296
    %v1561 = vunpack.c.l.s8.bf16 %v297
    %v1562 = vunpack.c.l.s8.bf16 %v298
    %v1563 = vunpack.c.l.s8.bf16 %v299
    %v1564 = vunpack.c.l.s8.bf16 %v300
    %v1565 = vunpack.c.l.s8.bf16 %v301
    %v1566 = vunpack.c.l.s8.bf16 %v302
    %v1567 = vunpack.c.h.s8.bf16 %v295
    %v1568 = vunpack.c.h.s8.bf16 %v296
    %v1569 = vunpack.c.h.s8.bf16 %v297
    %v1570 = vunpack.c.h.s8.bf16 %v298
    %v1571 = vunpack.c.h.s8.bf16 %v299
    %v1572 = vunpack.c.h.s8.bf16 %v300
    %v1573 = vunpack.c.h.s8.bf16 %v301
    %v1574 = vunpack.c.h.s8.bf16 %v302
    %v1575 = vunpack.c.l.s8.bf16 %v303
    %v1576 = vunpack.c.l.s8.bf16 %v304
    %v1577 = vunpack.c.l.s8.bf16 %v305
    %v1578 = vunpack.c.l.s8.bf16 %v306
    %v1579 = vunpack.c.l.s8.bf16 %v307
    %v1580 = vunpack.c.l.s8.bf16 %v308
    %v1581 = vunpack.c.l.s8.bf16 %v309
    %v1582 = vunpack.c.l.s8.bf16 %v310
    %v1583 = vunpack.c.h.s8.bf16 %v303
    %v1584 = vunpack.c.h.s8.bf16 %v304
    %v1585 = vunpack.c.h.s8.bf16 %v305
    %v1586 = vunpack.c.h.s8.bf16 %v306
    %v1587 = vunpack.c.h.s8.bf16 %v307
    %v1588 = vunpack.c.h.s8.bf16 %v308
    %v1589 = vunpack.c.h.s8.bf16 %v309
    %v1590 = vunpack.c.h.s8.bf16 %v310
    %v1591 = vunpack.c.l.s8.bf16 %v311
    %v1592 = vunpack.c.l.s8.bf16 %v312
    %v1593 = vunpack.c.l.s8.bf16 %v313
    %v1594 = vunpack.c.l.s8.bf16 %v314
    %v1595 = vunpack.c.l.s8.bf16 %v315
    %v1596 = vunpack.c.l.s8.bf16 %v316
    %v1597 = vunpack.c.l.s8.bf16 %v317
    %v1598 = vunpack.c.l.s8.bf16 %v318
    %v1599 = vunpack.c.h.s8.bf16 %v311
    %v1600 = vunpack.c.h.s8.bf16 %v312
    %v1601 = vunpack.c.h.s8.bf16 %v313
    %v1602 = vunpack.c.h.s8.bf16 %v314
    %v1603 = vunpack.c.h.s8.bf16 %v315
    %v1604 = vunpack.c.h.s8.bf16 %v316
    %v1605 = vunpack.c.h.s8.bf16 %v317
    %v1606 = vunpack.c.h.s8.bf16 %v318
    %v1607 = vunpack.c.l.s8.bf16 %v319
    %v1608 = vunpack.c.l.s8.bf16 %v320
    %v1609 = vunpack.c.l.s8.bf16 %v321
    %v1610 = vunpack.c.l.s8.bf16 %v322
    %v1611 = vunpack.c.l.s8.bf16 %v323
    %v1612 = vunpack.c.l.s8.bf16 %v324
    %v1613 = vunpack.c.l.s8.bf16 %v325
    %v1614 = vunpack.c.l.s8.bf16 %v326
    %v1615 = vunpack.c.h.s8.bf16 %v319
    %v1616 = vunpack.c.h.s8.bf16 %v320
    %v1617 = vunpack.c.h.s8.bf16 %v321
    %v1618 = vunpack.c.h.s8.bf16 %v322
    %v1619 = vunpack.c.h.s8.bf16 %v323
    %v1620 = vunpack.c.h.s8.bf16 %v324
    %v1621 = vunpack.c.h.s8.bf16 %v325
    %v1622 = vunpack.c.h.s8.bf16 %v326
    %v1623 = vunpack.c.l.s8.bf16 %v327
    %v1624 = vunpack.c.l.s8.bf16 %v328
    %v1625 = vunpack.c.l.s8.bf16 %v329
    %v1626 = vunpack.c.l.s8.bf16 %v330
    %v1627 = vunpack.c.l.s8.bf16 %v331
    %v1628 = vunpack.c.l.s8.bf16 %v332
    %v1629 = vunpack.c.l.s8.bf16 %v333
    %v1630 = vunpack.c.l.s8.bf16 %v334
    %v1631 = vunpack.c.h.s8.bf16 %v327
    %v1632 = vunpack.c.h.s8.bf16 %v328
    %v1633 = vunpack.c.h.s8.bf16 %v329
    %v1634 = vunpack.c.h.s8.bf16 %v330
    %v1635 = vunpack.c.h.s8.bf16 %v331
    %v1636 = vunpack.c.h.s8.bf16 %v332
    %v1637 = vunpack.c.h.s8.bf16 %v333
    %v1638 = vunpack.c.h.s8.bf16 %v334
    %v1639 = vunpack.c.l.s8.bf16 %v335
    %v1640 = vunpack.c.l.s8.bf16 %v336
    %v1641 = vunpack.c.l.s8.bf16 %v337
    %v1642 = vunpack.c.l.s8.bf16 %v338
    %v1643 = vunpack.c.l.s8.bf16 %v339
    %v1644 = vunpack.c.l.s8.bf16 %v340
    %v1645 = vunpack.c.l.s8.bf16 %v341
    %v1646 = vunpack.c.l.s8.bf16 %v342
    %v1647 = vunpack.c.h.s8.bf16 %v335
    %v1648 = vunpack.c.h.s8.bf16 %v336
    %v1649 = vunpack.c.h.s8.bf16 %v337
    %v1650 = vunpack.c.h.s8.bf16 %v338
    %v1651 = vunpack.c.h.s8.bf16 %v339
    %v1652 = vunpack.c.h.s8.bf16 %v340
    %v1653 = vunpack.c.h.s8.bf16 %v341
    %v1654 = vunpack.c.h.s8.bf16 %v342
    %v1655 = vunpack.c.l.s8.bf16 %v343
    %v1656 = vunpack.c.l.s8.bf16 %v344
    %v1657 = vunpack.c.l.s8.bf16 %v345
    %v1658 = vunpack.c.l.s8.bf16 %v346
    %v1659 = vunpack.c.l.s8.bf16 %v347
    %v1660 = vunpack.c.l.s8.bf16 %v348
    %v1661 = vunpack.c.l.s8.bf16 %v349
    %v1662 = vunpack.c.l.s8.bf16 %v350
    %v1663 = vunpack.c.h.s8.bf16 %v343
    %v1664 = vunpack.c.h.s8.bf16 %v344
    %v1665 = vunpack.c.h.s8.bf16 %v345
    %v1666 = vunpack.c.h.s8.bf16 %v346
    %v1667 = vunpack.c.h.s8.bf16 %v347
    %v1668 = vunpack.c.h.s8.bf16 %v348
    %v1669 = vunpack.c.h.s8.bf16 %v349
    %v1670 = vunpack.c.h.s8.bf16 %v350
    %v1671 = vunpack.c.l.s8.bf16 %v351
    %v1672 = vunpack.c.l.s8.bf16 %v352
    %v1673 = vunpack.c.l.s8.bf16 %v353
    %v1674 = vunpack.c.l.s8.bf16 %v354
    %v1675 = vunpack.c.l.s8.bf16 %v355
    %v1676 = vunpack.c.l.s8.bf16 %v356
    %v1677 = vunpack.c.l.s8.bf16 %v357
    %v1678 = vunpack.c.l.s8.bf16 %v358
    %v1679 = vunpack.c.h.s8.bf16 %v351
    %v1680 = vunpack.c.h.s8.bf16 %v352
    %v1681 = vunpack.c.h.s8.bf16 %v353
    %v1682 = vunpack.c.h.s8.bf16 %v354
    %v1683 = vunpack.c.h.s8.bf16 %v355
    %v1684 = vunpack.c.h.s8.bf16 %v356
    %v1685 = vunpack.c.h.s8.bf16 %v357
    %v1686 = vunpack.c.h.s8.bf16 %v358
    %v1687 = vunpack.c.l.s8.bf16 %v359
    %v1688 = vunpack.c.l.s8.bf16 %v360
    %v1689 = vunpack.c.l.s8.bf16 %v361
    %v1690 = vunpack.c.l.s8.bf16 %v362
    %v1691 = vunpack.c.l.s8.bf16 %v363
    %v1692 = vunpack.c.l.s8.bf16 %v364
    %v1693 = vunpack.c.l.s8.bf16 %v365
    %v1694 = vunpack.c.l.s8.bf16 %v366
    %v1695 = vunpack.c.h.s8.bf16 %v359
    %v1696 = vunpack.c.h.s8.bf16 %v360
    %v1697 = vunpack.c.h.s8.bf16 %v361
    %v1698 = vunpack.c.h.s8.bf16 %v362
    %v1699 = vunpack.c.h.s8.bf16 %v363
    %v1700 = vunpack.c.h.s8.bf16 %v364
    %v1701 = vunpack.c.h.s8.bf16 %v365
    %v1702 = vunpack.c.h.s8.bf16 %v366
    %v1703 = vunpack.c.l.s8.bf16 %v367
    %v1704 = vunpack.c.l.s8.bf16 %v368
    %v1705 = vunpack.c.l.s8.bf16 %v369
    %v1706 = vunpack.c.l.s8.bf16 %v370
    %v1707 = vunpack.c.l.s8.bf16 %v371
    %v1708 = vunpack.c.l.s8.bf16 %v372
    %v1709 = vunpack.c.l.s8.bf16 %v373
    %v1710 = vunpack.c.l.s8.bf16 %v374
    %v1711 = vunpack.c.h.s8.bf16 %v367
    %v1712 = vunpack.c.h.s8.bf16 %v368
    %v1713 = vunpack.c.h.s8.bf16 %v369
    %v1714 = vunpack.c.h.s8.bf16 %v370
    %v1715 = vunpack.c.h.s8.bf16 %v371
    %v1716 = vunpack.c.h.s8.bf16 %v372
    %v1717 = vunpack.c.h.s8.bf16 %v373
    %v1718 = vunpack.c.h.s8.bf16 %v374
    %v1719 = vunpack.c.l.s8.bf16 %v375
    %v1720 = vunpack.c.l.s8.bf16 %v376
    %v1721 = vunpack.c.l.s8.bf16 %v377
    %v1722 = vunpack.c.l.s8.bf16 %v378
    %v1723 = vunpack.c.l.s8.bf16 %v379
    %v1724 = vunpack.c.l.s8.bf16 %v380
    %v1725 = vunpack.c.l.s8.bf16 %v381
    %v1726 = vunpack.c.l.s8.bf16 %v382
    %v1727 = vunpack.c.h.s8.bf16 %v375
    %v1728 = vunpack.c.h.s8.bf16 %v376
    %v1729 = vunpack.c.h.s8.bf16 %v377
    %v1730 = vunpack.c.h.s8.bf16 %v378
    %v1731 = vunpack.c.h.s8.bf16 %v379
    %v1732 = vunpack.c.h.s8.bf16 %v380
    %v1733 = vunpack.c.h.s8.bf16 %v381
    %v1734 = vunpack.c.h.s8.bf16 %v382
    %v1735 = vunpack.c.l.s8.bf16 %v383
    %v1736 = vunpack.c.l.s8.bf16 %v384
    %v1737 = vunpack.c.l.s8.bf16 %v385
    %v1738 = vunpack.c.l.s8.bf16 %v386
    %v1739 = vunpack.c.l.s8.bf16 %v387
    %v1740 = vunpack.c.l.s8.bf16 %v388
    %v1741 = vunpack.c.l.s8.bf16 %v389
    %v1742 = vunpack.c.l.s8.bf16 %v390
    %v1743 = vunpack.c.h.s8.bf16 %v383
    %v1744 = vunpack.c.h.s8.bf16 %v384
    %v1745 = vunpack.c.h.s8.bf16 %v385
    %v1746 = vunpack.c.h.s8.bf16 %v386
    %v1747 = vunpack.c.h.s8.bf16 %v387
    %v1748 = vunpack.c.h.s8.bf16 %v388
    %v1749 = vunpack.c.h.s8.bf16 %v389
    %v1750 = vunpack.c.h.s8.bf16 %v390
    %v1751 = vunpack.c.l.s8.bf16 %v391
    %v1752 = vunpack.c.l.s8.bf16 %v392
    %v1753 = vunpack.c.l.s8.bf16 %v393
    %v1754 = vunpack.c.l.s8.bf16 %v394
    %v1755 = vunpack.c.l.s8.bf16 %v395
    %v1756 = vunpack.c.l.s8.bf16 %v396
    %v1757 = vunpack.c.l.s8.bf16 %v397
    %v1758 = vunpack.c.l.s8.bf16 %v398
    %v1759 = vunpack.c.h.s8.bf16 %v391
    %v1760 = vunpack.c.h.s8.bf16 %v392
    %v1761 = vunpack.c.h.s8.bf16 %v393
    %v1762 = vunpack.c.h.s8.bf16 %v394
    %v1763 = vunpack.c.h.s8.bf16 %v395
    %v1764 = vunpack.c.h.s8.bf16 %v396
    %v1765 = vunpack.c.h.s8.bf16 %v397
    %v1766 = vunpack.c.h.s8.bf16 %v398
    %v1767 = vunpack.c.l.s8.bf16 %v399
    %v1768 = vunpack.c.l.s8.bf16 %v400
    %v1769 = vunpack.c.l.s8.bf16 %v401
    %v1770 = vunpack.c.l.s8.bf16 %v402
    %v1771 = vunpack.c.l.s8.bf16 %v403
    %v1772 = vunpack.c.l.s8.bf16 %v404
    %v1773 = vunpack.c.l.s8.bf16 %v405
    %v1774 = vunpack.c.l.s8.bf16 %v406
    %v1775 = vunpack.c.h.s8.bf16 %v399
    %v1776 = vunpack.c.h.s8.bf16 %v400
    %v1777 = vunpack.c.h.s8.bf16 %v401
    %v1778 = vunpack.c.h.s8.bf16 %v402
    %v1779 = vunpack.c.h.s8.bf16 %v403
    %v1780 = vunpack.c.h.s8.bf16 %v404
    %v1781 = vunpack.c.h.s8.bf16 %v405
    %v1782 = vunpack.c.h.s8.bf16 %v406
    %v1783 = vunpack.c.l.s8.bf16 %v407
    %v1784 = vunpack.c.l.s8.bf16 %v408
    %v1785 = vunpack.c.l.s8.bf16 %v409
    %v1786 = vunpack.c.l.s8.bf16 %v410
    %v1787 = vunpack.c.l.s8.bf16 %v411
    %v1788 = vunpack.c.l.s8.bf16 %v412
    %v1789 = vunpack.c.l.s8.bf16 %v413
    %v1790 = vunpack.c.l.s8.bf16 %v414
    %v1791 = vunpack.c.h.s8.bf16 %v407
    %v1792 = vunpack.c.h.s8.bf16 %v408
    %v1793 = vunpack.c.h.s8.bf16 %v409
    %v1794 = vunpack.c.h.s8.bf16 %v410
    %v1795 = vunpack.c.h.s8.bf16 %v411
    %v1796 = vunpack.c.h.s8.bf16 %v412
    %v1797 = vunpack.c.h.s8.bf16 %v413
    %v1798 = vunpack.c.h.s8.bf16 %v414
    %v1799 = vunpack.c.l.s8.bf16 %v415
    %v1800 = vunpack.c.l.s8.bf16 %v416
    %v1801 = vunpack.c.l.s8.bf16 %v417
    %v1802 = vunpack.c.l.s8.bf16 %v418
    %v1803 = vunpack.c.l.s8.bf16 %v419
    %v1804 = vunpack.c.l.s8.bf16 %v420
    %v1805 = vunpack.c.l.s8.bf16 %v421
    %v1806 = vunpack.c.l.s8.bf16 %v422
    %v1807 = vunpack.c.h.s8.bf16 %v415
    %v1808 = vunpack.c.h.s8.bf16 %v416
    %v1809 = vunpack.c.h.s8.bf16 %v417
    %v1810 = vunpack.c.h.s8.bf16 %v418
    %v1811 = vunpack.c.h.s8.bf16 %v419
    %v1812 = vunpack.c.h.s8.bf16 %v420
    %v1813 = vunpack.c.h.s8.bf16 %v421
    %v1814 = vunpack.c.h.s8.bf16 %v422
    %v1815 = vunpack.c.l.s8.bf16 %v423
    %v1816 = vunpack.c.l.s8.bf16 %v424
    %v1817 = vunpack.c.l.s8.bf16 %v425
    %v1818 = vunpack.c.l.s8.bf16 %v426
    %v1819 = vunpack.c.l.s8.bf16 %v427
    %v1820 = vunpack.c.l.s8.bf16 %v428
    %v1821 = vunpack.c.l.s8.bf16 %v429
    %v1822 = vunpack.c.l.s8.bf16 %v430
    %v1823 = vunpack.c.h.s8.bf16 %v423
    %v1824 = vunpack.c.h.s8.bf16 %v424
    %v1825 = vunpack.c.h.s8.bf16 %v425
    %v1826 = vunpack.c.h.s8.bf16 %v426
    %v1827 = vunpack.c.h.s8.bf16 %v427
    %v1828 = vunpack.c.h.s8.bf16 %v428
    %v1829 = vunpack.c.h.s8.bf16 %v429
    %v1830 = vunpack.c.h.s8.bf16 %v430
    %v1831 = vunpack.c.l.s8.bf16 %v431
    %v1832 = vunpack.c.l.s8.bf16 %v432
    %v1833 = vunpack.c.l.s8.bf16 %v433
    %v1834 = vunpack.c.l.s8.bf16 %v434
    %v1835 = vunpack.c.l.s8.bf16 %v435
    %v1836 = vunpack.c.l.s8.bf16 %v436
    %v1837 = vunpack.c.l.s8.bf16 %v437
    %v1838 = vunpack.c.l.s8.bf16 %v438
    %v1839 = vunpack.c.h.s8.bf16 %v431
    %v1840 = vunpack.c.h.s8.bf16 %v432
    %v1841 = vunpack.c.h.s8.bf16 %v433
    %v1842 = vunpack.c.h.s8.bf16 %v434
    %v1843 = vunpack.c.h.s8.bf16 %v435
    %v1844 = vunpack.c.h.s8.bf16 %v436
    %v1845 = vunpack.c.h.s8.bf16 %v437
    %v1846 = vunpack.c.h.s8.bf16 %v438
    %v1847 = vunpack.c.l.s8.bf16 %v439
    %v1848 = vunpack.c.l.s8.bf16 %v440
    %v1849 = vunpack.c.l.s8.bf16 %v441
    %v1850 = vunpack.c.l.s8.bf16 %v442
    %v1851 = vunpack.c.l.s8.bf16 %v443
    %v1852 = vunpack.c.l.s8.bf16 %v444
    %v1853 = vunpack.c.l.s8.bf16 %v445
    %v1854 = vunpack.c.l.s8.bf16 %v446
    %v1855 = vunpack.c.h.s8.bf16 %v439
    %v1856 = vunpack.c.h.s8.bf16 %v440
    %v1857 = vunpack.c.h.s8.bf16 %v441
    %v1858 = vunpack.c.h.s8.bf16 %v442
    %v1859 = vunpack.c.h.s8.bf16 %v443
    %v1860 = vunpack.c.h.s8.bf16 %v444
    %v1861 = vunpack.c.h.s8.bf16 %v445
    %v1862 = vunpack.c.h.s8.bf16 %v446
    %v1863 = vunpack.c.l.s8.bf16 %v447
    %v1864 = vunpack.c.l.s8.bf16 %v448
    %v1865 = vunpack.c.l.s8.bf16 %v449
    %v1866 = vunpack.c.l.s8.bf16 %v450
    %v1867 = vunpack.c.l.s8.bf16 %v451
    %v1868 = vunpack.c.l.s8.bf16 %v452
    %v1869 = vunpack.c.l.s8.bf16 %v453
    %v1870 = vunpack.c.l.s8.bf16 %v454
    %v1871 = vunpack.c.h.s8.bf16 %v447
    %v1872 = vunpack.c.h.s8.bf16 %v448
    %v1873 = vunpack.c.h.s8.bf16 %v449
    %v1874 = vunpack.c.h.s8.bf16 %v450
    %v1875 = vunpack.c.h.s8.bf16 %v451
    %v1876 = vunpack.c.h.s8.bf16 %v452
    %v1877 = vunpack.c.h.s8.bf16 %v453
    %v1878 = vunpack.c.h.s8.bf16 %v454
    %v1879 = vunpack.c.l.s8.bf16 %v455
    %v1880 = vunpack.c.l.s8.bf16 %v456
    %v1881 = vunpack.c.l.s8.bf16 %v457
    %v1882 = vunpack.c.l.s8.bf16 %v458
    %v1883 = vunpack.c.l.s8.bf16 %v459
    %v1884 = vunpack.c.l.s8.bf16 %v460
    %v1885 = vunpack.c.l.s8.bf16 %v461
    %v1886 = vunpack.c.l.s8.bf16 %v462
    %v1887 = vunpack.c.h.s8.bf16 %v455
    %v1888 = vunpack.c.h.s8.bf16 %v456
    %v1889 = vunpack.c.h.s8.bf16 %v457
    %v1890 = vunpack.c.h.s8.bf16 %v458
    %v1891 = vunpack.c.h.s8.bf16 %v459
    %v1892 = vunpack.c.h.s8.bf16 %v460
    %v1893 = vunpack.c.h.s8.bf16 %v461
    %v1894 = vunpack.c.h.s8.bf16 %v462
    %v1895 = vunpack.c.l.s8.bf16 %v463
    %v1896 = vunpack.c.l.s8.bf16 %v464
    %v1897 = vunpack.c.l.s8.bf16 %v465
    %v1898 = vunpack.c.l.s8.bf16 %v466
    %v1899 = vunpack.c.l.s8.bf16 %v467
    %v1900 = vunpack.c.l.s8.bf16 %v468
    %v1901 = vunpack.c.l.s8.bf16 %v469
    %v1902 = vunpack.c.l.s8.bf16 %v470
    %v1903 = vunpack.c.h.s8.bf16 %v463
    %v1904 = vunpack.c.h.s8.bf16 %v464
    %v1905 = vunpack.c.h.s8.bf16 %v465
    %v1906 = vunpack.c.h.s8.bf16 %v466
    %v1907 = vunpack.c.h.s8.bf16 %v467
    %v1908 = vunpack.c.h.s8.bf16 %v468
    %v1909 = vunpack.c.h.s8.bf16 %v469
    %v1910 = vunpack.c.h.s8.bf16 %v470
    %v1911 = vunpack.c.l.s8.bf16 %v471
    %v1912 = vunpack.c.l.s8.bf16 %v472
    %v1913 = vunpack.c.l.s8.bf16 %v473
    %v1914 = vunpack.c.l.s8.bf16 %v474
    %v1915 = vunpack.c.l.s8.bf16 %v475
    %v1916 = vunpack.c.l.s8.bf16 %v476
    %v1917 = vunpack.c.l.s8.bf16 %v477
    %v1918 = vunpack.c.l.s8.bf16 %v478
    %v1919 = vunpack.c.h.s8.bf16 %v471
    %v1920 = vunpack.c.h.s8.bf16 %v472
    %v1921 = vunpack.c.h.s8.bf16 %v473
    %v1922 = vunpack.c.h.s8.bf16 %v474
    %v1923 = vunpack.c.h.s8.bf16 %v475
    %v1924 = vunpack.c.h.s8.bf16 %v476
    %v1925 = vunpack.c.h.s8.bf16 %v477
    %v1926 = vunpack.c.h.s8.bf16 %v478
    %v1927 = vunpack.c.l.s8.bf16 %v479
    %v1928 = vunpack.c.l.s8.bf16 %v480
    %v1929 = vunpack.c.l.s8.bf16 %v481
    %v1930 = vunpack.c.l.s8.bf16 %v482
    %v1931 = vunpack.c.l.s8.bf16 %v483
    %v1932 = vunpack.c.l.s8.bf16 %v484
    %v1933 = vunpack.c.l.s8.bf16 %v485
    %v1934 = vunpack.c.l.s8.bf16 %v486
    %v1935 = vunpack.c.h.s8.bf16 %v479
    %v1936 = vunpack.c.h.s8.bf16 %v480
    %v1937 = vunpack.c.h.s8.bf16 %v481
    %v1938 = vunpack.c.h.s8.bf16 %v482
    %v1939 = vunpack.c.h.s8.bf16 %v483
    %v1940 = vunpack.c.h.s8.bf16 %v484
    %v1941 = vunpack.c.h.s8.bf16 %v485
    %v1942 = vunpack.c.h.s8.bf16 %v486
    %v1943 = vunpack.c.l.s8.bf16 %v487
    %v1944 = vunpack.c.l.s8.bf16 %v488
    %v1945 = vunpack.c.l.s8.bf16 %v489
    %v1946 = vunpack.c.l.s8.bf16 %v490
    %v1947 = vunpack.c.l.s8.bf16 %v491
    %v1948 = vunpack.c.l.s8.bf16 %v492
    %v1949 = vunpack.c.l.s8.bf16 %v493
    %v1950 = vunpack.c.l.s8.bf16 %v494
    %v1951 = vunpack.c.h.s8.bf16 %v487
    %v1952 = vunpack.c.h.s8.bf16 %v488
    %v1953 = vunpack.c.h.s8.bf16 %v489
    %v1954 = vunpack.c.h.s8.bf16 %v490
    %v1955 = vunpack.c.h.s8.bf16 %v491
    %v1956 = vunpack.c.h.s8.bf16 %v492
    %v1957 = vunpack.c.h.s8.bf16 %v493
    %v1958 = vunpack.c.h.s8.bf16 %v494
    %v1959 = vunpack.c.l.s8.bf16 %v495
    %v1960 = vunpack.c.l.s8.bf16 %v496
    %v1961 = vunpack.c.l.s8.bf16 %v497
    %v1962 = vunpack.c.l.s8.bf16 %v498
    %v1963 = vunpack.c.l.s8.bf16 %v499
    %v1964 = vunpack.c.l.s8.bf16 %v500
    %v1965 = vunpack.c.l.s8.bf16 %v501
    %v1966 = vunpack.c.l.s8.bf16 %v502
    %v1967 = vunpack.c.h.s8.bf16 %v495
    %v1968 = vunpack.c.h.s8.bf16 %v496
    %v1969 = vunpack.c.h.s8.bf16 %v497
    %v1970 = vunpack.c.h.s8.bf16 %v498
    %v1971 = vunpack.c.h.s8.bf16 %v499
    %v1972 = vunpack.c.h.s8.bf16 %v500
    %v1973 = vunpack.c.h.s8.bf16 %v501
    %v1974 = vunpack.c.h.s8.bf16 %v502
    %v1975 = vunpack.c.l.s8.bf16 %v503
    %v1976 = vunpack.c.l.s8.bf16 %v504
    %v1977 = vunpack.c.l.s8.bf16 %v505
    %v1978 = vunpack.c.l.s8.bf16 %v506
    %v1979 = vunpack.c.l.s8.bf16 %v507
    %v1980 = vunpack.c.l.s8.bf16 %v508
    %v1981 = vunpack.c.l.s8.bf16 %v509
    %v1982 = vunpack.c.l.s8.bf16 %v510
    %v1983 = vunpack.c.h.s8.bf16 %v503
    %v1984 = vunpack.c.h.s8.bf16 %v504
    %v1985 = vunpack.c.h.s8.bf16 %v505
    %v1986 = vunpack.c.h.s8.bf16 %v506
    %v1987 = vunpack.c.h.s8.bf16 %v507
    %v1988 = vunpack.c.h.s8.bf16 %v508
    %v1989 = vunpack.c.h.s8.bf16 %v509
    %v1990 = vunpack.c.h.s8.bf16 %v510
    %v1991 = vunpack.c.l.s8.bf16 %v511
    %v1992 = vunpack.c.l.s8.bf16 %v512
    %v1993 = vunpack.c.l.s8.bf16 %v513
    %v1994 = vunpack.c.l.s8.bf16 %v514
    %v1995 = vunpack.c.l.s8.bf16 %v515
    %v1996 = vunpack.c.l.s8.bf16 %v516
    %v1997 = vunpack.c.l.s8.bf16 %v517
    %v1998 = vunpack.c.l.s8.bf16 %v518
    %v1999 = vunpack.c.h.s8.bf16 %v511
    %v2000 = vunpack.c.h.s8.bf16 %v512
    %v2001 = vunpack.c.h.s8.bf16 %v513
    %v2002 = vunpack.c.h.s8.bf16 %v514
    %v2003 = vunpack.c.h.s8.bf16 %v515
    %v2004 = vunpack.c.h.s8.bf16 %v516
    %v2005 = vunpack.c.h.s8.bf16 %v517
    %v2006 = vunpack.c.h.s8.bf16 %v518
    %v2007 = vunpack.c.l.s8.bf16 %v519
    %v2008 = vunpack.c.l.s8.bf16 %v520
    %v2009 = vunpack.c.l.s8.bf16 %v521
    %v2010 = vunpack.c.l.s8.bf16 %v522
    %v2011 = vunpack.c.l.s8.bf16 %v523
    %v2012 = vunpack.c.l.s8.bf16 %v524
    %v2013 = vunpack.c.l.s8.bf16 %v525
    %v2014 = vunpack.c.l.s8.bf16 %v526
    %v2015 = vunpack.c.h.s8.bf16 %v519
    %v2016 = vunpack.c.h.s8.bf16 %v520
    %v2017 = vunpack.c.h.s8.bf16 %v521
    %v2018 = vunpack.c.h.s8.bf16 %v522
    %v2019 = vunpack.c.h.s8.bf16 %v523
    %v2020 = vunpack.c.h.s8.bf16 %v524
    %v2021 = vunpack.c.h.s8.bf16 %v525
    %v2022 = vunpack.c.h.s8.bf16 %v526
    %v2023 = vunpack.c.l.s8.bf16 %v527
    %v2024 = vunpack.c.l.s8.bf16 %v528
    %v2025 = vunpack.c.l.s8.bf16 %v529
    %v2026 = vunpack.c.l.s8.bf16 %v530
    %v2027 = vunpack.c.l.s8.bf16 %v531
    %v2028 = vunpack.c.l.s8.bf16 %v532
    %v2029 = vunpack.c.l.s8.bf16 %v533
    %v2030 = vunpack.c.l.s8.bf16 %v534
    %v2031 = vunpack.c.h.s8.bf16 %v527
    %v2032 = vunpack.c.h.s8.bf16 %v528
    %v2033 = vunpack.c.h.s8.bf16 %v529
    %v2034 = vunpack.c.h.s8.bf16 %v530
    %v2035 = vunpack.c.h.s8.bf16 %v531
    %v2036 = vunpack.c.h.s8.bf16 %v532
    %v2037 = vunpack.c.h.s8.bf16 %v533
    %v2038 = vunpack.c.h.s8.bf16 %v534
    %v2039 = vunpack.c.l.s8.bf16 %v535
    %v2040 = vunpack.c.l.s8.bf16 %v536
    %v2041 = vunpack.c.l.s8.bf16 %v537
    %v2042 = vunpack.c.l.s8.bf16 %v538
    %v2043 = vunpack.c.l.s8.bf16 %v539
    %v2044 = vunpack.c.l.s8.bf16 %v540
    %v2045 = vunpack.c.l.s8.bf16 %v541
    %v2046 = vunpack.c.l.s8.bf16 %v542
    %v2047 = vunpack.c.h.s8.bf16 %v535
    %v2048 = vunpack.c.h.s8.bf16 %v536
    %v2049 = vunpack.c.h.s8.bf16 %v537
    %v2050 = vunpack.c.h.s8.bf16 %v538
    %v2051 = vunpack.c.h.s8.bf16 %v539
    %v2052 = vunpack.c.h.s8.bf16 %v540
    %v2053 = vunpack.c.h.s8.bf16 %v541
    %v2054 = vunpack.c.h.s8.bf16 %v542
    %v2055 = vunpack.c.l.s8.bf16 %v543
    %v2056 = vunpack.c.l.s8.bf16 %v544
    %v2057 = vunpack.c.l.s8.bf16 %v545
    %v2058 = vunpack.c.l.s8.bf16 %v546
    %v2059 = vunpack.c.l.s8.bf16 %v547
    %v2060 = vunpack.c.l.s8.bf16 %v548
    %v2061 = vunpack.c.l.s8.bf16 %v549
    %v2062 = vunpack.c.l.s8.bf16 %v550
    %v2063 = vunpack.c.h.s8.bf16 %v543
    %v2064 = vunpack.c.h.s8.bf16 %v544
    %v2065 = vunpack.c.h.s8.bf16 %v545
    %v2066 = vunpack.c.h.s8.bf16 %v546
    %v2067 = vunpack.c.h.s8.bf16 %v547
    %v2068 = vunpack.c.h.s8.bf16 %v548
    %v2069 = vunpack.c.h.s8.bf16 %v549
    %v2070 = vunpack.c.h.s8.bf16 %v550
    %v2071 = vunpack.c.l.s8.bf16 %v551
    %v2072 = vunpack.c.l.s8.bf16 %v552
    %v2073 = vunpack.c.l.s8.bf16 %v553
    %v2074 = vunpack.c.l.s8.bf16 %v554
    %v2075 = vunpack.c.l.s8.bf16 %v555
    %v2076 = vunpack.c.l.s8.bf16 %v556
    %v2077 = vunpack.c.l.s8.bf16 %v557
    %v2078 = vunpack.c.l.s8.bf16 %v558
    %v2079 = vunpack.c.h.s8.bf16 %v551
    %v2080 = vunpack.c.h.s8.bf16 %v552
    %v2081 = vunpack.c.h.s8.bf16 %v553
    %v2082 = vunpack.c.h.s8.bf16 %v554
    %v2083 = vunpack.c.h.s8.bf16 %v555
    %v2084 = vunpack.c.h.s8.bf16 %v556
    %v2085 = vunpack.c.h.s8.bf16 %v557
    %v2086 = vunpack.c.h.s8.bf16 %v558
    %v2087 = vunpack.c.l.s8.bf16 %v559
    %v2088 = vunpack.c.l.s8.bf16 %v560
    %v2089 = vunpack.c.l.s8.bf16 %v561
    %v2090 = vunpack.c.l.s8.bf16 %v562
    %v2091 = vunpack.c.l.s8.bf16 %v563
    %v2092 = vunpack.c.l.s8.bf16 %v564
    %v2093 = vunpack.c.l.s8.bf16 %v565
    %v2094 = vunpack.c.l.s8.bf16 %v566
    %v2095 = vunpack.c.h.s8.bf16 %v559
    %v2096 = vunpack.c.h.s8.bf16 %v560
    %v2097 = vunpack.c.h.s8.bf16 %v561
    %v2098 = vunpack.c.h.s8.bf16 %v562
    %v2099 = vunpack.c.h.s8.bf16 %v563
    %v2100 = vunpack.c.h.s8.bf16 %v564
    %v2101 = vunpack.c.h.s8.bf16 %v565
    %v2102 = vunpack.c.h.s8.bf16 %v566
    %v2103 = vunpack.c.l.s8.bf16 %v567
    %v2104 = vunpack.c.l.s8.bf16 %v568
    %v2105 = vunpack.c.l.s8.bf16 %v569
    %v2106 = vunpack.c.l.s8.bf16 %v570
    %v2107 = vunpack.c.l.s8.bf16 %v571
    %v2108 = vunpack.c.l.s8.bf16 %v572
    %v2109 = vunpack.c.l.s8.bf16 %v573
    %v2110 = vunpack.c.l.s8.bf16 %v574
    %v2111 = vunpack.c.h.s8.bf16 %v567
    %v2112 = vunpack.c.h.s8.bf16 %v568
    %v2113 = vunpack.c.h.s8.bf16 %v569
    %v2114 = vunpack.c.h.s8.bf16 %v570
    %v2115 = vunpack.c.h.s8.bf16 %v571
    %v2116 = vunpack.c.h.s8.bf16 %v572
    %v2117 = vunpack.c.h.s8.bf16 %v573
    %v2118 = vunpack.c.h.s8.bf16 %v574
    %v2119 = vunpack.c.l.s8.bf16 %v575
    %v2120 = vunpack.c.l.s8.bf16 %v576
    %v2121 = vunpack.c.l.s8.bf16 %v577
    %v2122 = vunpack.c.l.s8.bf16 %v578
    %v2123 = vunpack.c.l.s8.bf16 %v579
    %v2124 = vunpack.c.l.s8.bf16 %v580
    %v2125 = vunpack.c.l.s8.bf16 %v581
    %v2126 = vunpack.c.l.s8.bf16 %v582
    %v2127 = vunpack.c.h.s8.bf16 %v575
    %v2128 = vunpack.c.h.s8.bf16 %v576
    %v2129 = vunpack.c.h.s8.bf16 %v577
    %v2130 = vunpack.c.h.s8.bf16 %v578
    %v2131 = vunpack.c.h.s8.bf16 %v579
    %v2132 = vunpack.c.h.s8.bf16 %v580
    %v2133 = vunpack.c.h.s8.bf16 %v581
    %v2134 = vunpack.c.h.s8.bf16 %v582
    %v2135 = vunpack.c.l.s8.bf16 %v583
    %v2136 = vunpack.c.l.s8.bf16 %v584
    %v2137 = vunpack.c.l.s8.bf16 %v585
    %v2138 = vunpack.c.l.s8.bf16 %v586
    %v2139 = vunpack.c.l.s8.bf16 %v587
    %v2140 = vunpack.c.l.s8.bf16 %v588
    %v2141 = vunpack.c.l.s8.bf16 %v589
    %v2142 = vunpack.c.l.s8.bf16 %v590
    %v2143 = vunpack.c.h.s8.bf16 %v583
    %v2144 = vunpack.c.h.s8.bf16 %v584
    %v2145 = vunpack.c.h.s8.bf16 %v585
    %v2146 = vunpack.c.h.s8.bf16 %v586
    %v2147 = vunpack.c.h.s8.bf16 %v587
    %v2148 = vunpack.c.h.s8.bf16 %v588
    %v2149 = vunpack.c.h.s8.bf16 %v589
    %v2150 = vunpack.c.h.s8.bf16 %v590
    %v2151 = vunpack.c.l.s8.bf16 %v591
    %v2152 = vunpack.c.l.s8.bf16 %v592
    %v2153 = vunpack.c.l.s8.bf16 %v593
    %v2154 = vunpack.c.l.s8.bf16 %v594
    %v2155 = vunpack.c.l.s8.bf16 %v595
    %v2156 = vunpack.c.l.s8.bf16 %v596
    %v2157 = vunpack.c.l.s8.bf16 %v597
    %v2158 = vunpack.c.l.s8.bf16 %v598
    %v2159 = vunpack.c.h.s8.bf16 %v591
    %v2160 = vunpack.c.h.s8.bf16 %v592
    %v2161 = vunpack.c.h.s8.bf16 %v593
    %v2162 = vunpack.c.h.s8.bf16 %v594
    %v2163 = vunpack.c.h.s8.bf16 %v595
    %v2164 = vunpack.c.h.s8.bf16 %v596
    %v2165 = vunpack.c.h.s8.bf16 %v597
    %v2166 = vunpack.c.h.s8.bf16 %v598
    %v2167 = vunpack.c.l.s8.bf16 %v599
    %v2168 = vunpack.c.l.s8.bf16 %v600
    %v2169 = vunpack.c.l.s8.bf16 %v601
    %v2170 = vunpack.c.l.s8.bf16 %v602
    %v2171 = vunpack.c.l.s8.bf16 %v603
    %v2172 = vunpack.c.l.s8.bf16 %v604
    %v2173 = vunpack.c.l.s8.bf16 %v605
    %v2174 = vunpack.c.l.s8.bf16 %v606
    %v2175 = vunpack.c.h.s8.bf16 %v599
    %v2176 = vunpack.c.h.s8.bf16 %v600
    %v2177 = vunpack.c.h.s8.bf16 %v601
    %v2178 = vunpack.c.h.s8.bf16 %v602
    %v2179 = vunpack.c.h.s8.bf16 %v603
    %v2180 = vunpack.c.h.s8.bf16 %v604
    %v2181 = vunpack.c.h.s8.bf16 %v605
    %v2182 = vunpack.c.h.s8.bf16 %v606
    %v2183 = vunpack.c.l.s8.bf16 %v607
    %v2184 = vunpack.c.l.s8.bf16 %v608
    %v2185 = vunpack.c.l.s8.bf16 %v609
    %v2186 = vunpack.c.l.s8.bf16 %v610
    %v2187 = vunpack.c.l.s8.bf16 %v611
    %v2188 = vunpack.c.l.s8.bf16 %v612
    %v2189 = vunpack.c.l.s8.bf16 %v613
    %v2190 = vunpack.c.l.s8.bf16 %v614
    %v2191 = vunpack.c.h.s8.bf16 %v607
    %v2192 = vunpack.c.h.s8.bf16 %v608
    %v2193 = vunpack.c.h.s8.bf16 %v609
    %v2194 = vunpack.c.h.s8.bf16 %v610
    %v2195 = vunpack.c.h.s8.bf16 %v611
    %v2196 = vunpack.c.h.s8.bf16 %v612
    %v2197 = vunpack.c.h.s8.bf16 %v613
    %v2198 = vunpack.c.h.s8.bf16 %v614
    %v2199 = vunpack.c.l.s8.bf16 %v615
    %v2200 = vunpack.c.l.s8.bf16 %v616
    %v2201 = vunpack.c.l.s8.bf16 %v617
    %v2202 = vunpack.c.l.s8.bf16 %v618
    %v2203 = vunpack.c.l.s8.bf16 %v619
    %v2204 = vunpack.c.l.s8.bf16 %v620
    %v2205 = vunpack.c.l.s8.bf16 %v621
    %v2206 = vunpack.c.l.s8.bf16 %v622
    %v2207 = vunpack.c.h.s8.bf16 %v615
    %v2208 = vunpack.c.h.s8.bf16 %v616
    %v2209 = vunpack.c.h.s8.bf16 %v617
    %v2210 = vunpack.c.h.s8.bf16 %v618
    %v2211 = vunpack.c.h.s8.bf16 %v619
    %v2212 = vunpack.c.h.s8.bf16 %v620
    %v2213 = vunpack.c.h.s8.bf16 %v621
    %v2214 = vunpack.c.h.s8.bf16 %v622
    %v2215 = vunpack.c.l.s8.bf16 %v623
    %v2216 = vunpack.c.l.s8.bf16 %v624
    %v2217 = vunpack.c.l.s8.bf16 %v625
    %v2218 = vunpack.c.l.s8.bf16 %v626
    %v2219 = vunpack.c.l.s8.bf16 %v627
    %v2220 = vunpack.c.l.s8.bf16 %v628
    %v2221 = vunpack.c.l.s8.bf16 %v629
    %v2222 = vunpack.c.l.s8.bf16 %v630
    %v2223 = vunpack.c.h.s8.bf16 %v623
    %v2224 = vunpack.c.h.s8.bf16 %v624
    %v2225 = vunpack.c.h.s8.bf16 %v625
    %v2226 = vunpack.c.h.s8.bf16 %v626
    %v2227 = vunpack.c.h.s8.bf16 %v627
    %v2228 = vunpack.c.h.s8.bf16 %v628
    %v2229 = vunpack.c.h.s8.bf16 %v629
    %v2230 = vunpack.c.h.s8.bf16 %v630
    %v2231 = vunpack.c.l.s8.bf16 %v631
    %v2232 = vunpack.c.l.s8.bf16 %v632
    %v2233 = vunpack.c.l.s8.bf16 %v633
    %v2234 = vunpack.c.l.s8.bf16 %v634
    %v2235 = vunpack.c.l.s8.bf16 %v635
    %v2236 = vunpack.c.l.s8.bf16 %v636
    %v2237 = vunpack.c.l.s8.bf16 %v637
    %v2238 = vunpack.c.l.s8.bf16 %v638
    %v2239 = vunpack.c.h.s8.bf16 %v631
    %v2240 = vunpack.c.h.s8.bf16 %v632
    %v2241 = vunpack.c.h.s8.bf16 %v633
    %v2242 = vunpack.c.h.s8.bf16 %v634
    %v2243 = vunpack.c.h.s8.bf16 %v635
    %v2244 = vunpack.c.h.s8.bf16 %v636
    %v2245 = vunpack.c.h.s8.bf16 %v637
    %v2246 = vunpack.c.h.s8.bf16 %v638
    %v2247 = vunpack.c.l.s8.bf16 %v639
    %v2248 = vunpack.c.l.s8.bf16 %v640
    %v2249 = vunpack.c.l.s8.bf16 %v641
    %v2250 = vunpack.c.l.s8.bf16 %v642
    %v2251 = vunpack.c.l.s8.bf16 %v643
    %v2252 = vunpack.c.l.s8.bf16 %v644
    %v2253 = vunpack.c.l.s8.bf16 %v645
    %v2254 = vunpack.c.l.s8.bf16 %v646
    %v2255 = vunpack.c.h.s8.bf16 %v639
    %v2256 = vunpack.c.h.s8.bf16 %v640
    %v2257 = vunpack.c.h.s8.bf16 %v641
    %v2258 = vunpack.c.h.s8.bf16 %v642
    %v2259 = vunpack.c.h.s8.bf16 %v643
    %v2260 = vunpack.c.h.s8.bf16 %v644
    %v2261 = vunpack.c.h.s8.bf16 %v645
    %v2262 = vunpack.c.h.s8.bf16 %v646
    %v2263 = vunpack.c.l.s8.bf16 %v647
    %v2264 = vunpack.c.l.s8.bf16 %v648
    %v2265 = vunpack.c.l.s8.bf16 %v649
    %v2266 = vunpack.c.l.s8.bf16 %v650
    %v2267 = vunpack.c.l.s8.bf16 %v651
    %v2268 = vunpack.c.l.s8.bf16 %v652
    %v2269 = vunpack.c.l.s8.bf16 %v653
    %v2270 = vunpack.c.l.s8.bf16 %v654
    %v2271 = vunpack.c.h.s8.bf16 %v647
    %v2272 = vunpack.c.h.s8.bf16 %v648
    %v2273 = vunpack.c.h.s8.bf16 %v649
    %v2274 = vunpack.c.h.s8.bf16 %v650
    %v2275 = vunpack.c.h.s8.bf16 %v651
    %v2276 = vunpack.c.h.s8.bf16 %v652
    %v2277 = vunpack.c.h.s8.bf16 %v653
    %v2278 = vunpack.c.h.s8.bf16 %v654
    %v2279 = vunpack.c.l.s8.bf16 %v655
    %v2280 = vunpack.c.l.s8.bf16 %v656
    %v2281 = vunpack.c.l.s8.bf16 %v657
    %v2282 = vunpack.c.l.s8.bf16 %v658
    %v2283 = vunpack.c.l.s8.bf16 %v659
    %v2284 = vunpack.c.l.s8.bf16 %v660
    %v2285 = vunpack.c.l.s8.bf16 %v661
    %v2286 = vunpack.c.l.s8.bf16 %v662
    %v2287 = vunpack.c.h.s8.bf16 %v655
    %v2288 = vunpack.c.h.s8.bf16 %v656
    %v2289 = vunpack.c.h.s8.bf16 %v657
    %v2290 = vunpack.c.h.s8.bf16 %v658
    %v2291 = vunpack.c.h.s8.bf16 %v659
    %v2292 = vunpack.c.h.s8.bf16 %v660
    %v2293 = vunpack.c.h.s8.bf16 %v661
    %v2294 = vunpack.c.h.s8.bf16 %v662
    %v2295 = vunpack.c.l.s8.bf16 %v663
    %v2296 = vunpack.c.l.s8.bf16 %v664
    %v2297 = vunpack.c.l.s8.bf16 %v665
    %v2298 = vunpack.c.l.s8.bf16 %v666
    %v2299 = vunpack.c.l.s8.bf16 %v667
    %v2300 = vunpack.c.l.s8.bf16 %v668
    %v2301 = vunpack.c.l.s8.bf16 %v669
    %v2302 = vunpack.c.l.s8.bf16 %v670
    %v2303 = vunpack.c.h.s8.bf16 %v663
    %v2304 = vunpack.c.h.s8.bf16 %v664
    %v2305 = vunpack.c.h.s8.bf16 %v665
    %v2306 = vunpack.c.h.s8.bf16 %v666
    %v2307 = vunpack.c.h.s8.bf16 %v667
    %v2308 = vunpack.c.h.s8.bf16 %v668
    %v2309 = vunpack.c.h.s8.bf16 %v669
    %v2310 = vunpack.c.h.s8.bf16 %v670
    %v2311 = vunpack.c.l.s8.bf16 %v671
    %v2312 = vunpack.c.l.s8.bf16 %v672
    %v2313 = vunpack.c.l.s8.bf16 %v673
    %v2314 = vunpack.c.l.s8.bf16 %v674
    %v2315 = vunpack.c.l.s8.bf16 %v675
    %v2316 = vunpack.c.l.s8.bf16 %v676
    %v2317 = vunpack.c.l.s8.bf16 %v677
    %v2318 = vunpack.c.l.s8.bf16 %v678
    %v2319 = vunpack.c.h.s8.bf16 %v671
    %v2320 = vunpack.c.h.s8.bf16 %v672
    %v2321 = vunpack.c.h.s8.bf16 %v673
    %v2322 = vunpack.c.h.s8.bf16 %v674
    %v2323 = vunpack.c.h.s8.bf16 %v675
    %v2324 = vunpack.c.h.s8.bf16 %v676
    %v2325 = vunpack.c.h.s8.bf16 %v677
    %v2326 = vunpack.c.h.s8.bf16 %v678
    %v2327 = vunpack.c.l.s8.bf16 %v679
    %v2328 = vunpack.c.l.s8.bf16 %v680
    %v2329 = vunpack.c.l.s8.bf16 %v681
    %v2330 = vunpack.c.l.s8.bf16 %v682
    %v2331 = vunpack.c.l.s8.bf16 %v683
    %v2332 = vunpack.c.l.s8.bf16 %v684
    %v2333 = vunpack.c.l.s8.bf16 %v685
    %v2334 = vunpack.c.l.s8.bf16 %v686
    %v2335 = vunpack.c.h.s8.bf16 %v679
    %v2336 = vunpack.c.h.s8.bf16 %v680
    %v2337 = vunpack.c.h.s8.bf16 %v681
    %v2338 = vunpack.c.h.s8.bf16 %v682
    %v2339 = vunpack.c.h.s8.bf16 %v683
    %v2340 = vunpack.c.h.s8.bf16 %v684
    %v2341 = vunpack.c.h.s8.bf16 %v685
    %v2342 = vunpack.c.h.s8.bf16 %v686
    %v2343 = vunpack.c.l.s8.bf16 %v687
    %v2344 = vunpack.c.l.s8.bf16 %v688
    %v2345 = vunpack.c.l.s8.bf16 %v689
    %v2346 = vunpack.c.l.s8.bf16 %v690
    %v2347 = vunpack.c.l.s8.bf16 %v691
    %v2348 = vunpack.c.l.s8.bf16 %v692
    %v2349 = vunpack.c.l.s8.bf16 %v693
    %v2350 = vunpack.c.l.s8.bf16 %v694
    %v2351 = vunpack.c.h.s8.bf16 %v687
    %v2352 = vunpack.c.h.s8.bf16 %v688
    %v2353 = vunpack.c.h.s8.bf16 %v689
    %v2354 = vunpack.c.h.s8.bf16 %v690
    %v2355 = vunpack.c.h.s8.bf16 %v691
    %v2356 = vunpack.c.h.s8.bf16 %v692
    %v2357 = vunpack.c.h.s8.bf16 %v693
    %v2358 = vunpack.c.h.s8.bf16 %v694
    %v2359 = vunpack.c.l.s8.bf16 %v695
    %v2360 = vunpack.c.l.s8.bf16 %v696
    %v2361 = vunpack.c.l.s8.bf16 %v697
    %v2362 = vunpack.c.l.s8.bf16 %v698
    %v2363 = vunpack.c.l.s8.bf16 %v699
    %v2364 = vunpack.c.l.s8.bf16 %v700
    %v2365 = vunpack.c.l.s8.bf16 %v701
    %v2366 = vunpack.c.l.s8.bf16 %v702
    %v2367 = vunpack.c.h.s8.bf16 %v695
    %v2368 = vunpack.c.h.s8.bf16 %v696
    %v2369 = vunpack.c.h.s8.bf16 %v697
    %v2370 = vunpack.c.h.s8.bf16 %v698
    %v2371 = vunpack.c.h.s8.bf16 %v699
    %v2372 = vunpack.c.h.s8.bf16 %v700
    %v2373 = vunpack.c.h.s8.bf16 %v701
    %v2374 = vunpack.c.h.s8.bf16 %v702
    %v2375 = vunpack.c.l.s8.bf16 %v703
    %v2376 = vunpack.c.l.s8.bf16 %v704
    %v2377 = vunpack.c.l.s8.bf16 %v705
    %v2378 = vunpack.c.l.s8.bf16 %v706
    %v2379 = vunpack.c.l.s8.bf16 %v707
    %v2380 = vunpack.c.l.s8.bf16 %v708
    %v2381 = vunpack.c.l.s8.bf16 %v709
    %v2382 = vunpack.c.l.s8.bf16 %v710
    %v2383 = vunpack.c.h.s8.bf16 %v703
    %v2384 = vunpack.c.h.s8.bf16 %v704
    %v2385 = vunpack.c.h.s8.bf16 %v705
    %v2386 = vunpack.c.h.s8.bf16 %v706
    %v2387 = vunpack.c.h.s8.bf16 %v707
    %v2388 = vunpack.c.h.s8.bf16 %v708
    %v2389 = vunpack.c.h.s8.bf16 %v709
    %v2390 = vunpack.c.h.s8.bf16 %v710
    %v2391 = vunpack.c.l.s8.bf16 %v711
    %v2392 = vunpack.c.l.s8.bf16 %v712
    %v2393 = vunpack.c.l.s8.bf16 %v713
    %v2394 = vunpack.c.l.s8.bf16 %v714
    %v2395 = vunpack.c.l.s8.bf16 %v715
    %v2396 = vunpack.c.l.s8.bf16 %v716
    %v2397 = vunpack.c.l.s8.bf16 %v717
    %v2398 = vunpack.c.l.s8.bf16 %v718
    %v2399 = vunpack.c.h.s8.bf16 %v711
    %v2400 = vunpack.c.h.s8.bf16 %v712
    %v2401 = vunpack.c.h.s8.bf16 %v713
    %v2402 = vunpack.c.h.s8.bf16 %v714
    %v2403 = vunpack.c.h.s8.bf16 %v715
    %v2404 = vunpack.c.h.s8.bf16 %v716
    %v2405 = vunpack.c.h.s8.bf16 %v717
    %v2406 = vunpack.c.h.s8.bf16 %v718
    %v2407 = vunpack.c.l.s8.bf16 %v719
    %v2408 = vunpack.c.l.s8.bf16 %v720
    %v2409 = vunpack.c.l.s8.bf16 %v721
    %v2410 = vunpack.c.l.s8.bf16 %v722
    %v2411 = vunpack.c.l.s8.bf16 %v723
    %v2412 = vunpack.c.l.s8.bf16 %v724
    %v2413 = vunpack.c.l.s8.bf16 %v725
    %v2414 = vunpack.c.l.s8.bf16 %v726
    %v2415 = vunpack.c.h.s8.bf16 %v719
    %v2416 = vunpack.c.h.s8.bf16 %v720
    %v2417 = vunpack.c.h.s8.bf16 %v721
    %v2418 = vunpack.c.h.s8.bf16 %v722
    %v2419 = vunpack.c.h.s8.bf16 %v723
    %v2420 = vunpack.c.h.s8.bf16 %v724
    %v2421 = vunpack.c.h.s8.bf16 %v725
    %v2422 = vunpack.c.h.s8.bf16 %v726
    %v2423 = vunpack.c.l.s8.bf16 %v727
    %v2424 = vunpack.c.l.s8.bf16 %v728
    %v2425 = vunpack.c.l.s8.bf16 %v729
    %v2426 = vunpack.c.l.s8.bf16 %v730
    %v2427 = vunpack.c.l.s8.bf16 %v731
    %v2428 = vunpack.c.l.s8.bf16 %v732
    %v2429 = vunpack.c.l.s8.bf16 %v733
    %v2430 = vunpack.c.l.s8.bf16 %v734
    %v2431 = vunpack.c.h.s8.bf16 %v727
    %v2432 = vunpack.c.h.s8.bf16 %v728
    %v2433 = vunpack.c.h.s8.bf16 %v729
    %v2434 = vunpack.c.h.s8.bf16 %v730
    %v2435 = vunpack.c.h.s8.bf16 %v731
    %v2436 = vunpack.c.h.s8.bf16 %v732
    %v2437 = vunpack.c.h.s8.bf16 %v733
    %v2438 = vunpack.c.h.s8.bf16 %v734
    %v2439 = vunpack.c.l.s8.bf16 %v735
    %v2440 = vunpack.c.l.s8.bf16 %v736
    %v2441 = vunpack.c.l.s8.bf16 %v737
    %v2442 = vunpack.c.l.s8.bf16 %v738
    %v2443 = vunpack.c.l.s8.bf16 %v739
    %v2444 = vunpack.c.l.s8.bf16 %v740
    %v2445 = vunpack.c.l.s8.bf16 %v741
    %v2446 = vunpack.c.l.s8.bf16 %v742
    %v2447 = vunpack.c.h.s8.bf16 %v735
    %v2448 = vunpack.c.h.s8.bf16 %v736
    %v2449 = vunpack.c.h.s8.bf16 %v737
    %v2450 = vunpack.c.h.s8.bf16 %v738
    %v2451 = vunpack.c.h.s8.bf16 %v739
    %v2452 = vunpack.c.h.s8.bf16 %v740
    %v2453 = vunpack.c.h.s8.bf16 %v741
    %v2454 = vunpack.c.h.s8.bf16 %v742
    %v2455 = vunpack.c.l.s8.bf16 %v743
    %v2456 = vunpack.c.l.s8.bf16 %v744
    %v2457 = vunpack.c.l.s8.bf16 %v745
    %v2458 = vunpack.c.l.s8.bf16 %v746
    %v2459 = vunpack.c.l.s8.bf16 %v747
    %v2460 = vunpack.c.l.s8.bf16 %v748
    %v2461 = vunpack.c.l.s8.bf16 %v749
    %v2462 = vunpack.c.l.s8.bf16 %v750
    %v2463 = vunpack.c.h.s8.bf16 %v743
    %v2464 = vunpack.c.h.s8.bf16 %v744
    %v2465 = vunpack.c.h.s8.bf16 %v745
    %v2466 = vunpack.c.h.s8.bf16 %v746
    %v2467 = vunpack.c.h.s8.bf16 %v747
    %v2468 = vunpack.c.h.s8.bf16 %v748
    %v2469 = vunpack.c.h.s8.bf16 %v749
    %v2470 = vunpack.c.h.s8.bf16 %v750
    %v2471 = vunpack.c.l.s8.bf16 %v751
    %v2472 = vunpack.c.l.s8.bf16 %v752
    %v2473 = vunpack.c.l.s8.bf16 %v753
    %v2474 = vunpack.c.l.s8.bf16 %v754
    %v2475 = vunpack.c.l.s8.bf16 %v755
    %v2476 = vunpack.c.l.s8.bf16 %v756
    %v2477 = vunpack.c.l.s8.bf16 %v757
    %v2478 = vunpack.c.l.s8.bf16 %v758
    %v2479 = vunpack.c.h.s8.bf16 %v751
    %v2480 = vunpack.c.h.s8.bf16 %v752
    %v2481 = vunpack.c.h.s8.bf16 %v753
    %v2482 = vunpack.c.h.s8.bf16 %v754
    %v2483 = vunpack.c.h.s8.bf16 %v755
    %v2484 = vunpack.c.h.s8.bf16 %v756
    %v2485 = vunpack.c.h.s8.bf16 %v757
    %v2486 = vunpack.c.h.s8.bf16 %v758
    %v2487 = vunpack.c.l.s8.bf16 %v759
    %v2488 = vunpack.c.l.s8.bf16 %v760
    %v2489 = vunpack.c.l.s8.bf16 %v761
    %v2490 = vunpack.c.l.s8.bf16 %v762
    %v2491 = vunpack.c.l.s8.bf16 %v763
    %v2492 = vunpack.c.l.s8.bf16 %v764
    %v2493 = vunpack.c.l.s8.bf16 %v765
    %v2494 = vunpack.c.l.s8.bf16 %v766
    %v2495 = vunpack.c.h.s8.bf16 %v759
    %v2496 = vunpack.c.h.s8.bf16 %v760
    %v2497 = vunpack.c.h.s8.bf16 %v761
    %v2498 = vunpack.c.h.s8.bf16 %v762
    %v2499 = vunpack.c.h.s8.bf16 %v763
    %v2500 = vunpack.c.h.s8.bf16 %v764
    %v2501 = vunpack.c.h.s8.bf16 %v765
    %v2502 = vunpack.c.h.s8.bf16 %v766
    %v2503 = vunpack.c.l.s8.bf16 %v767
    %v2504 = vunpack.c.l.s8.bf16 %v768
    %v2505 = vunpack.c.l.s8.bf16 %v769
    %v2506 = vunpack.c.l.s8.bf16 %v770
    %v2507 = vunpack.c.l.s8.bf16 %v771
    %v2508 = vunpack.c.l.s8.bf16 %v772
    %v2509 = vunpack.c.l.s8.bf16 %v773
    %v2510 = vunpack.c.l.s8.bf16 %v774
    %v2511 = vunpack.c.h.s8.bf16 %v767
    %v2512 = vunpack.c.h.s8.bf16 %v768
    %v2513 = vunpack.c.h.s8.bf16 %v769
    %v2514 = vunpack.c.h.s8.bf16 %v770
    %v2515 = vunpack.c.h.s8.bf16 %v771
    %v2516 = vunpack.c.h.s8.bf16 %v772
    %v2517 = vunpack.c.h.s8.bf16 %v773
    %v2518 = vunpack.c.h.s8.bf16 %v774
    %v2519 = vunpack.c.l.s8.bf16 %v775
    %v2520 = vunpack.c.l.s8.bf16 %v776
    %v2521 = vunpack.c.l.s8.bf16 %v777
    %v2522 = vunpack.c.l.s8.bf16 %v778
    %v2523 = vunpack.c.l.s8.bf16 %v779
    %v2524 = vunpack.c.l.s8.bf16 %v780
    %v2525 = vunpack.c.l.s8.bf16 %v781
    %v2526 = vunpack.c.l.s8.bf16 %v782
    %v2527 = vunpack.c.h.s8.bf16 %v775
    %v2528 = vunpack.c.h.s8.bf16 %v776
    %v2529 = vunpack.c.h.s8.bf16 %v777
    %v2530 = vunpack.c.h.s8.bf16 %v778
    %v2531 = vunpack.c.h.s8.bf16 %v779
    %v2532 = vunpack.c.h.s8.bf16 %v780
    %v2533 = vunpack.c.h.s8.bf16 %v781
    %v2534 = vunpack.c.h.s8.bf16 %v782
    %v2535 = vunpack.c.l.s8.bf16 %v783
    %v2536 = vunpack.c.l.s8.bf16 %v784
    %v2537 = vunpack.c.l.s8.bf16 %v785
    %v2538 = vunpack.c.l.s8.bf16 %v786
    %v2539 = vunpack.c.l.s8.bf16 %v787
    %v2540 = vunpack.c.l.s8.bf16 %v788
    %v2541 = vunpack.c.l.s8.bf16 %v789
    %v2542 = vunpack.c.l.s8.bf16 %v790
    %v2543 = vunpack.c.h.s8.bf16 %v783
    %v2544 = vunpack.c.h.s8.bf16 %v784
    %v2545 = vunpack.c.h.s8.bf16 %v785
    %v2546 = vunpack.c.h.s8.bf16 %v786
    %v2547 = vunpack.c.h.s8.bf16 %v787
    %v2548 = vunpack.c.h.s8.bf16 %v788
    %v2549 = vunpack.c.h.s8.bf16 %v789
    %v2550 = vunpack.c.h.s8.bf16 %v790
    %v2551 = vunpack.c.l.s8.bf16 %v791
    %v2552 = vunpack.c.l.s8.bf16 %v792
    %v2553 = vunpack.c.l.s8.bf16 %v793
    %v2554 = vunpack.c.l.s8.bf16 %v794
    %v2555 = vunpack.c.l.s8.bf16 %v795
    %v2556 = vunpack.c.l.s8.bf16 %v796
    %v2557 = vunpack.c.l.s8.bf16 %v797
    %v2558 = vunpack.c.l.s8.bf16 %v798
    %v2559 = vunpack.c.h.s8.bf16 %v791
    %v2560 = vunpack.c.h.s8.bf16 %v792
    %v2561 = vunpack.c.h.s8.bf16 %v793
    %v2562 = vunpack.c.h.s8.bf16 %v794
    %v2563 = vunpack.c.h.s8.bf16 %v795
    %v2564 = vunpack.c.h.s8.bf16 %v796
    %v2565 = vunpack.c.h.s8.bf16 %v797
    %v2566 = vunpack.c.h.s8.bf16 %v798
    %v2567 = vunpack.c.l.s8.bf16 %v799
    %v2568 = vunpack.c.l.s8.bf16 %v800
    %v2569 = vunpack.c.l.s8.bf16 %v801
    %v2570 = vunpack.c.l.s8.bf16 %v802
    %v2571 = vunpack.c.l.s8.bf16 %v803
    %v2572 = vunpack.c.l.s8.bf16 %v804
    %v2573 = vunpack.c.l.s8.bf16 %v805
    %v2574 = vunpack.c.l.s8.bf16 %v806
    %v2575 = vunpack.c.h.s8.bf16 %v799
    %v2576 = vunpack.c.h.s8.bf16 %v800
    %v2577 = vunpack.c.h.s8.bf16 %v801
    %v2578 = vunpack.c.h.s8.bf16 %v802
    %v2579 = vunpack.c.h.s8.bf16 %v803
    %v2580 = vunpack.c.h.s8.bf16 %v804
    %v2581 = vunpack.c.h.s8.bf16 %v805
    %v2582 = vunpack.c.h.s8.bf16 %v806
    %v2583 = vunpack.c.l.s8.bf16 %v807
    %v2584 = vunpack.c.l.s8.bf16 %v808
    %v2585 = vunpack.c.l.s8.bf16 %v809
    %v2586 = vunpack.c.l.s8.bf16 %v810
    %v2587 = vunpack.c.l.s8.bf16 %v811
    %v2588 = vunpack.c.l.s8.bf16 %v812
    %v2589 = vunpack.c.l.s8.bf16 %v813
    %v2590 = vunpack.c.l.s8.bf16 %v814
    %v2591 = vunpack.c.h.s8.bf16 %v807
    %v2592 = vunpack.c.h.s8.bf16 %v808
    %v2593 = vunpack.c.h.s8.bf16 %v809
    %v2594 = vunpack.c.h.s8.bf16 %v810
    %v2595 = vunpack.c.h.s8.bf16 %v811
    %v2596 = vunpack.c.h.s8.bf16 %v812
    %v2597 = vunpack.c.h.s8.bf16 %v813
    %v2598 = vunpack.c.h.s8.bf16 %v814
    %v2599 = vunpack.c.l.s8.bf16 %v815
    %v2600 = vunpack.c.l.s8.bf16 %v816
    %v2601 = vunpack.c.l.s8.bf16 %v817
    %v2602 = vunpack.c.l.s8.bf16 %v818
    %v2603 = vunpack.c.l.s8.bf16 %v819
    %v2604 = vunpack.c.l.s8.bf16 %v820
    %v2605 = vunpack.c.l.s8.bf16 %v821
    %v2606 = vunpack.c.l.s8.bf16 %v822
    %v2607 = vunpack.c.h.s8.bf16 %v815
    %v2608 = vunpack.c.h.s8.bf16 %v816
    %v2609 = vunpack.c.h.s8.bf16 %v817
    %v2610 = vunpack.c.h.s8.bf16 %v818
    %v2611 = vunpack.c.h.s8.bf16 %v819
    %v2612 = vunpack.c.h.s8.bf16 %v820
    %v2613 = vunpack.c.h.s8.bf16 %v821
    %v2614 = vunpack.c.h.s8.bf16 %v822
    %v2615 = vunpack.c.l.s8.bf16 %v823
    %v2616 = vunpack.c.l.s8.bf16 %v824
    %v2617 = vunpack.c.l.s8.bf16 %v825
    %v2618 = vunpack.c.l.s8.bf16 %v826
    %v2619 = vunpack.c.l.s8.bf16 %v827
    %v2620 = vunpack.c.l.s8.bf16 %v828
    %v2621 = vunpack.c.l.s8.bf16 %v829
    %v2622 = vunpack.c.l.s8.bf16 %v830
    %v2623 = vunpack.c.h.s8.bf16 %v823
    %v2624 = vunpack.c.h.s8.bf16 %v824
    %v2625 = vunpack.c.h.s8.bf16 %v825
    %v2626 = vunpack.c.h.s8.bf16 %v826
    %v2627 = vunpack.c.h.s8.bf16 %v827
    %v2628 = vunpack.c.h.s8.bf16 %v828
    %v2629 = vunpack.c.h.s8.bf16 %v829
    %v2630 = vunpack.c.h.s8.bf16 %v830
    %v2631 = vunpack.c.l.s8.bf16 %v831
    %v2632 = vunpack.c.l.s8.bf16 %v832
    %v2633 = vunpack.c.l.s8.bf16 %v833
    %v2634 = vunpack.c.l.s8.bf16 %v834
    %v2635 = vunpack.c.l.s8.bf16 %v835
    %v2636 = vunpack.c.l.s8.bf16 %v836
    %v2637 = vunpack.c.l.s8.bf16 %v837
    %v2638 = vunpack.c.l.s8.bf16 %v838
    %v2639 = vunpack.c.h.s8.bf16 %v831
    %v2640 = vunpack.c.h.s8.bf16 %v832
    %v2641 = vunpack.c.h.s8.bf16 %v833
    %v2642 = vunpack.c.h.s8.bf16 %v834
    %v2643 = vunpack.c.h.s8.bf16 %v835
    %v2644 = vunpack.c.h.s8.bf16 %v836
    %v2645 = vunpack.c.h.s8.bf16 %v837
    %v2646 = vunpack.c.h.s8.bf16 %v838
    %v2647 = vunpack.c.l.s8.bf16 %v839
    %v2648 = vunpack.c.l.s8.bf16 %v840
    %v2649 = vunpack.c.l.s8.bf16 %v841
    %v2650 = vunpack.c.l.s8.bf16 %v842
    %v2651 = vunpack.c.l.s8.bf16 %v843
    %v2652 = vunpack.c.l.s8.bf16 %v844
    %v2653 = vunpack.c.l.s8.bf16 %v845
    %v2654 = vunpack.c.l.s8.bf16 %v846
    %v2655 = vunpack.c.h.s8.bf16 %v839
    %v2656 = vunpack.c.h.s8.bf16 %v840
    %v2657 = vunpack.c.h.s8.bf16 %v841
    %v2658 = vunpack.c.h.s8.bf16 %v842
    %v2659 = vunpack.c.h.s8.bf16 %v843
    %v2660 = vunpack.c.h.s8.bf16 %v844
    %v2661 = vunpack.c.h.s8.bf16 %v845
    %v2662 = vunpack.c.h.s8.bf16 %v846
    %v2663 = vunpack.c.l.s8.bf16 %v847
    %v2664 = vunpack.c.l.s8.bf16 %v848
    %v2665 = vunpack.c.l.s8.bf16 %v849
    %v2666 = vunpack.c.l.s8.bf16 %v850
    %v2667 = vunpack.c.l.s8.bf16 %v851
    %v2668 = vunpack.c.l.s8.bf16 %v852
    %v2669 = vunpack.c.l.s8.bf16 %v853
    %v2670 = vunpack.c.l.s8.bf16 %v854
    %v2671 = vunpack.c.h.s8.bf16 %v847
    %v2672 = vunpack.c.h.s8.bf16 %v848
    %v2673 = vunpack.c.h.s8.bf16 %v849
    %v2674 = vunpack.c.h.s8.bf16 %v850
    %v2675 = vunpack.c.h.s8.bf16 %v851
    %v2676 = vunpack.c.h.s8.bf16 %v852
    %v2677 = vunpack.c.h.s8.bf16 %v853
    %v2678 = vunpack.c.h.s8.bf16 %v854
    %v2679 = vunpack.c.l.s8.bf16 %v855
    %v2680 = vunpack.c.l.s8.bf16 %v856
    %v2681 = vunpack.c.l.s8.bf16 %v857
    %v2682 = vunpack.c.l.s8.bf16 %v858
    %v2683 = vunpack.c.l.s8.bf16 %v859
    %v2684 = vunpack.c.l.s8.bf16 %v860
    %v2685 = vunpack.c.l.s8.bf16 %v861
    %v2686 = vunpack.c.l.s8.bf16 %v862
    %v2687 = vunpack.c.h.s8.bf16 %v855
    %v2688 = vunpack.c.h.s8.bf16 %v856
    %v2689 = vunpack.c.h.s8.bf16 %v857
    %v2690 = vunpack.c.h.s8.bf16 %v858
    %v2691 = vunpack.c.h.s8.bf16 %v859
    %v2692 = vunpack.c.h.s8.bf16 %v860
    %v2693 = vunpack.c.h.s8.bf16 %v861
    %v2694 = vunpack.c.h.s8.bf16 %v862
    %v2695 = vunpack.c.l.s8.bf16 %v863
    %v2696 = vunpack.c.l.s8.bf16 %v864
    %v2697 = vunpack.c.l.s8.bf16 %v865
    %v2698 = vunpack.c.l.s8.bf16 %v866
    %v2699 = vunpack.c.l.s8.bf16 %v867
    %v2700 = vunpack.c.l.s8.bf16 %v868
    %v2701 = vunpack.c.l.s8.bf16 %v869
    %v2702 = vunpack.c.l.s8.bf16 %v870
    %v2703 = vunpack.c.h.s8.bf16 %v863
    %v2704 = vunpack.c.h.s8.bf16 %v864
    %v2705 = vunpack.c.h.s8.bf16 %v865
    %v2706 = vunpack.c.h.s8.bf16 %v866
    %v2707 = vunpack.c.h.s8.bf16 %v867
    %v2708 = vunpack.c.h.s8.bf16 %v868
    %v2709 = vunpack.c.h.s8.bf16 %v869
    %v2710 = vunpack.c.h.s8.bf16 %v870
    %v2711 = vunpack.c.l.s8.bf16 %v871
    %v2712 = vunpack.c.l.s8.bf16 %v872
    %v2713 = vunpack.c.l.s8.bf16 %v873
    %v2714 = vunpack.c.l.s8.bf16 %v874
    %v2715 = vunpack.c.l.s8.bf16 %v875
    %v2716 = vunpack.c.l.s8.bf16 %v876
    %v2717 = vunpack.c.l.s8.bf16 %v877
    %v2718 = vunpack.c.l.s8.bf16 %v878
    %v2719 = vunpack.c.h.s8.bf16 %v871
    %v2720 = vunpack.c.h.s8.bf16 %v872
    %v2721 = vunpack.c.h.s8.bf16 %v873
    %v2722 = vunpack.c.h.s8.bf16 %v874
    %v2723 = vunpack.c.h.s8.bf16 %v875
    %v2724 = vunpack.c.h.s8.bf16 %v876
    %v2725 = vunpack.c.h.s8.bf16 %v877
    %v2726 = vunpack.c.h.s8.bf16 %v878
    %v2727 = vunpack.c.l.s8.bf16 %v879
    %v2728 = vunpack.c.l.s8.bf16 %v880
    %v2729 = vunpack.c.l.s8.bf16 %v881
    %v2730 = vunpack.c.l.s8.bf16 %v882
    %v2731 = vunpack.c.l.s8.bf16 %v883
    %v2732 = vunpack.c.l.s8.bf16 %v884
    %v2733 = vunpack.c.l.s8.bf16 %v885
    %v2734 = vunpack.c.l.s8.bf16 %v886
    %v2735 = vunpack.c.h.s8.bf16 %v879
    %v2736 = vunpack.c.h.s8.bf16 %v880
    %v2737 = vunpack.c.h.s8.bf16 %v881
    %v2738 = vunpack.c.h.s8.bf16 %v882
    %v2739 = vunpack.c.h.s8.bf16 %v883
    %v2740 = vunpack.c.h.s8.bf16 %v884
    %v2741 = vunpack.c.h.s8.bf16 %v885
    %v2742 = vunpack.c.h.s8.bf16 %v886
    %v2743 = vunpack.c.l.s8.bf16 %v887
    %v2744 = vunpack.c.l.s8.bf16 %v888
    %v2745 = vunpack.c.l.s8.bf16 %v889
    %v2746 = vunpack.c.l.s8.bf16 %v890
    %v2747 = vunpack.c.l.s8.bf16 %v891
    %v2748 = vunpack.c.l.s8.bf16 %v892
    %v2749 = vunpack.c.l.s8.bf16 %v893
    %v2750 = vunpack.c.l.s8.bf16 %v894
    %v2751 = vunpack.c.h.s8.bf16 %v887
    %v2752 = vunpack.c.h.s8.bf16 %v888
    %v2753 = vunpack.c.h.s8.bf16 %v889
    %v2754 = vunpack.c.h.s8.bf16 %v890
    %v2755 = vunpack.c.h.s8.bf16 %v891
    %v2756 = vunpack.c.h.s8.bf16 %v892
    %v2757 = vunpack.c.h.s8.bf16 %v893
    %v2758 = vunpack.c.h.s8.bf16 %v894
    %v2759 = vunpack.c.l.s8.bf16 %v895
    %v2760 = vunpack.c.l.s8.bf16 %v896
    %v2761 = vunpack.c.l.s8.bf16 %v897
    %v2762 = vunpack.c.l.s8.bf16 %v898
    %v2763 = vunpack.c.l.s8.bf16 %v899
    %v2764 = vunpack.c.l.s8.bf16 %v900
    %v2765 = vunpack.c.l.s8.bf16 %v901
    %v2766 = vunpack.c.l.s8.bf16 %v902
    %v2767 = vunpack.c.h.s8.bf16 %v895
    %v2768 = vunpack.c.h.s8.bf16 %v896
    %v2769 = vunpack.c.h.s8.bf16 %v897
    %v2770 = vunpack.c.h.s8.bf16 %v898
    %v2771 = vunpack.c.h.s8.bf16 %v899
    %v2772 = vunpack.c.h.s8.bf16 %v900
    %v2773 = vunpack.c.h.s8.bf16 %v901
    %v2774 = vunpack.c.h.s8.bf16 %v902
    %v2775 = vunpack.c.l.s8.bf16 %v903
    %v2776 = vunpack.c.l.s8.bf16 %v904
    %v2777 = vunpack.c.l.s8.bf16 %v905
    %v2778 = vunpack.c.l.s8.bf16 %v906
    %v2779 = vunpack.c.l.s8.bf16 %v907
    %v2780 = vunpack.c.l.s8.bf16 %v908
    %v2781 = vunpack.c.l.s8.bf16 %v909
    %v2782 = vunpack.c.l.s8.bf16 %v910
    %v2783 = vunpack.c.h.s8.bf16 %v903
    %v2784 = vunpack.c.h.s8.bf16 %v904
    %v2785 = vunpack.c.h.s8.bf16 %v905
    %v2786 = vunpack.c.h.s8.bf16 %v906
    %v2787 = vunpack.c.h.s8.bf16 %v907
    %v2788 = vunpack.c.h.s8.bf16 %v908
    %v2789 = vunpack.c.h.s8.bf16 %v909
    %v2790 = vunpack.c.h.s8.bf16 %v910
    %v2791 = vunpack.c.l.s8.bf16 %v911
    %v2792 = vunpack.c.l.s8.bf16 %v912
    %v2793 = vunpack.c.l.s8.bf16 %v913
    %v2794 = vunpack.c.l.s8.bf16 %v914
    %v2795 = vunpack.c.l.s8.bf16 %v915
    %v2796 = vunpack.c.l.s8.bf16 %v916
    %v2797 = vunpack.c.l.s8.bf16 %v917
    %v2798 = vunpack.c.l.s8.bf16 %v918
    %v2799 = vunpack.c.h.s8.bf16 %v911
    %v2800 = vunpack.c.h.s8.bf16 %v912
    %v2801 = vunpack.c.h.s8.bf16 %v913
    %v2802 = vunpack.c.h.s8.bf16 %v914
    %v2803 = vunpack.c.h.s8.bf16 %v915
    %v2804 = vunpack.c.h.s8.bf16 %v916
    %v2805 = vunpack.c.h.s8.bf16 %v917
    %v2806 = vunpack.c.h.s8.bf16 %v918
    %v2807 = vunpack.c.l.s8.bf16 %v919
    %v2808 = vunpack.c.l.s8.bf16 %v920
    %v2809 = vunpack.c.l.s8.bf16 %v921
    %v2810 = vunpack.c.l.s8.bf16 %v922
    %v2811 = vunpack.c.l.s8.bf16 %v923
    %v2812 = vunpack.c.l.s8.bf16 %v924
    %v2813 = vunpack.c.l.s8.bf16 %v925
    %v2814 = vunpack.c.l.s8.bf16 %v926
    %v2815 = vunpack.c.h.s8.bf16 %v919
    %v2816 = vunpack.c.h.s8.bf16 %v920
    %v2817 = vunpack.c.h.s8.bf16 %v921
    %v2818 = vunpack.c.h.s8.bf16 %v922
    %v2819 = vunpack.c.h.s8.bf16 %v923
    %v2820 = vunpack.c.h.s8.bf16 %v924
    %v2821 = vunpack.c.h.s8.bf16 %v925
    %v2822 = vunpack.c.h.s8.bf16 %v926
    %v2823 = vunpack.c.l.s8.bf16 %v927
    %v2824 = vunpack.c.l.s8.bf16 %v928
    %v2825 = vunpack.c.l.s8.bf16 %v929
    %v2826 = vunpack.c.l.s8.bf16 %v930
    %v2827 = vunpack.c.l.s8.bf16 %v931
    %v2828 = vunpack.c.l.s8.bf16 %v932
    %v2829 = vunpack.c.l.s8.bf16 %v933
    %v2830 = vunpack.c.l.s8.bf16 %v934
    %v2831 = vunpack.c.h.s8.bf16 %v927
    %v2832 = vunpack.c.h.s8.bf16 %v928
    %v2833 = vunpack.c.h.s8.bf16 %v929
    %v2834 = vunpack.c.h.s8.bf16 %v930
    %v2835 = vunpack.c.h.s8.bf16 %v931
    %v2836 = vunpack.c.h.s8.bf16 %v932
    %v2837 = vunpack.c.h.s8.bf16 %v933
    %v2838 = vunpack.c.h.s8.bf16 %v934
    %v2839 = vunpack.c.l.s8.bf16 %v935
    %v2840 = vunpack.c.l.s8.bf16 %v936
    %v2841 = vunpack.c.l.s8.bf16 %v937
    %v2842 = vunpack.c.l.s8.bf16 %v938
    %v2843 = vunpack.c.l.s8.bf16 %v939
    %v2844 = vunpack.c.l.s8.bf16 %v940
    %v2845 = vunpack.c.l.s8.bf16 %v941
    %v2846 = vunpack.c.l.s8.bf16 %v942
    %v2847 = vunpack.c.h.s8.bf16 %v935
    %v2848 = vunpack.c.h.s8.bf16 %v936
    %v2849 = vunpack.c.h.s8.bf16 %v937
    %v2850 = vunpack.c.h.s8.bf16 %v938
    %v2851 = vunpack.c.h.s8.bf16 %v939
    %v2852 = vunpack.c.h.s8.bf16 %v940
    %v2853 = vunpack.c.h.s8.bf16 %v941
    %v2854 = vunpack.c.h.s8.bf16 %v942
    %v2855 = vunpack.c.l.s8.bf16 %v943
    %v2856 = vunpack.c.l.s8.bf16 %v944
    %v2857 = vunpack.c.l.s8.bf16 %v945
    %v2858 = vunpack.c.l.s8.bf16 %v946
    %v2859 = vunpack.c.l.s8.bf16 %v947
    %v2860 = vunpack.c.l.s8.bf16 %v948
    %v2861 = vunpack.c.l.s8.bf16 %v949
    %v2862 = vunpack.c.l.s8.bf16 %v950
    %v2863 = vunpack.c.h.s8.bf16 %v943
    %v2864 = vunpack.c.h.s8.bf16 %v944
    %v2865 = vunpack.c.h.s8.bf16 %v945
    %v2866 = vunpack.c.h.s8.bf16 %v946
    %v2867 = vunpack.c.h.s8.bf16 %v947
    %v2868 = vunpack.c.h.s8.bf16 %v948
    %v2869 = vunpack.c.h.s8.bf16 %v949
    %v2870 = vunpack.c.h.s8.bf16 %v950
    %v2871 = vunpack.c.l.s8.bf16 %v951
    %v2872 = vunpack.c.l.s8.bf16 %v952
    %v2873 = vunpack.c.l.s8.bf16 %v953
    %v2874 = vunpack.c.l.s8.bf16 %v954
    %v2875 = vunpack.c.l.s8.bf16 %v955
    %v2876 = vunpack.c.l.s8.bf16 %v956
    %v2877 = vunpack.c.l.s8.bf16 %v957
    %v2878 = vunpack.c.l.s8.bf16 %v958
    %v2879 = vunpack.c.h.s8.bf16 %v951
    %v2880 = vunpack.c.h.s8.bf16 %v952
    %v2881 = vunpack.c.h.s8.bf16 %v953
    %v2882 = vunpack.c.h.s8.bf16 %v954
    %v2883 = vunpack.c.h.s8.bf16 %v955
    %v2884 = vunpack.c.h.s8.bf16 %v956
    %v2885 = vunpack.c.h.s8.bf16 %v957
    %v2886 = vunpack.c.h.s8.bf16 %v958
    %v2887 = vunpack.c.l.s8.bf16 %v959
    %v2888 = vunpack.c.l.s8.bf16 %v960
    %v2889 = vunpack.c.l.s8.bf16 %v961
    %v2890 = vunpack.c.l.s8.bf16 %v962
    %v2891 = vunpack.c.l.s8.bf16 %v963
    %v2892 = vunpack.c.l.s8.bf16 %v964
    %v2893 = vunpack.c.l.s8.bf16 %v965
    %v2894 = vunpack.c.l.s8.bf16 %v966
    %v2895 = vunpack.c.h.s8.bf16 %v959
    %v2896 = vunpack.c.h.s8.bf16 %v960
    %v2897 = vunpack.c.h.s8.bf16 %v961
    %v2898 = vunpack.c.h.s8.bf16 %v962
    %v2899 = vunpack.c.h.s8.bf16 %v963
    %v2900 = vunpack.c.h.s8.bf16 %v964
    %v2901 = vunpack.c.h.s8.bf16 %v965
    %v2902 = vunpack.c.h.s8.bf16 %v966
    %v2903 = vunpack.c.l.s8.bf16 %v967
    %v2904 = vunpack.c.l.s8.bf16 %v968
    %v2905 = vunpack.c.l.s8.bf16 %v969
    %v2906 = vunpack.c.l.s8.bf16 %v970
    %v2907 = vunpack.c.l.s8.bf16 %v971
    %v2908 = vunpack.c.l.s8.bf16 %v972
    %v2909 = vunpack.c.l.s8.bf16 %v973
    %v2910 = vunpack.c.l.s8.bf16 %v974
    %v2911 = vunpack.c.h.s8.bf16 %v967
    %v2912 = vunpack.c.h.s8.bf16 %v968
    %v2913 = vunpack.c.h.s8.bf16 %v969
    %v2914 = vunpack.c.h.s8.bf16 %v970
    %v2915 = vunpack.c.h.s8.bf16 %v971
    %v2916 = vunpack.c.h.s8.bf16 %v972
    %v2917 = vunpack.c.h.s8.bf16 %v973
    %v2918 = vunpack.c.h.s8.bf16 %v974
    %v2919 = vunpack.c.l.s8.bf16 %v975
    %v2920 = vunpack.c.l.s8.bf16 %v976
    %v2921 = vunpack.c.l.s8.bf16 %v977
    %v2922 = vunpack.c.l.s8.bf16 %v978
    %v2923 = vunpack.c.l.s8.bf16 %v979
    %v2924 = vunpack.c.l.s8.bf16 %v980
    %v2925 = vunpack.c.l.s8.bf16 %v981
    %v2926 = vunpack.c.l.s8.bf16 %v982
    %v2927 = vunpack.c.h.s8.bf16 %v975
    %v2928 = vunpack.c.h.s8.bf16 %v976
    %v2929 = vunpack.c.h.s8.bf16 %v977
    %v2930 = vunpack.c.h.s8.bf16 %v978
    %v2931 = vunpack.c.h.s8.bf16 %v979
    %v2932 = vunpack.c.h.s8.bf16 %v980
    %v2933 = vunpack.c.h.s8.bf16 %v981
    %v2934 = vunpack.c.h.s8.bf16 %v982
    %v2935 = vunpack.c.l.s8.bf16 %v983
    %v2936 = vunpack.c.l.s8.bf16 %v984
    %v2937 = vunpack.c.l.s8.bf16 %v985
    %v2938 = vunpack.c.l.s8.bf16 %v986
    %v2939 = vunpack.c.l.s8.bf16 %v987
    %v2940 = vunpack.c.l.s8.bf16 %v988
    %v2941 = vunpack.c.l.s8.bf16 %v989
    %v2942 = vunpack.c.l.s8.bf16 %v990
    %v2943 = vunpack.c.h.s8.bf16 %v983
    %v2944 = vunpack.c.h.s8.bf16 %v984
    %v2945 = vunpack.c.h.s8.bf16 %v985
    %v2946 = vunpack.c.h.s8.bf16 %v986
    %v2947 = vunpack.c.h.s8.bf16 %v987
    %v2948 = vunpack.c.h.s8.bf16 %v988
    %v2949 = vunpack.c.h.s8.bf16 %v989
    %v2950 = vunpack.c.h.s8.bf16 %v990
    %v2951 = vunpack.c.l.s8.bf16 %v991
    %v2952 = vunpack.c.l.s8.bf16 %v992
    %v2953 = vunpack.c.l.s8.bf16 %v993
    %v2954 = vunpack.c.l.s8.bf16 %v994
    %v2955 = vunpack.c.l.s8.bf16 %v995
    %v2956 = vunpack.c.l.s8.bf16 %v996
    %v2957 = vunpack.c.l.s8.bf16 %v997
    %v2958 = vunpack.c.l.s8.bf16 %v998
    %v2959 = vunpack.c.h.s8.bf16 %v991
    %v2960 = vunpack.c.h.s8.bf16 %v992
    %v2961 = vunpack.c.h.s8.bf16 %v993
    %v2962 = vunpack.c.h.s8.bf16 %v994
    %v2963 = vunpack.c.h.s8.bf16 %v995
    %v2964 = vunpack.c.h.s8.bf16 %v996
    %v2965 = vunpack.c.h.s8.bf16 %v997
    %v2966 = vunpack.c.h.s8.bf16 %v998
    %v2967 = vunpack.c.l.s8.bf16 %v999
    %v2968 = vunpack.c.l.s8.bf16 %v1000
    %v2969 = vunpack.c.l.s8.bf16 %v1001
    %v2970 = vunpack.c.l.s8.bf16 %v1002
    %v2971 = vunpack.c.l.s8.bf16 %v1003
    %v2972 = vunpack.c.l.s8.bf16 %v1004
    %v2973 = vunpack.c.l.s8.bf16 %v1005
    %v2974 = vunpack.c.l.s8.bf16 %v1006
    %v2975 = vunpack.c.h.s8.bf16 %v999
    %v2976 = vunpack.c.h.s8.bf16 %v1000
    %v2977 = vunpack.c.h.s8.bf16 %v1001
    %v2978 = vunpack.c.h.s8.bf16 %v1002
    %v2979 = vunpack.c.h.s8.bf16 %v1003
    %v2980 = vunpack.c.h.s8.bf16 %v1004
    %v2981 = vunpack.c.h.s8.bf16 %v1005
    %v2982 = vunpack.c.h.s8.bf16 %v1006
    %v2983 = vunpack.c.l.s8.bf16 %v1007
    %v2984 = vunpack.c.l.s8.bf16 %v1008
    %v2985 = vunpack.c.l.s8.bf16 %v1009
    %v2986 = vunpack.c.l.s8.bf16 %v1010
    %v2987 = vunpack.c.l.s8.bf16 %v1011
    %v2988 = vunpack.c.l.s8.bf16 %v1012
    %v2989 = vunpack.c.l.s8.bf16 %v1013
    %v2990 = vunpack.c.l.s8.bf16 %v1014
    %v2991 = vunpack.c.h.s8.bf16 %v1007
    %v2992 = vunpack.c.h.s8.bf16 %v1008
    %v2993 = vunpack.c.h.s8.bf16 %v1009
    %v2994 = vunpack.c.h.s8.bf16 %v1010
    %v2995 = vunpack.c.h.s8.bf16 %v1011
    %v2996 = vunpack.c.h.s8.bf16 %v1012
    %v2997 = vunpack.c.h.s8.bf16 %v1013
    %v2998 = vunpack.c.h.s8.bf16 %v1014
    %v2999 = vunpack.c.l.s8.bf16 %v1015
    %v3000 = vunpack.c.l.s8.bf16 %v1016
    %v3001 = vunpack.c.l.s8.bf16 %v1017
    %v3002 = vunpack.c.l.s8.bf16 %v1018
    %v3003 = vunpack.c.l.s8.bf16 %v1019
    %v3004 = vunpack.c.l.s8.bf16 %v1020
    %v3005 = vunpack.c.l.s8.bf16 %v1021
    %v3006 = vunpack.c.l.s8.bf16 %v1022
    %v3007 = vunpack.c.h.s8.bf16 %v1015
    %v3008 = vunpack.c.h.s8.bf16 %v1016
    %v3009 = vunpack.c.h.s8.bf16 %v1017
    %v3010 = vunpack.c.h.s8.bf16 %v1018
    %v3011 = vunpack.c.h.s8.bf16 %v1019
    %v3012 = vunpack.c.h.s8.bf16 %v1020
    %v3013 = vunpack.c.h.s8.bf16 %v1021
    %v3014 = vunpack.c.h.s8.bf16 %v1022
    %v3015 = vunpack.c.l.s8.bf16 %v1023
    %v3016 = vunpack.c.l.s8.bf16 %v1024
    %v3017 = vunpack.c.l.s8.bf16 %v1025
    %v3018 = vunpack.c.l.s8.bf16 %v1026
    %v3019 = vunpack.c.l.s8.bf16 %v1027
    %v3020 = vunpack.c.l.s8.bf16 %v1028
    %v3021 = vunpack.c.l.s8.bf16 %v1029
    %v3022 = vunpack.c.l.s8.bf16 %v1030
    %v3023 = vunpack.c.h.s8.bf16 %v1023
    %v3024 = vunpack.c.h.s8.bf16 %v1024
    %v3025 = vunpack.c.h.s8.bf16 %v1025
    %v3026 = vunpack.c.h.s8.bf16 %v1026
    %v3027 = vunpack.c.h.s8.bf16 %v1027
    %v3028 = vunpack.c.h.s8.bf16 %v1028
    %v3029 = vunpack.c.h.s8.bf16 %v1029
    %v3030 = vunpack.c.h.s8.bf16 %v1030
    %v3031 = vunpack.c.l.s8.bf16 %v1031
    %v3032 = vunpack.c.l.s8.bf16 %v1032
    %v3033 = vunpack.c.l.s8.bf16 %v1033
    %v3034 = vunpack.c.l.s8.bf16 %v1034
    %v3035 = vunpack.c.l.s8.bf16 %v1035
    %v3036 = vunpack.c.l.s8.bf16 %v1036
    %v3037 = vunpack.c.l.s8.bf16 %v1037
    %v3038 = vunpack.c.l.s8.bf16 %v1038
    %v3039 = vunpack.c.h.s8.bf16 %v1031
    %v3040 = vunpack.c.h.s8.bf16 %v1032
    %v3041 = vunpack.c.h.s8.bf16 %v1033
    %v3042 = vunpack.c.h.s8.bf16 %v1034
    %v3043 = vunpack.c.h.s8.bf16 %v1035
    %v3044 = vunpack.c.h.s8.bf16 %v1036
    %v3045 = vunpack.c.h.s8.bf16 %v1037
    %v3046 = vunpack.c.h.s8.bf16 %v1038
    %v3047 = vunpack.c.l.s8.bf16 %v1039
    %v3048 = vunpack.c.l.s8.bf16 %v1040
    %v3049 = vunpack.c.l.s8.bf16 %v1041
    %v3050 = vunpack.c.l.s8.bf16 %v1042
    %v3051 = vunpack.c.l.s8.bf16 %v1043
    %v3052 = vunpack.c.l.s8.bf16 %v1044
    %v3053 = vunpack.c.l.s8.bf16 %v1045
    %v3054 = vunpack.c.l.s8.bf16 %v1046
    %v3055 = vunpack.c.h.s8.bf16 %v1039
    %v3056 = vunpack.c.h.s8.bf16 %v1040
    %v3057 = vunpack.c.h.s8.bf16 %v1041
    %v3058 = vunpack.c.h.s8.bf16 %v1042
    %v3059 = vunpack.c.h.s8.bf16 %v1043
    %v3060 = vunpack.c.h.s8.bf16 %v1044
    %v3061 = vunpack.c.h.s8.bf16 %v1045
    %v3062 = vunpack.c.h.s8.bf16 %v1046
    %v3063 = vunpack.c.l.s8.bf16 %v1047
    %v3064 = vunpack.c.l.s8.bf16 %v1048
    %v3065 = vunpack.c.l.s8.bf16 %v1049
    %v3066 = vunpack.c.l.s8.bf16 %v1050
    %v3067 = vunpack.c.l.s8.bf16 %v1051
    %v3068 = vunpack.c.l.s8.bf16 %v1052
    %v3069 = vunpack.c.l.s8.bf16 %v1053
    %v3070 = vunpack.c.l.s8.bf16 %v1054
    %v3071 = vunpack.c.h.s8.bf16 %v1047
    %v3072 = vunpack.c.h.s8.bf16 %v1048
    %v3073 = vunpack.c.h.s8.bf16 %v1049
    %v3074 = vunpack.c.h.s8.bf16 %v1050
    %v3075 = vunpack.c.h.s8.bf16 %v1051
    %v3076 = vunpack.c.h.s8.bf16 %v1052
    %v3077 = vunpack.c.h.s8.bf16 %v1053
    %v3078 = vunpack.c.h.s8.bf16 %v1054
    %v3079 = vunpack.c.l.s8.bf16 %v1055
    %v3080 = vunpack.c.l.s8.bf16 %v1056
    %v3081 = vunpack.c.l.s8.bf16 %v1057
    %v3082 = vunpack.c.l.s8.bf16 %v1058
    %v3083 = vunpack.c.l.s8.bf16 %v1059
    %v3084 = vunpack.c.l.s8.bf16 %v1060
    %v3085 = vunpack.c.l.s8.bf16 %v1061
    %v3086 = vunpack.c.l.s8.bf16 %v1062
    %v3087 = vunpack.c.h.s8.bf16 %v1055
    %v3088 = vunpack.c.h.s8.bf16 %v1056
    %v3089 = vunpack.c.h.s8.bf16 %v1057
    %v3090 = vunpack.c.h.s8.bf16 %v1058
    %v3091 = vunpack.c.h.s8.bf16 %v1059
    %v3092 = vunpack.c.h.s8.bf16 %v1060
    %v3093 = vunpack.c.h.s8.bf16 %v1061
    %v3094 = vunpack.c.h.s8.bf16 %v1062
    %v3095 = vunpack.c.l.s8.bf16 %v1063
    %v3096 = vunpack.c.l.s8.bf16 %v1064
    %v3097 = vunpack.c.l.s8.bf16 %v1065
    %v3098 = vunpack.c.l.s8.bf16 %v1066
    %v3099 = vunpack.c.l.s8.bf16 %v1067
    %v3100 = vunpack.c.l.s8.bf16 %v1068
    %v3101 = vunpack.c.l.s8.bf16 %v1069
    %v3102 = vunpack.c.l.s8.bf16 %v1070
    %v3103 = vunpack.c.h.s8.bf16 %v1063
    %v3104 = vunpack.c.h.s8.bf16 %v1064
    %v3105 = vunpack.c.h.s8.bf16 %v1065
    %v3106 = vunpack.c.h.s8.bf16 %v1066
    %v3107 = vunpack.c.h.s8.bf16 %v1067
    %v3108 = vunpack.c.h.s8.bf16 %v1068
    %v3109 = vunpack.c.h.s8.bf16 %v1069
    %v3110 = vunpack.c.h.s8.bf16 %v1070
    %v3111 = vunpack.c.l.s8.bf16 %v1071
    %v3112 = vunpack.c.l.s8.bf16 %v1072
    %v3113 = vunpack.c.l.s8.bf16 %v1073
    %v3114 = vunpack.c.l.s8.bf16 %v1074
    %v3115 = vunpack.c.l.s8.bf16 %v1075
    %v3116 = vunpack.c.l.s8.bf16 %v1076
    %v3117 = vunpack.c.l.s8.bf16 %v1077
    %v3118 = vunpack.c.l.s8.bf16 %v1078
    %v3119 = vunpack.c.h.s8.bf16 %v1071
    %v3120 = vunpack.c.h.s8.bf16 %v1072
    %v3121 = vunpack.c.h.s8.bf16 %v1073
    %v3122 = vunpack.c.h.s8.bf16 %v1074
    %v3123 = vunpack.c.h.s8.bf16 %v1075
    %v3124 = vunpack.c.h.s8.bf16 %v1076
    %v3125 = vunpack.c.h.s8.bf16 %v1077
    %v3126 = vunpack.c.h.s8.bf16 %v1078
    %v3127 = vld [vmem:[%s0] sm:$0xff]
    %v3128 = vld [vmem:[%s0 + $0x8] sm:$0xff]
    %v3129 = vld [vmem:[%s0 + $0x10] sm:$0xff]
    %v3130 = vld [vmem:[%s0 + $0x18] sm:$0xff]
    %v3135 = vcombine.high %v3127, %v3127
    %v3137 = vunpack.c.l.s4 1966171168
    %v3138 = vunpack.c.0.s8 %v3137
    %v3139 = vlaneseq
    %v3140 = vshrl.u32 %v3139, 7
    %v3141 = vsub.s32 %v3138, %v3140
    %v3142 = vrot.slane %v3127, %v3141
    %v3144 = vunpack.c.l.s4 1966171168
    %v3145 = vunpack.c.0.s8 %v3144
    %v3146 = vlaneseq
    %v3147 = vshrl.u32 %v3146, 7
    %v3148 = vsub.s32 %v3145, %v3147
    %v3149 = vrot.slane %v3135, %v3148
    %v3150 = vcombine.high %v3142, %v3142
    %v3151 = vcombine.high %v3149, %v3149
    %v3153 = vunpack.c.l.s4 1966171168
    %v3154 = vunpack.c.0.s8 %v3153
    %v3155 = vlaneseq
    %v3156 = vshrl.u32 %v3155, 7
    %v3157 = vsub.s32 %v3154, %v3156
    %v3158 = vrot.slane %v3142, %v3157
    %v3160 = vunpack.c.l.s4 1966171168
    %v3161 = vunpack.c.0.s8 %v3160
    %v3162 = vlaneseq
    %v3163 = vshrl.u32 %v3162, 7
    %v3164 = vsub.s32 %v3161, %v3163
    %v3165 = vrot.slane %v3149, %v3164
    %v3167 = vunpack.c.l.s4 1966171168
    %v3168 = vunpack.c.0.s8 %v3167
    %v3169 = vlaneseq
    %v3170 = vshrl.u32 %v3169, 7
    %v3171 = vsub.s32 %v3168, %v3170
    %v3172 = vrot.slane %v3150, %v3171
    %v3174 = vunpack.c.l.s4 1966171168
    %v3175 = vunpack.c.0.s8 %v3174
    %v3176 = vlaneseq
    %v3177 = vshrl.u32 %v3176, 7
    %v3178 = vsub.s32 %v3175, %v3177
    %v3179 = vrot.slane %v3151, %v3178
    %v3180 = vcombine.high %v3158, %v3158
    %v3181 = vcombine.high %v3165, %v3165
    %v3182 = vcombine.high %v3172, %v3172
    %v3183 = vcombine.high %v3179, %v3179
    %v3184 = vcombine.high %v3128, %v3128
    %v3186 = vunpack.c.l.s4 1966171168
    %v3187 = vunpack.c.0.s8 %v3186
    %v3188 = vlaneseq
    %v3189 = vshrl.u32 %v3188, 7
    %v3190 = vsub.s32 %v3187, %v3189
    %v3191 = vrot.slane %v3128, %v3190
    %v3193 = vunpack.c.l.s4 1966171168
    %v3194 = vunpack.c.0.s8 %v3193
    %v3195 = vlaneseq
    %v3196 = vshrl.u32 %v3195, 7
    %v3197 = vsub.s32 %v3194, %v3196
    %v3198 = vrot.slane %v3184, %v3197
    %v3199 = vcombine.high %v3191, %v3191
    %v3200 = vcombine.high %v3198, %v3198
    %v3202 = vunpack.c.l.s4 1966171168
    %v3203 = vunpack.c.0.s8 %v3202
    %v3204 = vlaneseq
    %v3205 = vshrl.u32 %v3204, 7
    %v3206 = vsub.s32 %v3203, %v3205
    %v3207 = vrot.slane %v3191, %v3206
    %v3209 = vunpack.c.l.s4 1966171168
    %v3210 = vunpack.c.0.s8 %v3209
    %v3211 = vlaneseq
    %v3212 = vshrl.u32 %v3211, 7
    %v3213 = vsub.s32 %v3210, %v3212
    %v3214 = vrot.slane %v3198, %v3213
    %v3216 = vunpack.c.l.s4 1966171168
    %v3217 = vunpack.c.0.s8 %v3216
    %v3218 = vlaneseq
    %v3219 = vshrl.u32 %v3218, 7
    %v3220 = vsub.s32 %v3217, %v3219
    %v3221 = vrot.slane %v3199, %v3220
    %v3223 = vunpack.c.l.s4 1966171168
    %v3224 = vunpack.c.0.s8 %v3223
    %v3225 = vlaneseq
    %v3226 = vshrl.u32 %v3225, 7
    %v3227 = vsub.s32 %v3224, %v3226
    %v3228 = vrot.slane %v3200, %v3227
    %v3229 = vcombine.high %v3207, %v3207
    %v3230 = vcombine.high %v3214, %v3214
    %v3231 = vcombine.high %v3221, %v3221
    %v3232 = vcombine.high %v3228, %v3228
    %v3233 = vcombine.high %v3129, %v3129
    %v3235 = vunpack.c.l.s4 1966171168
    %v3236 = vunpack.c.0.s8 %v3235
    %v3237 = vlaneseq
    %v3238 = vshrl.u32 %v3237, 7
    %v3239 = vsub.s32 %v3236, %v3238
    %v3240 = vrot.slane %v3129, %v3239
    %v3242 = vunpack.c.l.s4 1966171168
    %v3243 = vunpack.c.0.s8 %v3242
    %v3244 = vlaneseq
    %v3245 = vshrl.u32 %v3244, 7
    %v3246 = vsub.s32 %v3243, %v3245
    %v3247 = vrot.slane %v3233, %v3246
    %v3248 = vcombine.high %v3240, %v3240
    %v3249 = vcombine.high %v3247, %v3247
    %v3251 = vunpack.c.l.s4 1966171168
    %v3252 = vunpack.c.0.s8 %v3251
    %v3253 = vlaneseq
    %v3254 = vshrl.u32 %v3253, 7
    %v3255 = vsub.s32 %v3252, %v3254
    %v3256 = vrot.slane %v3240, %v3255
    %v3258 = vunpack.c.l.s4 1966171168
    %v3259 = vunpack.c.0.s8 %v3258
    %v3260 = vlaneseq
    %v3261 = vshrl.u32 %v3260, 7
    %v3262 = vsub.s32 %v3259, %v3261
    %v3263 = vrot.slane %v3247, %v3262
    %v3265 = vunpack.c.l.s4 1966171168
    %v3266 = vunpack.c.0.s8 %v3265
    %v3267 = vlaneseq
    %v3268 = vshrl.u32 %v3267, 7
    %v3269 = vsub.s32 %v3266, %v3268
    %v3270 = vrot.slane %v3248, %v3269
    %v3272 = vunpack.c.l.s4 1966171168
    %v3273 = vunpack.c.0.s8 %v3272
    %v3274 = vlaneseq
    %v3275 = vshrl.u32 %v3274, 7
    %v3276 = vsub.s32 %v3273, %v3275
    %v3277 = vrot.slane %v3249, %v3276
    %v3278 = vcombine.high %v3256, %v3256
    %v3279 = vcombine.high %v3263, %v3263
    %v3280 = vcombine.high %v3270, %v3270
    %v3281 = vcombine.high %v3277, %v3277
    %v3282 = vcombine.high %v3130, %v3130
    %v3284 = vunpack.c.l.s4 1966171168
    %v3285 = vunpack.c.0.s8 %v3284
    %v3286 = vlaneseq
    %v3287 = vshrl.u32 %v3286, 7
    %v3288 = vsub.s32 %v3285, %v3287
    %v3289 = vrot.slane %v3130, %v3288
    %v3291 = vunpack.c.l.s4 1966171168
    %v3292 = vunpack.c.0.s8 %v3291
    %v3293 = vlaneseq
    %v3294 = vshrl.u32 %v3293, 7
    %v3295 = vsub.s32 %v3292, %v3294
    %v3296 = vrot.slane %v3282, %v3295
    %v3297 = vcombine.high %v3289, %v3289
    %v3298 = vcombine.high %v3296, %v3296
    %v3300 = vunpack.c.l.s4 1966171168
    %v3301 = vunpack.c.0.s8 %v3300
    %v3302 = vlaneseq
    %v3303 = vshrl.u32 %v3302, 7
    %v3304 = vsub.s32 %v3301, %v3303
    %v3305 = vrot.slane %v3289, %v3304
    %v3307 = vunpack.c.l.s4 1966171168
    %v3308 = vunpack.c.0.s8 %v3307
    %v3309 = vlaneseq
    %v3310 = vshrl.u32 %v3309, 7
    %v3311 = vsub.s32 %v3308, %v3310
    %v3312 = vrot.slane %v3296, %v3311
    %v3314 = vunpack.c.l.s4 1966171168
    %v3315 = vunpack.c.0.s8 %v3314
    %v3316 = vlaneseq
    %v3317 = vshrl.u32 %v3316, 7
    %v3318 = vsub.s32 %v3315, %v3317
    %v3319 = vrot.slane %v3297, %v3318
    %v3321 = vunpack.c.l.s4 1966171168
    %v3322 = vunpack.c.0.s8 %v3321
    %v3323 = vlaneseq
    %v3324 = vshrl.u32 %v3323, 7
    %v3325 = vsub.s32 %v3322, %v3324
    %v3326 = vrot.slane %v3298, %v3325
    %v3327 = vcombine.high %v3305, %v3305
    %v3328 = vcombine.high %v3312, %v3312
    %v3329 = vcombine.high %v3319, %v3319
    %v3330 = vcombine.high %v3326, %v3326
    %3363 = vmatprep.subr.bf16.mxu0 %v1136
    %3364 = vmatpush1.bf16.msra.mxu0 %v1135
    %3365 = vmatprep.subr.bf16.mxu0 %v1128
    %3366 = vmatpush1.bf16.msra.mxu0 %v1127
    %3367 = vmatprep.subr.bf16.mxu0 %v1120
    %3368 = vmatpush1.bf16.msra.mxu0 %v1119
    %3369 = vmatprep.subr.bf16.mxu0 %v1112
    %3370 = vmatpush1.bf16.msra.mxu0 %v1111
    %3371 = vmatprep.subr.bf16.mxu0 %v1104
    %3372 = vmatpush1.bf16.msra.mxu0 %v1103
    %3373 = vmatprep.subr.bf16.mxu0 %v1096
    %3374 = vmatpush1.bf16.msra.mxu0 %v1095
    %3375 = vmatprep.subr.bf16.mxu0 %v1088
    %3376 = vmatpush1.bf16.msra.mxu0 %v1087
    %3377 = vmatprep.subr.bf16.mxu0 %v1080
    %3378 = vmatpush1.bf16.msra.mxu0 %v1079
    %3379 = vmatprep.subr.bf16.mxu0 %v1200
    %3380 = vmatpush2.bf16.msra.mxu0 %v1199
    %3381 = vmatprep.subr.bf16.mxu0 %v1192
    %3382 = vmatpush2.bf16.msra.mxu0 %v1191
    %3383 = vmatprep.subr.bf16.mxu0 %v1184
    %3384 = vmatpush2.bf16.msra.mxu0 %v1183
    %3385 = vmatprep.subr.bf16.mxu0 %v1176
    %3386 = vmatpush2.bf16.msra.mxu0 %v1175
    %3387 = vmatprep.subr.bf16.mxu0 %v1168
    %3388 = vmatpush2.bf16.msra.mxu0 %v1167
    %3389 = vmatprep.subr.bf16.mxu0 %v1160
    %3390 = vmatpush2.bf16.msra.mxu0 %v1159
    %3391 = vmatprep.subr.bf16.mxu0 %v1152
    %3392 = vmatpush2.bf16.msra.mxu0 %v1151
    %3393 = vmatprep.subr.bf16.mxu0 %v1144
    %3394 = vmatpush2.bf16.msra.mxu0 %v1143
    %3395 = vmatprep.mubr.bf16.mxu0 %v3172
    %3396 = vmatmul.mubr.bf16.gmra.mxu0 %v3158
    %v3397 = vpop.f32.mrf.mxu0
    %v3398 = vadd.f32 0.0, %v3397
    %v3399 = vpop.f32.mrf.mxu0
    %v3400 = vadd.f32 0.0, %v3399
    %v3401 = vpop.f32.mrf.mxu0
    %v3402 = vpop.f32.mrf.mxu0
    %3403 = vdwg.mxu0
    %3404 = vmatprep.subr.bf16.mxu0 %v1264
    %3405 = vmatpush1.bf16.msra.mxu0 %v1263
    %3406 = vmatprep.subr.bf16.mxu0 %v1256
    %3407 = vmatpush1.bf16.msra.mxu0 %v1255
    %3408 = vmatprep.subr.bf16.mxu0 %v1248
    %3409 = vmatpush1.bf16.msra.mxu0 %v1247
    %3410 = vmatprep.subr.bf16.mxu0 %v1240
    %3411 = vmatpush1.bf16.msra.mxu0 %v1239
    %3412 = vmatprep.subr.bf16.mxu0 %v1232
    %3413 = vmatpush1.bf16.msra.mxu0 %v1231
    %3414 = vmatprep.subr.bf16.mxu0 %v1224
    %3415 = vmatpush1.bf16.msra.mxu0 %v1223
    %3416 = vmatprep.subr.bf16.mxu0 %v1216
    %3417 = vmatpush1.bf16.msra.mxu0 %v1215
    %3418 = vmatprep.subr.bf16.mxu0 %v1208
    %3419 = vmatpush1.bf16.msra.mxu0 %v1207
    %3420 = vmatprep.subr.bf16.mxu0 %v1328
    %3421 = vmatpush2.bf16.msra.mxu0 %v1327
    %3422 = vmatprep.subr.bf16.mxu0 %v1320
    %3423 = vmatpush2.bf16.msra.mxu0 %v1319
    %3424 = vmatprep.subr.bf16.mxu0 %v1312
    %3425 = vmatpush2.bf16.msra.mxu0 %v1311
    %3426 = vmatprep.subr.bf16.mxu0 %v1304
    %3427 = vmatpush2.bf16.msra.mxu0 %v1303
    %3428 = vmatprep.subr.bf16.mxu0 %v1296
    %3429 = vmatpush2.bf16.msra.mxu0 %v1295
    %3430 = vmatprep.subr.bf16.mxu0 %v1288
    %3431 = vmatpush2.bf16.msra.mxu0 %v1287
    %3432 = vmatprep.subr.bf16.mxu0 %v1280
    %3433 = vmatpush2.bf16.msra.mxu0 %v1279
    %3434 = vmatprep.subr.bf16.mxu0 %v1272
    %3435 = vmatpush2.bf16.msra.mxu0 %v1271
    %3436 = vmatprep.mubr.bf16.mxu0 %v3182
    %3437 = vmatmul.mubr.bf16.gmra.mxu0 %v3180
    %v3438 = vpop.f32.mrf.mxu0
    %v3439 = vadd.f32 %v3398, %v3438
    %v3440 = vpop.f32.mrf.mxu0
    %v3441 = vadd.f32 %v3400, %v3440
    %v3442 = vpop.f32.mrf.mxu0
    %v3443 = vpop.f32.mrf.mxu0
    %3444 = vdwg.mxu0
    %3445 = vmatprep.subr.bf16.mxu0 %v1392
    %3446 = vmatpush1.bf16.msra.mxu0 %v1391
    %3447 = vmatprep.subr.bf16.mxu0 %v1384
    %3448 = vmatpush1.bf16.msra.mxu0 %v1383
    %3449 = vmatprep.subr.bf16.mxu0 %v1376
    %3450 = vmatpush1.bf16.msra.mxu0 %v1375
    %3451 = vmatprep.subr.bf16.mxu0 %v1368
    %3452 = vmatpush1.bf16.msra.mxu0 %v1367
    %3453 = vmatprep.subr.bf16.mxu0 %v1360
    %3454 = vmatpush1.bf16.msra.mxu0 %v1359
    %3455 = vmatprep.subr.bf16.mxu0 %v1352
    %3456 = vmatpush1.bf16.msra.mxu0 %v1351
    %3457 = vmatprep.subr.bf16.mxu0 %v1344
    %3458 = vmatpush1.bf16.msra.mxu0 %v1343
    %3459 = vmatprep.subr.bf16.mxu0 %v1336
    %3460 = vmatpush1.bf16.msra.mxu0 %v1335
    %3461 = vmatprep.subr.bf16.mxu0 %v1456
    %3462 = vmatpush2.bf16.msra.mxu0 %v1455
    %3463 = vmatprep.subr.bf16.mxu0 %v1448
    %3464 = vmatpush2.bf16.msra.mxu0 %v1447
    %3465 = vmatprep.subr.bf16.mxu0 %v1440
    %3466 = vmatpush2.bf16.msra.mxu0 %v1439
    %3467 = vmatprep.subr.bf16.mxu0 %v1432
    %3468 = vmatpush2.bf16.msra.mxu0 %v1431
    %3469 = vmatprep.subr.bf16.mxu0 %v1424
    %3470 = vmatpush2.bf16.msra.mxu0 %v1423
    %3471 = vmatprep.subr.bf16.mxu0 %v1416
    %3472 = vmatpush2.bf16.msra.mxu0 %v1415
    %3473 = vmatprep.subr.bf16.mxu0 %v1408
    %3474 = vmatpush2.bf16.msra.mxu0 %v1407
    %3475 = vmatprep.subr.bf16.mxu0 %v1400
    %3476 = vmatpush2.bf16.msra.mxu0 %v1399
    %3477 = vmatprep.mubr.bf16.mxu0 %v3179
    %3478 = vmatmul.mubr.bf16.gmra.mxu0 %v3165
    %v3479 = vpop.f32.mrf.mxu0
    %v3480 = vadd.f32 %v3439, %v3479
    %v3481 = vpop.f32.mrf.mxu0
    %v3482 = vadd.f32 %v3441, %v3481
    %v3483 = vpop.f32.mrf.mxu0
    %v3484 = vpop.f32.mrf.mxu0
    %3485 = vdwg.mxu0
    %3486 = vmatprep.subr.bf16.mxu0 %v1520
    %3487 = vmatpush1.bf16.msra.mxu0 %v1519
    %3488 = vmatprep.subr.bf16.mxu0 %v1512
    %3489 = vmatpush1.bf16.msra.mxu0 %v1511
    %3490 = vmatprep.subr.bf16.mxu0 %v1504
    %3491 = vmatpush1.bf16.msra.mxu0 %v1503
    %3492 = vmatprep.subr.bf16.mxu0 %v1496
    %3493 = vmatpush1.bf16.msra.mxu0 %v1495
    %3494 = vmatprep.subr.bf16.mxu0 %v1488
    %3495 = vmatpush1.bf16.msra.mxu0 %v1487
    %3496 = vmatprep.subr.bf16.mxu0 %v1480
    %3497 = vmatpush1.bf16.msra.mxu0 %v1479
    %3498 = vmatprep.subr.bf16.mxu0 %v1472
    %3499 = vmatpush1.bf16.msra.mxu0 %v1471
    %3500 = vmatprep.subr.bf16.mxu0 %v1464
    %3501 = vmatpush1.bf16.msra.mxu0 %v1463
    %3502 = vmatprep.subr.bf16.mxu0 %v1584
    %3503 = vmatpush2.bf16.msra.mxu0 %v1583
    %3504 = vmatprep.subr.bf16.mxu0 %v1576
    %3505 = vmatpush2.bf16.msra.mxu0 %v1575
    %3506 = vmatprep.subr.bf16.mxu0 %v1568
    %3507 = vmatpush2.bf16.msra.mxu0 %v1567
    %3508 = vmatprep.subr.bf16.mxu0 %v1560
    %3509 = vmatpush2.bf16.msra.mxu0 %v1559
    %3510 = vmatprep.subr.bf16.mxu0 %v1552
    %3511 = vmatpush2.bf16.msra.mxu0 %v1551
    %3512 = vmatprep.subr.bf16.mxu0 %v1544
    %3513 = vmatpush2.bf16.msra.mxu0 %v1543
    %3514 = vmatprep.subr.bf16.mxu0 %v1536
    %3515 = vmatpush2.bf16.msra.mxu0 %v1535
    %3516 = vmatprep.subr.bf16.mxu0 %v1528
    %3517 = vmatpush2.bf16.msra.mxu0 %v1527
    %3518 = vmatprep.mubr.bf16.mxu0 %v3183
    %3519 = vmatmul.mubr.bf16.gmra.mxu0 %v3181
    %v3520 = vpop.f32.mrf.mxu0
    %v3521 = vadd.f32 %v3480, %v3520
    %v3522 = vpop.f32.mrf.mxu0
    %v3523 = vadd.f32 %v3482, %v3522
    %v3524 = vpop.f32.mrf.mxu0
    %v3525 = vpop.f32.mrf.mxu0
    %3526 = vdwg.mxu0
    %3527 = vmatprep.subr.bf16.mxu0 %v1648
    %3528 = vmatpush1.bf16.msra.mxu0 %v1647
    %3529 = vmatprep.subr.bf16.mxu0 %v1640
    %3530 = vmatpush1.bf16.msra.mxu0 %v1639
    %3531 = vmatprep.subr.bf16.mxu0 %v1632
    %3532 = vmatpush1.bf16.msra.mxu0 %v1631
    %3533 = vmatprep.subr.bf16.mxu0 %v1624
    %3534 = vmatpush1.bf16.msra.mxu0 %v1623
    %3535 = vmatprep.subr.bf16.mxu0 %v1616
    %3536 = vmatpush1.bf16.msra.mxu0 %v1615
    %3537 = vmatprep.subr.bf16.mxu0 %v1608
    %3538 = vmatpush1.bf16.msra.mxu0 %v1607
    %3539 = vmatprep.subr.bf16.mxu0 %v1600
    %3540 = vmatpush1.bf16.msra.mxu0 %v1599
    %3541 = vmatprep.subr.bf16.mxu0 %v1592
    %3542 = vmatpush1.bf16.msra.mxu0 %v1591
    %3543 = vmatprep.subr.bf16.mxu0 %v1712
    %3544 = vmatpush2.bf16.msra.mxu0 %v1711
    %3545 = vmatprep.subr.bf16.mxu0 %v1704
    %3546 = vmatpush2.bf16.msra.mxu0 %v1703
    %3547 = vmatprep.subr.bf16.mxu0 %v1696
    %3548 = vmatpush2.bf16.msra.mxu0 %v1695
    %3549 = vmatprep.subr.bf16.mxu0 %v1688
    %3550 = vmatpush2.bf16.msra.mxu0 %v1687
    %3551 = vmatprep.subr.bf16.mxu0 %v1680
    %3552 = vmatpush2.bf16.msra.mxu0 %v1679
    %3553 = vmatprep.subr.bf16.mxu0 %v1672
    %3554 = vmatpush2.bf16.msra.mxu0 %v1671
    %3555 = vmatprep.subr.bf16.mxu0 %v1664
    %3556 = vmatpush2.bf16.msra.mxu0 %v1663
    %3557 = vmatprep.subr.bf16.mxu0 %v1656
    %3558 = vmatpush2.bf16.msra.mxu0 %v1655
    %3559 = vmatprep.mubr.bf16.mxu0 %v3221
    %3560 = vmatmul.mubr.bf16.gmra.mxu0 %v3207
    %v3561 = vpop.f32.mrf.mxu0
    %v3562 = vadd.f32 %v3521, %v3561
    %v3563 = vpop.f32.mrf.mxu0
    %v3564 = vadd.f32 %v3523, %v3563
    %v3565 = vpop.f32.mrf.mxu0
    %v3566 = vpop.f32.mrf.mxu0
    %3567 = vdwg.mxu0
    %3568 = vmatprep.subr.bf16.mxu0 %v1776
    %3569 = vmatpush1.bf16.msra.mxu0 %v1775
    %3570 = vmatprep.subr.bf16.mxu0 %v1768
    %3571 = vmatpush1.bf16.msra.mxu0 %v1767
    %3572 = vmatprep.subr.bf16.mxu0 %v1760
    %3573 = vmatpush1.bf16.msra.mxu0 %v1759
    %3574 = vmatprep.subr.bf16.mxu0 %v1752
    %3575 = vmatpush1.bf16.msra.mxu0 %v1751
    %3576 = vmatprep.subr.bf16.mxu0 %v1744
    %3577 = vmatpush1.bf16.msra.mxu0 %v1743
    %3578 = vmatprep.subr.bf16.mxu0 %v1736
    %3579 = vmatpush1.bf16.msra.mxu0 %v1735
    %3580 = vmatprep.subr.bf16.mxu0 %v1728
    %3581 = vmatpush1.bf16.msra.mxu0 %v1727
    %3582 = vmatprep.subr.bf16.mxu0 %v1720
    %3583 = vmatpush1.bf16.msra.mxu0 %v1719
    %3584 = vmatprep.subr.bf16.mxu0 %v1840
    %3585 = vmatpush2.bf16.msra.mxu0 %v1839
    %3586 = vmatprep.subr.bf16.mxu0 %v1832
    %3587 = vmatpush2.bf16.msra.mxu0 %v1831
    %3588 = vmatprep.subr.bf16.mxu0 %v1824
    %3589 = vmatpush2.bf16.msra.mxu0 %v1823
    %3590 = vmatprep.subr.bf16.mxu0 %v1816
    %3591 = vmatpush2.bf16.msra.mxu0 %v1815
    %3592 = vmatprep.subr.bf16.mxu0 %v1808
    %3593 = vmatpush2.bf16.msra.mxu0 %v1807
    %3594 = vmatprep.subr.bf16.mxu0 %v1800
    %3595 = vmatpush2.bf16.msra.mxu0 %v1799
    %3596 = vmatprep.subr.bf16.mxu0 %v1792
    %3597 = vmatpush2.bf16.msra.mxu0 %v1791
    %3598 = vmatprep.subr.bf16.mxu0 %v1784
    %3599 = vmatpush2.bf16.msra.mxu0 %v1783
    %3600 = vmatprep.mubr.bf16.mxu0 %v3231
    %3601 = vmatmul.mubr.bf16.gmra.mxu0 %v3229
    %v3602 = vpop.f32.mrf.mxu0
    %v3603 = vadd.f32 %v3562, %v3602
    %v3604 = vpop.f32.mrf.mxu0
    %v3605 = vadd.f32 %v3564, %v3604
    %v3606 = vpop.f32.mrf.mxu0
    %v3607 = vpop.f32.mrf.mxu0
    %3608 = vdwg.mxu0
    %3609 = vmatprep.subr.bf16.mxu0 %v1904
    %3610 = vmatpush1.bf16.msra.mxu0 %v1903
    %3611 = vmatprep.subr.bf16.mxu0 %v1896
    %3612 = vmatpush1.bf16.msra.mxu0 %v1895
    %3613 = vmatprep.subr.bf16.mxu0 %v1888
    %3614 = vmatpush1.bf16.msra.mxu0 %v1887
    %3615 = vmatprep.subr.bf16.mxu0 %v1880
    %3616 = vmatpush1.bf16.msra.mxu0 %v1879
    %3617 = vmatprep.subr.bf16.mxu0 %v1872
    %3618 = vmatpush1.bf16.msra.mxu0 %v1871
    %3619 = vmatprep.subr.bf16.mxu0 %v1864
    %3620 = vmatpush1.bf16.msra.mxu0 %v1863
    %3621 = vmatprep.subr.bf16.mxu0 %v1856
    %3622 = vmatpush1.bf16.msra.mxu0 %v1855
    %3623 = vmatprep.subr.bf16.mxu0 %v1848
    %3624 = vmatpush1.bf16.msra.mxu0 %v1847
    %3625 = vmatprep.subr.bf16.mxu0 %v1968
    %3626 = vmatpush2.bf16.msra.mxu0 %v1967
    %3627 = vmatprep.subr.bf16.mxu0 %v1960
    %3628 = vmatpush2.bf16.msra.mxu0 %v1959
    %3629 = vmatprep.subr.bf16.mxu0 %v1952
    %3630 = vmatpush2.bf16.msra.mxu0 %v1951
    %3631 = vmatprep.subr.bf16.mxu0 %v1944
    %3632 = vmatpush2.bf16.msra.mxu0 %v1943
    %3633 = vmatprep.subr.bf16.mxu0 %v1936
    %3634 = vmatpush2.bf16.msra.mxu0 %v1935
    %3635 = vmatprep.subr.bf16.mxu0 %v1928
    %3636 = vmatpush2.bf16.msra.mxu0 %v1927
    %3637 = vmatprep.subr.bf16.mxu0 %v1920
    %3638 = vmatpush2.bf16.msra.mxu0 %v1919
    %3639 = vmatprep.subr.bf16.mxu0 %v1912
    %3640 = vmatpush2.bf16.msra.mxu0 %v1911
    %3641 = vmatprep.mubr.bf16.mxu0 %v3228
    %3642 = vmatmul.mubr.bf16.gmra.mxu0 %v3214
    %v3643 = vpop.f32.mrf.mxu0
    %v3644 = vadd.f32 %v3603, %v3643
    %v3645 = vpop.f32.mrf.mxu0
    %v3646 = vadd.f32 %v3605, %v3645
    %v3647 = vpop.f32.mrf.mxu0
    %v3648 = vpop.f32.mrf.mxu0
    %3649 = vdwg.mxu0
    %3650 = vmatprep.subr.bf16.mxu0 %v2032
    %3651 = vmatpush1.bf16.msra.mxu0 %v2031
    %3652 = vmatprep.subr.bf16.mxu0 %v2024
    %3653 = vmatpush1.bf16.msra.mxu0 %v2023
    %3654 = vmatprep.subr.bf16.mxu0 %v2016
    %3655 = vmatpush1.bf16.msra.mxu0 %v2015
    %3656 = vmatprep.subr.bf16.mxu0 %v2008
    %3657 = vmatpush1.bf16.msra.mxu0 %v2007
    %3658 = vmatprep.subr.bf16.mxu0 %v2000
    %3659 = vmatpush1.bf16.msra.mxu0 %v1999
    %3660 = vmatprep.subr.bf16.mxu0 %v1992
    %3661 = vmatpush1.bf16.msra.mxu0 %v1991
    %3662 = vmatprep.subr.bf16.mxu0 %v1984
    %3663 = vmatpush1.bf16.msra.mxu0 %v1983
    %3664 = vmatprep.subr.bf16.mxu0 %v1976
    %3665 = vmatpush1.bf16.msra.mxu0 %v1975
    %3666 = vmatprep.subr.bf16.mxu0 %v2096
    %3667 = vmatpush2.bf16.msra.mxu0 %v2095
    %3668 = vmatprep.subr.bf16.mxu0 %v2088
    %3669 = vmatpush2.bf16.msra.mxu0 %v2087
    %3670 = vmatprep.subr.bf16.mxu0 %v2080
    %3671 = vmatpush2.bf16.msra.mxu0 %v2079
    %3672 = vmatprep.subr.bf16.mxu0 %v2072
    %3673 = vmatpush2.bf16.msra.mxu0 %v2071
    %3674 = vmatprep.subr.bf16.mxu0 %v2064
    %3675 = vmatpush2.bf16.msra.mxu0 %v2063
    %3676 = vmatprep.subr.bf16.mxu0 %v2056
    %3677 = vmatpush2.bf16.msra.mxu0 %v2055
    %3678 = vmatprep.subr.bf16.mxu0 %v2048
    %3679 = vmatpush2.bf16.msra.mxu0 %v2047
    %3680 = vmatprep.subr.bf16.mxu0 %v2040
    %3681 = vmatpush2.bf16.msra.mxu0 %v2039
    %3682 = vmatprep.mubr.bf16.mxu0 %v3232
    %3683 = vmatmul.mubr.bf16.gmra.mxu0 %v3230
    %v3684 = vpop.f32.mrf.mxu0
    %v3685 = vadd.f32 %v3644, %v3684
    %v3686 = vpop.f32.mrf.mxu0
    %v3687 = vadd.f32 %v3646, %v3686
    %v3688 = vpop.f32.mrf.mxu0
    %v3689 = vpop.f32.mrf.mxu0
    %3690 = vdwg.mxu0
    %3691 = vmatprep.subr.bf16.mxu0 %v2160
    %3692 = vmatpush1.bf16.msra.mxu0 %v2159
    %3693 = vmatprep.subr.bf16.mxu0 %v2152
    %3694 = vmatpush1.bf16.msra.mxu0 %v2151
    %3695 = vmatprep.subr.bf16.mxu0 %v2144
    %3696 = vmatpush1.bf16.msra.mxu0 %v2143
    %3697 = vmatprep.subr.bf16.mxu0 %v2136
    %3698 = vmatpush1.bf16.msra.mxu0 %v2135
    %3699 = vmatprep.subr.bf16.mxu0 %v2128
    %3700 = vmatpush1.bf16.msra.mxu0 %v2127
    %3701 = vmatprep.subr.bf16.mxu0 %v2120
    %3702 = vmatpush1.bf16.msra.mxu0 %v2119
    %3703 = vmatprep.subr.bf16.mxu0 %v2112
    %3704 = vmatpush1.bf16.msra.mxu0 %v2111
    %3705 = vmatprep.subr.bf16.mxu0 %v2104
    %3706 = vmatpush1.bf16.msra.mxu0 %v2103
    %3707 = vmatprep.subr.bf16.mxu0 %v2224
    %3708 = vmatpush2.bf16.msra.mxu0 %v2223
    %3709 = vmatprep.subr.bf16.mxu0 %v2216
    %3710 = vmatpush2.bf16.msra.mxu0 %v2215
    %3711 = vmatprep.subr.bf16.mxu0 %v2208
    %3712 = vmatpush2.bf16.msra.mxu0 %v2207
    %3713 = vmatprep.subr.bf16.mxu0 %v2200
    %3714 = vmatpush2.bf16.msra.mxu0 %v2199
    %3715 = vmatprep.subr.bf16.mxu0 %v2192
    %3716 = vmatpush2.bf16.msra.mxu0 %v2191
    %3717 = vmatprep.subr.bf16.mxu0 %v2184
    %3718 = vmatpush2.bf16.msra.mxu0 %v2183
    %3719 = vmatprep.subr.bf16.mxu0 %v2176
    %3720 = vmatpush2.bf16.msra.mxu0 %v2175
    %3721 = vmatprep.subr.bf16.mxu0 %v2168
    %3722 = vmatpush2.bf16.msra.mxu0 %v2167
    %3723 = vmatprep.mubr.bf16.mxu0 %v3270
    %3724 = vmatmul.mubr.bf16.gmra.mxu0 %v3256
    %v3725 = vpop.f32.mrf.mxu0
    %v3726 = vadd.f32 %v3685, %v3725
    %v3727 = vpop.f32.mrf.mxu0
    %v3728 = vadd.f32 %v3687, %v3727
    %v3729 = vpop.f32.mrf.mxu0
    %v3730 = vpop.f32.mrf.mxu0
    %3731 = vdwg.mxu0
    %3732 = vmatprep.subr.bf16.mxu0 %v2288
    %3733 = vmatpush1.bf16.msra.mxu0 %v2287
    %3734 = vmatprep.subr.bf16.mxu0 %v2280
    %3735 = vmatpush1.bf16.msra.mxu0 %v2279
    %3736 = vmatprep.subr.bf16.mxu0 %v2272
    %3737 = vmatpush1.bf16.msra.mxu0 %v2271
    %3738 = vmatprep.subr.bf16.mxu0 %v2264
    %3739 = vmatpush1.bf16.msra.mxu0 %v2263
    %3740 = vmatprep.subr.bf16.mxu0 %v2256
    %3741 = vmatpush1.bf16.msra.mxu0 %v2255
    %3742 = vmatprep.subr.bf16.mxu0 %v2248
    %3743 = vmatpush1.bf16.msra.mxu0 %v2247
    %3744 = vmatprep.subr.bf16.mxu0 %v2240
    %3745 = vmatpush1.bf16.msra.mxu0 %v2239
    %3746 = vmatprep.subr.bf16.mxu0 %v2232
    %3747 = vmatpush1.bf16.msra.mxu0 %v2231
    %3748 = vmatprep.subr.bf16.mxu0 %v2352
    %3749 = vmatpush2.bf16.msra.mxu0 %v2351
    %3750 = vmatprep.subr.bf16.mxu0 %v2344
    %3751 = vmatpush2.bf16.msra.mxu0 %v2343
    %3752 = vmatprep.subr.bf16.mxu0 %v2336
    %3753 = vmatpush2.bf16.msra.mxu0 %v2335
    %3754 = vmatprep.subr.bf16.mxu0 %v2328
    %3755 = vmatpush2.bf16.msra.mxu0 %v2327
    %3756 = vmatprep.subr.bf16.mxu0 %v2320
    %3757 = vmatpush2.bf16.msra.mxu0 %v2319
    %3758 = vmatprep.subr.bf16.mxu0 %v2312
    %3759 = vmatpush2.bf16.msra.mxu0 %v2311
    %3760 = vmatprep.subr.bf16.mxu0 %v2304
    %3761 = vmatpush2.bf16.msra.mxu0 %v2303
    %3762 = vmatprep.subr.bf16.mxu0 %v2296
    %3763 = vmatpush2.bf16.msra.mxu0 %v2295
    %3764 = vmatprep.mubr.bf16.mxu0 %v3280
    %3765 = vmatmul.mubr.bf16.gmra.mxu0 %v3278
    %v3766 = vpop.f32.mrf.mxu0
    %v3767 = vadd.f32 %v3726, %v3766
    %v3768 = vpop.f32.mrf.mxu0
    %v3769 = vadd.f32 %v3728, %v3768
    %v3770 = vpop.f32.mrf.mxu0
    %v3771 = vpop.f32.mrf.mxu0
    %3772 = vdwg.mxu0
    %3773 = vmatprep.subr.bf16.mxu0 %v2416
    %3774 = vmatpush1.bf16.msra.mxu0 %v2415
    %3775 = vmatprep.subr.bf16.mxu0 %v2408
    %3776 = vmatpush1.bf16.msra.mxu0 %v2407
    %3777 = vmatprep.subr.bf16.mxu0 %v2400
    %3778 = vmatpush1.bf16.msra.mxu0 %v2399
    %3779 = vmatprep.subr.bf16.mxu0 %v2392
    %3780 = vmatpush1.bf16.msra.mxu0 %v2391
    %3781 = vmatprep.subr.bf16.mxu0 %v2384
    %3782 = vmatpush1.bf16.msra.mxu0 %v2383
    %3783 = vmatprep.subr.bf16.mxu0 %v2376
    %3784 = vmatpush1.bf16.msra.mxu0 %v2375
    %3785 = vmatprep.subr.bf16.mxu0 %v2368
    %3786 = vmatpush1.bf16.msra.mxu0 %v2367
    %3787 = vmatprep.subr.bf16.mxu0 %v2360
    %3788 = vmatpush1.bf16.msra.mxu0 %v2359
    %3789 = vmatprep.subr.bf16.mxu0 %v2480
    %3790 = vmatpush2.bf16.msra.mxu0 %v2479
    %3791 = vmatprep.subr.bf16.mxu0 %v2472
    %3792 = vmatpush2.bf16.msra.mxu0 %v2471
    %3793 = vmatprep.subr.bf16.mxu0 %v2464
    %3794 = vmatpush2.bf16.msra.mxu0 %v2463
    %3795 = vmatprep.subr.bf16.mxu0 %v2456
    %3796 = vmatpush2.bf16.msra.mxu0 %v2455
    %3797 = vmatprep.subr.bf16.mxu0 %v2448
    %3798 = vmatpush2.bf16.msra.mxu0 %v2447
    %3799 = vmatprep.subr.bf16.mxu0 %v2440
    %3800 = vmatpush2.bf16.msra.mxu0 %v2439
    %3801 = vmatprep.subr.bf16.mxu0 %v2432
    %3802 = vmatpush2.bf16.msra.mxu0 %v2431
    %3803 = vmatprep.subr.bf16.mxu0 %v2424
    %3804 = vmatpush2.bf16.msra.mxu0 %v2423
    %3805 = vmatprep.mubr.bf16.mxu0 %v3277
    %3806 = vmatmul.mubr.bf16.gmra.mxu0 %v3263
    %v3807 = vpop.f32.mrf.mxu0
    %v3808 = vadd.f32 %v3767, %v3807
    %v3809 = vpop.f32.mrf.mxu0
    %v3810 = vadd.f32 %v3769, %v3809
    %v3811 = vpop.f32.mrf.mxu0
    %v3812 = vpop.f32.mrf.mxu0
    %3813 = vdwg.mxu0
    %3814 = vmatprep.subr.bf16.mxu0 %v2544
    %3815 = vmatpush1.bf16.msra.mxu0 %v2543
    %3816 = vmatprep.subr.bf16.mxu0 %v2536
    %3817 = vmatpush1.bf16.msra.mxu0 %v2535
    %3818 = vmatprep.subr.bf16.mxu0 %v2528
    %3819 = vmatpush1.bf16.msra.mxu0 %v2527
    %3820 = vmatprep.subr.bf16.mxu0 %v2520
    %3821 = vmatpush1.bf16.msra.mxu0 %v2519
    %3822 = vmatprep.subr.bf16.mxu0 %v2512
    %3823 = vmatpush1.bf16.msra.mxu0 %v2511
    %3824 = vmatprep.subr.bf16.mxu0 %v2504
    %3825 = vmatpush1.bf16.msra.mxu0 %v2503
    %3826 = vmatprep.subr.bf16.mxu0 %v2496
    %3827 = vmatpush1.bf16.msra.mxu0 %v2495
    %3828 = vmatprep.subr.bf16.mxu0 %v2488
    %3829 = vmatpush1.bf16.msra.mxu0 %v2487
    %3830 = vmatprep.subr.bf16.mxu0 %v2608
    %3831 = vmatpush2.bf16.msra.mxu0 %v2607
    %3832 = vmatprep.subr.bf16.mxu0 %v2600
    %3833 = vmatpush2.bf16.msra.mxu0 %v2599
    %3834 = vmatprep.subr.bf16.mxu0 %v2592
    %3835 = vmatpush2.bf16.msra.mxu0 %v2591
    %3836 = vmatprep.subr.bf16.mxu0 %v2584
    %3837 = vmatpush2.bf16.msra.mxu0 %v2583
    %3838 = vmatprep.subr.bf16.mxu0 %v2576
    %3839 = vmatpush2.bf16.msra.mxu0 %v2575
    %3840 = vmatprep.subr.bf16.mxu0 %v2568
    %3841 = vmatpush2.bf16.msra.mxu0 %v2567
    %3842 = vmatprep.subr.bf16.mxu0 %v2560
    %3843 = vmatpush2.bf16.msra.mxu0 %v2559
    %3844 = vmatprep.subr.bf16.mxu0 %v2552
    %3845 = vmatpush2.bf16.msra.mxu0 %v2551
    %3846 = vmatprep.mubr.bf16.mxu0 %v3281
    %3847 = vmatmul.mubr.bf16.gmra.mxu0 %v3279
    %v3848 = vpop.f32.mrf.mxu0
    %v3849 = vadd.f32 %v3808, %v3848
    %v3850 = vpop.f32.mrf.mxu0
    %v3851 = vadd.f32 %v3810, %v3850
    %v3852 = vpop.f32.mrf.mxu0
    %v3853 = vpop.f32.mrf.mxu0
    %3854 = vdwg.mxu0
    %3855 = vmatprep.subr.bf16.mxu0 %v2672
    %3856 = vmatpush1.bf16.msra.mxu0 %v2671
    %3857 = vmatprep.subr.bf16.mxu0 %v2664
    %3858 = vmatpush1.bf16.msra.mxu0 %v2663
    %3859 = vmatprep.subr.bf16.mxu0 %v2656
    %3860 = vmatpush1.bf16.msra.mxu0 %v2655
    %3861 = vmatprep.subr.bf16.mxu0 %v2648
    %3862 = vmatpush1.bf16.msra.mxu0 %v2647
    %3863 = vmatprep.subr.bf16.mxu0 %v2640
    %3864 = vmatpush1.bf16.msra.mxu0 %v2639
    %3865 = vmatprep.subr.bf16.mxu0 %v2632
    %3866 = vmatpush1.bf16.msra.mxu0 %v2631
    %3867 = vmatprep.subr.bf16.mxu0 %v2624
    %3868 = vmatpush1.bf16.msra.mxu0 %v2623
    %3869 = vmatprep.subr.bf16.mxu0 %v2616
    %3870 = vmatpush1.bf16.msra.mxu0 %v2615
    %3871 = vmatprep.subr.bf16.mxu0 %v2736
    %3872 = vmatpush2.bf16.msra.mxu0 %v2735
    %3873 = vmatprep.subr.bf16.mxu0 %v2728
    %3874 = vmatpush2.bf16.msra.mxu0 %v2727
    %3875 = vmatprep.subr.bf16.mxu0 %v2720
    %3876 = vmatpush2.bf16.msra.mxu0 %v2719
    %3877 = vmatprep.subr.bf16.mxu0 %v2712
    %3878 = vmatpush2.bf16.msra.mxu0 %v2711
    %3879 = vmatprep.subr.bf16.mxu0 %v2704
    %3880 = vmatpush2.bf16.msra.mxu0 %v2703
    %3881 = vmatprep.subr.bf16.mxu0 %v2696
    %3882 = vmatpush2.bf16.msra.mxu0 %v2695
    %3883 = vmatprep.subr.bf16.mxu0 %v2688
    %3884 = vmatpush2.bf16.msra.mxu0 %v2687
    %3885 = vmatprep.subr.bf16.mxu0 %v2680
    %3886 = vmatpush2.bf16.msra.mxu0 %v2679
    %3887 = vmatprep.mubr.bf16.mxu0 %v3319
    %3888 = vmatmul.mubr.bf16.gmra.mxu0 %v3305
    %v3889 = vpop.f32.mrf.mxu0
    %v3890 = vadd.f32 %v3849, %v3889
    %v3891 = vpop.f32.mrf.mxu0
    %v3892 = vadd.f32 %v3851, %v3891
    %v3893 = vpop.f32.mrf.mxu0
    %v3894 = vpop.f32.mrf.mxu0
    %3895 = vdwg.mxu0
    %3896 = vmatprep.subr.bf16.mxu0 %v2800
    %3897 = vmatpush1.bf16.msra.mxu0 %v2799
    %3898 = vmatprep.subr.bf16.mxu0 %v2792
    %3899 = vmatpush1.bf16.msra.mxu0 %v2791
    %3900 = vmatprep.subr.bf16.mxu0 %v2784
    %3901 = vmatpush1.bf16.msra.mxu0 %v2783
    %3902 = vmatprep.subr.bf16.mxu0 %v2776
    %3903 = vmatpush1.bf16.msra.mxu0 %v2775
    %3904 = vmatprep.subr.bf16.mxu0 %v2768
    %3905 = vmatpush1.bf16.msra.mxu0 %v2767
    %3906 = vmatprep.subr.bf16.mxu0 %v2760
    %3907 = vmatpush1.bf16.msra.mxu0 %v2759
    %3908 = vmatprep.subr.bf16.mxu0 %v2752
    %3909 = vmatpush1.bf16.msra.mxu0 %v2751
    %3910 = vmatprep.subr.bf16.mxu0 %v2744
    %3911 = vmatpush1.bf16.msra.mxu0 %v2743
    %3912 = vmatprep.subr.bf16.mxu0 %v2864
    %3913 = vmatpush2.bf16.msra.mxu0 %v2863
    %3914 = vmatprep.subr.bf16.mxu0 %v2856
    %3915 = vmatpush2.bf16.msra.mxu0 %v2855
    %3916 = vmatprep.subr.bf16.mxu0 %v2848
    %3917 = vmatpush2.bf16.msra.mxu0 %v2847
    %3918 = vmatprep.subr.bf16.mxu0 %v2840
    %3919 = vmatpush2.bf16.msra.mxu0 %v2839
    %3920 = vmatprep.subr.bf16.mxu0 %v2832
    %3921 = vmatpush2.bf16.msra.mxu0 %v2831
    %3922 = vmatprep.subr.bf16.mxu0 %v2824
    %3923 = vmatpush2.bf16.msra.mxu0 %v2823
    %3924 = vmatprep.subr.bf16.mxu0 %v2816
    %3925 = vmatpush2.bf16.msra.mxu0 %v2815
    %3926 = vmatprep.subr.bf16.mxu0 %v2808
    %3927 = vmatpush2.bf16.msra.mxu0 %v2807
    %3928 = vmatprep.mubr.bf16.mxu0 %v3329
    %3929 = vmatmul.mubr.bf16.gmra.mxu0 %v3327
    %v3930 = vpop.f32.mrf.mxu0
    %v3931 = vadd.f32 %v3890, %v3930
    %v3932 = vpop.f32.mrf.mxu0
    %v3933 = vadd.f32 %v3892, %v3932
    %v3934 = vpop.f32.mrf.mxu0
    %v3935 = vpop.f32.mrf.mxu0
    %3936 = vdwg.mxu0
    %3937 = vmatprep.subr.bf16.mxu0 %v2928
    %3938 = vmatpush1.bf16.msra.mxu0 %v2927
    %3939 = vmatprep.subr.bf16.mxu0 %v2920
    %3940 = vmatpush1.bf16.msra.mxu0 %v2919
    %3941 = vmatprep.subr.bf16.mxu0 %v2912
    %3942 = vmatpush1.bf16.msra.mxu0 %v2911
    %3943 = vmatprep.subr.bf16.mxu0 %v2904
    %3944 = vmatpush1.bf16.msra.mxu0 %v2903
    %3945 = vmatprep.subr.bf16.mxu0 %v2896
    %3946 = vmatpush1.bf16.msra.mxu0 %v2895
    %3947 = vmatprep.subr.bf16.mxu0 %v2888
    %3948 = vmatpush1.bf16.msra.mxu0 %v2887
    %3949 = vmatprep.subr.bf16.mxu0 %v2880
    %3950 = vmatpush1.bf16.msra.mxu0 %v2879
    %3951 = vmatprep.subr.bf16.mxu0 %v2872
    %3952 = vmatpush1.bf16.msra.mxu0 %v2871
    %3953 = vmatprep.subr.bf16.mxu0 %v2992
    %3954 = vmatpush2.bf16.msra.mxu0 %v2991
    %3955 = vmatprep.subr.bf16.mxu0 %v2984
    %3956 = vmatpush2.bf16.msra.mxu0 %v2983
    %3957 = vmatprep.subr.bf16.mxu0 %v2976
    %3958 = vmatpush2.bf16.msra.mxu0 %v2975
    %3959 = vmatprep.subr.bf16.mxu0 %v2968
    %3960 = vmatpush2.bf16.msra.mxu0 %v2967
    %3961 = vmatprep.subr.bf16.mxu0 %v2960
    %3962 = vmatpush2.bf16.msra.mxu0 %v2959
    %3963 = vmatprep.subr.bf16.mxu0 %v2952
    %3964 = vmatpush2.bf16.msra.mxu0 %v2951
    %3965 = vmatprep.subr.bf16.mxu0 %v2944
    %3966 = vmatpush2.bf16.msra.mxu0 %v2943
    %3967 = vmatprep.subr.bf16.mxu0 %v2936
    %3968 = vmatpush2.bf16.msra.mxu0 %v2935
    %3969 = vmatprep.mubr.bf16.mxu0 %v3326
    %3970 = vmatmul.mubr.bf16.gmra.mxu0 %v3312
    %v3971 = vpop.f32.mrf.mxu0
    %v3972 = vadd.f32 %v3931, %v3971
    %v3973 = vpop.f32.mrf.mxu0
    %v3974 = vadd.f32 %v3933, %v3973
    %v3975 = vpop.f32.mrf.mxu0
    %v3976 = vpop.f32.mrf.mxu0
    %3977 = vdwg.mxu0
    %3978 = vmatprep.subr.bf16.mxu0 %v3056
    %3979 = vmatpush1.bf16.msra.mxu0 %v3055
    %3980 = vmatprep.subr.bf16.mxu0 %v3048
    %3981 = vmatpush1.bf16.msra.mxu0 %v3047
    %3982 = vmatprep.subr.bf16.mxu0 %v3040
    %3983 = vmatpush1.bf16.msra.mxu0 %v3039
    %3984 = vmatprep.subr.bf16.mxu0 %v3032
    %3985 = vmatpush1.bf16.msra.mxu0 %v3031
    %3986 = vmatprep.subr.bf16.mxu0 %v3024
    %3987 = vmatpush1.bf16.msra.mxu0 %v3023
    %3988 = vmatprep.subr.bf16.mxu0 %v3016
    %3989 = vmatpush1.bf16.msra.mxu0 %v3015
    %3990 = vmatprep.subr.bf16.mxu0 %v3008
    %3991 = vmatpush1.bf16.msra.mxu0 %v3007
    %3992 = vmatprep.subr.bf16.mxu0 %v3000
    %3993 = vmatpush1.bf16.msra.mxu0 %v2999
    %3994 = vmatprep.subr.bf16.mxu0 %v3120
    %3995 = vmatpush2.bf16.msra.mxu0 %v3119
    %3996 = vmatprep.subr.bf16.mxu0 %v3112
    %3997 = vmatpush2.bf16.msra.mxu0 %v3111
    %3998 = vmatprep.subr.bf16.mxu0 %v3104
    %3999 = vmatpush2.bf16.msra.mxu0 %v3103
    %4000 = vmatprep.subr.bf16.mxu0 %v3096
    %4001 = vmatpush2.bf16.msra.mxu0 %v3095
    %4002 = vmatprep.subr.bf16.mxu0 %v3088
    %4003 = vmatpush2.bf16.msra.mxu0 %v3087
    %4004 = vmatprep.subr.bf16.mxu0 %v3080
    %4005 = vmatpush2.bf16.msra.mxu0 %v3079
    %4006 = vmatprep.subr.bf16.mxu0 %v3072
    %4007 = vmatpush2.bf16.msra.mxu0 %v3071
    %4008 = vmatprep.subr.bf16.mxu0 %v3064
    %4009 = vmatpush2.bf16.msra.mxu0 %v3063
    %4010 = vmatprep.mubr.bf16.mxu0 %v3330
    %4011 = vmatmul.mubr.bf16.gmra.mxu0 %v3328
    %v4012 = vpop.f32.mrf.mxu0
    %v4013 = vadd.f32 %v3972, %v4012
    %v4014 = vpop.f32.mrf.mxu0
    %v4015 = vadd.f32 %v3974, %v4014
    %v4016 = vpop.f32.mrf.mxu0
    %v4017 = vpop.f32.mrf.mxu0
    %4018 = vdwg.mxu0
    %4019 = vmatprep.subr.bf16.mxu0 %v1138
    %4020 = vmatpush1.bf16.msra.mxu0 %v1137
    %4021 = vmatprep.subr.bf16.mxu0 %v1130
    %4022 = vmatpush1.bf16.msra.mxu0 %v1129
    %4023 = vmatprep.subr.bf16.mxu0 %v1122
    %4024 = vmatpush1.bf16.msra.mxu0 %v1121
    %4025 = vmatprep.subr.bf16.mxu0 %v1114
    %4026 = vmatpush1.bf16.msra.mxu0 %v1113
    %4027 = vmatprep.subr.bf16.mxu0 %v1106
    %4028 = vmatpush1.bf16.msra.mxu0 %v1105
    %4029 = vmatprep.subr.bf16.mxu0 %v1098
    %4030 = vmatpush1.bf16.msra.mxu0 %v1097
    %4031 = vmatprep.subr.bf16.mxu0 %v1090
    %4032 = vmatpush1.bf16.msra.mxu0 %v1089
    %4033 = vmatprep.subr.bf16.mxu0 %v1082
    %4034 = vmatpush1.bf16.msra.mxu0 %v1081
    %4035 = vmatprep.subr.bf16.mxu0 %v1202
    %4036 = vmatpush2.bf16.msra.mxu0 %v1201
    %4037 = vmatprep.subr.bf16.mxu0 %v1194
    %4038 = vmatpush2.bf16.msra.mxu0 %v1193
    %4039 = vmatprep.subr.bf16.mxu0 %v1186
    %4040 = vmatpush2.bf16.msra.mxu0 %v1185
    %4041 = vmatprep.subr.bf16.mxu0 %v1178
    %4042 = vmatpush2.bf16.msra.mxu0 %v1177
    %4043 = vmatprep.subr.bf16.mxu0 %v1170
    %4044 = vmatpush2.bf16.msra.mxu0 %v1169
    %4045 = vmatprep.subr.bf16.mxu0 %v1162
    %4046 = vmatpush2.bf16.msra.mxu0 %v1161
    %4047 = vmatprep.subr.bf16.mxu0 %v1154
    %4048 = vmatpush2.bf16.msra.mxu0 %v1153
    %4049 = vmatprep.subr.bf16.mxu0 %v1146
    %4050 = vmatpush2.bf16.msra.mxu0 %v1145
    %4051 = vmatprep.mubr.bf16.mxu0 %v3172
    %4052 = vmatmul.mubr.bf16.gmra.mxu0 %v3158
    %v4053 = vpop.f32.mrf.mxu0
    %v4054 = vadd.f32 0.0, %v4053
    %v4055 = vpop.f32.mrf.mxu0
    %v4056 = vadd.f32 0.0, %v4055
    %v4057 = vpop.f32.mrf.mxu0
    %v4058 = vpop.f32.mrf.mxu0
    %4059 = vdwg.mxu0
    %4060 = vmatprep.subr.bf16.mxu0 %v1266
    %4061 = vmatpush1.bf16.msra.mxu0 %v1265
    %4062 = vmatprep.subr.bf16.mxu0 %v1258
    %4063 = vmatpush1.bf16.msra.mxu0 %v1257
    %4064 = vmatprep.subr.bf16.mxu0 %v1250
    %4065 = vmatpush1.bf16.msra.mxu0 %v1249
    %4066 = vmatprep.subr.bf16.mxu0 %v1242
    %4067 = vmatpush1.bf16.msra.mxu0 %v1241
    %4068 = vmatprep.subr.bf16.mxu0 %v1234
    %4069 = vmatpush1.bf16.msra.mxu0 %v1233
    %4070 = vmatprep.subr.bf16.mxu0 %v1226
    %4071 = vmatpush1.bf16.msra.mxu0 %v1225
    %4072 = vmatprep.subr.bf16.mxu0 %v1218
    %4073 = vmatpush1.bf16.msra.mxu0 %v1217
    %4074 = vmatprep.subr.bf16.mxu0 %v1210
    %4075 = vmatpush1.bf16.msra.mxu0 %v1209
    %4076 = vmatprep.subr.bf16.mxu0 %v1330
    %4077 = vmatpush2.bf16.msra.mxu0 %v1329
    %4078 = vmatprep.subr.bf16.mxu0 %v1322
    %4079 = vmatpush2.bf16.msra.mxu0 %v1321
    %4080 = vmatprep.subr.bf16.mxu0 %v1314
    %4081 = vmatpush2.bf16.msra.mxu0 %v1313
    %4082 = vmatprep.subr.bf16.mxu0 %v1306
    %4083 = vmatpush2.bf16.msra.mxu0 %v1305
    %4084 = vmatprep.subr.bf16.mxu0 %v1298
    %4085 = vmatpush2.bf16.msra.mxu0 %v1297
    %4086 = vmatprep.subr.bf16.mxu0 %v1290
    %4087 = vmatpush2.bf16.msra.mxu0 %v1289
    %4088 = vmatprep.subr.bf16.mxu0 %v1282
    %4089 = vmatpush2.bf16.msra.mxu0 %v1281
    %4090 = vmatprep.subr.bf16.mxu0 %v1274
    %4091 = vmatpush2.bf16.msra.mxu0 %v1273
    %4092 = vmatprep.mubr.bf16.mxu0 %v3182
    %4093 = vmatmul.mubr.bf16.gmra.mxu0 %v3180
    %v4094 = vpop.f32.mrf.mxu0
    %v4095 = vadd.f32 %v4054, %v4094
    %v4096 = vpop.f32.mrf.mxu0
    %v4097 = vadd.f32 %v4056, %v4096
    %v4098 = vpop.f32.mrf.mxu0
    %v4099 = vpop.f32.mrf.mxu0
    %4100 = vdwg.mxu0
    %4101 = vmatprep.subr.bf16.mxu0 %v1394
    %4102 = vmatpush1.bf16.msra.mxu0 %v1393
    %4103 = vmatprep.subr.bf16.mxu0 %v1386
    %4104 = vmatpush1.bf16.msra.mxu0 %v1385
    %4105 = vmatprep.subr.bf16.mxu0 %v1378
    %4106 = vmatpush1.bf16.msra.mxu0 %v1377
    %4107 = vmatprep.subr.bf16.mxu0 %v1370
    %4108 = vmatpush1.bf16.msra.mxu0 %v1369
    %4109 = vmatprep.subr.bf16.mxu0 %v1362
    %4110 = vmatpush1.bf16.msra.mxu0 %v1361
    %4111 = vmatprep.subr.bf16.mxu0 %v1354
    %4112 = vmatpush1.bf16.msra.mxu0 %v1353
    %4113 = vmatprep.subr.bf16.mxu0 %v1346
    %4114 = vmatpush1.bf16.msra.mxu0 %v1345
    %4115 = vmatprep.subr.bf16.mxu0 %v1338
    %4116 = vmatpush1.bf16.msra.mxu0 %v1337
    %4117 = vmatprep.subr.bf16.mxu0 %v1458
    %4118 = vmatpush2.bf16.msra.mxu0 %v1457
    %4119 = vmatprep.subr.bf16.mxu0 %v1450
    %4120 = vmatpush2.bf16.msra.mxu0 %v1449
    %4121 = vmatprep.subr.bf16.mxu0 %v1442
    %4122 = vmatpush2.bf16.msra.mxu0 %v1441
    %4123 = vmatprep.subr.bf16.mxu0 %v1434
    %4124 = vmatpush2.bf16.msra.mxu0 %v1433
    %4125 = vmatprep.subr.bf16.mxu0 %v1426
    %4126 = vmatpush2.bf16.msra.mxu0 %v1425
    %4127 = vmatprep.subr.bf16.mxu0 %v1418
    %4128 = vmatpush2.bf16.msra.mxu0 %v1417
    %4129 = vmatprep.subr.bf16.mxu0 %v1410
    %4130 = vmatpush2.bf16.msra.mxu0 %v1409
    %4131 = vmatprep.subr.bf16.mxu0 %v1402
    %4132 = vmatpush2.bf16.msra.mxu0 %v1401
    %4133 = vmatprep.mubr.bf16.mxu0 %v3179
    %4134 = vmatmul.mubr.bf16.gmra.mxu0 %v3165
    %v4135 = vpop.f32.mrf.mxu0
    %v4136 = vadd.f32 %v4095, %v4135
    %v4137 = vpop.f32.mrf.mxu0
    %v4138 = vadd.f32 %v4097, %v4137
    %v4139 = vpop.f32.mrf.mxu0
    %v4140 = vpop.f32.mrf.mxu0
    %4141 = vdwg.mxu0
    %4142 = vmatprep.subr.bf16.mxu0 %v1522
    %4143 = vmatpush1.bf16.msra.mxu0 %v1521
    %4144 = vmatprep.subr.bf16.mxu0 %v1514
    %4145 = vmatpush1.bf16.msra.mxu0 %v1513
    %4146 = vmatprep.subr.bf16.mxu0 %v1506
    %4147 = vmatpush1.bf16.msra.mxu0 %v1505
    %4148 = vmatprep.subr.bf16.mxu0 %v1498
    %4149 = vmatpush1.bf16.msra.mxu0 %v1497
    %4150 = vmatprep.subr.bf16.mxu0 %v1490
    %4151 = vmatpush1.bf16.msra.mxu0 %v1489
    %4152 = vmatprep.subr.bf16.mxu0 %v1482
    %4153 = vmatpush1.bf16.msra.mxu0 %v1481
    %4154 = vmatprep.subr.bf16.mxu0 %v1474
    %4155 = vmatpush1.bf16.msra.mxu0 %v1473
    %4156 = vmatprep.subr.bf16.mxu0 %v1466
    %4157 = vmatpush1.bf16.msra.mxu0 %v1465
    %4158 = vmatprep.subr.bf16.mxu0 %v1586
    %4159 = vmatpush2.bf16.msra.mxu0 %v1585
    %4160 = vmatprep.subr.bf16.mxu0 %v1578
    %4161 = vmatpush2.bf16.msra.mxu0 %v1577
    %4162 = vmatprep.subr.bf16.mxu0 %v1570
    %4163 = vmatpush2.bf16.msra.mxu0 %v1569
    %4164 = vmatprep.subr.bf16.mxu0 %v1562
    %4165 = vmatpush2.bf16.msra.mxu0 %v1561
    %4166 = vmatprep.subr.bf16.mxu0 %v1554
    %4167 = vmatpush2.bf16.msra.mxu0 %v1553
    %4168 = vmatprep.subr.bf16.mxu0 %v1546
    %4169 = vmatpush2.bf16.msra.mxu0 %v1545
    %4170 = vmatprep.subr.bf16.mxu0 %v1538
    %4171 = vmatpush2.bf16.msra.mxu0 %v1537
    %4172 = vmatprep.subr.bf16.mxu0 %v1530
    %4173 = vmatpush2.bf16.msra.mxu0 %v1529
    %4174 = vmatprep.mubr.bf16.mxu0 %v3183
    %4175 = vmatmul.mubr.bf16.gmra.mxu0 %v3181
    %v4176 = vpop.f32.mrf.mxu0
    %v4177 = vadd.f32 %v4136, %v4176
    %v4178 = vpop.f32.mrf.mxu0
    %v4179 = vadd.f32 %v4138, %v4178
    %v4180 = vpop.f32.mrf.mxu0
    %v4181 = vpop.f32.mrf.mxu0
    %4182 = vdwg.mxu0
    %4183 = vmatprep.subr.bf16.mxu0 %v1650
    %4184 = vmatpush1.bf16.msra.mxu0 %v1649
    %4185 = vmatprep.subr.bf16.mxu0 %v1642
    %4186 = vmatpush1.bf16.msra.mxu0 %v1641
    %4187 = vmatprep.subr.bf16.mxu0 %v1634
    %4188 = vmatpush1.bf16.msra.mxu0 %v1633
    %4189 = vmatprep.subr.bf16.mxu0 %v1626
    %4190 = vmatpush1.bf16.msra.mxu0 %v1625
    %4191 = vmatprep.subr.bf16.mxu0 %v1618
    %4192 = vmatpush1.bf16.msra.mxu0 %v1617
    %4193 = vmatprep.subr.bf16.mxu0 %v1610
    %4194 = vmatpush1.bf16.msra.mxu0 %v1609
    %4195 = vmatprep.subr.bf16.mxu0 %v1602
    %4196 = vmatpush1.bf16.msra.mxu0 %v1601
    %4197 = vmatprep.subr.bf16.mxu0 %v1594
    %4198 = vmatpush1.bf16.msra.mxu0 %v1593
    %4199 = vmatprep.subr.bf16.mxu0 %v1714
    %4200 = vmatpush2.bf16.msra.mxu0 %v1713
    %4201 = vmatprep.subr.bf16.mxu0 %v1706
    %4202 = vmatpush2.bf16.msra.mxu0 %v1705
    %4203 = vmatprep.subr.bf16.mxu0 %v1698
    %4204 = vmatpush2.bf16.msra.mxu0 %v1697
    %4205 = vmatprep.subr.bf16.mxu0 %v1690
    %4206 = vmatpush2.bf16.msra.mxu0 %v1689
    %4207 = vmatprep.subr.bf16.mxu0 %v1682
    %4208 = vmatpush2.bf16.msra.mxu0 %v1681
    %4209 = vmatprep.subr.bf16.mxu0 %v1674
    %4210 = vmatpush2.bf16.msra.mxu0 %v1673
    %4211 = vmatprep.subr.bf16.mxu0 %v1666
    %4212 = vmatpush2.bf16.msra.mxu0 %v1665
    %4213 = vmatprep.subr.bf16.mxu0 %v1658
    %4214 = vmatpush2.bf16.msra.mxu0 %v1657
    %4215 = vmatprep.mubr.bf16.mxu0 %v3221
    %4216 = vmatmul.mubr.bf16.gmra.mxu0 %v3207
    %v4217 = vpop.f32.mrf.mxu0
    %v4218 = vadd.f32 %v4177, %v4217
    %v4219 = vpop.f32.mrf.mxu0
    %v4220 = vadd.f32 %v4179, %v4219
    %v4221 = vpop.f32.mrf.mxu0
    %v4222 = vpop.f32.mrf.mxu0
    %4223 = vdwg.mxu0
    %4224 = vmatprep.subr.bf16.mxu0 %v1778
    %4225 = vmatpush1.bf16.msra.mxu0 %v1777
    %4226 = vmatprep.subr.bf16.mxu0 %v1770
    %4227 = vmatpush1.bf16.msra.mxu0 %v1769
    %4228 = vmatprep.subr.bf16.mxu0 %v1762
    %4229 = vmatpush1.bf16.msra.mxu0 %v1761
    %4230 = vmatprep.subr.bf16.mxu0 %v1754
    %4231 = vmatpush1.bf16.msra.mxu0 %v1753
    %4232 = vmatprep.subr.bf16.mxu0 %v1746
    %4233 = vmatpush1.bf16.msra.mxu0 %v1745
    %4234 = vmatprep.subr.bf16.mxu0 %v1738
    %4235 = vmatpush1.bf16.msra.mxu0 %v1737
    %4236 = vmatprep.subr.bf16.mxu0 %v1730
    %4237 = vmatpush1.bf16.msra.mxu0 %v1729
    %4238 = vmatprep.subr.bf16.mxu0 %v1722
    %4239 = vmatpush1.bf16.msra.mxu0 %v1721
    %4240 = vmatprep.subr.bf16.mxu0 %v1842
    %4241 = vmatpush2.bf16.msra.mxu0 %v1841
    %4242 = vmatprep.subr.bf16.mxu0 %v1834
    %4243 = vmatpush2.bf16.msra.mxu0 %v1833
    %4244 = vmatprep.subr.bf16.mxu0 %v1826
    %4245 = vmatpush2.bf16.msra.mxu0 %v1825
    %4246 = vmatprep.subr.bf16.mxu0 %v1818
    %4247 = vmatpush2.bf16.msra.mxu0 %v1817
    %4248 = vmatprep.subr.bf16.mxu0 %v1810
    %4249 = vmatpush2.bf16.msra.mxu0 %v1809
    %4250 = vmatprep.subr.bf16.mxu0 %v1802
    %4251 = vmatpush2.bf16.msra.mxu0 %v1801
    %4252 = vmatprep.subr.bf16.mxu0 %v1794
    %4253 = vmatpush2.bf16.msra.mxu0 %v1793
    %4254 = vmatprep.subr.bf16.mxu0 %v1786
    %4255 = vmatpush2.bf16.msra.mxu0 %v1785
    %4256 = vmatprep.mubr.bf16.mxu0 %v3231
    %4257 = vmatmul.mubr.bf16.gmra.mxu0 %v3229
    %v4258 = vpop.f32.mrf.mxu0
    %v4259 = vadd.f32 %v4218, %v4258
    %v4260 = vpop.f32.mrf.mxu0
    %v4261 = vadd.f32 %v4220, %v4260
    %v4262 = vpop.f32.mrf.mxu0
    %v4263 = vpop.f32.mrf.mxu0
    %4264 = vdwg.mxu0
    %4265 = vmatprep.subr.bf16.mxu0 %v1906
    %4266 = vmatpush1.bf16.msra.mxu0 %v1905
    %4267 = vmatprep.subr.bf16.mxu0 %v1898
    %4268 = vmatpush1.bf16.msra.mxu0 %v1897
    %4269 = vmatprep.subr.bf16.mxu0 %v1890
    %4270 = vmatpush1.bf16.msra.mxu0 %v1889
    %4271 = vmatprep.subr.bf16.mxu0 %v1882
    %4272 = vmatpush1.bf16.msra.mxu0 %v1881
    %4273 = vmatprep.subr.bf16.mxu0 %v1874
    %4274 = vmatpush1.bf16.msra.mxu0 %v1873
    %4275 = vmatprep.subr.bf16.mxu0 %v1866
    %4276 = vmatpush1.bf16.msra.mxu0 %v1865
    %4277 = vmatprep.subr.bf16.mxu0 %v1858
    %4278 = vmatpush1.bf16.msra.mxu0 %v1857
    %4279 = vmatprep.subr.bf16.mxu0 %v1850
    %4280 = vmatpush1.bf16.msra.mxu0 %v1849
    %4281 = vmatprep.subr.bf16.mxu0 %v1970
    %4282 = vmatpush2.bf16.msra.mxu0 %v1969
    %4283 = vmatprep.subr.bf16.mxu0 %v1962
    %4284 = vmatpush2.bf16.msra.mxu0 %v1961
    %4285 = vmatprep.subr.bf16.mxu0 %v1954
    %4286 = vmatpush2.bf16.msra.mxu0 %v1953
    %4287 = vmatprep.subr.bf16.mxu0 %v1946
    %4288 = vmatpush2.bf16.msra.mxu0 %v1945
    %4289 = vmatprep.subr.bf16.mxu0 %v1938
    %4290 = vmatpush2.bf16.msra.mxu0 %v1937
    %4291 = vmatprep.subr.bf16.mxu0 %v1930
    %4292 = vmatpush2.bf16.msra.mxu0 %v1929
    %4293 = vmatprep.subr.bf16.mxu0 %v1922
    %4294 = vmatpush2.bf16.msra.mxu0 %v1921
    %4295 = vmatprep.subr.bf16.mxu0 %v1914
    %4296 = vmatpush2.bf16.msra.mxu0 %v1913
    %4297 = vmatprep.mubr.bf16.mxu0 %v3228
    %4298 = vmatmul.mubr.bf16.gmra.mxu0 %v3214
    %v4299 = vpop.f32.mrf.mxu0
    %v4300 = vadd.f32 %v4259, %v4299
    %v4301 = vpop.f32.mrf.mxu0
    %v4302 = vadd.f32 %v4261, %v4301
    %v4303 = vpop.f32.mrf.mxu0
    %v4304 = vpop.f32.mrf.mxu0
    %4305 = vdwg.mxu0
    %4306 = vmatprep.subr.bf16.mxu0 %v2034
    %4307 = vmatpush1.bf16.msra.mxu0 %v2033
    %4308 = vmatprep.subr.bf16.mxu0 %v2026
    %4309 = vmatpush1.bf16.msra.mxu0 %v2025
    %4310 = vmatprep.subr.bf16.mxu0 %v2018
    %4311 = vmatpush1.bf16.msra.mxu0 %v2017
    %4312 = vmatprep.subr.bf16.mxu0 %v2010
    %4313 = vmatpush1.bf16.msra.mxu0 %v2009
    %4314 = vmatprep.subr.bf16.mxu0 %v2002
    %4315 = vmatpush1.bf16.msra.mxu0 %v2001
    %4316 = vmatprep.subr.bf16.mxu0 %v1994
    %4317 = vmatpush1.bf16.msra.mxu0 %v1993
    %4318 = vmatprep.subr.bf16.mxu0 %v1986
    %4319 = vmatpush1.bf16.msra.mxu0 %v1985
    %4320 = vmatprep.subr.bf16.mxu0 %v1978
    %4321 = vmatpush1.bf16.msra.mxu0 %v1977
    %4322 = vmatprep.subr.bf16.mxu0 %v2098
    %4323 = vmatpush2.bf16.msra.mxu0 %v2097
    %4324 = vmatprep.subr.bf16.mxu0 %v2090
    %4325 = vmatpush2.bf16.msra.mxu0 %v2089
    %4326 = vmatprep.subr.bf16.mxu0 %v2082
    %4327 = vmatpush2.bf16.msra.mxu0 %v2081
    %4328 = vmatprep.subr.bf16.mxu0 %v2074
    %4329 = vmatpush2.bf16.msra.mxu0 %v2073
    %4330 = vmatprep.subr.bf16.mxu0 %v2066
    %4331 = vmatpush2.bf16.msra.mxu0 %v2065
    %4332 = vmatprep.subr.bf16.mxu0 %v2058
    %4333 = vmatpush2.bf16.msra.mxu0 %v2057
    %4334 = vmatprep.subr.bf16.mxu0 %v2050
    %4335 = vmatpush2.bf16.msra.mxu0 %v2049
    %4336 = vmatprep.subr.bf16.mxu0 %v2042
    %4337 = vmatpush2.bf16.msra.mxu0 %v2041
    %4338 = vmatprep.mubr.bf16.mxu0 %v3232
    %4339 = vmatmul.mubr.bf16.gmra.mxu0 %v3230
    %v4340 = vpop.f32.mrf.mxu0
    %v4341 = vadd.f32 %v4300, %v4340
    %v4342 = vpop.f32.mrf.mxu0
    %v4343 = vadd.f32 %v4302, %v4342
    %v4344 = vpop.f32.mrf.mxu0
    %v4345 = vpop.f32.mrf.mxu0
    %4346 = vdwg.mxu0
    %4347 = vmatprep.subr.bf16.mxu0 %v2162
    %4348 = vmatpush1.bf16.msra.mxu0 %v2161
    %4349 = vmatprep.subr.bf16.mxu0 %v2154
    %4350 = vmatpush1.bf16.msra.mxu0 %v2153
    %4351 = vmatprep.subr.bf16.mxu0 %v2146
    %4352 = vmatpush1.bf16.msra.mxu0 %v2145
    %4353 = vmatprep.subr.bf16.mxu0 %v2138
    %4354 = vmatpush1.bf16.msra.mxu0 %v2137
    %4355 = vmatprep.subr.bf16.mxu0 %v2130
    %4356 = vmatpush1.bf16.msra.mxu0 %v2129
    %4357 = vmatprep.subr.bf16.mxu0 %v2122
    %4358 = vmatpush1.bf16.msra.mxu0 %v2121
    %4359 = vmatprep.subr.bf16.mxu0 %v2114
    %4360 = vmatpush1.bf16.msra.mxu0 %v2113
    %4361 = vmatprep.subr.bf16.mxu0 %v2106
    %4362 = vmatpush1.bf16.msra.mxu0 %v2105
    %4363 = vmatprep.subr.bf16.mxu0 %v2226
    %4364 = vmatpush2.bf16.msra.mxu0 %v2225
    %4365 = vmatprep.subr.bf16.mxu0 %v2218
    %4366 = vmatpush2.bf16.msra.mxu0 %v2217
    %4367 = vmatprep.subr.bf16.mxu0 %v2210
    %4368 = vmatpush2.bf16.msra.mxu0 %v2209
    %4369 = vmatprep.subr.bf16.mxu0 %v2202
    %4370 = vmatpush2.bf16.msra.mxu0 %v2201
    %4371 = vmatprep.subr.bf16.mxu0 %v2194
    %4372 = vmatpush2.bf16.msra.mxu0 %v2193
    %4373 = vmatprep.subr.bf16.mxu0 %v2186
    %4374 = vmatpush2.bf16.msra.mxu0 %v2185
    %4375 = vmatprep.subr.bf16.mxu0 %v2178
    %4376 = vmatpush2.bf16.msra.mxu0 %v2177
    %4377 = vmatprep.subr.bf16.mxu0 %v2170
    %4378 = vmatpush2.bf16.msra.mxu0 %v2169
    %4379 = vmatprep.mubr.bf16.mxu0 %v3270
    %4380 = vmatmul.mubr.bf16.gmra.mxu0 %v3256
    %v4381 = vpop.f32.mrf.mxu0
    %v4382 = vadd.f32 %v4341, %v4381
    %v4383 = vpop.f32.mrf.mxu0
    %v4384 = vadd.f32 %v4343, %v4383
    %v4385 = vpop.f32.mrf.mxu0
    %v4386 = vpop.f32.mrf.mxu0
    %4387 = vdwg.mxu0
    %4388 = vmatprep.subr.bf16.mxu0 %v2290
    %4389 = vmatpush1.bf16.msra.mxu0 %v2289
    %4390 = vmatprep.subr.bf16.mxu0 %v2282
    %4391 = vmatpush1.bf16.msra.mxu0 %v2281
    %4392 = vmatprep.subr.bf16.mxu0 %v2274
    %4393 = vmatpush1.bf16.msra.mxu0 %v2273
    %4394 = vmatprep.subr.bf16.mxu0 %v2266
    %4395 = vmatpush1.bf16.msra.mxu0 %v2265
    %4396 = vmatprep.subr.bf16.mxu0 %v2258
    %4397 = vmatpush1.bf16.msra.mxu0 %v2257
    %4398 = vmatprep.subr.bf16.mxu0 %v2250
    %4399 = vmatpush1.bf16.msra.mxu0 %v2249
    %4400 = vmatprep.subr.bf16.mxu0 %v2242
    %4401 = vmatpush1.bf16.msra.mxu0 %v2241
    %4402 = vmatprep.subr.bf16.mxu0 %v2234
    %4403 = vmatpush1.bf16.msra.mxu0 %v2233
    %4404 = vmatprep.subr.bf16.mxu0 %v2354
    %4405 = vmatpush2.bf16.msra.mxu0 %v2353
    %4406 = vmatprep.subr.bf16.mxu0 %v2346
    %4407 = vmatpush2.bf16.msra.mxu0 %v2345
    %4408 = vmatprep.subr.bf16.mxu0 %v2338
    %4409 = vmatpush2.bf16.msra.mxu0 %v2337
    %4410 = vmatprep.subr.bf16.mxu0 %v2330
    %4411 = vmatpush2.bf16.msra.mxu0 %v2329
    %4412 = vmatprep.subr.bf16.mxu0 %v2322
    %4413 = vmatpush2.bf16.msra.mxu0 %v2321
    %4414 = vmatprep.subr.bf16.mxu0 %v2314
    %4415 = vmatpush2.bf16.msra.mxu0 %v2313
    %4416 = vmatprep.subr.bf16.mxu0 %v2306
    %4417 = vmatpush2.bf16.msra.mxu0 %v2305
    %4418 = vmatprep.subr.bf16.mxu0 %v2298
    %4419 = vmatpush2.bf16.msra.mxu0 %v2297
    %4420 = vmatprep.mubr.bf16.mxu0 %v3280
    %4421 = vmatmul.mubr.bf16.gmra.mxu0 %v3278
    %v4422 = vpop.f32.mrf.mxu0
    %v4423 = vadd.f32 %v4382, %v4422
    %v4424 = vpop.f32.mrf.mxu0
    %v4425 = vadd.f32 %v4384, %v4424
    %v4426 = vpop.f32.mrf.mxu0
    %v4427 = vpop.f32.mrf.mxu0
    %4428 = vdwg.mxu0
    %4429 = vmatprep.subr.bf16.mxu0 %v2418
    %4430 = vmatpush1.bf16.msra.mxu0 %v2417
    %4431 = vmatprep.subr.bf16.mxu0 %v2410
    %4432 = vmatpush1.bf16.msra.mxu0 %v2409
    %4433 = vmatprep.subr.bf16.mxu0 %v2402
    %4434 = vmatpush1.bf16.msra.mxu0 %v2401
    %4435 = vmatprep.subr.bf16.mxu0 %v2394
    %4436 = vmatpush1.bf16.msra.mxu0 %v2393
    %4437 = vmatprep.subr.bf16.mxu0 %v2386
    %4438 = vmatpush1.bf16.msra.mxu0 %v2385
    %4439 = vmatprep.subr.bf16.mxu0 %v2378
    %4440 = vmatpush1.bf16.msra.mxu0 %v2377
    %4441 = vmatprep.subr.bf16.mxu0 %v2370
    %4442 = vmatpush1.bf16.msra.mxu0 %v2369
    %4443 = vmatprep.subr.bf16.mxu0 %v2362
    %4444 = vmatpush1.bf16.msra.mxu0 %v2361
    %4445 = vmatprep.subr.bf16.mxu0 %v2482
    %4446 = vmatpush2.bf16.msra.mxu0 %v2481
    %4447 = vmatprep.subr.bf16.mxu0 %v2474
    %4448 = vmatpush2.bf16.msra.mxu0 %v2473
    %4449 = vmatprep.subr.bf16.mxu0 %v2466
    %4450 = vmatpush2.bf16.msra.mxu0 %v2465
    %4451 = vmatprep.subr.bf16.mxu0 %v2458
    %4452 = vmatpush2.bf16.msra.mxu0 %v2457
    %4453 = vmatprep.subr.bf16.mxu0 %v2450
    %4454 = vmatpush2.bf16.msra.mxu0 %v2449
    %4455 = vmatprep.subr.bf16.mxu0 %v2442
    %4456 = vmatpush2.bf16.msra.mxu0 %v2441
    %4457 = vmatprep.subr.bf16.mxu0 %v2434
    %4458 = vmatpush2.bf16.msra.mxu0 %v2433
    %4459 = vmatprep.subr.bf16.mxu0 %v2426
    %4460 = vmatpush2.bf16.msra.mxu0 %v2425
    %4461 = vmatprep.mubr.bf16.mxu0 %v3277
    %4462 = vmatmul.mubr.bf16.gmra.mxu0 %v3263
    %v4463 = vpop.f32.mrf.mxu0
    %v4464 = vadd.f32 %v4423, %v4463
    %v4465 = vpop.f32.mrf.mxu0
    %v4466 = vadd.f32 %v4425, %v4465
    %v4467 = vpop.f32.mrf.mxu0
    %v4468 = vpop.f32.mrf.mxu0
    %4469 = vdwg.mxu0
    %4470 = vmatprep.subr.bf16.mxu0 %v2546
    %4471 = vmatpush1.bf16.msra.mxu0 %v2545
    %4472 = vmatprep.subr.bf16.mxu0 %v2538
    %4473 = vmatpush1.bf16.msra.mxu0 %v2537
    %4474 = vmatprep.subr.bf16.mxu0 %v2530
    %4475 = vmatpush1.bf16.msra.mxu0 %v2529
    %4476 = vmatprep.subr.bf16.mxu0 %v2522
    %4477 = vmatpush1.bf16.msra.mxu0 %v2521
    %4478 = vmatprep.subr.bf16.mxu0 %v2514
    %4479 = vmatpush1.bf16.msra.mxu0 %v2513
    %4480 = vmatprep.subr.bf16.mxu0 %v2506
    %4481 = vmatpush1.bf16.msra.mxu0 %v2505
    %4482 = vmatprep.subr.bf16.mxu0 %v2498
    %4483 = vmatpush1.bf16.msra.mxu0 %v2497
    %4484 = vmatprep.subr.bf16.mxu0 %v2490
    %4485 = vmatpush1.bf16.msra.mxu0 %v2489
    %4486 = vmatprep.subr.bf16.mxu0 %v2610
    %4487 = vmatpush2.bf16.msra.mxu0 %v2609
    %4488 = vmatprep.subr.bf16.mxu0 %v2602
    %4489 = vmatpush2.bf16.msra.mxu0 %v2601
    %4490 = vmatprep.subr.bf16.mxu0 %v2594
    %4491 = vmatpush2.bf16.msra.mxu0 %v2593
    %4492 = vmatprep.subr.bf16.mxu0 %v2586
    %4493 = vmatpush2.bf16.msra.mxu0 %v2585
    %4494 = vmatprep.subr.bf16.mxu0 %v2578
    %4495 = vmatpush2.bf16.msra.mxu0 %v2577
    %4496 = vmatprep.subr.bf16.mxu0 %v2570
    %4497 = vmatpush2.bf16.msra.mxu0 %v2569
    %4498 = vmatprep.subr.bf16.mxu0 %v2562
    %4499 = vmatpush2.bf16.msra.mxu0 %v2561
    %4500 = vmatprep.subr.bf16.mxu0 %v2554
    %4501 = vmatpush2.bf16.msra.mxu0 %v2553
    %4502 = vmatprep.mubr.bf16.mxu0 %v3281
    %4503 = vmatmul.mubr.bf16.gmra.mxu0 %v3279
    %v4504 = vpop.f32.mrf.mxu0
    %v4505 = vadd.f32 %v4464, %v4504
    %v4506 = vpop.f32.mrf.mxu0
    %v4507 = vadd.f32 %v4466, %v4506
    %v4508 = vpop.f32.mrf.mxu0
    %v4509 = vpop.f32.mrf.mxu0
    %4510 = vdwg.mxu0
    %4511 = vmatprep.subr.bf16.mxu0 %v2674
    %4512 = vmatpush1.bf16.msra.mxu0 %v2673
    %4513 = vmatprep.subr.bf16.mxu0 %v2666
    %4514 = vmatpush1.bf16.msra.mxu0 %v2665
    %4515 = vmatprep.subr.bf16.mxu0 %v2658
    %4516 = vmatpush1.bf16.msra.mxu0 %v2657
    %4517 = vmatprep.subr.bf16.mxu0 %v2650
    %4518 = vmatpush1.bf16.msra.mxu0 %v2649
    %4519 = vmatprep.subr.bf16.mxu0 %v2642
    %4520 = vmatpush1.bf16.msra.mxu0 %v2641
    %4521 = vmatprep.subr.bf16.mxu0 %v2634
    %4522 = vmatpush1.bf16.msra.mxu0 %v2633
    %4523 = vmatprep.subr.bf16.mxu0 %v2626
    %4524 = vmatpush1.bf16.msra.mxu0 %v2625
    %4525 = vmatprep.subr.bf16.mxu0 %v2618
    %4526 = vmatpush1.bf16.msra.mxu0 %v2617
    %4527 = vmatprep.subr.bf16.mxu0 %v2738
    %4528 = vmatpush2.bf16.msra.mxu0 %v2737
    %4529 = vmatprep.subr.bf16.mxu0 %v2730
    %4530 = vmatpush2.bf16.msra.mxu0 %v2729
    %4531 = vmatprep.subr.bf16.mxu0 %v2722
    %4532 = vmatpush2.bf16.msra.mxu0 %v2721
    %4533 = vmatprep.subr.bf16.mxu0 %v2714
    %4534 = vmatpush2.bf16.msra.mxu0 %v2713
    %4535 = vmatprep.subr.bf16.mxu0 %v2706
    %4536 = vmatpush2.bf16.msra.mxu0 %v2705
    %4537 = vmatprep.subr.bf16.mxu0 %v2698
    %4538 = vmatpush2.bf16.msra.mxu0 %v2697
    %4539 = vmatprep.subr.bf16.mxu0 %v2690
    %4540 = vmatpush2.bf16.msra.mxu0 %v2689
    %4541 = vmatprep.subr.bf16.mxu0 %v2682
    %4542 = vmatpush2.bf16.msra.mxu0 %v2681
    %4543 = vmatprep.mubr.bf16.mxu0 %v3319
    %4544 = vmatmul.mubr.bf16.gmra.mxu0 %v3305
    %v4545 = vpop.f32.mrf.mxu0
    %v4546 = vadd.f32 %v4505, %v4545
    %v4547 = vpop.f32.mrf.mxu0
    %v4548 = vadd.f32 %v4507, %v4547
    %v4549 = vpop.f32.mrf.mxu0
    %v4550 = vpop.f32.mrf.mxu0
    %4551 = vdwg.mxu0
    %4552 = vmatprep.subr.bf16.mxu0 %v2802
    %4553 = vmatpush1.bf16.msra.mxu0 %v2801
    %4554 = vmatprep.subr.bf16.mxu0 %v2794
    %4555 = vmatpush1.bf16.msra.mxu0 %v2793
    %4556 = vmatprep.subr.bf16.mxu0 %v2786
    %4557 = vmatpush1.bf16.msra.mxu0 %v2785
    %4558 = vmatprep.subr.bf16.mxu0 %v2778
    %4559 = vmatpush1.bf16.msra.mxu0 %v2777
    %4560 = vmatprep.subr.bf16.mxu0 %v2770
    %4561 = vmatpush1.bf16.msra.mxu0 %v2769
    %4562 = vmatprep.subr.bf16.mxu0 %v2762
    %4563 = vmatpush1.bf16.msra.mxu0 %v2761
    %4564 = vmatprep.subr.bf16.mxu0 %v2754
    %4565 = vmatpush1.bf16.msra.mxu0 %v2753
    %4566 = vmatprep.subr.bf16.mxu0 %v2746
    %4567 = vmatpush1.bf16.msra.mxu0 %v2745
    %4568 = vmatprep.subr.bf16.mxu0 %v2866
    %4569 = vmatpush2.bf16.msra.mxu0 %v2865
    %4570 = vmatprep.subr.bf16.mxu0 %v2858
    %4571 = vmatpush2.bf16.msra.mxu0 %v2857
    %4572 = vmatprep.subr.bf16.mxu0 %v2850
    %4573 = vmatpush2.bf16.msra.mxu0 %v2849
    %4574 = vmatprep.subr.bf16.mxu0 %v2842
    %4575 = vmatpush2.bf16.msra.mxu0 %v2841
    %4576 = vmatprep.subr.bf16.mxu0 %v2834
    %4577 = vmatpush2.bf16.msra.mxu0 %v2833
    %4578 = vmatprep.subr.bf16.mxu0 %v2826
    %4579 = vmatpush2.bf16.msra.mxu0 %v2825
    %4580 = vmatprep.subr.bf16.mxu0 %v2818
    %4581 = vmatpush2.bf16.msra.mxu0 %v2817
    %4582 = vmatprep.subr.bf16.mxu0 %v2810
    %4583 = vmatpush2.bf16.msra.mxu0 %v2809
    %4584 = vmatprep.mubr.bf16.mxu0 %v3329
    %4585 = vmatmul.mubr.bf16.gmra.mxu0 %v3327
    %v4586 = vpop.f32.mrf.mxu0
    %v4587 = vadd.f32 %v4546, %v4586
    %v4588 = vpop.f32.mrf.mxu0
    %v4589 = vadd.f32 %v4548, %v4588
    %v4590 = vpop.f32.mrf.mxu0
    %v4591 = vpop.f32.mrf.mxu0
    %4592 = vdwg.mxu0
    %4593 = vmatprep.subr.bf16.mxu0 %v2930
    %4594 = vmatpush1.bf16.msra.mxu0 %v2929
    %4595 = vmatprep.subr.bf16.mxu0 %v2922
    %4596 = vmatpush1.bf16.msra.mxu0 %v2921
    %4597 = vmatprep.subr.bf16.mxu0 %v2914
    %4598 = vmatpush1.bf16.msra.mxu0 %v2913
    %4599 = vmatprep.subr.bf16.mxu0 %v2906
    %4600 = vmatpush1.bf16.msra.mxu0 %v2905
    %4601 = vmatprep.subr.bf16.mxu0 %v2898
    %4602 = vmatpush1.bf16.msra.mxu0 %v2897
    %4603 = vmatprep.subr.bf16.mxu0 %v2890
    %4604 = vmatpush1.bf16.msra.mxu0 %v2889
    %4605 = vmatprep.subr.bf16.mxu0 %v2882
    %4606 = vmatpush1.bf16.msra.mxu0 %v2881
    %4607 = vmatprep.subr.bf16.mxu0 %v2874
    %4608 = vmatpush1.bf16.msra.mxu0 %v2873
    %4609 = vmatprep.subr.bf16.mxu0 %v2994
    %4610 = vmatpush2.bf16.msra.mxu0 %v2993
    %4611 = vmatprep.subr.bf16.mxu0 %v2986
    %4612 = vmatpush2.bf16.msra.mxu0 %v2985
    %4613 = vmatprep.subr.bf16.mxu0 %v2978
    %4614 = vmatpush2.bf16.msra.mxu0 %v2977
    %4615 = vmatprep.subr.bf16.mxu0 %v2970
    %4616 = vmatpush2.bf16.msra.mxu0 %v2969
    %4617 = vmatprep.subr.bf16.mxu0 %v2962
    %4618 = vmatpush2.bf16.msra.mxu0 %v2961
    %4619 = vmatprep.subr.bf16.mxu0 %v2954
    %4620 = vmatpush2.bf16.msra.mxu0 %v2953
    %4621 = vmatprep.subr.bf16.mxu0 %v2946
    %4622 = vmatpush2.bf16.msra.mxu0 %v2945
    %4623 = vmatprep.subr.bf16.mxu0 %v2938
    %4624 = vmatpush2.bf16.msra.mxu0 %v2937
    %4625 = vmatprep.mubr.bf16.mxu0 %v3326
    %4626 = vmatmul.mubr.bf16.gmra.mxu0 %v3312
    %v4627 = vpop.f32.mrf.mxu0
    %v4628 = vadd.f32 %v4587, %v4627
    %v4629 = vpop.f32.mrf.mxu0
    %v4630 = vadd.f32 %v4589, %v4629
    %v4631 = vpop.f32.mrf.mxu0
    %v4632 = vpop.f32.mrf.mxu0
    %4633 = vdwg.mxu0
    %4634 = vmatprep.subr.bf16.mxu0 %v3058
    %4635 = vmatpush1.bf16.msra.mxu0 %v3057
    %4636 = vmatprep.subr.bf16.mxu0 %v3050
    %4637 = vmatpush1.bf16.msra.mxu0 %v3049
    %4638 = vmatprep.subr.bf16.mxu0 %v3042
    %4639 = vmatpush1.bf16.msra.mxu0 %v3041
    %4640 = vmatprep.subr.bf16.mxu0 %v3034
    %4641 = vmatpush1.bf16.msra.mxu0 %v3033
    %4642 = vmatprep.subr.bf16.mxu0 %v3026
    %4643 = vmatpush1.bf16.msra.mxu0 %v3025
    %4644 = vmatprep.subr.bf16.mxu0 %v3018
    %4645 = vmatpush1.bf16.msra.mxu0 %v3017
    %4646 = vmatprep.subr.bf16.mxu0 %v3010
    %4647 = vmatpush1.bf16.msra.mxu0 %v3009
    %4648 = vmatprep.subr.bf16.mxu0 %v3002
    %4649 = vmatpush1.bf16.msra.mxu0 %v3001
    %4650 = vmatprep.subr.bf16.mxu0 %v3122
    %4651 = vmatpush2.bf16.msra.mxu0 %v3121
    %4652 = vmatprep.subr.bf16.mxu0 %v3114
    %4653 = vmatpush2.bf16.msra.mxu0 %v3113
    %4654 = vmatprep.subr.bf16.mxu0 %v3106
    %4655 = vmatpush2.bf16.msra.mxu0 %v3105
    %4656 = vmatprep.subr.bf16.mxu0 %v3098
    %4657 = vmatpush2.bf16.msra.mxu0 %v3097
    %4658 = vmatprep.subr.bf16.mxu0 %v3090
    %4659 = vmatpush2.bf16.msra.mxu0 %v3089
    %4660 = vmatprep.subr.bf16.mxu0 %v3082
    %4661 = vmatpush2.bf16.msra.mxu0 %v3081
    %4662 = vmatprep.subr.bf16.mxu0 %v3074
    %4663 = vmatpush2.bf16.msra.mxu0 %v3073
    %4664 = vmatprep.subr.bf16.mxu0 %v3066
    %4665 = vmatpush2.bf16.msra.mxu0 %v3065
    %4666 = vmatprep.mubr.bf16.mxu0 %v3330
    %4667 = vmatmul.mubr.bf16.gmra.mxu0 %v3328
    %v4668 = vpop.f32.mrf.mxu0
    %v4669 = vadd.f32 %v4628, %v4668
    %v4670 = vpop.f32.mrf.mxu0
    %v4671 = vadd.f32 %v4630, %v4670
    %v4672 = vpop.f32.mrf.mxu0
    %v4673 = vpop.f32.mrf.mxu0
    %4674 = vdwg.mxu0
    %4675 = vmatprep.subr.bf16.mxu0 %v1140
    %4676 = vmatpush1.bf16.msra.mxu0 %v1139
    %4677 = vmatprep.subr.bf16.mxu0 %v1132
    %4678 = vmatpush1.bf16.msra.mxu0 %v1131
    %4679 = vmatprep.subr.bf16.mxu0 %v1124
    %4680 = vmatpush1.bf16.msra.mxu0 %v1123
    %4681 = vmatprep.subr.bf16.mxu0 %v1116
    %4682 = vmatpush1.bf16.msra.mxu0 %v1115
    %4683 = vmatprep.subr.bf16.mxu0 %v1108
    %4684 = vmatpush1.bf16.msra.mxu0 %v1107
    %4685 = vmatprep.subr.bf16.mxu0 %v1100
    %4686 = vmatpush1.bf16.msra.mxu0 %v1099
    %4687 = vmatprep.subr.bf16.mxu0 %v1092
    %4688 = vmatpush1.bf16.msra.mxu0 %v1091
    %4689 = vmatprep.subr.bf16.mxu0 %v1084
    %4690 = vmatpush1.bf16.msra.mxu0 %v1083
    %4691 = vmatprep.subr.bf16.mxu0 %v1204
    %4692 = vmatpush2.bf16.msra.mxu0 %v1203
    %4693 = vmatprep.subr.bf16.mxu0 %v1196
    %4694 = vmatpush2.bf16.msra.mxu0 %v1195
    %4695 = vmatprep.subr.bf16.mxu0 %v1188
    %4696 = vmatpush2.bf16.msra.mxu0 %v1187
    %4697 = vmatprep.subr.bf16.mxu0 %v1180
    %4698 = vmatpush2.bf16.msra.mxu0 %v1179
    %4699 = vmatprep.subr.bf16.mxu0 %v1172
    %4700 = vmatpush2.bf16.msra.mxu0 %v1171
    %4701 = vmatprep.subr.bf16.mxu0 %v1164
    %4702 = vmatpush2.bf16.msra.mxu0 %v1163
    %4703 = vmatprep.subr.bf16.mxu0 %v1156
    %4704 = vmatpush2.bf16.msra.mxu0 %v1155
    %4705 = vmatprep.subr.bf16.mxu0 %v1148
    %4706 = vmatpush2.bf16.msra.mxu0 %v1147
    %4707 = vmatprep.mubr.bf16.mxu0 %v3172
    %4708 = vmatmul.mubr.bf16.gmra.mxu0 %v3158
    %v4709 = vpop.f32.mrf.mxu0
    %v4710 = vadd.f32 0.0, %v4709
    %v4711 = vpop.f32.mrf.mxu0
    %v4712 = vadd.f32 0.0, %v4711
    %v4713 = vpop.f32.mrf.mxu0
    %v4714 = vpop.f32.mrf.mxu0
    %4715 = vdwg.mxu0
    %4716 = vmatprep.subr.bf16.mxu0 %v1268
    %4717 = vmatpush1.bf16.msra.mxu0 %v1267
    %4718 = vmatprep.subr.bf16.mxu0 %v1260
    %4719 = vmatpush1.bf16.msra.mxu0 %v1259
    %4720 = vmatprep.subr.bf16.mxu0 %v1252
    %4721 = vmatpush1.bf16.msra.mxu0 %v1251
    %4722 = vmatprep.subr.bf16.mxu0 %v1244
    %4723 = vmatpush1.bf16.msra.mxu0 %v1243
    %4724 = vmatprep.subr.bf16.mxu0 %v1236
    %4725 = vmatpush1.bf16.msra.mxu0 %v1235
    %4726 = vmatprep.subr.bf16.mxu0 %v1228
    %4727 = vmatpush1.bf16.msra.mxu0 %v1227
    %4728 = vmatprep.subr.bf16.mxu0 %v1220
    %4729 = vmatpush1.bf16.msra.mxu0 %v1219
    %4730 = vmatprep.subr.bf16.mxu0 %v1212
    %4731 = vmatpush1.bf16.msra.mxu0 %v1211
    %4732 = vmatprep.subr.bf16.mxu0 %v1332
    %4733 = vmatpush2.bf16.msra.mxu0 %v1331
    %4734 = vmatprep.subr.bf16.mxu0 %v1324
    %4735 = vmatpush2.bf16.msra.mxu0 %v1323
    %4736 = vmatprep.subr.bf16.mxu0 %v1316
    %4737 = vmatpush2.bf16.msra.mxu0 %v1315
    %4738 = vmatprep.subr.bf16.mxu0 %v1308
    %4739 = vmatpush2.bf16.msra.mxu0 %v1307
    %4740 = vmatprep.subr.bf16.mxu0 %v1300
    %4741 = vmatpush2.bf16.msra.mxu0 %v1299
    %4742 = vmatprep.subr.bf16.mxu0 %v1292
    %4743 = vmatpush2.bf16.msra.mxu0 %v1291
    %4744 = vmatprep.subr.bf16.mxu0 %v1284
    %4745 = vmatpush2.bf16.msra.mxu0 %v1283
    %4746 = vmatprep.subr.bf16.mxu0 %v1276
    %4747 = vmatpush2.bf16.msra.mxu0 %v1275
    %4748 = vmatprep.mubr.bf16.mxu0 %v3182
    %4749 = vmatmul.mubr.bf16.gmra.mxu0 %v3180
    %v4750 = vpop.f32.mrf.mxu0
    %v4751 = vadd.f32 %v4710, %v4750
    %v4752 = vpop.f32.mrf.mxu0
    %v4753 = vadd.f32 %v4712, %v4752
    %v4754 = vpop.f32.mrf.mxu0
    %v4755 = vpop.f32.mrf.mxu0
    %4756 = vdwg.mxu0
    %4757 = vmatprep.subr.bf16.mxu0 %v1396
    %4758 = vmatpush1.bf16.msra.mxu0 %v1395
    %4759 = vmatprep.subr.bf16.mxu0 %v1388
    %4760 = vmatpush1.bf16.msra.mxu0 %v1387
    %4761 = vmatprep.subr.bf16.mxu0 %v1380
    %4762 = vmatpush1.bf16.msra.mxu0 %v1379
    %4763 = vmatprep.subr.bf16.mxu0 %v1372
    %4764 = vmatpush1.bf16.msra.mxu0 %v1371
    %4765 = vmatprep.subr.bf16.mxu0 %v1364
    %4766 = vmatpush1.bf16.msra.mxu0 %v1363
    %4767 = vmatprep.subr.bf16.mxu0 %v1356
    %4768 = vmatpush1.bf16.msra.mxu0 %v1355
    %4769 = vmatprep.subr.bf16.mxu0 %v1348
    %4770 = vmatpush1.bf16.msra.mxu0 %v1347
    %4771 = vmatprep.subr.bf16.mxu0 %v1340
    %4772 = vmatpush1.bf16.msra.mxu0 %v1339
    %4773 = vmatprep.subr.bf16.mxu0 %v1460
    %4774 = vmatpush2.bf16.msra.mxu0 %v1459
    %4775 = vmatprep.subr.bf16.mxu0 %v1452
    %4776 = vmatpush2.bf16.msra.mxu0 %v1451
    %4777 = vmatprep.subr.bf16.mxu0 %v1444
    %4778 = vmatpush2.bf16.msra.mxu0 %v1443
    %4779 = vmatprep.subr.bf16.mxu0 %v1436
    %4780 = vmatpush2.bf16.msra.mxu0 %v1435
    %4781 = vmatprep.subr.bf16.mxu0 %v1428
    %4782 = vmatpush2.bf16.msra.mxu0 %v1427
    %4783 = vmatprep.subr.bf16.mxu0 %v1420
    %4784 = vmatpush2.bf16.msra.mxu0 %v1419
    %4785 = vmatprep.subr.bf16.mxu0 %v1412
    %4786 = vmatpush2.bf16.msra.mxu0 %v1411
    %4787 = vmatprep.subr.bf16.mxu0 %v1404
    %4788 = vmatpush2.bf16.msra.mxu0 %v1403
    %4789 = vmatprep.mubr.bf16.mxu0 %v3179
    %4790 = vmatmul.mubr.bf16.gmra.mxu0 %v3165
    %v4791 = vpop.f32.mrf.mxu0
    %v4792 = vadd.f32 %v4751, %v4791
    %v4793 = vpop.f32.mrf.mxu0
    %v4794 = vadd.f32 %v4753, %v4793
    %v4795 = vpop.f32.mrf.mxu0
    %v4796 = vpop.f32.mrf.mxu0
    %4797 = vdwg.mxu0
    %4798 = vmatprep.subr.bf16.mxu0 %v1524
    %4799 = vmatpush1.bf16.msra.mxu0 %v1523
    %4800 = vmatprep.subr.bf16.mxu0 %v1516
    %4801 = vmatpush1.bf16.msra.mxu0 %v1515
    %4802 = vmatprep.subr.bf16.mxu0 %v1508
    %4803 = vmatpush1.bf16.msra.mxu0 %v1507
    %4804 = vmatprep.subr.bf16.mxu0 %v1500
    %4805 = vmatpush1.bf16.msra.mxu0 %v1499
    %4806 = vmatprep.subr.bf16.mxu0 %v1492
    %4807 = vmatpush1.bf16.msra.mxu0 %v1491
    %4808 = vmatprep.subr.bf16.mxu0 %v1484
    %4809 = vmatpush1.bf16.msra.mxu0 %v1483
    %4810 = vmatprep.subr.bf16.mxu0 %v1476
    %4811 = vmatpush1.bf16.msra.mxu0 %v1475
    %4812 = vmatprep.subr.bf16.mxu0 %v1468
    %4813 = vmatpush1.bf16.msra.mxu0 %v1467
    %4814 = vmatprep.subr.bf16.mxu0 %v1588
    %4815 = vmatpush2.bf16.msra.mxu0 %v1587
    %4816 = vmatprep.subr.bf16.mxu0 %v1580
    %4817 = vmatpush2.bf16.msra.mxu0 %v1579
    %4818 = vmatprep.subr.bf16.mxu0 %v1572
    %4819 = vmatpush2.bf16.msra.mxu0 %v1571
    %4820 = vmatprep.subr.bf16.mxu0 %v1564
    %4821 = vmatpush2.bf16.msra.mxu0 %v1563
    %4822 = vmatprep.subr.bf16.mxu0 %v1556
    %4823 = vmatpush2.bf16.msra.mxu0 %v1555
    %4824 = vmatprep.subr.bf16.mxu0 %v1548
    %4825 = vmatpush2.bf16.msra.mxu0 %v1547
    %4826 = vmatprep.subr.bf16.mxu0 %v1540
    %4827 = vmatpush2.bf16.msra.mxu0 %v1539
    %4828 = vmatprep.subr.bf16.mxu0 %v1532
    %4829 = vmatpush2.bf16.msra.mxu0 %v1531
    %4830 = vmatprep.mubr.bf16.mxu0 %v3183
    %4831 = vmatmul.mubr.bf16.gmra.mxu0 %v3181
    %v4832 = vpop.f32.mrf.mxu0
    %v4833 = vadd.f32 %v4792, %v4832
    %v4834 = vpop.f32.mrf.mxu0
    %v4835 = vadd.f32 %v4794, %v4834
    %v4836 = vpop.f32.mrf.mxu0
    %v4837 = vpop.f32.mrf.mxu0
    %4838 = vdwg.mxu0
    %4839 = vmatprep.subr.bf16.mxu0 %v1652
    %4840 = vmatpush1.bf16.msra.mxu0 %v1651
    %4841 = vmatprep.subr.bf16.mxu0 %v1644
    %4842 = vmatpush1.bf16.msra.mxu0 %v1643
    %4843 = vmatprep.subr.bf16.mxu0 %v1636
    %4844 = vmatpush1.bf16.msra.mxu0 %v1635
    %4845 = vmatprep.subr.bf16.mxu0 %v1628
    %4846 = vmatpush1.bf16.msra.mxu0 %v1627
    %4847 = vmatprep.subr.bf16.mxu0 %v1620
    %4848 = vmatpush1.bf16.msra.mxu0 %v1619
    %4849 = vmatprep.subr.bf16.mxu0 %v1612
    %4850 = vmatpush1.bf16.msra.mxu0 %v1611
    %4851 = vmatprep.subr.bf16.mxu0 %v1604
    %4852 = vmatpush1.bf16.msra.mxu0 %v1603
    %4853 = vmatprep.subr.bf16.mxu0 %v1596
    %4854 = vmatpush1.bf16.msra.mxu0 %v1595
    %4855 = vmatprep.subr.bf16.mxu0 %v1716
    %4856 = vmatpush2.bf16.msra.mxu0 %v1715
    %4857 = vmatprep.subr.bf16.mxu0 %v1708
    %4858 = vmatpush2.bf16.msra.mxu0 %v1707
    %4859 = vmatprep.subr.bf16.mxu0 %v1700
    %4860 = vmatpush2.bf16.msra.mxu0 %v1699
    %4861 = vmatprep.subr.bf16.mxu0 %v1692
    %4862 = vmatpush2.bf16.msra.mxu0 %v1691
    %4863 = vmatprep.subr.bf16.mxu0 %v1684
    %4864 = vmatpush2.bf16.msra.mxu0 %v1683
    %4865 = vmatprep.subr.bf16.mxu0 %v1676
    %4866 = vmatpush2.bf16.msra.mxu0 %v1675
    %4867 = vmatprep.subr.bf16.mxu0 %v1668
    %4868 = vmatpush2.bf16.msra.mxu0 %v1667
    %4869 = vmatprep.subr.bf16.mxu0 %v1660
    %4870 = vmatpush2.bf16.msra.mxu0 %v1659
    %4871 = vmatprep.mubr.bf16.mxu0 %v3221
    %4872 = vmatmul.mubr.bf16.gmra.mxu0 %v3207
    %v4873 = vpop.f32.mrf.mxu0
    %v4874 = vadd.f32 %v4833, %v4873
    %v4875 = vpop.f32.mrf.mxu0
    %v4876 = vadd.f32 %v4835, %v4875
    %v4877 = vpop.f32.mrf.mxu0
    %v4878 = vpop.f32.mrf.mxu0
    %4879 = vdwg.mxu0
    %4880 = vmatprep.subr.bf16.mxu0 %v1780
    %4881 = vmatpush1.bf16.msra.mxu0 %v1779
    %4882 = vmatprep.subr.bf16.mxu0 %v1772
    %4883 = vmatpush1.bf16.msra.mxu0 %v1771
    %4884 = vmatprep.subr.bf16.mxu0 %v1764
    %4885 = vmatpush1.bf16.msra.mxu0 %v1763
    %4886 = vmatprep.subr.bf16.mxu0 %v1756
    %4887 = vmatpush1.bf16.msra.mxu0 %v1755
    %4888 = vmatprep.subr.bf16.mxu0 %v1748
    %4889 = vmatpush1.bf16.msra.mxu0 %v1747
    %4890 = vmatprep.subr.bf16.mxu0 %v1740
    %4891 = vmatpush1.bf16.msra.mxu0 %v1739
    %4892 = vmatprep.subr.bf16.mxu0 %v1732
    %4893 = vmatpush1.bf16.msra.mxu0 %v1731
    %4894 = vmatprep.subr.bf16.mxu0 %v1724
    %4895 = vmatpush1.bf16.msra.mxu0 %v1723
    %4896 = vmatprep.subr.bf16.mxu0 %v1844
    %4897 = vmatpush2.bf16.msra.mxu0 %v1843
    %4898 = vmatprep.subr.bf16.mxu0 %v1836
    %4899 = vmatpush2.bf16.msra.mxu0 %v1835
    %4900 = vmatprep.subr.bf16.mxu0 %v1828
    %4901 = vmatpush2.bf16.msra.mxu0 %v1827
    %4902 = vmatprep.subr.bf16.mxu0 %v1820
    %4903 = vmatpush2.bf16.msra.mxu0 %v1819
    %4904 = vmatprep.subr.bf16.mxu0 %v1812
    %4905 = vmatpush2.bf16.msra.mxu0 %v1811
    %4906 = vmatprep.subr.bf16.mxu0 %v1804
    %4907 = vmatpush2.bf16.msra.mxu0 %v1803
    %4908 = vmatprep.subr.bf16.mxu0 %v1796
    %4909 = vmatpush2.bf16.msra.mxu0 %v1795
    %4910 = vmatprep.subr.bf16.mxu0 %v1788
    %4911 = vmatpush2.bf16.msra.mxu0 %v1787
    %4912 = vmatprep.mubr.bf16.mxu0 %v3231
    %4913 = vmatmul.mubr.bf16.gmra.mxu0 %v3229
    %v4914 = vpop.f32.mrf.mxu0
    %v4915 = vadd.f32 %v4874, %v4914
    %v4916 = vpop.f32.mrf.mxu0
    %v4917 = vadd.f32 %v4876, %v4916
    %v4918 = vpop.f32.mrf.mxu0
    %v4919 = vpop.f32.mrf.mxu0
    %4920 = vdwg.mxu0
    %4921 = vmatprep.subr.bf16.mxu0 %v1908
    %4922 = vmatpush1.bf16.msra.mxu0 %v1907
    %4923 = vmatprep.subr.bf16.mxu0 %v1900
    %4924 = vmatpush1.bf16.msra.mxu0 %v1899
    %4925 = vmatprep.subr.bf16.mxu0 %v1892
    %4926 = vmatpush1.bf16.msra.mxu0 %v1891
    %4927 = vmatprep.subr.bf16.mxu0 %v1884
    %4928 = vmatpush1.bf16.msra.mxu0 %v1883
    %4929 = vmatprep.subr.bf16.mxu0 %v1876
    %4930 = vmatpush1.bf16.msra.mxu0 %v1875
    %4931 = vmatprep.subr.bf16.mxu0 %v1868
    %4932 = vmatpush1.bf16.msra.mxu0 %v1867
    %4933 = vmatprep.subr.bf16.mxu0 %v1860
    %4934 = vmatpush1.bf16.msra.mxu0 %v1859
    %4935 = vmatprep.subr.bf16.mxu0 %v1852
    %4936 = vmatpush1.bf16.msra.mxu0 %v1851
    %4937 = vmatprep.subr.bf16.mxu0 %v1972
    %4938 = vmatpush2.bf16.msra.mxu0 %v1971
    %4939 = vmatprep.subr.bf16.mxu0 %v1964
    %4940 = vmatpush2.bf16.msra.mxu0 %v1963
    %4941 = vmatprep.subr.bf16.mxu0 %v1956
    %4942 = vmatpush2.bf16.msra.mxu0 %v1955
    %4943 = vmatprep.subr.bf16.mxu0 %v1948
    %4944 = vmatpush2.bf16.msra.mxu0 %v1947
    %4945 = vmatprep.subr.bf16.mxu0 %v1940
    %4946 = vmatpush2.bf16.msra.mxu0 %v1939
    %4947 = vmatprep.subr.bf16.mxu0 %v1932
    %4948 = vmatpush2.bf16.msra.mxu0 %v1931
    %4949 = vmatprep.subr.bf16.mxu0 %v1924
    %4950 = vmatpush2.bf16.msra.mxu0 %v1923
    %4951 = vmatprep.subr.bf16.mxu0 %v1916
    %4952 = vmatpush2.bf16.msra.mxu0 %v1915
    %4953 = vmatprep.mubr.bf16.mxu0 %v3228
    %4954 = vmatmul.mubr.bf16.gmra.mxu0 %v3214
    %v4955 = vpop.f32.mrf.mxu0
    %v4956 = vadd.f32 %v4915, %v4955
    %v4957 = vpop.f32.mrf.mxu0
    %v4958 = vadd.f32 %v4917, %v4957
    %v4959 = vpop.f32.mrf.mxu0
    %v4960 = vpop.f32.mrf.mxu0
    %4961 = vdwg.mxu0
    %4962 = vmatprep.subr.bf16.mxu0 %v2036
    %4963 = vmatpush1.bf16.msra.mxu0 %v2035
    %4964 = vmatprep.subr.bf16.mxu0 %v2028
    %4965 = vmatpush1.bf16.msra.mxu0 %v2027
    %4966 = vmatprep.subr.bf16.mxu0 %v2020
    %4967 = vmatpush1.bf16.msra.mxu0 %v2019
    %4968 = vmatprep.subr.bf16.mxu0 %v2012
    %4969 = vmatpush1.bf16.msra.mxu0 %v2011
    %4970 = vmatprep.subr.bf16.mxu0 %v2004
    %4971 = vmatpush1.bf16.msra.mxu0 %v2003
    %4972 = vmatprep.subr.bf16.mxu0 %v1996
    %4973 = vmatpush1.bf16.msra.mxu0 %v1995
    %4974 = vmatprep.subr.bf16.mxu0 %v1988
    %4975 = vmatpush1.bf16.msra.mxu0 %v1987
    %4976 = vmatprep.subr.bf16.mxu0 %v1980
    %4977 = vmatpush1.bf16.msra.mxu0 %v1979
    %4978 = vmatprep.subr.bf16.mxu0 %v2100
    %4979 = vmatpush2.bf16.msra.mxu0 %v2099
    %4980 = vmatprep.subr.bf16.mxu0 %v2092
    %4981 = vmatpush2.bf16.msra.mxu0 %v2091
    %4982 = vmatprep.subr.bf16.mxu0 %v2084
    %4983 = vmatpush2.bf16.msra.mxu0 %v2083
    %4984 = vmatprep.subr.bf16.mxu0 %v2076
    %4985 = vmatpush2.bf16.msra.mxu0 %v2075
    %4986 = vmatprep.subr.bf16.mxu0 %v2068
    %4987 = vmatpush2.bf16.msra.mxu0 %v2067
    %4988 = vmatprep.subr.bf16.mxu0 %v2060
    %4989 = vmatpush2.bf16.msra.mxu0 %v2059
    %4990 = vmatprep.subr.bf16.mxu0 %v2052
    %4991 = vmatpush2.bf16.msra.mxu0 %v2051
    %4992 = vmatprep.subr.bf16.mxu0 %v2044
    %4993 = vmatpush2.bf16.msra.mxu0 %v2043
    %4994 = vmatprep.mubr.bf16.mxu0 %v3232
    %4995 = vmatmul.mubr.bf16.gmra.mxu0 %v3230
    %v4996 = vpop.f32.mrf.mxu0
    %v4997 = vadd.f32 %v4956, %v4996
    %v4998 = vpop.f32.mrf.mxu0
    %v4999 = vadd.f32 %v4958, %v4998
    %v5000 = vpop.f32.mrf.mxu0
    %v5001 = vpop.f32.mrf.mxu0
    %5002 = vdwg.mxu0
    %5003 = vmatprep.subr.bf16.mxu0 %v2164
    %5004 = vmatpush1.bf16.msra.mxu0 %v2163
    %5005 = vmatprep.subr.bf16.mxu0 %v2156
    %5006 = vmatpush1.bf16.msra.mxu0 %v2155
    %5007 = vmatprep.subr.bf16.mxu0 %v2148
    %5008 = vmatpush1.bf16.msra.mxu0 %v2147
    %5009 = vmatprep.subr.bf16.mxu0 %v2140
    %5010 = vmatpush1.bf16.msra.mxu0 %v2139
    %5011 = vmatprep.subr.bf16.mxu0 %v2132
    %5012 = vmatpush1.bf16.msra.mxu0 %v2131
    %5013 = vmatprep.subr.bf16.mxu0 %v2124
    %5014 = vmatpush1.bf16.msra.mxu0 %v2123
    %5015 = vmatprep.subr.bf16.mxu0 %v2116
    %5016 = vmatpush1.bf16.msra.mxu0 %v2115
    %5017 = vmatprep.subr.bf16.mxu0 %v2108
    %5018 = vmatpush1.bf16.msra.mxu0 %v2107
    %5019 = vmatprep.subr.bf16.mxu0 %v2228
    %5020 = vmatpush2.bf16.msra.mxu0 %v2227
    %5021 = vmatprep.subr.bf16.mxu0 %v2220
    %5022 = vmatpush2.bf16.msra.mxu0 %v2219
    %5023 = vmatprep.subr.bf16.mxu0 %v2212
    %5024 = vmatpush2.bf16.msra.mxu0 %v2211
    %5025 = vmatprep.subr.bf16.mxu0 %v2204
    %5026 = vmatpush2.bf16.msra.mxu0 %v2203
    %5027 = vmatprep.subr.bf16.mxu0 %v2196
    %5028 = vmatpush2.bf16.msra.mxu0 %v2195
    %5029 = vmatprep.subr.bf16.mxu0 %v2188
    %5030 = vmatpush2.bf16.msra.mxu0 %v2187
    %5031 = vmatprep.subr.bf16.mxu0 %v2180
    %5032 = vmatpush2.bf16.msra.mxu0 %v2179
    %5033 = vmatprep.subr.bf16.mxu0 %v2172
    %5034 = vmatpush2.bf16.msra.mxu0 %v2171
    %5035 = vmatprep.mubr.bf16.mxu0 %v3270
    %5036 = vmatmul.mubr.bf16.gmra.mxu0 %v3256
    %v5037 = vpop.f32.mrf.mxu0
    %v5038 = vadd.f32 %v4997, %v5037
    %v5039 = vpop.f32.mrf.mxu0
    %v5040 = vadd.f32 %v4999, %v5039
    %v5041 = vpop.f32.mrf.mxu0
    %v5042 = vpop.f32.mrf.mxu0
    %5043 = vdwg.mxu0
    %5044 = vmatprep.subr.bf16.mxu0 %v2292
    %5045 = vmatpush1.bf16.msra.mxu0 %v2291
    %5046 = vmatprep.subr.bf16.mxu0 %v2284
    %5047 = vmatpush1.bf16.msra.mxu0 %v2283
    %5048 = vmatprep.subr.bf16.mxu0 %v2276
    %5049 = vmatpush1.bf16.msra.mxu0 %v2275
    %5050 = vmatprep.subr.bf16.mxu0 %v2268
    %5051 = vmatpush1.bf16.msra.mxu0 %v2267
    %5052 = vmatprep.subr.bf16.mxu0 %v2260
    %5053 = vmatpush1.bf16.msra.mxu0 %v2259
    %5054 = vmatprep.subr.bf16.mxu0 %v2252
    %5055 = vmatpush1.bf16.msra.mxu0 %v2251
    %5056 = vmatprep.subr.bf16.mxu0 %v2244
    %5057 = vmatpush1.bf16.msra.mxu0 %v2243
    %5058 = vmatprep.subr.bf16.mxu0 %v2236
    %5059 = vmatpush1.bf16.msra.mxu0 %v2235
    %5060 = vmatprep.subr.bf16.mxu0 %v2356
    %5061 = vmatpush2.bf16.msra.mxu0 %v2355
    %5062 = vmatprep.subr.bf16.mxu0 %v2348
    %5063 = vmatpush2.bf16.msra.mxu0 %v2347
    %5064 = vmatprep.subr.bf16.mxu0 %v2340
    %5065 = vmatpush2.bf16.msra.mxu0 %v2339
    %5066 = vmatprep.subr.bf16.mxu0 %v2332
    %5067 = vmatpush2.bf16.msra.mxu0 %v2331
    %5068 = vmatprep.subr.bf16.mxu0 %v2324
    %5069 = vmatpush2.bf16.msra.mxu0 %v2323
    %5070 = vmatprep.subr.bf16.mxu0 %v2316
    %5071 = vmatpush2.bf16.msra.mxu0 %v2315
    %5072 = vmatprep.subr.bf16.mxu0 %v2308
    %5073 = vmatpush2.bf16.msra.mxu0 %v2307
    %5074 = vmatprep.subr.bf16.mxu0 %v2300
    %5075 = vmatpush2.bf16.msra.mxu0 %v2299
    %5076 = vmatprep.mubr.bf16.mxu0 %v3280
    %5077 = vmatmul.mubr.bf16.gmra.mxu0 %v3278
    %v5078 = vpop.f32.mrf.mxu0
    %v5079 = vadd.f32 %v5038, %v5078
    %v5080 = vpop.f32.mrf.mxu0
    %v5081 = vadd.f32 %v5040, %v5080
    %v5082 = vpop.f32.mrf.mxu0
    %v5083 = vpop.f32.mrf.mxu0
    %5084 = vdwg.mxu0
    %5085 = vmatprep.subr.bf16.mxu0 %v2420
    %5086 = vmatpush1.bf16.msra.mxu0 %v2419
    %5087 = vmatprep.subr.bf16.mxu0 %v2412
    %5088 = vmatpush1.bf16.msra.mxu0 %v2411
    %5089 = vmatprep.subr.bf16.mxu0 %v2404
    %5090 = vmatpush1.bf16.msra.mxu0 %v2403
    %5091 = vmatprep.subr.bf16.mxu0 %v2396
    %5092 = vmatpush1.bf16.msra.mxu0 %v2395
    %5093 = vmatprep.subr.bf16.mxu0 %v2388
    %5094 = vmatpush1.bf16.msra.mxu0 %v2387
    %5095 = vmatprep.subr.bf16.mxu0 %v2380
    %5096 = vmatpush1.bf16.msra.mxu0 %v2379
    %5097 = vmatprep.subr.bf16.mxu0 %v2372
    %5098 = vmatpush1.bf16.msra.mxu0 %v2371
    %5099 = vmatprep.subr.bf16.mxu0 %v2364
    %5100 = vmatpush1.bf16.msra.mxu0 %v2363
    %5101 = vmatprep.subr.bf16.mxu0 %v2484
    %5102 = vmatpush2.bf16.msra.mxu0 %v2483
    %5103 = vmatprep.subr.bf16.mxu0 %v2476
    %5104 = vmatpush2.bf16.msra.mxu0 %v2475
    %5105 = vmatprep.subr.bf16.mxu0 %v2468
    %5106 = vmatpush2.bf16.msra.mxu0 %v2467
    %5107 = vmatprep.subr.bf16.mxu0 %v2460
    %5108 = vmatpush2.bf16.msra.mxu0 %v2459
    %5109 = vmatprep.subr.bf16.mxu0 %v2452
    %5110 = vmatpush2.bf16.msra.mxu0 %v2451
    %5111 = vmatprep.subr.bf16.mxu0 %v2444
    %5112 = vmatpush2.bf16.msra.mxu0 %v2443
    %5113 = vmatprep.subr.bf16.mxu0 %v2436
    %5114 = vmatpush2.bf16.msra.mxu0 %v2435
    %5115 = vmatprep.subr.bf16.mxu0 %v2428
    %5116 = vmatpush2.bf16.msra.mxu0 %v2427
    %5117 = vmatprep.mubr.bf16.mxu0 %v3277
    %5118 = vmatmul.mubr.bf16.gmra.mxu0 %v3263
    %v5119 = vpop.f32.mrf.mxu0
    %v5120 = vadd.f32 %v5079, %v5119
    %v5121 = vpop.f32.mrf.mxu0
    %v5122 = vadd.f32 %v5081, %v5121
    %v5123 = vpop.f32.mrf.mxu0
    %v5124 = vpop.f32.mrf.mxu0
    %5125 = vdwg.mxu0
    %5126 = vmatprep.subr.bf16.mxu0 %v2548
    %5127 = vmatpush1.bf16.msra.mxu0 %v2547
    %5128 = vmatprep.subr.bf16.mxu0 %v2540
    %5129 = vmatpush1.bf16.msra.mxu0 %v2539
    %5130 = vmatprep.subr.bf16.mxu0 %v2532
    %5131 = vmatpush1.bf16.msra.mxu0 %v2531
    %5132 = vmatprep.subr.bf16.mxu0 %v2524
    %5133 = vmatpush1.bf16.msra.mxu0 %v2523
    %5134 = vmatprep.subr.bf16.mxu0 %v2516
    %5135 = vmatpush1.bf16.msra.mxu0 %v2515
    %5136 = vmatprep.subr.bf16.mxu0 %v2508
    %5137 = vmatpush1.bf16.msra.mxu0 %v2507
    %5138 = vmatprep.subr.bf16.mxu0 %v2500
    %5139 = vmatpush1.bf16.msra.mxu0 %v2499
    %5140 = vmatprep.subr.bf16.mxu0 %v2492
    %5141 = vmatpush1.bf16.msra.mxu0 %v2491
    %5142 = vmatprep.subr.bf16.mxu0 %v2612
    %5143 = vmatpush2.bf16.msra.mxu0 %v2611
    %5144 = vmatprep.subr.bf16.mxu0 %v2604
    %5145 = vmatpush2.bf16.msra.mxu0 %v2603
    %5146 = vmatprep.subr.bf16.mxu0 %v2596
    %5147 = vmatpush2.bf16.msra.mxu0 %v2595
    %5148 = vmatprep.subr.bf16.mxu0 %v2588
    %5149 = vmatpush2.bf16.msra.mxu0 %v2587
    %5150 = vmatprep.subr.bf16.mxu0 %v2580
    %5151 = vmatpush2.bf16.msra.mxu0 %v2579
    %5152 = vmatprep.subr.bf16.mxu0 %v2572
    %5153 = vmatpush2.bf16.msra.mxu0 %v2571
    %5154 = vmatprep.subr.bf16.mxu0 %v2564
    %5155 = vmatpush2.bf16.msra.mxu0 %v2563
    %5156 = vmatprep.subr.bf16.mxu0 %v2556
    %5157 = vmatpush2.bf16.msra.mxu0 %v2555
    %5158 = vmatprep.mubr.bf16.mxu0 %v3281
    %5159 = vmatmul.mubr.bf16.gmra.mxu0 %v3279
    %v5160 = vpop.f32.mrf.mxu0
    %v5161 = vadd.f32 %v5120, %v5160
    %v5162 = vpop.f32.mrf.mxu0
    %v5163 = vadd.f32 %v5122, %v5162
    %v5164 = vpop.f32.mrf.mxu0
    %v5165 = vpop.f32.mrf.mxu0
    %5166 = vdwg.mxu0
    %5167 = vmatprep.subr.bf16.mxu0 %v2676
    %5168 = vmatpush1.bf16.msra.mxu0 %v2675
    %5169 = vmatprep.subr.bf16.mxu0 %v2668
    %5170 = vmatpush1.bf16.msra.mxu0 %v2667
    %5171 = vmatprep.subr.bf16.mxu0 %v2660
    %5172 = vmatpush1.bf16.msra.mxu0 %v2659
    %5173 = vmatprep.subr.bf16.mxu0 %v2652
    %5174 = vmatpush1.bf16.msra.mxu0 %v2651
    %5175 = vmatprep.subr.bf16.mxu0 %v2644
    %5176 = vmatpush1.bf16.msra.mxu0 %v2643
    %5177 = vmatprep.subr.bf16.mxu0 %v2636
    %5178 = vmatpush1.bf16.msra.mxu0 %v2635
    %5179 = vmatprep.subr.bf16.mxu0 %v2628
    %5180 = vmatpush1.bf16.msra.mxu0 %v2627
    %5181 = vmatprep.subr.bf16.mxu0 %v2620
    %5182 = vmatpush1.bf16.msra.mxu0 %v2619
    %5183 = vmatprep.subr.bf16.mxu0 %v2740
    %5184 = vmatpush2.bf16.msra.mxu0 %v2739
    %5185 = vmatprep.subr.bf16.mxu0 %v2732
    %5186 = vmatpush2.bf16.msra.mxu0 %v2731
    %5187 = vmatprep.subr.bf16.mxu0 %v2724
    %5188 = vmatpush2.bf16.msra.mxu0 %v2723
    %5189 = vmatprep.subr.bf16.mxu0 %v2716
    %5190 = vmatpush2.bf16.msra.mxu0 %v2715
    %5191 = vmatprep.subr.bf16.mxu0 %v2708
    %5192 = vmatpush2.bf16.msra.mxu0 %v2707
    %5193 = vmatprep.subr.bf16.mxu0 %v2700
    %5194 = vmatpush2.bf16.msra.mxu0 %v2699
    %5195 = vmatprep.subr.bf16.mxu0 %v2692
    %5196 = vmatpush2.bf16.msra.mxu0 %v2691
    %5197 = vmatprep.subr.bf16.mxu0 %v2684
    %5198 = vmatpush2.bf16.msra.mxu0 %v2683
    %5199 = vmatprep.mubr.bf16.mxu0 %v3319
    %5200 = vmatmul.mubr.bf16.gmra.mxu0 %v3305
    %v5201 = vpop.f32.mrf.mxu0
    %v5202 = vadd.f32 %v5161, %v5201
    %v5203 = vpop.f32.mrf.mxu0
    %v5204 = vadd.f32 %v5163, %v5203
    %v5205 = vpop.f32.mrf.mxu0
    %v5206 = vpop.f32.mrf.mxu0
    %5207 = vdwg.mxu0
    %5208 = vmatprep.subr.bf16.mxu0 %v2804
    %5209 = vmatpush1.bf16.msra.mxu0 %v2803
    %5210 = vmatprep.subr.bf16.mxu0 %v2796
    %5211 = vmatpush1.bf16.msra.mxu0 %v2795
    %5212 = vmatprep.subr.bf16.mxu0 %v2788
    %5213 = vmatpush1.bf16.msra.mxu0 %v2787
    %5214 = vmatprep.subr.bf16.mxu0 %v2780
    %5215 = vmatpush1.bf16.msra.mxu0 %v2779
    %5216 = vmatprep.subr.bf16.mxu0 %v2772
    %5217 = vmatpush1.bf16.msra.mxu0 %v2771
    %5218 = vmatprep.subr.bf16.mxu0 %v2764
    %5219 = vmatpush1.bf16.msra.mxu0 %v2763
    %5220 = vmatprep.subr.bf16.mxu0 %v2756
    %5221 = vmatpush1.bf16.msra.mxu0 %v2755
    %5222 = vmatprep.subr.bf16.mxu0 %v2748
    %5223 = vmatpush1.bf16.msra.mxu0 %v2747
    %5224 = vmatprep.subr.bf16.mxu0 %v2868
    %5225 = vmatpush2.bf16.msra.mxu0 %v2867
    %5226 = vmatprep.subr.bf16.mxu0 %v2860
    %5227 = vmatpush2.bf16.msra.mxu0 %v2859
    %5228 = vmatprep.subr.bf16.mxu0 %v2852
    %5229 = vmatpush2.bf16.msra.mxu0 %v2851
    %5230 = vmatprep.subr.bf16.mxu0 %v2844
    %5231 = vmatpush2.bf16.msra.mxu0 %v2843
    %5232 = vmatprep.subr.bf16.mxu0 %v2836
    %5233 = vmatpush2.bf16.msra.mxu0 %v2835
    %5234 = vmatprep.subr.bf16.mxu0 %v2828
    %5235 = vmatpush2.bf16.msra.mxu0 %v2827
    %5236 = vmatprep.subr.bf16.mxu0 %v2820
    %5237 = vmatpush2.bf16.msra.mxu0 %v2819
    %5238 = vmatprep.subr.bf16.mxu0 %v2812
    %5239 = vmatpush2.bf16.msra.mxu0 %v2811
    %5240 = vmatprep.mubr.bf16.mxu0 %v3329
    %5241 = vmatmul.mubr.bf16.gmra.mxu0 %v3327
    %v5242 = vpop.f32.mrf.mxu0
    %v5243 = vadd.f32 %v5202, %v5242
    %v5244 = vpop.f32.mrf.mxu0
    %v5245 = vadd.f32 %v5204, %v5244
    %v5246 = vpop.f32.mrf.mxu0
    %v5247 = vpop.f32.mrf.mxu0
    %5248 = vdwg.mxu0
    %5249 = vmatprep.subr.bf16.mxu0 %v2932
    %5250 = vmatpush1.bf16.msra.mxu0 %v2931
    %5251 = vmatprep.subr.bf16.mxu0 %v2924
    %5252 = vmatpush1.bf16.msra.mxu0 %v2923
    %5253 = vmatprep.subr.bf16.mxu0 %v2916
    %5254 = vmatpush1.bf16.msra.mxu0 %v2915
    %5255 = vmatprep.subr.bf16.mxu0 %v2908
    %5256 = vmatpush1.bf16.msra.mxu0 %v2907
    %5257 = vmatprep.subr.bf16.mxu0 %v2900
    %5258 = vmatpush1.bf16.msra.mxu0 %v2899
    %5259 = vmatprep.subr.bf16.mxu0 %v2892
    %5260 = vmatpush1.bf16.msra.mxu0 %v2891
    %5261 = vmatprep.subr.bf16.mxu0 %v2884
    %5262 = vmatpush1.bf16.msra.mxu0 %v2883
    %5263 = vmatprep.subr.bf16.mxu0 %v2876
    %5264 = vmatpush1.bf16.msra.mxu0 %v2875
    %5265 = vmatprep.subr.bf16.mxu0 %v2996
    %5266 = vmatpush2.bf16.msra.mxu0 %v2995
    %5267 = vmatprep.subr.bf16.mxu0 %v2988
    %5268 = vmatpush2.bf16.msra.mxu0 %v2987
    %5269 = vmatprep.subr.bf16.mxu0 %v2980
    %5270 = vmatpush2.bf16.msra.mxu0 %v2979
    %5271 = vmatprep.subr.bf16.mxu0 %v2972
    %5272 = vmatpush2.bf16.msra.mxu0 %v2971
    %5273 = vmatprep.subr.bf16.mxu0 %v2964
    %5274 = vmatpush2.bf16.msra.mxu0 %v2963
    %5275 = vmatprep.subr.bf16.mxu0 %v2956
    %5276 = vmatpush2.bf16.msra.mxu0 %v2955
    %5277 = vmatprep.subr.bf16.mxu0 %v2948
    %5278 = vmatpush2.bf16.msra.mxu0 %v2947
    %5279 = vmatprep.subr.bf16.mxu0 %v2940
    %5280 = vmatpush2.bf16.msra.mxu0 %v2939
    %5281 = vmatprep.mubr.bf16.mxu0 %v3326
    %5282 = vmatmul.mubr.bf16.gmra.mxu0 %v3312
    %v5283 = vpop.f32.mrf.mxu0
    %v5284 = vadd.f32 %v5243, %v5283
    %v5285 = vpop.f32.mrf.mxu0
    %v5286 = vadd.f32 %v5245, %v5285
    %v5287 = vpop.f32.mrf.mxu0
    %v5288 = vpop.f32.mrf.mxu0
    %5289 = vdwg.mxu0
    %5290 = vmatprep.subr.bf16.mxu0 %v3060
    %5291 = vmatpush1.bf16.msra.mxu0 %v3059
    %5292 = vmatprep.subr.bf16.mxu0 %v3052
    %5293 = vmatpush1.bf16.msra.mxu0 %v3051
    %5294 = vmatprep.subr.bf16.mxu0 %v3044
    %5295 = vmatpush1.bf16.msra.mxu0 %v3043
    %5296 = vmatprep.subr.bf16.mxu0 %v3036
    %5297 = vmatpush1.bf16.msra.mxu0 %v3035
    %5298 = vmatprep.subr.bf16.mxu0 %v3028
    %5299 = vmatpush1.bf16.msra.mxu0 %v3027
    %5300 = vmatprep.subr.bf16.mxu0 %v3020
    %5301 = vmatpush1.bf16.msra.mxu0 %v3019
    %5302 = vmatprep.subr.bf16.mxu0 %v3012
    %5303 = vmatpush1.bf16.msra.mxu0 %v3011
    %5304 = vmatprep.subr.bf16.mxu0 %v3004
    %5305 = vmatpush1.bf16.msra.mxu0 %v3003
    %5306 = vmatprep.subr.bf16.mxu0 %v3124
    %5307 = vmatpush2.bf16.msra.mxu0 %v3123
    %5308 = vmatprep.subr.bf16.mxu0 %v3116
    %5309 = vmatpush2.bf16.msra.mxu0 %v3115
    %5310 = vmatprep.subr.bf16.mxu0 %v3108
    %5311 = vmatpush2.bf16.msra.mxu0 %v3107
    %5312 = vmatprep.subr.bf16.mxu0 %v3100
    %5313 = vmatpush2.bf16.msra.mxu0 %v3099
    %5314 = vmatprep.subr.bf16.mxu0 %v3092
    %5315 = vmatpush2.bf16.msra.mxu0 %v3091
    %5316 = vmatprep.subr.bf16.mxu0 %v3084
    %5317 = vmatpush2.bf16.msra.mxu0 %v3083
    %5318 = vmatprep.subr.bf16.mxu0 %v3076
    %5319 = vmatpush2.bf16.msra.mxu0 %v3075
    %5320 = vmatprep.subr.bf16.mxu0 %v3068
    %5321 = vmatpush2.bf16.msra.mxu0 %v3067
    %5322 = vmatprep.mubr.bf16.mxu0 %v3330
    %5323 = vmatmul.mubr.bf16.gmra.mxu0 %v3328
    %v5324 = vpop.f32.mrf.mxu0
    %v5325 = vadd.f32 %v5284, %v5324
    %v5326 = vpop.f32.mrf.mxu0
    %v5327 = vadd.f32 %v5286, %v5326
    %v5328 = vpop.f32.mrf.mxu0
    %v5329 = vpop.f32.mrf.mxu0
    %5330 = vdwg.mxu0
    %5331 = vmatprep.subr.bf16.mxu0 %v1142
    %5332 = vmatpush1.bf16.msra.mxu0 %v1141
    %5333 = vmatprep.subr.bf16.mxu0 %v1134
    %5334 = vmatpush1.bf16.msra.mxu0 %v1133
    %5335 = vmatprep.subr.bf16.mxu0 %v1126
    %5336 = vmatpush1.bf16.msra.mxu0 %v1125
    %5337 = vmatprep.subr.bf16.mxu0 %v1118
    %5338 = vmatpush1.bf16.msra.mxu0 %v1117
    %5339 = vmatprep.subr.bf16.mxu0 %v1110
    %5340 = vmatpush1.bf16.msra.mxu0 %v1109
    %5341 = vmatprep.subr.bf16.mxu0 %v1102
    %5342 = vmatpush1.bf16.msra.mxu0 %v1101
    %5343 = vmatprep.subr.bf16.mxu0 %v1094
    %5344 = vmatpush1.bf16.msra.mxu0 %v1093
    %5345 = vmatprep.subr.bf16.mxu0 %v1086
    %5346 = vmatpush1.bf16.msra.mxu0 %v1085
    %5347 = vmatprep.subr.bf16.mxu0 %v1206
    %5348 = vmatpush2.bf16.msra.mxu0 %v1205
    %5349 = vmatprep.subr.bf16.mxu0 %v1198
    %5350 = vmatpush2.bf16.msra.mxu0 %v1197
    %5351 = vmatprep.subr.bf16.mxu0 %v1190
    %5352 = vmatpush2.bf16.msra.mxu0 %v1189
    %5353 = vmatprep.subr.bf16.mxu0 %v1182
    %5354 = vmatpush2.bf16.msra.mxu0 %v1181
    %5355 = vmatprep.subr.bf16.mxu0 %v1174
    %5356 = vmatpush2.bf16.msra.mxu0 %v1173
    %5357 = vmatprep.subr.bf16.mxu0 %v1166
    %5358 = vmatpush2.bf16.msra.mxu0 %v1165
    %5359 = vmatprep.subr.bf16.mxu0 %v1158
    %5360 = vmatpush2.bf16.msra.mxu0 %v1157
    %5361 = vmatprep.subr.bf16.mxu0 %v1150
    %5362 = vmatpush2.bf16.msra.mxu0 %v1149
    %5363 = vmatprep.mubr.bf16.mxu0 %v3172
    %5364 = vmatmul.mubr.bf16.gmra.mxu0 %v3158
    %v5365 = vpop.f32.mrf.mxu0
    %v5366 = vadd.f32 0.0, %v5365
    %v5367 = vpop.f32.mrf.mxu0
    %v5368 = vadd.f32 0.0, %v5367
    %v5369 = vpop.f32.mrf.mxu0
    %v5370 = vpop.f32.mrf.mxu0
    %5371 = vdwg.mxu0
    %5372 = vmatprep.subr.bf16.mxu0 %v1270
    %5373 = vmatpush1.bf16.msra.mxu0 %v1269
    %5374 = vmatprep.subr.bf16.mxu0 %v1262
    %5375 = vmatpush1.bf16.msra.mxu0 %v1261
    %5376 = vmatprep.subr.bf16.mxu0 %v1254
    %5377 = vmatpush1.bf16.msra.mxu0 %v1253
    %5378 = vmatprep.subr.bf16.mxu0 %v1246
    %5379 = vmatpush1.bf16.msra.mxu0 %v1245
    %5380 = vmatprep.subr.bf16.mxu0 %v1238
    %5381 = vmatpush1.bf16.msra.mxu0 %v1237
    %5382 = vmatprep.subr.bf16.mxu0 %v1230
    %5383 = vmatpush1.bf16.msra.mxu0 %v1229
    %5384 = vmatprep.subr.bf16.mxu0 %v1222
    %5385 = vmatpush1.bf16.msra.mxu0 %v1221
    %5386 = vmatprep.subr.bf16.mxu0 %v1214
    %5387 = vmatpush1.bf16.msra.mxu0 %v1213
    %5388 = vmatprep.subr.bf16.mxu0 %v1334
    %5389 = vmatpush2.bf16.msra.mxu0 %v1333
    %5390 = vmatprep.subr.bf16.mxu0 %v1326
    %5391 = vmatpush2.bf16.msra.mxu0 %v1325
    %5392 = vmatprep.subr.bf16.mxu0 %v1318
    %5393 = vmatpush2.bf16.msra.mxu0 %v1317
    %5394 = vmatprep.subr.bf16.mxu0 %v1310
    %5395 = vmatpush2.bf16.msra.mxu0 %v1309
    %5396 = vmatprep.subr.bf16.mxu0 %v1302
    %5397 = vmatpush2.bf16.msra.mxu0 %v1301
    %5398 = vmatprep.subr.bf16.mxu0 %v1294
    %5399 = vmatpush2.bf16.msra.mxu0 %v1293
    %5400 = vmatprep.subr.bf16.mxu0 %v1286
    %5401 = vmatpush2.bf16.msra.mxu0 %v1285
    %5402 = vmatprep.subr.bf16.mxu0 %v1278
    %5403 = vmatpush2.bf16.msra.mxu0 %v1277
    %5404 = vmatprep.mubr.bf16.mxu0 %v3182
    %5405 = vmatmul.mubr.bf16.gmra.mxu0 %v3180
    %v5406 = vpop.f32.mrf.mxu0
    %v5407 = vadd.f32 %v5366, %v5406
    %v5408 = vpop.f32.mrf.mxu0
    %v5409 = vadd.f32 %v5368, %v5408
    %v5410 = vpop.f32.mrf.mxu0
    %v5411 = vpop.f32.mrf.mxu0
    %5412 = vdwg.mxu0
    %5413 = vmatprep.subr.bf16.mxu0 %v1398
    %5414 = vmatpush1.bf16.msra.mxu0 %v1397
    %5415 = vmatprep.subr.bf16.mxu0 %v1390
    %5416 = vmatpush1.bf16.msra.mxu0 %v1389
    %5417 = vmatprep.subr.bf16.mxu0 %v1382
    %5418 = vmatpush1.bf16.msra.mxu0 %v1381
    %5419 = vmatprep.subr.bf16.mxu0 %v1374
    %5420 = vmatpush1.bf16.msra.mxu0 %v1373
    %5421 = vmatprep.subr.bf16.mxu0 %v1366
    %5422 = vmatpush1.bf16.msra.mxu0 %v1365
    %5423 = vmatprep.subr.bf16.mxu0 %v1358
    %5424 = vmatpush1.bf16.msra.mxu0 %v1357
    %5425 = vmatprep.subr.bf16.mxu0 %v1350
    %5426 = vmatpush1.bf16.msra.mxu0 %v1349
    %5427 = vmatprep.subr.bf16.mxu0 %v1342
    %5428 = vmatpush1.bf16.msra.mxu0 %v1341
    %5429 = vmatprep.subr.bf16.mxu0 %v1462
    %5430 = vmatpush2.bf16.msra.mxu0 %v1461
    %5431 = vmatprep.subr.bf16.mxu0 %v1454
    %5432 = vmatpush2.bf16.msra.mxu0 %v1453
    %5433 = vmatprep.subr.bf16.mxu0 %v1446
    %5434 = vmatpush2.bf16.msra.mxu0 %v1445
    %5435 = vmatprep.subr.bf16.mxu0 %v1438
    %5436 = vmatpush2.bf16.msra.mxu0 %v1437
    %5437 = vmatprep.subr.bf16.mxu0 %v1430
    %5438 = vmatpush2.bf16.msra.mxu0 %v1429
    %5439 = vmatprep.subr.bf16.mxu0 %v1422
    %5440 = vmatpush2.bf16.msra.mxu0 %v1421
    %5441 = vmatprep.subr.bf16.mxu0 %v1414
    %5442 = vmatpush2.bf16.msra.mxu0 %v1413
    %5443 = vmatprep.subr.bf16.mxu0 %v1406
    %5444 = vmatpush2.bf16.msra.mxu0 %v1405
    %5445 = vmatprep.mubr.bf16.mxu0 %v3179
    %5446 = vmatmul.mubr.bf16.gmra.mxu0 %v3165
    %v5447 = vpop.f32.mrf.mxu0
    %v5448 = vadd.f32 %v5407, %v5447
    %v5449 = vpop.f32.mrf.mxu0
    %v5450 = vadd.f32 %v5409, %v5449
    %v5451 = vpop.f32.mrf.mxu0
    %v5452 = vpop.f32.mrf.mxu0
    %5453 = vdwg.mxu0
    %5454 = vmatprep.subr.bf16.mxu0 %v1526
    %5455 = vmatpush1.bf16.msra.mxu0 %v1525
    %5456 = vmatprep.subr.bf16.mxu0 %v1518
    %5457 = vmatpush1.bf16.msra.mxu0 %v1517
    %5458 = vmatprep.subr.bf16.mxu0 %v1510
    %5459 = vmatpush1.bf16.msra.mxu0 %v1509
    %5460 = vmatprep.subr.bf16.mxu0 %v1502
    %5461 = vmatpush1.bf16.msra.mxu0 %v1501
    %5462 = vmatprep.subr.bf16.mxu0 %v1494
    %5463 = vmatpush1.bf16.msra.mxu0 %v1493
    %5464 = vmatprep.subr.bf16.mxu0 %v1486
    %5465 = vmatpush1.bf16.msra.mxu0 %v1485
    %5466 = vmatprep.subr.bf16.mxu0 %v1478
    %5467 = vmatpush1.bf16.msra.mxu0 %v1477
    %5468 = vmatprep.subr.bf16.mxu0 %v1470
    %5469 = vmatpush1.bf16.msra.mxu0 %v1469
    %5470 = vmatprep.subr.bf16.mxu0 %v1590
    %5471 = vmatpush2.bf16.msra.mxu0 %v1589
    %5472 = vmatprep.subr.bf16.mxu0 %v1582
    %5473 = vmatpush2.bf16.msra.mxu0 %v1581
    %5474 = vmatprep.subr.bf16.mxu0 %v1574
    %5475 = vmatpush2.bf16.msra.mxu0 %v1573
    %5476 = vmatprep.subr.bf16.mxu0 %v1566
    %5477 = vmatpush2.bf16.msra.mxu0 %v1565
    %5478 = vmatprep.subr.bf16.mxu0 %v1558
    %5479 = vmatpush2.bf16.msra.mxu0 %v1557
    %5480 = vmatprep.subr.bf16.mxu0 %v1550
    %5481 = vmatpush2.bf16.msra.mxu0 %v1549
    %5482 = vmatprep.subr.bf16.mxu0 %v1542
    %5483 = vmatpush2.bf16.msra.mxu0 %v1541
    %5484 = vmatprep.subr.bf16.mxu0 %v1534
    %5485 = vmatpush2.bf16.msra.mxu0 %v1533
    %5486 = vmatprep.mubr.bf16.mxu0 %v3183
    %5487 = vmatmul.mubr.bf16.gmra.mxu0 %v3181
    %v5488 = vpop.f32.mrf.mxu0
    %v5489 = vadd.f32 %v5448, %v5488
    %v5490 = vpop.f32.mrf.mxu0
    %v5491 = vadd.f32 %v5450, %v5490
    %v5492 = vpop.f32.mrf.mxu0
    %v5493 = vpop.f32.mrf.mxu0
    %5494 = vdwg.mxu0
    %5495 = vmatprep.subr.bf16.mxu0 %v1654
    %5496 = vmatpush1.bf16.msra.mxu0 %v1653
    %5497 = vmatprep.subr.bf16.mxu0 %v1646
    %5498 = vmatpush1.bf16.msra.mxu0 %v1645
    %5499 = vmatprep.subr.bf16.mxu0 %v1638
    %5500 = vmatpush1.bf16.msra.mxu0 %v1637
    %5501 = vmatprep.subr.bf16.mxu0 %v1630
    %5502 = vmatpush1.bf16.msra.mxu0 %v1629
    %5503 = vmatprep.subr.bf16.mxu0 %v1622
    %5504 = vmatpush1.bf16.msra.mxu0 %v1621
    %5505 = vmatprep.subr.bf16.mxu0 %v1614
    %5506 = vmatpush1.bf16.msra.mxu0 %v1613
    %5507 = vmatprep.subr.bf16.mxu0 %v1606
    %5508 = vmatpush1.bf16.msra.mxu0 %v1605
    %5509 = vmatprep.subr.bf16.mxu0 %v1598
    %5510 = vmatpush1.bf16.msra.mxu0 %v1597
    %5511 = vmatprep.subr.bf16.mxu0 %v1718
    %5512 = vmatpush2.bf16.msra.mxu0 %v1717
    %5513 = vmatprep.subr.bf16.mxu0 %v1710
    %5514 = vmatpush2.bf16.msra.mxu0 %v1709
    %5515 = vmatprep.subr.bf16.mxu0 %v1702
    %5516 = vmatpush2.bf16.msra.mxu0 %v1701
    %5517 = vmatprep.subr.bf16.mxu0 %v1694
    %5518 = vmatpush2.bf16.msra.mxu0 %v1693
    %5519 = vmatprep.subr.bf16.mxu0 %v1686
    %5520 = vmatpush2.bf16.msra.mxu0 %v1685
    %5521 = vmatprep.subr.bf16.mxu0 %v1678
    %5522 = vmatpush2.bf16.msra.mxu0 %v1677
    %5523 = vmatprep.subr.bf16.mxu0 %v1670
    %5524 = vmatpush2.bf16.msra.mxu0 %v1669
    %5525 = vmatprep.subr.bf16.mxu0 %v1662
    %5526 = vmatpush2.bf16.msra.mxu0 %v1661
    %5527 = vmatprep.mubr.bf16.mxu0 %v3221
    %5528 = vmatmul.mubr.bf16.gmra.mxu0 %v3207
    %v5529 = vpop.f32.mrf.mxu0
    %v5530 = vadd.f32 %v5489, %v5529
    %v5531 = vpop.f32.mrf.mxu0
    %v5532 = vadd.f32 %v5491, %v5531
    %v5533 = vpop.f32.mrf.mxu0
    %v5534 = vpop.f32.mrf.mxu0
    %5535 = vdwg.mxu0
    %5536 = vmatprep.subr.bf16.mxu0 %v1782
    %5537 = vmatpush1.bf16.msra.mxu0 %v1781
    %5538 = vmatprep.subr.bf16.mxu0 %v1774
    %5539 = vmatpush1.bf16.msra.mxu0 %v1773
    %5540 = vmatprep.subr.bf16.mxu0 %v1766
    %5541 = vmatpush1.bf16.msra.mxu0 %v1765
    %5542 = vmatprep.subr.bf16.mxu0 %v1758
    %5543 = vmatpush1.bf16.msra.mxu0 %v1757
    %5544 = vmatprep.subr.bf16.mxu0 %v1750
    %5545 = vmatpush1.bf16.msra.mxu0 %v1749
    %5546 = vmatprep.subr.bf16.mxu0 %v1742
    %5547 = vmatpush1.bf16.msra.mxu0 %v1741
    %5548 = vmatprep.subr.bf16.mxu0 %v1734
    %5549 = vmatpush1.bf16.msra.mxu0 %v1733
    %5550 = vmatprep.subr.bf16.mxu0 %v1726
    %5551 = vmatpush1.bf16.msra.mxu0 %v1725
    %5552 = vmatprep.subr.bf16.mxu0 %v1846
    %5553 = vmatpush2.bf16.msra.mxu0 %v1845
    %5554 = vmatprep.subr.bf16.mxu0 %v1838
    %5555 = vmatpush2.bf16.msra.mxu0 %v1837
    %5556 = vmatprep.subr.bf16.mxu0 %v1830
    %5557 = vmatpush2.bf16.msra.mxu0 %v1829
    %5558 = vmatprep.subr.bf16.mxu0 %v1822
    %5559 = vmatpush2.bf16.msra.mxu0 %v1821
    %5560 = vmatprep.subr.bf16.mxu0 %v1814
    %5561 = vmatpush2.bf16.msra.mxu0 %v1813
    %5562 = vmatprep.subr.bf16.mxu0 %v1806
    %5563 = vmatpush2.bf16.msra.mxu0 %v1805
    %5564 = vmatprep.subr.bf16.mxu0 %v1798
    %5565 = vmatpush2.bf16.msra.mxu0 %v1797
    %5566 = vmatprep.subr.bf16.mxu0 %v1790
    %5567 = vmatpush2.bf16.msra.mxu0 %v1789
    %5568 = vmatprep.mubr.bf16.mxu0 %v3231
    %5569 = vmatmul.mubr.bf16.gmra.mxu0 %v3229
    %v5570 = vpop.f32.mrf.mxu0
    %v5571 = vadd.f32 %v5530, %v5570
    %v5572 = vpop.f32.mrf.mxu0
    %v5573 = vadd.f32 %v5532, %v5572
    %v5574 = vpop.f32.mrf.mxu0
    %v5575 = vpop.f32.mrf.mxu0
    %5576 = vdwg.mxu0
    %5577 = vmatprep.subr.bf16.mxu0 %v1910
    %5578 = vmatpush1.bf16.msra.mxu0 %v1909
    %5579 = vmatprep.subr.bf16.mxu0 %v1902
    %5580 = vmatpush1.bf16.msra.mxu0 %v1901
    %5581 = vmatprep.subr.bf16.mxu0 %v1894
    %5582 = vmatpush1.bf16.msra.mxu0 %v1893
    %5583 = vmatprep.subr.bf16.mxu0 %v1886
    %5584 = vmatpush1.bf16.msra.mxu0 %v1885
    %5585 = vmatprep.subr.bf16.mxu0 %v1878
    %5586 = vmatpush1.bf16.msra.mxu0 %v1877
    %5587 = vmatprep.subr.bf16.mxu0 %v1870
    %5588 = vmatpush1.bf16.msra.mxu0 %v1869
    %5589 = vmatprep.subr.bf16.mxu0 %v1862
    %5590 = vmatpush1.bf16.msra.mxu0 %v1861
    %5591 = vmatprep.subr.bf16.mxu0 %v1854
    %5592 = vmatpush1.bf16.msra.mxu0 %v1853
    %5593 = vmatprep.subr.bf16.mxu0 %v1974
    %5594 = vmatpush2.bf16.msra.mxu0 %v1973
    %5595 = vmatprep.subr.bf16.mxu0 %v1966
    %5596 = vmatpush2.bf16.msra.mxu0 %v1965
    %5597 = vmatprep.subr.bf16.mxu0 %v1958
    %5598 = vmatpush2.bf16.msra.mxu0 %v1957
    %5599 = vmatprep.subr.bf16.mxu0 %v1950
    %5600 = vmatpush2.bf16.msra.mxu0 %v1949
    %5601 = vmatprep.subr.bf16.mxu0 %v1942
    %5602 = vmatpush2.bf16.msra.mxu0 %v1941
    %5603 = vmatprep.subr.bf16.mxu0 %v1934
    %5604 = vmatpush2.bf16.msra.mxu0 %v1933
    %5605 = vmatprep.subr.bf16.mxu0 %v1926
    %5606 = vmatpush2.bf16.msra.mxu0 %v1925
    %5607 = vmatprep.subr.bf16.mxu0 %v1918
    %5608 = vmatpush2.bf16.msra.mxu0 %v1917
    %5609 = vmatprep.mubr.bf16.mxu0 %v3228
    %5610 = vmatmul.mubr.bf16.gmra.mxu0 %v3214
    %v5611 = vpop.f32.mrf.mxu0
    %v5612 = vadd.f32 %v5571, %v5611
    %v5613 = vpop.f32.mrf.mxu0
    %v5614 = vadd.f32 %v5573, %v5613
    %v5615 = vpop.f32.mrf.mxu0
    %v5616 = vpop.f32.mrf.mxu0
    %5617 = vdwg.mxu0
    %5618 = vmatprep.subr.bf16.mxu0 %v2038
    %5619 = vmatpush1.bf16.msra.mxu0 %v2037
    %5620 = vmatprep.subr.bf16.mxu0 %v2030
    %5621 = vmatpush1.bf16.msra.mxu0 %v2029
    %5622 = vmatprep.subr.bf16.mxu0 %v2022
    %5623 = vmatpush1.bf16.msra.mxu0 %v2021
    %5624 = vmatprep.subr.bf16.mxu0 %v2014
    %5625 = vmatpush1.bf16.msra.mxu0 %v2013
    %5626 = vmatprep.subr.bf16.mxu0 %v2006
    %5627 = vmatpush1.bf16.msra.mxu0 %v2005
    %5628 = vmatprep.subr.bf16.mxu0 %v1998
    %5629 = vmatpush1.bf16.msra.mxu0 %v1997
    %5630 = vmatprep.subr.bf16.mxu0 %v1990
    %5631 = vmatpush1.bf16.msra.mxu0 %v1989
    %5632 = vmatprep.subr.bf16.mxu0 %v1982
    %5633 = vmatpush1.bf16.msra.mxu0 %v1981
    %5634 = vmatprep.subr.bf16.mxu0 %v2102
    %5635 = vmatpush2.bf16.msra.mxu0 %v2101
    %5636 = vmatprep.subr.bf16.mxu0 %v2094
    %5637 = vmatpush2.bf16.msra.mxu0 %v2093
    %5638 = vmatprep.subr.bf16.mxu0 %v2086
    %5639 = vmatpush2.bf16.msra.mxu0 %v2085
    %5640 = vmatprep.subr.bf16.mxu0 %v2078
    %5641 = vmatpush2.bf16.msra.mxu0 %v2077
    %5642 = vmatprep.subr.bf16.mxu0 %v2070
    %5643 = vmatpush2.bf16.msra.mxu0 %v2069
    %5644 = vmatprep.subr.bf16.mxu0 %v2062
    %5645 = vmatpush2.bf16.msra.mxu0 %v2061
    %5646 = vmatprep.subr.bf16.mxu0 %v2054
    %5647 = vmatpush2.bf16.msra.mxu0 %v2053
    %5648 = vmatprep.subr.bf16.mxu0 %v2046
    %5649 = vmatpush2.bf16.msra.mxu0 %v2045
    %5650 = vmatprep.mubr.bf16.mxu0 %v3232
    %5651 = vmatmul.mubr.bf16.gmra.mxu0 %v3230
    %v5652 = vpop.f32.mrf.mxu0
    %v5653 = vadd.f32 %v5612, %v5652
    %v5654 = vpop.f32.mrf.mxu0
    %v5655 = vadd.f32 %v5614, %v5654
    %v5656 = vpop.f32.mrf.mxu0
    %v5657 = vpop.f32.mrf.mxu0
    %5658 = vdwg.mxu0
    %5659 = vmatprep.subr.bf16.mxu0 %v2166
    %5660 = vmatpush1.bf16.msra.mxu0 %v2165
    %5661 = vmatprep.subr.bf16.mxu0 %v2158
    %5662 = vmatpush1.bf16.msra.mxu0 %v2157
    %5663 = vmatprep.subr.bf16.mxu0 %v2150
    %5664 = vmatpush1.bf16.msra.mxu0 %v2149
    %5665 = vmatprep.subr.bf16.mxu0 %v2142
    %5666 = vmatpush1.bf16.msra.mxu0 %v2141
    %5667 = vmatprep.subr.bf16.mxu0 %v2134
    %5668 = vmatpush1.bf16.msra.mxu0 %v2133
    %5669 = vmatprep.subr.bf16.mxu0 %v2126
    %5670 = vmatpush1.bf16.msra.mxu0 %v2125
    %5671 = vmatprep.subr.bf16.mxu0 %v2118
    %5672 = vmatpush1.bf16.msra.mxu0 %v2117
    %5673 = vmatprep.subr.bf16.mxu0 %v2110
    %5674 = vmatpush1.bf16.msra.mxu0 %v2109
    %5675 = vmatprep.subr.bf16.mxu0 %v2230
    %5676 = vmatpush2.bf16.msra.mxu0 %v2229
    %5677 = vmatprep.subr.bf16.mxu0 %v2222
    %5678 = vmatpush2.bf16.msra.mxu0 %v2221
    %5679 = vmatprep.subr.bf16.mxu0 %v2214
    %5680 = vmatpush2.bf16.msra.mxu0 %v2213
    %5681 = vmatprep.subr.bf16.mxu0 %v2206
    %5682 = vmatpush2.bf16.msra.mxu0 %v2205
    %5683 = vmatprep.subr.bf16.mxu0 %v2198
    %5684 = vmatpush2.bf16.msra.mxu0 %v2197
    %5685 = vmatprep.subr.bf16.mxu0 %v2190
    %5686 = vmatpush2.bf16.msra.mxu0 %v2189
    %5687 = vmatprep.subr.bf16.mxu0 %v2182
    %5688 = vmatpush2.bf16.msra.mxu0 %v2181
    %5689 = vmatprep.subr.bf16.mxu0 %v2174
    %5690 = vmatpush2.bf16.msra.mxu0 %v2173
    %5691 = vmatprep.mubr.bf16.mxu0 %v3270
    %5692 = vmatmul.mubr.bf16.gmra.mxu0 %v3256
    %v5693 = vpop.f32.mrf.mxu0
    %v5694 = vadd.f32 %v5653, %v5693
    %v5695 = vpop.f32.mrf.mxu0
    %v5696 = vadd.f32 %v5655, %v5695
    %v5697 = vpop.f32.mrf.mxu0
    %v5698 = vpop.f32.mrf.mxu0
    %5699 = vdwg.mxu0
    %5700 = vmatprep.subr.bf16.mxu0 %v2294
    %5701 = vmatpush1.bf16.msra.mxu0 %v2293
    %5702 = vmatprep.subr.bf16.mxu0 %v2286
    %5703 = vmatpush1.bf16.msra.mxu0 %v2285
    %5704 = vmatprep.subr.bf16.mxu0 %v2278
    %5705 = vmatpush1.bf16.msra.mxu0 %v2277
    %5706 = vmatprep.subr.bf16.mxu0 %v2270
    %5707 = vmatpush1.bf16.msra.mxu0 %v2269
    %5708 = vmatprep.subr.bf16.mxu0 %v2262
    %5709 = vmatpush1.bf16.msra.mxu0 %v2261
    %5710 = vmatprep.subr.bf16.mxu0 %v2254
    %5711 = vmatpush1.bf16.msra.mxu0 %v2253
    %5712 = vmatprep.subr.bf16.mxu0 %v2246
    %5713 = vmatpush1.bf16.msra.mxu0 %v2245
    %5714 = vmatprep.subr.bf16.mxu0 %v2238
    %5715 = vmatpush1.bf16.msra.mxu0 %v2237
    %5716 = vmatprep.subr.bf16.mxu0 %v2358
    %5717 = vmatpush2.bf16.msra.mxu0 %v2357
    %5718 = vmatprep.subr.bf16.mxu0 %v2350
    %5719 = vmatpush2.bf16.msra.mxu0 %v2349
    %5720 = vmatprep.subr.bf16.mxu0 %v2342
    %5721 = vmatpush2.bf16.msra.mxu0 %v2341
    %5722 = vmatprep.subr.bf16.mxu0 %v2334
    %5723 = vmatpush2.bf16.msra.mxu0 %v2333
    %5724 = vmatprep.subr.bf16.mxu0 %v2326
    %5725 = vmatpush2.bf16.msra.mxu0 %v2325
    %5726 = vmatprep.subr.bf16.mxu0 %v2318
    %5727 = vmatpush2.bf16.msra.mxu0 %v2317
    %5728 = vmatprep.subr.bf16.mxu0 %v2310
    %5729 = vmatpush2.bf16.msra.mxu0 %v2309
    %5730 = vmatprep.subr.bf16.mxu0 %v2302
    %5731 = vmatpush2.bf16.msra.mxu0 %v2301
    %5732 = vmatprep.mubr.bf16.mxu0 %v3280
    %5733 = vmatmul.mubr.bf16.gmra.mxu0 %v3278
    %v5734 = vpop.f32.mrf.mxu0
    %v5735 = vadd.f32 %v5694, %v5734
    %v5736 = vpop.f32.mrf.mxu0
    %v5737 = vadd.f32 %v5696, %v5736
    %v5738 = vpop.f32.mrf.mxu0
    %v5739 = vpop.f32.mrf.mxu0
    %5740 = vdwg.mxu0
    %5741 = vmatprep.subr.bf16.mxu0 %v2422
    %5742 = vmatpush1.bf16.msra.mxu0 %v2421
    %5743 = vmatprep.subr.bf16.mxu0 %v2414
    %5744 = vmatpush1.bf16.msra.mxu0 %v2413
    %5745 = vmatprep.subr.bf16.mxu0 %v2406
    %5746 = vmatpush1.bf16.msra.mxu0 %v2405
    %5747 = vmatprep.subr.bf16.mxu0 %v2398
    %5748 = vmatpush1.bf16.msra.mxu0 %v2397
    %5749 = vmatprep.subr.bf16.mxu0 %v2390
    %5750 = vmatpush1.bf16.msra.mxu0 %v2389
    %5751 = vmatprep.subr.bf16.mxu0 %v2382
    %5752 = vmatpush1.bf16.msra.mxu0 %v2381
    %5753 = vmatprep.subr.bf16.mxu0 %v2374
    %5754 = vmatpush1.bf16.msra.mxu0 %v2373
    %5755 = vmatprep.subr.bf16.mxu0 %v2366
    %5756 = vmatpush1.bf16.msra.mxu0 %v2365
    %5757 = vmatprep.subr.bf16.mxu0 %v2486
    %5758 = vmatpush2.bf16.msra.mxu0 %v2485
    %5759 = vmatprep.subr.bf16.mxu0 %v2478
    %5760 = vmatpush2.bf16.msra.mxu0 %v2477
    %5761 = vmatprep.subr.bf16.mxu0 %v2470
    %5762 = vmatpush2.bf16.msra.mxu0 %v2469
    %5763 = vmatprep.subr.bf16.mxu0 %v2462
    %5764 = vmatpush2.bf16.msra.mxu0 %v2461
    %5765 = vmatprep.subr.bf16.mxu0 %v2454
    %5766 = vmatpush2.bf16.msra.mxu0 %v2453
    %5767 = vmatprep.subr.bf16.mxu0 %v2446
    %5768 = vmatpush2.bf16.msra.mxu0 %v2445
    %5769 = vmatprep.subr.bf16.mxu0 %v2438
    %5770 = vmatpush2.bf16.msra.mxu0 %v2437
    %5771 = vmatprep.subr.bf16.mxu0 %v2430
    %5772 = vmatpush2.bf16.msra.mxu0 %v2429
    %5773 = vmatprep.mubr.bf16.mxu0 %v3277
    %5774 = vmatmul.mubr.bf16.gmra.mxu0 %v3263
    %v5775 = vpop.f32.mrf.mxu0
    %v5776 = vadd.f32 %v5735, %v5775
    %v5777 = vpop.f32.mrf.mxu0
    %v5778 = vadd.f32 %v5737, %v5777
    %v5779 = vpop.f32.mrf.mxu0
    %v5780 = vpop.f32.mrf.mxu0
    %5781 = vdwg.mxu0
    %5782 = vmatprep.subr.bf16.mxu0 %v2550
    %5783 = vmatpush1.bf16.msra.mxu0 %v2549
    %5784 = vmatprep.subr.bf16.mxu0 %v2542
    %5785 = vmatpush1.bf16.msra.mxu0 %v2541
    %5786 = vmatprep.subr.bf16.mxu0 %v2534
    %5787 = vmatpush1.bf16.msra.mxu0 %v2533
    %5788 = vmatprep.subr.bf16.mxu0 %v2526
    %5789 = vmatpush1.bf16.msra.mxu0 %v2525
    %5790 = vmatprep.subr.bf16.mxu0 %v2518
    %5791 = vmatpush1.bf16.msra.mxu0 %v2517
    %5792 = vmatprep.subr.bf16.mxu0 %v2510
    %5793 = vmatpush1.bf16.msra.mxu0 %v2509
    %5794 = vmatprep.subr.bf16.mxu0 %v2502
    %5795 = vmatpush1.bf16.msra.mxu0 %v2501
    %5796 = vmatprep.subr.bf16.mxu0 %v2494
    %5797 = vmatpush1.bf16.msra.mxu0 %v2493
    %5798 = vmatprep.subr.bf16.mxu0 %v2614
    %5799 = vmatpush2.bf16.msra.mxu0 %v2613
    %5800 = vmatprep.subr.bf16.mxu0 %v2606
    %5801 = vmatpush2.bf16.msra.mxu0 %v2605
    %5802 = vmatprep.subr.bf16.mxu0 %v2598
    %5803 = vmatpush2.bf16.msra.mxu0 %v2597
    %5804 = vmatprep.subr.bf16.mxu0 %v2590
    %5805 = vmatpush2.bf16.msra.mxu0 %v2589
    %5806 = vmatprep.subr.bf16.mxu0 %v2582
    %5807 = vmatpush2.bf16.msra.mxu0 %v2581
    %5808 = vmatprep.subr.bf16.mxu0 %v2574
    %5809 = vmatpush2.bf16.msra.mxu0 %v2573
    %5810 = vmatprep.subr.bf16.mxu0 %v2566
    %5811 = vmatpush2.bf16.msra.mxu0 %v2565
    %5812 = vmatprep.subr.bf16.mxu0 %v2558
    %5813 = vmatpush2.bf16.msra.mxu0 %v2557
    %5814 = vmatprep.mubr.bf16.mxu0 %v3281
    %5815 = vmatmul.mubr.bf16.gmra.mxu0 %v3279
    %v5816 = vpop.f32.mrf.mxu0
    %v5817 = vadd.f32 %v5776, %v5816
    %v5818 = vpop.f32.mrf.mxu0
    %v5819 = vadd.f32 %v5778, %v5818
    %v5820 = vpop.f32.mrf.mxu0
    %v5821 = vpop.f32.mrf.mxu0
    %5822 = vdwg.mxu0
    %5823 = vmatprep.subr.bf16.mxu0 %v2678
    %5824 = vmatpush1.bf16.msra.mxu0 %v2677
    %5825 = vmatprep.subr.bf16.mxu0 %v2670
    %5826 = vmatpush1.bf16.msra.mxu0 %v2669
    %5827 = vmatprep.subr.bf16.mxu0 %v2662
    %5828 = vmatpush1.bf16.msra.mxu0 %v2661
    %5829 = vmatprep.subr.bf16.mxu0 %v2654
    %5830 = vmatpush1.bf16.msra.mxu0 %v2653
    %5831 = vmatprep.subr.bf16.mxu0 %v2646
    %5832 = vmatpush1.bf16.msra.mxu0 %v2645
    %5833 = vmatprep.subr.bf16.mxu0 %v2638
    %5834 = vmatpush1.bf16.msra.mxu0 %v2637
    %5835 = vmatprep.subr.bf16.mxu0 %v2630
    %5836 = vmatpush1.bf16.msra.mxu0 %v2629
    %5837 = vmatprep.subr.bf16.mxu0 %v2622
    %5838 = vmatpush1.bf16.msra.mxu0 %v2621
    %5839 = vmatprep.subr.bf16.mxu0 %v2742
    %5840 = vmatpush2.bf16.msra.mxu0 %v2741
    %5841 = vmatprep.subr.bf16.mxu0 %v2734
    %5842 = vmatpush2.bf16.msra.mxu0 %v2733
    %5843 = vmatprep.subr.bf16.mxu0 %v2726
    %5844 = vmatpush2.bf16.msra.mxu0 %v2725
    %5845 = vmatprep.subr.bf16.mxu0 %v2718
    %5846 = vmatpush2.bf16.msra.mxu0 %v2717
    %5847 = vmatprep.subr.bf16.mxu0 %v2710
    %5848 = vmatpush2.bf16.msra.mxu0 %v2709
    %5849 = vmatprep.subr.bf16.mxu0 %v2702
    %5850 = vmatpush2.bf16.msra.mxu0 %v2701
    %5851 = vmatprep.subr.bf16.mxu0 %v2694
    %5852 = vmatpush2.bf16.msra.mxu0 %v2693
    %5853 = vmatprep.subr.bf16.mxu0 %v2686
    %5854 = vmatpush2.bf16.msra.mxu0 %v2685
    %5855 = vmatprep.mubr.bf16.mxu0 %v3319
    %5856 = vmatmul.mubr.bf16.gmra.mxu0 %v3305
    %v5857 = vpop.f32.mrf.mxu0
    %v5858 = vadd.f32 %v5817, %v5857
    %v5859 = vpop.f32.mrf.mxu0
    %v5860 = vadd.f32 %v5819, %v5859
    %v5861 = vpop.f32.mrf.mxu0
    %v5862 = vpop.f32.mrf.mxu0
    %5863 = vdwg.mxu0
    %5864 = vmatprep.subr.bf16.mxu0 %v2806
    %5865 = vmatpush1.bf16.msra.mxu0 %v2805
    %5866 = vmatprep.subr.bf16.mxu0 %v2798
    %5867 = vmatpush1.bf16.msra.mxu0 %v2797
    %5868 = vmatprep.subr.bf16.mxu0 %v2790
    %5869 = vmatpush1.bf16.msra.mxu0 %v2789
    %5870 = vmatprep.subr.bf16.mxu0 %v2782
    %5871 = vmatpush1.bf16.msra.mxu0 %v2781
    %5872 = vmatprep.subr.bf16.mxu0 %v2774
    %5873 = vmatpush1.bf16.msra.mxu0 %v2773
    %5874 = vmatprep.subr.bf16.mxu0 %v2766
    %5875 = vmatpush1.bf16.msra.mxu0 %v2765
    %5876 = vmatprep.subr.bf16.mxu0 %v2758
    %5877 = vmatpush1.bf16.msra.mxu0 %v2757
    %5878 = vmatprep.subr.bf16.mxu0 %v2750
    %5879 = vmatpush1.bf16.msra.mxu0 %v2749
    %5880 = vmatprep.subr.bf16.mxu0 %v2870
    %5881 = vmatpush2.bf16.msra.mxu0 %v2869
    %5882 = vmatprep.subr.bf16.mxu0 %v2862
    %5883 = vmatpush2.bf16.msra.mxu0 %v2861
    %5884 = vmatprep.subr.bf16.mxu0 %v2854
    %5885 = vmatpush2.bf16.msra.mxu0 %v2853
    %5886 = vmatprep.subr.bf16.mxu0 %v2846
    %5887 = vmatpush2.bf16.msra.mxu0 %v2845
    %5888 = vmatprep.subr.bf16.mxu0 %v2838
    %5889 = vmatpush2.bf16.msra.mxu0 %v2837
    %5890 = vmatprep.subr.bf16.mxu0 %v2830
    %5891 = vmatpush2.bf16.msra.mxu0 %v2829
    %5892 = vmatprep.subr.bf16.mxu0 %v2822
    %5893 = vmatpush2.bf16.msra.mxu0 %v2821
    %5894 = vmatprep.subr.bf16.mxu0 %v2814
    %5895 = vmatpush2.bf16.msra.mxu0 %v2813
    %5896 = vmatprep.mubr.bf16.mxu0 %v3329
    %5897 = vmatmul.mubr.bf16.gmra.mxu0 %v3327
    %v5898 = vpop.f32.mrf.mxu0
    %v5899 = vadd.f32 %v5858, %v5898
    %v5900 = vpop.f32.mrf.mxu0
    %v5901 = vadd.f32 %v5860, %v5900
    %v5902 = vpop.f32.mrf.mxu0
    %v5903 = vpop.f32.mrf.mxu0
    %5904 = vdwg.mxu0
    %5905 = vmatprep.subr.bf16.mxu0 %v2934
    %5906 = vmatpush1.bf16.msra.mxu0 %v2933
    %5907 = vmatprep.subr.bf16.mxu0 %v2926
    %5908 = vmatpush1.bf16.msra.mxu0 %v2925
    %5909 = vmatprep.subr.bf16.mxu0 %v2918
    %5910 = vmatpush1.bf16.msra.mxu0 %v2917
    %5911 = vmatprep.subr.bf16.mxu0 %v2910
    %5912 = vmatpush1.bf16.msra.mxu0 %v2909
    %5913 = vmatprep.subr.bf16.mxu0 %v2902
    %5914 = vmatpush1.bf16.msra.mxu0 %v2901
    %5915 = vmatprep.subr.bf16.mxu0 %v2894
    %5916 = vmatpush1.bf16.msra.mxu0 %v2893
    %5917 = vmatprep.subr.bf16.mxu0 %v2886
    %5918 = vmatpush1.bf16.msra.mxu0 %v2885
    %5919 = vmatprep.subr.bf16.mxu0 %v2878
    %5920 = vmatpush1.bf16.msra.mxu0 %v2877
    %5921 = vmatprep.subr.bf16.mxu0 %v2998
    %5922 = vmatpush2.bf16.msra.mxu0 %v2997
    %5923 = vmatprep.subr.bf16.mxu0 %v2990
    %5924 = vmatpush2.bf16.msra.mxu0 %v2989
    %5925 = vmatprep.subr.bf16.mxu0 %v2982
    %5926 = vmatpush2.bf16.msra.mxu0 %v2981
    %5927 = vmatprep.subr.bf16.mxu0 %v2974
    %5928 = vmatpush2.bf16.msra.mxu0 %v2973
    %5929 = vmatprep.subr.bf16.mxu0 %v2966
    %5930 = vmatpush2.bf16.msra.mxu0 %v2965
    %5931 = vmatprep.subr.bf16.mxu0 %v2958
    %5932 = vmatpush2.bf16.msra.mxu0 %v2957
    %5933 = vmatprep.subr.bf16.mxu0 %v2950
    %5934 = vmatpush2.bf16.msra.mxu0 %v2949
    %5935 = vmatprep.subr.bf16.mxu0 %v2942
    %5936 = vmatpush2.bf16.msra.mxu0 %v2941
    %5937 = vmatprep.mubr.bf16.mxu0 %v3326
    %5938 = vmatmul.mubr.bf16.gmra.mxu0 %v3312
    %v5939 = vpop.f32.mrf.mxu0
    %v5940 = vadd.f32 %v5899, %v5939
    %v5941 = vpop.f32.mrf.mxu0
    %v5942 = vadd.f32 %v5901, %v5941
    %v5943 = vpop.f32.mrf.mxu0
    %v5944 = vpop.f32.mrf.mxu0
    %5945 = vdwg.mxu0
    %5946 = vmatprep.subr.bf16.mxu0 %v3062
    %5947 = vmatpush1.bf16.msra.mxu0 %v3061
    %5948 = vmatprep.subr.bf16.mxu0 %v3054
    %5949 = vmatpush1.bf16.msra.mxu0 %v3053
    %5950 = vmatprep.subr.bf16.mxu0 %v3046
    %5951 = vmatpush1.bf16.msra.mxu0 %v3045
    %5952 = vmatprep.subr.bf16.mxu0 %v3038
    %5953 = vmatpush1.bf16.msra.mxu0 %v3037
    %5954 = vmatprep.subr.bf16.mxu0 %v3030
    %5955 = vmatpush1.bf16.msra.mxu0 %v3029
    %5956 = vmatprep.subr.bf16.mxu0 %v3022
    %5957 = vmatpush1.bf16.msra.mxu0 %v3021
    %5958 = vmatprep.subr.bf16.mxu0 %v3014
    %5959 = vmatpush1.bf16.msra.mxu0 %v3013
    %5960 = vmatprep.subr.bf16.mxu0 %v3006
    %5961 = vmatpush1.bf16.msra.mxu0 %v3005
    %5962 = vmatprep.subr.bf16.mxu0 %v3126
    %5963 = vmatpush2.bf16.msra.mxu0 %v3125
    %5964 = vmatprep.subr.bf16.mxu0 %v3118
    %5965 = vmatpush2.bf16.msra.mxu0 %v3117
    %5966 = vmatprep.subr.bf16.mxu0 %v3110
    %5967 = vmatpush2.bf16.msra.mxu0 %v3109
    %5968 = vmatprep.subr.bf16.mxu0 %v3102
    %5969 = vmatpush2.bf16.msra.mxu0 %v3101
    %5970 = vmatprep.subr.bf16.mxu0 %v3094
    %5971 = vmatpush2.bf16.msra.mxu0 %v3093
    %5972 = vmatprep.subr.bf16.mxu0 %v3086
    %5973 = vmatpush2.bf16.msra.mxu0 %v3085
    %5974 = vmatprep.subr.bf16.mxu0 %v3078
    %5975 = vmatpush2.bf16.msra.mxu0 %v3077
    %5976 = vmatprep.subr.bf16.mxu0 %v3070
    %5977 = vmatpush2.bf16.msra.mxu0 %v3069
    %5978 = vmatprep.mubr.bf16.mxu0 %v3330
    %5979 = vmatmul.mubr.bf16.gmra.mxu0 %v3328
    %v5980 = vpop.f32.mrf.mxu0
    %v5981 = vadd.f32 %v5940, %v5980
    %v5982 = vpop.f32.mrf.mxu0
    %v5983 = vadd.f32 %v5942, %v5982
    %v5984 = vpop.f32.mrf.mxu0
    %v5985 = vpop.f32.mrf.mxu0
    %5986 = vdwg.mxu0
    %v5987 = vld [vmem:[#allocation5] sm:$0xff]
    %v5989 = vlaneseq
    %v5990 = vshrl.u32 %v5989, 7
    %v5991 = vsub.s32 0, %v5990
    %v5992 = vrot.slane %v5987, %v5991
    %v5993 = vlaneseq
    %v5994 = vshrl.u32 %v5993, 7
    %v5995 = vsub.s32 1, %v5994
    %v5996 = vrot.slane %v5987, %v5995
    %v5997 = vlaneseq
    %v5998 = vshrl.u32 %v5997, 7
    %v5999 = vsub.s32 2, %v5998
    %v6000 = vrot.slane %v5987, %v5999
    %v6001 = vlaneseq
    %v6002 = vshrl.u32 %v6001, 7
    %v6003 = vsub.s32 3, %v6002
    %v6004 = vrot.slane %v5987, %v6003
    %v6005 = vlaneseq
    %v6006 = vshrl.u32 %v6005, 7
    %v6007 = vsub.s32 4, %v6006
    %v6008 = vrot.slane %v5987, %v6007
    %v6009 = vlaneseq
    %v6010 = vshrl.u32 %v6009, 7
    %v6011 = vsub.s32 5, %v6010
    %v6012 = vrot.slane %v5987, %v6011
    %v6013 = vlaneseq
    %v6014 = vshrl.u32 %v6013, 7
    %v6015 = vsub.s32 6, %v6014
    %v6016 = vrot.slane %v5987, %v6015
    %v6017 = vlaneseq
    %v6018 = vshrl.u32 %v6017, 7
    %v6019 = vsub.s32 7, %v6018
    %v6020 = vrot.slane %v5987, %v6019
    %v6029 = vmul.f32 %v4013, %v5992
    %v6030 = vmul.f32 %v4015, %v5996
    %v6031 = vmul.f32 %v4669, %v6000
    %v6032 = vmul.f32 %v4671, %v6004
    %v6033 = vmul.f32 %v5325, %v6008
    %v6034 = vmul.f32 %v5327, %v6012
    %v6035 = vmul.f32 %v5981, %v6016
    %v6036 = vmul.f32 %v5983, %v6020
    %v6037 = vld [vmem:[#allocation7] sm:$0xff]
    %v6039 = vlaneseq
    %v6040 = vshrl.u32 %v6039, 7
    %v6041 = vsub.s32 0, %v6040
    %v6042 = vrot.slane %v6037, %v6041
    %v6043 = vlaneseq
    %v6044 = vshrl.u32 %v6043, 7
    %v6045 = vsub.s32 1, %v6044
    %v6046 = vrot.slane %v6037, %v6045
    %v6047 = vlaneseq
    %v6048 = vshrl.u32 %v6047, 7
    %v6049 = vsub.s32 2, %v6048
    %v6050 = vrot.slane %v6037, %v6049
    %v6051 = vlaneseq
    %v6052 = vshrl.u32 %v6051, 7
    %v6053 = vsub.s32 3, %v6052
    %v6054 = vrot.slane %v6037, %v6053
    %v6055 = vlaneseq
    %v6056 = vshrl.u32 %v6055, 7
    %v6057 = vsub.s32 4, %v6056
    %v6058 = vrot.slane %v6037, %v6057
    %v6059 = vlaneseq
    %v6060 = vshrl.u32 %v6059, 7
    %v6061 = vsub.s32 5, %v6060
    %v6062 = vrot.slane %v6037, %v6061
    %v6063 = vlaneseq
    %v6064 = vshrl.u32 %v6063, 7
    %v6065 = vsub.s32 6, %v6064
    %v6066 = vrot.slane %v6037, %v6065
    %v6067 = vlaneseq
    %v6068 = vshrl.u32 %v6067, 7
    %v6069 = vsub.s32 7, %v6068
    %v6070 = vrot.slane %v6037, %v6069
    %v6079 = vadd.f32 %v6029, %v6042
    %v6080 = vadd.f32 %v6030, %v6046
    %v6081 = vadd.f32 %v6031, %v6050
    %v6082 = vadd.f32 %v6032, %v6054
    %v6083 = vadd.f32 %v6033, %v6058
    %v6084 = vadd.f32 %v6034, %v6062
    %v6085 = vadd.f32 %v6035, %v6066
    %v6086 = vadd.f32 %v6036, %v6070
    %v6087 = vtanh.pop %v6079
    %v6088 = vtanh.pop %v6080
    %v6089 = vtanh.pop %v6081
    %v6090 = vtanh.pop %v6082
    %v6091 = vtanh.pop %v6083
    %v6092 = vtanh.pop %v6084
    %v6093 = vtanh.pop %v6085
    %v6094 = vtanh.pop %v6086
    %v6103 = vcombine.low %v6087, %v6088
    %v6104 = vcombine.low %v6089, %v6090
    %v6106 = vunpack.c.l.s4 1983009808
    %v6107 = vunpack.c.0.s8 %v6106
    %v6108 = vlaneseq
    %v6109 = vshrl.u32 %v6108, 7
    %v6110 = vsub.s32 %v6107, %v6109
    %v6111 = vrot.slane %v6103, %v6110
    %v6113 = vunpack.c.l.s4 1983009808
    %v6114 = vunpack.c.0.s8 %v6113
    %v6115 = vlaneseq
    %v6116 = vshrl.u32 %v6115, 7
    %v6117 = vsub.s32 %v6114, %v6116
    %v6118 = vrot.slane %v6104, %v6117
    %v6119 = vcombine.low %v6111, %v6118
    %v6120 = vcombine.low %v6091, %v6092
    %v6121 = vcombine.low %v6093, %v6094
    %v6123 = vunpack.c.l.s4 1983009808
    %v6124 = vunpack.c.0.s8 %v6123
    %v6125 = vlaneseq
    %v6126 = vshrl.u32 %v6125, 7
    %v6127 = vsub.s32 %v6124, %v6126
    %v6128 = vrot.slane %v6120, %v6127
    %v6130 = vunpack.c.l.s4 1983009808
    %v6131 = vunpack.c.0.s8 %v6130
    %v6132 = vlaneseq
    %v6133 = vshrl.u32 %v6132, 7
    %v6134 = vsub.s32 %v6131, %v6133
    %v6135 = vrot.slane %v6121, %v6134
    %v6136 = vcombine.low %v6128, %v6135
    %6139 = vst [vmem:[#allocation8] sm:$0xff] %v6119
    %6140 = vst [vmem:[#allocation8 + $0x8] sm:$0xff] %v6136
    // Predicated region
    $region30: #{image_embedding_forward.1} parent=1 // pred_check
      _
    $region31: #{image_embedding_forward.1} parent=1 // pred_check_branch
      %6142 = sbr.rel (0) target = $region33
    $region32: #{image_embedding_forward.1} parent=1 // pred_region
      %s6144 = ssub.s32 256, 256
      %6145 = vsyncadd [#allocation4], %s6144
      %s6147 = sshll.u32 [#allocation8], 4
      %s6148 = int_to_ptr.vmem [resolvable:$true] %s6147
      %6150 = dma.vmem_to_hbm [thread:$0]  %s6148, 256, %s4, [#allocation4]
    $region33: #{image_embedding_forward.1} parent=1 // pred_fallthru
      _
    // Predicated region
    $region34: #{image_embedding_forward.1} parent=1 // pred_check
      _
    $region35: #{image_embedding_forward.1} parent=1 // pred_check_branch
      %6152 = sbr.rel (0) target = $region37
    $region36: #{image_embedding_forward.1} parent=1 // pred_region
      %6153 = dma.done [#allocation4], 256
    $region37: #{image_embedding_forward.1} parent=1 // pred_fallthru
      _
    %6154 = vsyncpa [#allocation3], 1
    %6155 = vsyncpa [#allocation6], 1
    %6156 = vsyncpa [#allocation4], 1

</llo_original>
